<compile_context>
chip_gen: v7x
topology: tpu7x:2x2x1
jax: 0.10.0
libtpu: 0.0.40
codegen_flags: <defaults>
</compile_context>

<pallas_src>
import functools
import math

import jax
import jax.numpy as jnp
from jax.experimental import pallas as pl
from jax.experimental.pallas import tpu as pltpu


# --------------------------------------------------------------------------
# Fused BasicBlock kernel (one image per grid step)
# --------------------------------------------------------------------------
def _basic_block_kernel(*refs, stride, oh, ow, cin, c1, has_ds):
    """Refs (in order):
         x_ref   stride=1: (1, H, W, Cin) f32
                 stride=2: (1, Hq, 2, Wq, 2*Cin) bf16 (padded, col-phase merged)
         w1_ref  (K1, C1) bf16   conv1 weights, BN1 scale folded, taps along K
         b1_ref  (1,  C1) f32    folded BN1 shift
         w2_ref  (9*C1, C1) bf16 conv2 weights, BN2 scale folded
         b2_ref  (1,  C1) f32
        [wd_ref  (Kd, C1) bf16   downsample 1x1 weights, BN scale folded]
        [bd_ref  (1,  C1) f32]
         o_ref   (1, OH, OW, C1) f32
       Scratch: [xpad (H+2, W+2, Cin) f32  (stride=1 only)],
                 y1pad (OH+2, OW+2, C1) f32
    """
    if has_ds:
        (x_ref, w1_ref, b1_ref, w2_ref, b2_ref, wd_ref, bd_ref, o_ref,
         *scratch) = refs
    else:
        x_ref, w1_ref, b1_ref, w2_ref, b2_ref, o_ref, *scratch = refs
        wd_ref = bd_ref = None
    if stride == 1:
        xpad_ref, y1pad_ref = scratch
    else:
        (y1pad_ref,) = scratch
    m = oh * ow

    # ---- conv1 + bn1 + relu (single K-concatenated MXU matmul) ------------
    if stride == 1:
        # 1-pixel halo built in VMEM — no wrapper-side HBM pad / cast.
        xpad_ref[...] = jnp.zeros(xpad_ref.shape, xpad_ref.dtype)
        xpad_ref[pl.ds(1, oh), pl.ds(1, ow), :] = x_ref[0]
        taps = [xpad_ref[pl.ds(ki, oh), pl.ds(kj, ow), :]
                .astype(jnp.bfloat16).reshape(m, cin)
                for ki in range(3) for kj in range(3)]
    else:
        # stride == 2: column phase is merged into the lane dim, so every tap
        # window is a contiguous, full-lane read.  wq offset 0 carries column
        # taps kj=0,1; offset 1 carries kj=2 (its unused half is zero-weighted).
        taps = []
        for ki in range(3):
            r0, pr = ki // 2, ki % 2
            for c0 in range(2):
                win = x_ref[0, pl.ds(r0, oh), pr, pl.ds(c0, ow), :]
                taps.append(win.reshape(m, 2 * cin))
    lhs1 = jnp.concatenate(taps, axis=-1)                         # (M, K1) bf16
    y1 = jnp.dot(lhs1, w1_ref[...], preferred_element_type=jnp.float32)
    y1 = jnp.maximum(y1 + b1_ref[...], 0.0)                       # (M, C1) f32

    # ---- residual (identity or in-kernel 1x1 downsample + bn) -------------
    if has_ds:
        if stride == 1:
            xd = x_ref[0].astype(jnp.bfloat16).reshape(m, cin)
        else:
            # row phase 1, full lanes; zero rows in wd pick the odd col phase,
            # i.e. original x[2i, 2j, :].
            xd = x_ref[0, pl.ds(0, oh), 1, pl.ds(0, ow), :].reshape(m, 2 * cin)
        res = jnp.dot(xd, wd_ref[...], preferred_element_type=jnp.float32)
        res = res + bd_ref[...]
    else:
        res = x_ref[0].reshape(m, c1)                             # identity, f32

    # ---- conv2 + bn2 + residual + relu -------------------------------------
    y1pad_ref[...] = jnp.zeros(y1pad_ref.shape, y1pad_ref.dtype)
    y1pad_ref[pl.ds(1, oh), pl.ds(1, ow), :] = y1.reshape(oh, ow, c1)
    taps2 = [y1pad_ref[pl.ds(ki, oh), pl.ds(kj, ow), :]
             .astype(jnp.bfloat16).reshape(m, c1)
             for ki in range(3) for kj in range(3)]
    lhs2 = jnp.concatenate(taps2, axis=-1)                        # (M, 9*C1) bf16
    y2 = jnp.dot(lhs2, w2_ref[...], preferred_element_type=jnp.float32)
    y2 = jnp.maximum(y2 + b2_ref[...] + res, 0.0)
    o_ref[0] = y2.reshape(oh, ow, c1).astype(o_ref.dtype)


# --------------------------------------------------------------------------
# Wrapper glue
# --------------------------------------------------------------------------
def _prep_stride2_input(x):
    """(N,H,W,C) f32 -> padded bf16, column-phase merged (N, Hq, 2, Wq, 2*C).
    Element (n, hq, pr, wq, pc*C + c) == padded_x[n, 2*hq + pr, 2*wq + pc, c].
    The reshape is a free row-major bitcast; only pad+cast touches HBM once."""
    n, h, w, c = x.shape
    hp, wp = h + 2, w + 2
    eh, ew = hp % 2, wp % 2
    xb = jnp.pad(x.astype(jnp.bfloat16),
                 ((0, 0), (1, 1 + eh), (1, 1 + ew), (0, 0)))
    hq, wq = (hp + eh) // 2, (wp + ew) // 2
    return xb.reshape(n, hq, 2, wq, 2 * c), hq, wq


def _fold_w1_stride2(w1):
    """(3,3,Cin,C1) -> (12*Cin, C1): per row-tap [w(ki,0); w(ki,1); w(ki,2); 0]
    so the kernel reads full-lane (2*Cin) windows with no lane slicing."""
    kh, kw, cin, c1 = w1.shape
    zero = jnp.zeros((cin, c1), w1.dtype)
    blocks = []
    for ki in range(kh):
        blocks += [w1[ki, 0], w1[ki, 1], w1[ki, 2], zero]
    return jnp.concatenate(blocks, axis=0)


def basic_block_nhwc(x, blk):
    """x: (N, H, W, Cin) f32.  Returns (N, OH, OW, C1) f32."""
    n, h, w, cin = x.shape
    stride = int(blk["stride"])
    assert stride in (1, 2), "ResNet BasicBlock uses stride 1 or 2"
    c1 = blk["w1"].shape[-1]
    oh = (h + 2 - 3) // stride + 1
    ow = (w + 2 - 3) // stride + 1
    has_ds = blk["wds"] is not None

    b1 = blk["b1"].reshape(1, c1).astype(jnp.float32)
    b2 = blk["b2"].reshape(1, c1).astype(jnp.float32)
    w2 = blk["w2"].reshape(9 * c1, c1).astype(jnp.bfloat16)

    if stride == 1:
        x_in = x                                     # raw f32, cast in-kernel
        x_spec = pl.BlockSpec((1, h, w, cin), lambda i: (i, 0, 0, 0))
        w1 = blk["w1"].reshape(9 * cin, c1).astype(jnp.bfloat16)
        scratch = [pltpu.VMEM((h + 2, w + 2, cin), jnp.float32),
                   pltpu.VMEM((oh + 2, ow + 2, c1), jnp.float32)]
    else:
        x_in, hq, wq = _prep_stride2_input(x)
        x_spec = pl.BlockSpec((1, hq, 2, wq, 2 * cin),
                              lambda i: (i, 0, 0, 0, 0))
        w1 = _fold_w1_stride2(blk["w1"]).astype(jnp.bfloat16)
        scratch = [pltpu.VMEM((oh + 2, ow + 2, c1), jnp.float32)]

    in_specs = [x_spec,
                pl.BlockSpec(w1.shape, lambda i: (0, 0)),
                pl.BlockSpec((1, c1), lambda i: (0, 0)),
                pl.BlockSpec(w2.shape, lambda i: (0, 0)),
                pl.BlockSpec((1, c1), lambda i: (0, 0))]
    args = [x_in, w1, b1, w2, b2]
    if has_ds:
        wd = blk["wds"].reshape(cin, c1)
        if stride == 2:     # zero rows select the odd column phase in-kernel
            wd = jnp.concatenate([jnp.zeros((cin, c1), wd.dtype), wd], axis=0)
        wd = wd.astype(jnp.bfloat16)
        bd = blk["bds"].reshape(1, c1).astype(jnp.float32)
        in_specs += [pl.BlockSpec(wd.shape, lambda i: (0, 0)),
                     pl.BlockSpec((1, c1), lambda i: (0, 0))]
        args += [wd, bd]

    kern = functools.partial(_basic_block_kernel, stride=stride, oh=oh, ow=ow,
                             cin=cin, c1=c1, has_ds=has_ds)
    k_ds = args[5].shape[0] if has_ds else 0
    flops = 2 * n * oh * ow * c1 * (w1.shape[0] + 9 * c1 + k_ds)
    bytes_accessed = (x_in.size * x_in.dtype.itemsize
                      + sum(a.size * a.dtype.itemsize for a in args[1:])
                      + n * oh * ow * c1 * 4)

    return pl.pallas_call(
        kern,
        out_shape=jax.ShapeDtypeStruct((n, oh, ow, c1), jnp.float32),
        grid=(n,),
        in_specs=in_specs,
        out_specs=pl.BlockSpec((1, oh, ow, c1), lambda i: (i, 0, 0, 0)),
        scratch_shapes=scratch,
        compiler_params=pltpu.CompilerParams(
            dimension_semantics=("parallel",),       # feeds both v7x TCs
            vmem_limit_bytes=32 * 1024 * 1024),
        cost_estimate=pl.CostEstimate(flops=flops, transcendentals=0,
                                      bytes_accessed=bytes_accessed),
    )(*args)


def basic_block_forward(x_nchw, blk):
    """PyTorch-layout entry point: NCHW in, NCHW out.
    (In a full network these transposes would be done once, not per block.)"""
    x = jnp.transpose(x_nchw, (0, 2, 3, 1)).astype(jnp.float32)
    y = basic_block_nhwc(x, blk)
    return jnp.transpose(y, (0, 3, 1, 2))


# --------------------------------------------------------------------------
# Parameters (deterministic; BN scale folded into weights at prep time)
# --------------------------------------------------------------------------
def _kaiming(key, kh, kw, cin, cout):
    std = math.sqrt(2.0 / (cout * kh * kw))          # kaiming_normal_, fan_out
    return jax.random.normal(key, (kh, kw, cin, cout), jnp.float32) * std


def _bn_fold(c, eps=1e-5):
    gamma = jnp.ones((c,), jnp.float32)
    beta = jnp.zeros((c,), jnp.float32)
    running_mean = jnp.zeros((c,), jnp.float32)
    running_var = jnp.ones((c,), jnp.float32)
    scale = gamma / jnp.sqrt(running_var + eps)
    shift = beta - running_mean * scale
    return scale, shift


def init_basic_block(key, inplanes, planes, stride):
    k1, k2, k3 = jax.random.split(key, 3)
    s1, b1 = _bn_fold(planes)
    s2, b2 = _bn_fold(planes)
    blk = {
        "stride": stride,
        "w1": _kaiming(k1, 3, 3, inplanes, planes) * s1,   # bn1 scale folded
        "b1": b1,
        "w2": _kaiming(k2, 3, 3, planes, planes) * s2,     # bn2 scale folded
        "b2": b2,
        "wds": None, "bds": None,
    }
    if stride != 1 or inplanes != planes:                  # expansion == 1
        sd, bd = _bn_fold(planes)
        blk["wds"] = _kaiming(k3, 1, 1, inplanes, planes) * sd
        blk["bds"] = bd
    return blk


# --------------------------------------------------------------------------
# Plain-JAX f32 reference (for correctness check only)
# --------------------------------------------------------------------------
def _conv_ref(x, w, shift, stride, pad, relu, residual=None):
    y = jax.lax.conv_general_dilated(
        x, w, window_strides=(stride, stride),
        padding=((pad, pad), (pad, pad)),
        dimension_numbers=("NHWC", "HWIO", "NHWC"))
    y = y + shift.reshape(1, 1, 1, -1)
    if residual is not None:
        y = y + residual
    return jnp.maximum(y, 0.0) if relu else y


def basic_block_ref(x_nchw, blk):
    x = jnp.transpose(x_nchw, (0, 2, 3, 1)).astype(jnp.float32)
    identity = x
    out = _conv_ref(x, blk["w1"], blk["b1"], blk["stride"], 1, True)
    if blk["wds"] is not None:
        identity = _conv_ref(x, blk["wds"], blk["bds"], blk["stride"], 0, False)
    out = _conv_ref(out, blk["w2"], blk["b2"], 1, 1, True, residual=identity)
    return jnp.transpose(out, (0, 3, 1, 2))


if __name__ == "__main__":
    key = jax.random.PRNGKey(0)
    kp, kx = jax.random.split(key)

    # Small shapes consistent with a ResNet interior stage:
    # batch=2, 64 input channels, 16x16 spatial (NCHW, PyTorch layout).
    x = jax.random.normal(kx, (2, 64, 16, 16), jnp.float32)

    # (a) identity block: 64 -> 64, stride 1, no downsample
    blk_id = init_basic_block(jax.random.fold_in(kp, 0), 64, 64, 1)
    # (b) downsampling block: 64 -> 128, stride 2, 1x1-conv+BN downsample
    blk_ds = init_basic_block(jax.random.fold_in(kp, 1), 64, 128, 2)

    fwd = jax.jit(lambda inp: (basic_block_forward(inp, blk_id),
                               basic_block_forward(inp, blk_ds)))
    y_id, y_ds = fwd(x)
    jax.block_until_ready((y_id, y_ds))

    assert y_id.shape == (2, 64, 16, 16), y_id.shape
    assert y_ds.shape == (2, 128, 8, 8), y_ds.shape
    assert bool(jnp.all(jnp.isfinite(y_id))) and bool(jnp.all(jnp.isfinite(y_ds)))

    # Compare against the plain-JAX f32 reference (kernel uses bf16 operands).
    r_id = basic_block_ref(x, blk_id)
    r_ds = basic_block_ref(x, blk_ds)
    err = max(float(jnp.max(jnp.abs(y_id - r_id))),
              float(jnp.max(jnp.abs(y_ds - r_ds))))
    assert err < 0.2, err
    print("KERNEL_OK")
</pallas_src>

<mosaic_0001>
module attributes {stable_mosaic.version = 11 : i64} {
  func.func @_basic_block_kernel(%arg0: i32, %arg1: memref<1x16x16x64xf32, #tpu.memory_space<vmem>>, %arg2: memref<576x64xbf16, #tpu.memory_space<vmem>>, %arg3: memref<1x64xf32, #tpu.memory_space<vmem>>, %arg4: memref<576x64xbf16, #tpu.memory_space<vmem>>, %arg5: memref<1x64xf32, #tpu.memory_space<vmem>>, %arg6: memref<1x16x16x64xf32, #tpu.memory_space<vmem>>, %arg7: memref<18x18x64xf32, #tpu.memory_space<vmem>>, %arg8: memref<18x18x64xf32, #tpu.memory_space<vmem>>) attributes {dimension_semantics = [#tpu.dimension_semantics<parallel>], iteration_bounds = array<i64: 2>, scalar_prefetch = 0 : i64, scratch_operands = 2 : i64, tpu.core_type = #tpu.core_type<tc>, window_params = [{transform_indices = @transform_0, window_bounds = array<i64: 1, 16, 16, 64>}, {pipeline_mode = #tpu.pipeline_mode<synchronous>, transform_indices = @transform_1, window_bounds = array<i64: 576, 64>}, {pipeline_mode = #tpu.pipeline_mode<synchronous>, transform_indices = @transform_2, window_bounds = array<i64: 1, 64>}, {pipeline_mode = #tpu.pipeline_mode<synchronous>, transform_indices = @transform_3, window_bounds = array<i64: 576, 64>}, {pipeline_mode = #tpu.pipeline_mode<synchronous>, transform_indices = @transform_4, window_bounds = array<i64: 1, 64>}, {transform_indices = @transform_5, window_bounds = array<i64: 1, 16, 16, 64>}]} {
    %cst = arith.constant 0.000000e+00 : f32
    %0 = vector.broadcast %cst : f32 to vector<18x18x64xf32>
    %c0 = arith.constant 0 : index
    %c0_0 = arith.constant 0 : index
    %c0_1 = arith.constant 0 : index
    %1 = vector.load %arg7[%c0, %c0_0, %c0_1] : memref<18x18x64xf32, #tpu.memory_space<vmem>>, vector<18x18x64xf32>
    tpu.vector_store %arg7[%c0, %c0_0, %c0_1], %0 {strides = array<i32>} : memref<18x18x64xf32, #tpu.memory_space<vmem>>, vector<18x18x64xf32>,
    %c0_2 = arith.constant 0 : index
    %c0_3 = arith.constant 0 : index
    %c0_4 = arith.constant 0 : index
    %c0_5 = arith.constant 0 : index
    %2 = vector.load %arg1[%c0_2, %c0_3, %c0_4, %c0_5] : memref<1x16x16x64xf32, #tpu.memory_space<vmem>>, vector<1x16x16x64xf32>
    %3 = vector.shape_cast %2 : vector<1x16x16x64xf32> to vector<16x16x64xf32>
    %c1 = arith.constant 1 : index
    %c1_6 = arith.constant 1 : index
    %c0_7 = arith.constant 0 : index
    %4 = vector.load %arg7[%c1, %c1_6, %c0_7] : memref<18x18x64xf32, #tpu.memory_space<vmem>>, vector<16x16x64xf32>
    tpu.vector_store %arg7[%c1, %c1_6, %c0_7], %3 {strides = array<i32>} : memref<18x18x64xf32, #tpu.memory_space<vmem>>, vector<16x16x64xf32>,
    %c0_8 = arith.constant 0 : index
    %c0_9 = arith.constant 0 : index
    %c0_10 = arith.constant 0 : index
    %5 = vector.load %arg7[%c0_8, %c0_9, %c0_10] : memref<18x18x64xf32, #tpu.memory_space<vmem>>, vector<16x16x64xf32>
    %6 = arith.truncf %5 : vector<16x16x64xf32> to vector<16x16x64xbf16>
    %7 = vector.shape_cast %6 : vector<16x16x64xbf16> to vector<256x64xbf16>
    %c0_11 = arith.constant 0 : index
    %c1_12 = arith.constant 1 : index
    %c0_13 = arith.constant 0 : index
    %8 = vector.load %arg7[%c0_11, %c1_12, %c0_13] : memref<18x18x64xf32, #tpu.memory_space<vmem>>, vector<16x16x64xf32>
    %9 = arith.truncf %8 : vector<16x16x64xf32> to vector<16x16x64xbf16>
    %10 = vector.shape_cast %9 : vector<16x16x64xbf16> to vector<256x64xbf16>
    %c0_14 = arith.constant 0 : index
    %c2 = arith.constant 2 : index
    %c0_15 = arith.constant 0 : index
    %11 = vector.load %arg7[%c0_14, %c2, %c0_15] : memref<18x18x64xf32, #tpu.memory_space<vmem>>, vector<16x16x64xf32>
    %12 = arith.truncf %11 : vector<16x16x64xf32> to vector<16x16x64xbf16>
    %13 = vector.shape_cast %12 : vector<16x16x64xbf16> to vector<256x64xbf16>
    %c1_16 = arith.constant 1 : index
    %c0_17 = arith.constant 0 : index
    %c0_18 = arith.constant 0 : index
    %14 = vector.load %arg7[%c1_16, %c0_17, %c0_18] : memref<18x18x64xf32, #tpu.memory_space<vmem>>, vector<16x16x64xf32>
    %15 = arith.truncf %14 : vector<16x16x64xf32> to vector<16x16x64xbf16>
    %16 = vector.shape_cast %15 : vector<16x16x64xbf16> to vector<256x64xbf16>
    %c1_19 = arith.constant 1 : index
    %c1_20 = arith.constant 1 : index
    %c0_21 = arith.constant 0 : index
    %17 = vector.load %arg7[%c1_19, %c1_20, %c0_21] : memref<18x18x64xf32, #tpu.memory_space<vmem>>, vector<16x16x64xf32>
    %18 = arith.truncf %17 : vector<16x16x64xf32> to vector<16x16x64xbf16>
    %19 = vector.shape_cast %18 : vector<16x16x64xbf16> to vector<256x64xbf16>
    %c1_22 = arith.constant 1 : index
    %c2_23 = arith.constant 2 : index
    %c0_24 = arith.constant 0 : index
    %20 = vector.load %arg7[%c1_22, %c2_23, %c0_24] : memref<18x18x64xf32, #tpu.memory_space<vmem>>, vector<16x16x64xf32>
    %21 = arith.truncf %20 : vector<16x16x64xf32> to vector<16x16x64xbf16>
    %22 = vector.shape_cast %21 : vector<16x16x64xbf16> to vector<256x64xbf16>
    %c2_25 = arith.constant 2 : index
    %c0_26 = arith.constant 0 : index
    %c0_27 = arith.constant 0 : index
    %23 = vector.load %arg7[%c2_25, %c0_26, %c0_27] : memref<18x18x64xf32, #tpu.memory_space<vmem>>, vector<16x16x64xf32>
    %24 = arith.truncf %23 : vector<16x16x64xf32> to vector<16x16x64xbf16>
    %25 = vector.shape_cast %24 : vector<16x16x64xbf16> to vector<256x64xbf16>
    %c2_28 = arith.constant 2 : index
    %c1_29 = arith.constant 1 : index
    %c0_30 = arith.constant 0 : index
    %26 = vector.load %arg7[%c2_28, %c1_29, %c0_30] : memref<18x18x64xf32, #tpu.memory_space<vmem>>, vector<16x16x64xf32>
    %27 = arith.truncf %26 : vector<16x16x64xf32> to vector<16x16x64xbf16>
    %28 = vector.shape_cast %27 : vector<16x16x64xbf16> to vector<256x64xbf16>
    %c2_31 = arith.constant 2 : index
    %c2_32 = arith.constant 2 : index
    %c0_33 = arith.constant 0 : index
    %29 = vector.load %arg7[%c2_31, %c2_32, %c0_33] : memref<18x18x64xf32, #tpu.memory_space<vmem>>, vector<16x16x64xf32>
    %30 = arith.truncf %29 : vector<16x16x64xf32> to vector<16x16x64xbf16>
    %31 = vector.shape_cast %30 : vector<16x16x64xbf16> to vector<256x64xbf16>
    %32 = tpu.concatenate %7, %10, %13, %16, %19, %22, %25, %28, %31 in 1 : vector<256x64xbf16>, vector<256x64xbf16>, vector<256x64xbf16>, vector<256x64xbf16>, vector<256x64xbf16>, vector<256x64xbf16>, vector<256x64xbf16>, vector<256x64xbf16>, vector<256x64xbf16> -> vector<256x576xbf16>
    %c0_34 = arith.constant 0 : index
    %c0_35 = arith.constant 0 : index
    %33 = vector.load %arg2[%c0_34, %c0_35] : memref<576x64xbf16, #tpu.memory_space<vmem>>, vector<576x64xbf16>
    %cst_36 = arith.constant dense<0.000000e+00> : vector<256x64xf32>
    %34 = tpu.matmul %32, %33, %cst_36 {dimension_numbers = #tpu.dot_dimension_numbers<[1], [0], [0], [1], [0, 0, 1, 1], [], []>} : vector<256x576xbf16>, vector<576x64xbf16>, vector<256x64xf32> -> vector<256x64xf32>
    %c0_37 = arith.constant 0 : index
    %c0_38 = arith.constant 0 : index
    %35 = vector.load %arg3[%c0_37, %c0_38] : memref<1x64xf32, #tpu.memory_space<vmem>>, vector<1x64xf32>
    %36 = vector.broadcast %35 : vector<1x64xf32> to vector<256x64xf32>
    %37 = arith.addf %34, %36 : vector<256x64xf32>
    %cst_39 = arith.constant 0.000000e+00 : f32
    %38 = vector.broadcast %cst_39 : f32 to vector<256x64xf32>
    %39 = arith.maximumf %37, %38 : vector<256x64xf32>
    %c0_40 = arith.constant 0 : index
    %c0_41 = arith.constant 0 : index
    %c0_42 = arith.constant 0 : index
    %c0_43 = arith.constant 0 : index
    %40 = vector.load %arg1[%c0_40, %c0_41, %c0_42, %c0_43] : memref<1x16x16x64xf32, #tpu.memory_space<vmem>>, vector<1x16x16x64xf32>
    %41 = vector.shape_cast %40 : vector<1x16x16x64xf32> to vector<16x16x64xf32>
    %42 = vector.shape_cast %41 : vector<16x16x64xf32> to vector<256x64xf32>
    %cst_44 = arith.constant 0.000000e+00 : f32
    %43 = vector.broadcast %cst_44 : f32 to vector<18x18x64xf32>
    %c0_45 = arith.constant 0 : index
    %c0_46 = arith.constant 0 : index
    %c0_47 = arith.constant 0 : index
    %44 = vector.load %arg8[%c0_45, %c0_46, %c0_47] : memref<18x18x64xf32, #tpu.memory_space<vmem>>, vector<18x18x64xf32>
    tpu.vector_store %arg8[%c0_45, %c0_46, %c0_47], %43 {strides = array<i32>} : memref<18x18x64xf32, #tpu.memory_space<vmem>>, vector<18x18x64xf32>,
    %45 = vector.shape_cast %39 : vector<256x64xf32> to vector<16x16x64xf32>
    %c1_48 = arith.constant 1 : index
    %c1_49 = arith.constant 1 : index
    %c0_50 = arith.constant 0 : index
    %46 = vector.load %arg8[%c1_48, %c1_49, %c0_50] : memref<18x18x64xf32, #tpu.memory_space<vmem>>, vector<16x16x64xf32>
    tpu.vector_store %arg8[%c1_48, %c1_49, %c0_50], %45 {strides = array<i32>} : memref<18x18x64xf32, #tpu.memory_space<vmem>>, vector<16x16x64xf32>,
    %c0_51 = arith.constant 0 : index
    %c0_52 = arith.constant 0 : index
    %c0_53 = arith.constant 0 : index
    %47 = vector.load %arg8[%c0_51, %c0_52, %c0_53] : memref<18x18x64xf32, #tpu.memory_space<vmem>>, vector<16x16x64xf32>
    %48 = arith.truncf %47 : vector<16x16x64xf32> to vector<16x16x64xbf16>
    %49 = vector.shape_cast %48 : vector<16x16x64xbf16> to vector<256x64xbf16>
    %c0_54 = arith.constant 0 : index
    %c1_55 = arith.constant 1 : index
    %c0_56 = arith.constant 0 : index
    %50 = vector.load %arg8[%c0_54, %c1_55, %c0_56] : memref<18x18x64xf32, #tpu.memory_space<vmem>>, vector<16x16x64xf32>
    %51 = arith.truncf %50 : vector<16x16x64xf32> to vector<16x16x64xbf16>
    %52 = vector.shape_cast %51 : vector<16x16x64xbf16> to vector<256x64xbf16>
    %c0_57 = arith.constant 0 : index
    %c2_58 = arith.constant 2 : index
    %c0_59 = arith.constant 0 : index
    %53 = vector.load %arg8[%c0_57, %c2_58, %c0_59] : memref<18x18x64xf32, #tpu.memory_space<vmem>>, vector<16x16x64xf32>
    %54 = arith.truncf %53 : vector<16x16x64xf32> to vector<16x16x64xbf16>
    %55 = vector.shape_cast %54 : vector<16x16x64xbf16> to vector<256x64xbf16>
    %c1_60 = arith.constant 1 : index
    %c0_61 = arith.constant 0 : index
    %c0_62 = arith.constant 0 : index
    %56 = vector.load %arg8[%c1_60, %c0_61, %c0_62] : memref<18x18x64xf32, #tpu.memory_space<vmem>>, vector<16x16x64xf32>
    %57 = arith.truncf %56 : vector<16x16x64xf32> to vector<16x16x64xbf16>
    %58 = vector.shape_cast %57 : vector<16x16x64xbf16> to vector<256x64xbf16>
    %c1_63 = arith.constant 1 : index
    %c1_64 = arith.constant 1 : index
    %c0_65 = arith.constant 0 : index
    %59 = vector.load %arg8[%c1_63, %c1_64, %c0_65] : memref<18x18x64xf32, #tpu.memory_space<vmem>>, vector<16x16x64xf32>
    %60 = arith.truncf %59 : vector<16x16x64xf32> to vector<16x16x64xbf16>
    %61 = vector.shape_cast %60 : vector<16x16x64xbf16> to vector<256x64xbf16>
    %c1_66 = arith.constant 1 : index
    %c2_67 = arith.constant 2 : index
    %c0_68 = arith.constant 0 : index
    %62 = vector.load %arg8[%c1_66, %c2_67, %c0_68] : memref<18x18x64xf32, #tpu.memory_space<vmem>>, vector<16x16x64xf32>
    %63 = arith.truncf %62 : vector<16x16x64xf32> to vector<16x16x64xbf16>
    %64 = vector.shape_cast %63 : vector<16x16x64xbf16> to vector<256x64xbf16>
    %c2_69 = arith.constant 2 : index
    %c0_70 = arith.constant 0 : index
    %c0_71 = arith.constant 0 : index
    %65 = vector.load %arg8[%c2_69, %c0_70, %c0_71] : memref<18x18x64xf32, #tpu.memory_space<vmem>>, vector<16x16x64xf32>
    %66 = arith.truncf %65 : vector<16x16x64xf32> to vector<16x16x64xbf16>
    %67 = vector.shape_cast %66 : vector<16x16x64xbf16> to vector<256x64xbf16>
    %c2_72 = arith.constant 2 : index
    %c1_73 = arith.constant 1 : index
    %c0_74 = arith.constant 0 : index
    %68 = vector.load %arg8[%c2_72, %c1_73, %c0_74] : memref<18x18x64xf32, #tpu.memory_space<vmem>>, vector<16x16x64xf32>
    %69 = arith.truncf %68 : vector<16x16x64xf32> to vector<16x16x64xbf16>
    %70 = vector.shape_cast %69 : vector<16x16x64xbf16> to vector<256x64xbf16>
    %c2_75 = arith.constant 2 : index
    %c2_76 = arith.constant 2 : index
    %c0_77 = arith.constant 0 : index
    %71 = vector.load %arg8[%c2_75, %c2_76, %c0_77] : memref<18x18x64xf32, #tpu.memory_space<vmem>>, vector<16x16x64xf32>
    %72 = arith.truncf %71 : vector<16x16x64xf32> to vector<16x16x64xbf16>
    %73 = vector.shape_cast %72 : vector<16x16x64xbf16> to vector<256x64xbf16>
    %74 = tpu.concatenate %49, %52, %55, %58, %61, %64, %67, %70, %73 in 1 : vector<256x64xbf16>, vector<256x64xbf16>, vector<256x64xbf16>, vector<256x64xbf16>, vector<256x64xbf16>, vector<256x64xbf16>, vector<256x64xbf16>, vector<256x64xbf16>, vector<256x64xbf16> -> vector<256x576xbf16>
    %c0_78 = arith.constant 0 : index
    %c0_79 = arith.constant 0 : index
    %75 = vector.load %arg4[%c0_78, %c0_79] : memref<576x64xbf16, #tpu.memory_space<vmem>>, vector<576x64xbf16>
    %cst_80 = arith.constant dense<0.000000e+00> : vector<256x64xf32>
    %76 = tpu.matmul %74, %75, %cst_80 {dimension_numbers = #tpu.dot_dimension_numbers<[1], [0], [0], [1], [0, 0, 1, 1], [], []>} : vector<256x576xbf16>, vector<576x64xbf16>, vector<256x64xf32> -> vector<256x64xf32>
    %c0_81 = arith.constant 0 : index
    %c0_82 = arith.constant 0 : index
    %77 = vector.load %arg5[%c0_81, %c0_82] : memref<1x64xf32, #tpu.memory_space<vmem>>, vector<1x64xf32>
    %78 = vector.broadcast %77 : vector<1x64xf32> to vector<256x64xf32>
    %79 = arith.addf %76, %78 : vector<256x64xf32>
    %80 = arith.addf %79, %42 : vector<256x64xf32>
    %cst_83 = arith.constant 0.000000e+00 : f32
    %81 = vector.broadcast %cst_83 : f32 to vector<256x64xf32>
    %82 = arith.maximumf %80, %81 : vector<256x64xf32>
    %83 = vector.shape_cast %82 : vector<256x64xf32> to vector<16x16x64xf32>
    %c0_84 = arith.constant 0 : index
    %c0_85 = arith.constant 0 : index
    %c0_86 = arith.constant 0 : index
    %c0_87 = arith.constant 0 : index
    %84 = vector.load %arg6[%c0_84, %c0_85, %c0_86, %c0_87] : memref<1x16x16x64xf32, #tpu.memory_space<vmem>>, vector<1x16x16x64xf32>
    %85 = vector.shape_cast %84 : vector<1x16x16x64xf32> to vector<16x16x64xf32>
    %86 = vector.shape_cast %83 : vector<16x16x64xf32> to vector<1x16x16x64xf32>
    tpu.vector_store %arg6[%c0_84, %c0_85, %c0_86, %c0_87], %86 {strides = array<i32>} : memref<1x16x16x64xf32, #tpu.memory_space<vmem>>, vector<1x16x16x64xf32>,
    return
  }
  func.func @transform_0(%arg0: i32) -> (i32, i32, i32, i32) {
    %c0_i32 = arith.constant 0 : i32
    %c0_i32_0 = arith.constant 0 : i32
    %c0_i32_1 = arith.constant 0 : i32
    %c0_i32_2 = arith.constant 0 : i32
    return %arg0, %c0_i32, %c0_i32_0, %c0_i32_1 : i32, i32, i32, i32
  }
  func.func @transform_1(%arg0: i32) -> (i32, i32) {
    %c0_i32 = arith.constant 0 : i32
    %c0_i32_0 = arith.constant 0 : i32
    %c0_i32_1 = arith.constant 0 : i32
    return %c0_i32, %c0_i32_0 : i32, i32
  }
  func.func @transform_2(%arg0: i32) -> (i32, i32) {
    %c0_i32 = arith.constant 0 : i32
    %c0_i32_0 = arith.constant 0 : i32
    %c0_i32_1 = arith.constant 0 : i32
    return %c0_i32, %c0_i32_0 : i32, i32
  }
  func.func @transform_3(%arg0: i32) -> (i32, i32) {
    %c0_i32 = arith.constant 0 : i32
    %c0_i32_0 = arith.constant 0 : i32
    %c0_i32_1 = arith.constant 0 : i32
    return %c0_i32, %c0_i32_0 : i32, i32
  }
  func.func @transform_4(%arg0: i32) -> (i32, i32) {
    %c0_i32 = arith.constant 0 : i32
    %c0_i32_0 = arith.constant 0 : i32
    %c0_i32_1 = arith.constant 0 : i32
    return %c0_i32, %c0_i32_0 : i32, i32
  }
  func.func @transform_5(%arg0: i32) -> (i32, i32, i32, i32) {
    %c0_i32 = arith.constant 0 : i32
    %c0_i32_0 = arith.constant 0 : i32
    %c0_i32_1 = arith.constant 0 : i32
    %c0_i32_2 = arith.constant 0 : i32
    return %arg0, %c0_i32, %c0_i32_0, %c0_i32_1 : i32, i32, i32, i32
  }
}

module attributes {stable_mosaic.version = 11 : i64} {
  func.func @_basic_block_kernel(%arg0: i32, %arg1: memref<1x9x2x9x128xbf16, #tpu.memory_space<vmem>>, %arg2: memref<768x128xbf16, #tpu.memory_space<vmem>>, %arg3: memref<1x128xf32, #tpu.memory_space<vmem>>, %arg4: memref<1152x128xbf16, #tpu.memory_space<vmem>>, %arg5: memref<1x128xf32, #tpu.memory_space<vmem>>, %arg6: memref<128x128xbf16, #tpu.memory_space<vmem>>, %arg7: memref<1x128xf32, #tpu.memory_space<vmem>>, %arg8: memref<1x8x8x128xf32, #tpu.memory_space<vmem>>, %arg9: memref<10x10x128xf32, #tpu.memory_space<vmem>>) attributes {dimension_semantics = [#tpu.dimension_semantics<parallel>], iteration_bounds = array<i64: 2>, scalar_prefetch = 0 : i64, scratch_operands = 1 : i64, tpu.core_type = #tpu.core_type<tc>, window_params = [{transform_indices = @transform_0, window_bounds = array<i64: 1, 9, 2, 9, 128>}, {pipeline_mode = #tpu.pipeline_mode<synchronous>, transform_indices = @transform_1, window_bounds = array<i64: 768, 128>}, {pipeline_mode = #tpu.pipeline_mode<synchronous>, transform_indices = @transform_2, window_bounds = array<i64: 1, 128>}, {pipeline_mode = #tpu.pipeline_mode<synchronous>, transform_indices = @transform_3, window_bounds = array<i64: 1152, 128>}, {pipeline_mode = #tpu.pipeline_mode<synchronous>, transform_indices = @transform_4, window_bounds = array<i64: 1, 128>}, {pipeline_mode = #tpu.pipeline_mode<synchronous>, transform_indices = @transform_5, window_bounds = array<i64: 128, 128>}, {pipeline_mode = #tpu.pipeline_mode<synchronous>, transform_indices = @transform_6, window_bounds = array<i64: 1, 128>}, {transform_indices = @transform_7, window_bounds = array<i64: 1, 8, 8, 128>}]} {
    %c0 = arith.constant 0 : index
    %c0_0 = arith.constant 0 : index
    %c0_1 = arith.constant 0 : index
    %c0_2 = arith.constant 0 : index
    %c0_3 = arith.constant 0 : index
    %0 = vector.load %arg1[%c0, %c0_0, %c0_1, %c0_2, %c0_3] : memref<1x9x2x9x128xbf16, #tpu.memory_space<vmem>>, vector<1x8x1x8x128xbf16>
    %1 = vector.shape_cast %0 : vector<1x8x1x8x128xbf16> to vector<8x8x128xbf16>
    %2 = vector.shape_cast %1 : vector<8x8x128xbf16> to vector<64x128xbf16>
    %c0_4 = arith.constant 0 : index
    %c0_5 = arith.constant 0 : index
    %c0_6 = arith.constant 0 : index
    %c1 = arith.constant 1 : index
    %c0_7 = arith.constant 0 : index
    %3 = vector.load %arg1[%c0_4, %c0_5, %c0_6, %c1, %c0_7] : memref<1x9x2x9x128xbf16, #tpu.memory_space<vmem>>, vector<1x8x1x8x128xbf16>
    %4 = vector.shape_cast %3 : vector<1x8x1x8x128xbf16> to vector<8x8x128xbf16>
    %5 = vector.shape_cast %4 : vector<8x8x128xbf16> to vector<64x128xbf16>
    %c0_8 = arith.constant 0 : index
    %c0_9 = arith.constant 0 : index
    %c1_10 = arith.constant 1 : index
    %c0_11 = arith.constant 0 : index
    %c0_12 = arith.constant 0 : index
    %6 = vector.load %arg1[%c0_8, %c0_9, %c1_10, %c0_11, %c0_12] : memref<1x9x2x9x128xbf16, #tpu.memory_space<vmem>>, vector<1x8x1x8x128xbf16>
    %7 = vector.shape_cast %6 : vector<1x8x1x8x128xbf16> to vector<8x8x128xbf16>
    %8 = vector.shape_cast %7 : vector<8x8x128xbf16> to vector<64x128xbf16>
    %c0_13 = arith.constant 0 : index
    %c0_14 = arith.constant 0 : index
    %c1_15 = arith.constant 1 : index
    %c1_16 = arith.constant 1 : index
    %c0_17 = arith.constant 0 : index
    %9 = vector.load %arg1[%c0_13, %c0_14, %c1_15, %c1_16, %c0_17] : memref<1x9x2x9x128xbf16, #tpu.memory_space<vmem>>, vector<1x8x1x8x128xbf16>
    %10 = vector.shape_cast %9 : vector<1x8x1x8x128xbf16> to vector<8x8x128xbf16>
    %11 = vector.shape_cast %10 : vector<8x8x128xbf16> to vector<64x128xbf16>
    %c0_18 = arith.constant 0 : index
    %c1_19 = arith.constant 1 : index
    %c0_20 = arith.constant 0 : index
    %c0_21 = arith.constant 0 : index
    %c0_22 = arith.constant 0 : index
    %12 = vector.load %arg1[%c0_18, %c1_19, %c0_20, %c0_21, %c0_22] : memref<1x9x2x9x128xbf16, #tpu.memory_space<vmem>>, vector<1x8x1x8x128xbf16>
    %13 = vector.shape_cast %12 : vector<1x8x1x8x128xbf16> to vector<8x8x128xbf16>
    %14 = vector.shape_cast %13 : vector<8x8x128xbf16> to vector<64x128xbf16>
    %c0_23 = arith.constant 0 : index
    %c1_24 = arith.constant 1 : index
    %c0_25 = arith.constant 0 : index
    %c1_26 = arith.constant 1 : index
    %c0_27 = arith.constant 0 : index
    %15 = vector.load %arg1[%c0_23, %c1_24, %c0_25, %c1_26, %c0_27] : memref<1x9x2x9x128xbf16, #tpu.memory_space<vmem>>, vector<1x8x1x8x128xbf16>
    %16 = vector.shape_cast %15 : vector<1x8x1x8x128xbf16> to vector<8x8x128xbf16>
    %17 = vector.shape_cast %16 : vector<8x8x128xbf16> to vector<64x128xbf16>
    %18 = tpu.concatenate %2, %5, %8, %11, %14, %17 in 1 : vector<64x128xbf16>, vector<64x128xbf16>, vector<64x128xbf16>, vector<64x128xbf16>, vector<64x128xbf16>, vector<64x128xbf16> -> vector<64x768xbf16>
    %c0_28 = arith.constant 0 : index
    %c0_29 = arith.constant 0 : index
    %19 = vector.load %arg2[%c0_28, %c0_29] : memref<768x128xbf16, #tpu.memory_space<vmem>>, vector<768x128xbf16>
    %cst = arith.constant dense<0.000000e+00> : vector<64x128xf32>
    %20 = tpu.matmul %18, %19, %cst {dimension_numbers = #tpu.dot_dimension_numbers<[1], [0], [0], [1], [0, 0, 1, 1], [], []>} : vector<64x768xbf16>, vector<768x128xbf16>, vector<64x128xf32> -> vector<64x128xf32>
    %c0_30 = arith.constant 0 : index
    %c0_31 = arith.constant 0 : index
    %21 = vector.load %arg3[%c0_30, %c0_31] : memref<1x128xf32, #tpu.memory_space<vmem>>, vector<1x128xf32>
    %22 = vector.broadcast %21 : vector<1x128xf32> to vector<64x128xf32>
    %23 = arith.addf %20, %22 : vector<64x128xf32>
    %cst_32 = arith.constant 0.000000e+00 : f32
    %24 = vector.broadcast %cst_32 : f32 to vector<64x128xf32>
    %25 = arith.maximumf %23, %24 : vector<64x128xf32>
    %c0_33 = arith.constant 0 : index
    %c0_34 = arith.constant 0 : index
    %c1_35 = arith.constant 1 : index
    %c0_36 = arith.constant 0 : index
    %c0_37 = arith.constant 0 : index
    %26 = vector.load %arg1[%c0_33, %c0_34, %c1_35, %c0_36, %c0_37] : memref<1x9x2x9x128xbf16, #tpu.memory_space<vmem>>, vector<1x8x1x8x128xbf16>
    %27 = vector.shape_cast %26 : vector<1x8x1x8x128xbf16> to vector<8x8x128xbf16>
    %28 = vector.shape_cast %27 : vector<8x8x128xbf16> to vector<64x128xbf16>
    %c0_38 = arith.constant 0 : index
    %c0_39 = arith.constant 0 : index
    %29 = vector.load %arg6[%c0_38, %c0_39] : memref<128x128xbf16, #tpu.memory_space<vmem>>, vector<128x128xbf16>
    %cst_40 = arith.constant dense<0.000000e+00> : vector<64x128xf32>
    %30 = tpu.matmul %28, %29, %cst_40 {dimension_numbers = #tpu.dot_dimension_numbers<[1], [0], [0], [1], [0, 0, 1, 1], [], []>} : vector<64x128xbf16>, vector<128x128xbf16>, vector<64x128xf32> -> vector<64x128xf32>
    %c0_41 = arith.constant 0 : index
    %c0_42 = arith.constant 0 : index
    %31 = vector.load %arg7[%c0_41, %c0_42] : memref<1x128xf32, #tpu.memory_space<vmem>>, vector<1x128xf32>
    %32 = vector.broadcast %31 : vector<1x128xf32> to vector<64x128xf32>
    %33 = arith.addf %30, %32 : vector<64x128xf32>
    %cst_43 = arith.constant 0.000000e+00 : f32
    %34 = vector.broadcast %cst_43 : f32 to vector<10x10x128xf32>
    %c0_44 = arith.constant 0 : index
    %c0_45 = arith.constant 0 : index
    %c0_46 = arith.constant 0 : index
    %35 = vector.load %arg9[%c0_44, %c0_45, %c0_46] : memref<10x10x128xf32, #tpu.memory_space<vmem>>, vector<10x10x128xf32>
    tpu.vector_store %arg9[%c0_44, %c0_45, %c0_46], %34 {strides = array<i32>} : memref<10x10x128xf32, #tpu.memory_space<vmem>>, vector<10x10x128xf32>,
    %36 = vector.shape_cast %25 : vector<64x128xf32> to vector<8x8x128xf32>
    %c1_47 = arith.constant 1 : index
    %c1_48 = arith.constant 1 : index
    %c0_49 = arith.constant 0 : index
    %37 = vector.load %arg9[%c1_47, %c1_48, %c0_49] : memref<10x10x128xf32, #tpu.memory_space<vmem>>, vector<8x8x128xf32>
    tpu.vector_store %arg9[%c1_47, %c1_48, %c0_49], %36 {strides = array<i32>} : memref<10x10x128xf32, #tpu.memory_space<vmem>>, vector<8x8x128xf32>,
    %c0_50 = arith.constant 0 : index
    %c0_51 = arith.constant 0 : index
    %c0_52 = arith.constant 0 : index
    %38 = vector.load %arg9[%c0_50, %c0_51, %c0_52] : memref<10x10x128xf32, #tpu.memory_space<vmem>>, vector<8x8x128xf32>
    %39 = arith.truncf %38 : vector<8x8x128xf32> to vector<8x8x128xbf16>
    %40 = vector.shape_cast %39 : vector<8x8x128xbf16> to vector<64x128xbf16>
    %c0_53 = arith.constant 0 : index
    %c1_54 = arith.constant 1 : index
    %c0_55 = arith.constant 0 : index
    %41 = vector.load %arg9[%c0_53, %c1_54, %c0_55] : memref<10x10x128xf32, #tpu.memory_space<vmem>>, vector<8x8x128xf32>
    %42 = arith.truncf %41 : vector<8x8x128xf32> to vector<8x8x128xbf16>
    %43 = vector.shape_cast %42 : vector<8x8x128xbf16> to vector<64x128xbf16>
    %c0_56 = arith.constant 0 : index
    %c2 = arith.constant 2 : index
    %c0_57 = arith.constant 0 : index
    %44 = vector.load %arg9[%c0_56, %c2, %c0_57] : memref<10x10x128xf32, #tpu.memory_space<vmem>>, vector<8x8x128xf32>
    %45 = arith.truncf %44 : vector<8x8x128xf32> to vector<8x8x128xbf16>
    %46 = vector.shape_cast %45 : vector<8x8x128xbf16> to vector<64x128xbf16>
    %c1_58 = arith.constant 1 : index
    %c0_59 = arith.constant 0 : index
    %c0_60 = arith.constant 0 : index
    %47 = vector.load %arg9[%c1_58, %c0_59, %c0_60] : memref<10x10x128xf32, #tpu.memory_space<vmem>>, vector<8x8x128xf32>
    %48 = arith.truncf %47 : vector<8x8x128xf32> to vector<8x8x128xbf16>
    %49 = vector.shape_cast %48 : vector<8x8x128xbf16> to vector<64x128xbf16>
    %c1_61 = arith.constant 1 : index
    %c1_62 = arith.constant 1 : index
    %c0_63 = arith.constant 0 : index
    %50 = vector.load %arg9[%c1_61, %c1_62, %c0_63] : memref<10x10x128xf32, #tpu.memory_space<vmem>>, vector<8x8x128xf32>
    %51 = arith.truncf %50 : vector<8x8x128xf32> to vector<8x8x128xbf16>
    %52 = vector.shape_cast %51 : vector<8x8x128xbf16> to vector<64x128xbf16>
    %c1_64 = arith.constant 1 : index
    %c2_65 = arith.constant 2 : index
    %c0_66 = arith.constant 0 : index
    %53 = vector.load %arg9[%c1_64, %c2_65, %c0_66] : memref<10x10x128xf32, #tpu.memory_space<vmem>>, vector<8x8x128xf32>
    %54 = arith.truncf %53 : vector<8x8x128xf32> to vector<8x8x128xbf16>
    %55 = vector.shape_cast %54 : vector<8x8x128xbf16> to vector<64x128xbf16>
    %c2_67 = arith.constant 2 : index
    %c0_68 = arith.constant 0 : index
    %c0_69 = arith.constant 0 : index
    %56 = vector.load %arg9[%c2_67, %c0_68, %c0_69] : memref<10x10x128xf32, #tpu.memory_space<vmem>>, vector<8x8x128xf32>
    %57 = arith.truncf %56 : vector<8x8x128xf32> to vector<8x8x128xbf16>
    %58 = vector.shape_cast %57 : vector<8x8x128xbf16> to vector<64x128xbf16>
    %c2_70 = arith.constant 2 : index
    %c1_71 = arith.constant 1 : index
    %c0_72 = arith.constant 0 : index
    %59 = vector.load %arg9[%c2_70, %c1_71, %c0_72] : memref<10x10x128xf32, #tpu.memory_space<vmem>>, vector<8x8x128xf32>
    %60 = arith.truncf %59 : vector<8x8x128xf32> to vector<8x8x128xbf16>
    %61 = vector.shape_cast %60 : vector<8x8x128xbf16> to vector<64x128xbf16>
    %c2_73 = arith.constant 2 : index
    %c2_74 = arith.constant 2 : index
    %c0_75 = arith.constant 0 : index
    %62 = vector.load %arg9[%c2_73, %c2_74, %c0_75] : memref<10x10x128xf32, #tpu.memory_space<vmem>>, vector<8x8x128xf32>
    %63 = arith.truncf %62 : vector<8x8x128xf32> to vector<8x8x128xbf16>
    %64 = vector.shape_cast %63 : vector<8x8x128xbf16> to vector<64x128xbf16>
    %65 = tpu.concatenate %40, %43, %46, %49, %52, %55, %58, %61, %64 in 1 : vector<64x128xbf16>, vector<64x128xbf16>, vector<64x128xbf16>, vector<64x128xbf16>, vector<64x128xbf16>, vector<64x128xbf16>, vector<64x128xbf16>, vector<64x128xbf16>, vector<64x128xbf16> -> vector<64x1152xbf16>
    %c0_76 = arith.constant 0 : index
    %c0_77 = arith.constant 0 : index
    %66 = vector.load %arg4[%c0_76, %c0_77] : memref<1152x128xbf16, #tpu.memory_space<vmem>>, vector<1152x128xbf16>
    %cst_78 = arith.constant dense<0.000000e+00> : vector<64x128xf32>
    %67 = tpu.matmul %65, %66, %cst_78 {dimension_numbers = #tpu.dot_dimension_numbers<[1], [0], [0], [1], [0, 0, 1, 1], [], []>} : vector<64x1152xbf16>, vector<1152x128xbf16>, vector<64x128xf32> -> vector<64x128xf32>
    %c0_79 = arith.constant 0 : index
    %c0_80 = arith.constant 0 : index
    %68 = vector.load %arg5[%c0_79, %c0_80] : memref<1x128xf32, #tpu.memory_space<vmem>>, vector<1x128xf32>
    %69 = vector.broadcast %68 : vector<1x128xf32> to vector<64x128xf32>
    %70 = arith.addf %67, %69 : vector<64x128xf32>
    %71 = arith.addf %70, %33 : vector<64x128xf32>
    %cst_81 = arith.constant 0.000000e+00 : f32
    %72 = vector.broadcast %cst_81 : f32 to vector<64x128xf32>
    %73 = arith.maximumf %71, %72 : vector<64x128xf32>
    %74 = vector.shape_cast %73 : vector<64x128xf32> to vector<8x8x128xf32>
    %c0_82 = arith.constant 0 : index
    %c0_83 = arith.constant 0 : index
    %c0_84 = arith.constant 0 : index
    %c0_85 = arith.constant 0 : index
    %75 = vector.load %arg8[%c0_82, %c0_83, %c0_84, %c0_85] : memref<1x8x8x128xf32, #tpu.memory_space<vmem>>, vector<1x8x8x128xf32>
    %76 = vector.shape_cast %75 : vector<1x8x8x128xf32> to vector<8x8x128xf32>
    %77 = vector.shape_cast %74 : vector<8x8x128xf32> to vector<1x8x8x128xf32>
    tpu.vector_store %arg8[%c0_82, %c0_83, %c0_84, %c0_85], %77 {strides = array<i32>} : memref<1x8x8x128xf32, #tpu.memory_space<vmem>>, vector<1x8x8x128xf32>,
    return
  }
  func.func @transform_0(%arg0: i32) -> (i32, i32, i32, i32, i32) {
    %c0_i32 = arith.constant 0 : i32
    %c0_i32_0 = arith.constant 0 : i32
    %c0_i32_1 = arith.constant 0 : i32
    %c0_i32_2 = arith.constant 0 : i32
    %c0_i32_3 = arith.constant 0 : i32
    return %arg0, %c0_i32, %c0_i32_0, %c0_i32_1, %c0_i32_2 : i32, i32, i32, i32, i32
  }
  func.func @transform_1(%arg0: i32) -> (i32, i32) {
    %c0_i32 = arith.constant 0 : i32
    %c0_i32_0 = arith.constant 0 : i32
    %c0_i32_1 = arith.constant 0 : i32
    return %c0_i32, %c0_i32_0 : i32, i32
  }
  func.func @transform_2(%arg0: i32) -> (i32, i32) {
    %c0_i32 = arith.constant 0 : i32
    %c0_i32_0 = arith.constant 0 : i32
    %c0_i32_1 = arith.constant 0 : i32
    return %c0_i32, %c0_i32_0 : i32, i32
  }
  func.func @transform_3(%arg0: i32) -> (i32, i32) {
    %c0_i32 = arith.constant 0 : i32
    %c0_i32_0 = arith.constant 0 : i32
    %c0_i32_1 = arith.constant 0 : i32
    return %c0_i32, %c0_i32_0 : i32, i32
  }
  func.func @transform_4(%arg0: i32) -> (i32, i32) {
    %c0_i32 = arith.constant 0 : i32
    %c0_i32_0 = arith.constant 0 : i32
    %c0_i32_1 = arith.constant 0 : i32
    return %c0_i32, %c0_i32_0 : i32, i32
  }
  func.func @transform_5(%arg0: i32) -> (i32, i32) {
    %c0_i32 = arith.constant 0 : i32
    %c0_i32_0 = arith.constant 0 : i32
    %c0_i32_1 = arith.constant 0 : i32
    return %c0_i32, %c0_i32_0 : i32, i32
  }
  func.func @transform_6(%arg0: i32) -> (i32, i32) {
    %c0_i32 = arith.constant 0 : i32
    %c0_i32_0 = arith.constant 0 : i32
    %c0_i32_1 = arith.constant 0 : i32
    return %c0_i32, %c0_i32_0 : i32, i32
  }
  func.func @transform_7(%arg0: i32) -> (i32, i32, i32, i32) {
    %c0_i32 = arith.constant 0 : i32
    %c0_i32_0 = arith.constant 0 : i32
    %c0_i32_1 = arith.constant 0 : i32
    %c0_i32_2 = arith.constant 0 : i32
    return %arg0, %c0_i32, %c0_i32_0, %c0_i32_1 : i32, i32, i32, i32
  }
}

</mosaic_0001>

<llo_original>
// kernel: _lambda_.3
$region0: #{_lambda_.3}
  #allocation0 [shape = 'u32[]', space=smem, size = 0x4, offset = 0x4, fixed_abs, tag = 'smem constant byte address 0x4 - core index']
  #allocation1 [shape = 'u32[144,128]{1,0:T(1,128)}', space=vmem, size = 0x12000, scoped, tag = 'internal scratch']
  #allocation2 [shape = 'f32[10,10,128]{2,1,0:T(8,128)}', space=vmem, size = 0x14000, scoped, tag = 'scratch operand']
  %s0 = inlined_call_operand.vmem [shape: bf16[2,9,2,9,128], index: 0, kind: input, shape index: {}]
  %s1 = inlined_call_operand.vmem [shape: bf16[768,128], index: 1, kind: input, shape index: {}]
  %s2 = inlined_call_operand.vmem [shape: f32[1,128], index: 2, kind: input, shape index: {}, may-alias: {2,4,6}]
  %s3 = inlined_call_operand.vmem [shape: bf16[1152,128], index: 3, kind: input, shape index: {}]
  %s4 = inlined_call_operand.vmem [shape: f32[1,128], index: 4, kind: input, shape index: {}, may-alias: {2,4,6}]
  %s5 = inlined_call_operand.vmem [shape: bf16[128,128], index: 5, kind: input, shape index: {}]
  %s6 = inlined_call_operand.vmem [shape: f32[1,128], index: 6, kind: input, shape index: {}, may-alias: {2,4,6}]
  %s7 = inlined_call_operand.hbm [shape: f32[2,8,8,128], index: 7, kind: output, shape index: {}]
  %s8 = sld [smem:[#allocation0]]
  $region61: #{_lambda_.3} parent=0
    _
  %s10 = ssub.s32 1, %s8
  %s11 = scalar_select 0, %s10, %s8
  $region1: #{_lambda_.3} parent=0
    #allocation3 [shape = 'u8[65536]{0}', space=vmem, size = 0x10000, scoped, tag = 'output window, operand 0']
    #allocation4 [shape = 's32[2]{0}', space=sflag, size = 0x8, scoped, tag = 'scoped memory for _lambda_.3']
    %12 = vsyncpa [#allocation4], 0
    %s13 = scalar_lea.sflag [#allocation4], 1
    %14 = vsyncpa %s13, 0
    loop: start=0, step=1, limit=4
    $region2: #{_lambda_.3} parent=1 // loop_pre_header
      _
    $region3: #{_lambda_.3} parent=1 // loop_header
      %s16 = sphi 0, %s20
      %p17 = scmp.ge.s32.totalorder %s16, 4
      %s26 = sphi 0, %s28
      %s29 = sphi 0, %s26
      %s30 = sphi 0, %s29
      %s46 = sphi 0, %s30
      %s50 = sphi 0, %s50
      %s52 = sphi 0, %s50
      %s53 = sphi 0, %s52
      %s67 = sphi 0, %s53
      %s71 = sphi 0, %s71
      %s73 = sphi 0, %s71
      %s74 = sphi 0, %s73
      %s88 = sphi 0, %s74
      %s92 = sphi 0, %s92
      %s94 = sphi 0, %s92
      %s95 = sphi 0, %s94
      %s109 = sphi 0, %s95
      %s113 = sphi 0, %s113
      %s115 = sphi 0, %s113
      %s116 = sphi 0, %s115
      %s130 = sphi 0, %s116
      %s134 = sphi 0, %s134
      %s136 = sphi 0, %s134
      %s137 = sphi 0, %s136
      %s151 = sphi 0, %s137
      %s155 = sphi 0, %s155
      %s157 = sphi 0, %s155
      %s158 = sphi 0, %s157
      %s172 = sphi 0, %s158
      %s178 = sphi 0, %s180
      %s181 = sphi 0, %s178
      %s182 = sphi 0, %s181
      %s198 = sphi 0, %s182
    $region4: #{_lambda_.3} parent=1 // loop_header_branch
      %19 = sbr.rel (%p17) target = $region8
    $region5: #{_lambda_.3} parent=1 // loop_body
      %s21 = ssub.s32 %s16, 1
      %s22 = ssub.s32 %s16, 2
      %s23 = sadd.s32 %s16, 1
      %s24 = ssub.s32 %s16, %s23
      %p25 = scmp.eq.s32.totalorder %s24, 0
      %s27 = sadd.s32 %s26, 1
      %s28 = scalar_select %p25, %s26, %s27
      %p31 = pneg %p25
      %p32 = scmp.eq.s32.totalorder %s16, 1
      %p33 = por %p31, %p32
      %p34 = scmp.ne.s32.totalorder %s26, %s29
      %p35 = scmp.eq.s32.totalorder %s16, 0
      %p36 = por %p34, %p35
      %p37 = scmp.ne.s32.totalorder %s26, %s29
      %p38 = scmp.eq.s32.totalorder %s21, 1
      %p39 = por %p37, %p38
      %p40 = scmp.ne.s32.totalorder %s29, %s30
      %p41 = scmp.eq.s32.totalorder %s21, 0
      %p42 = por %p40, %p41
      %p43 = scmp.ne.s32.totalorder %s29, %s30
      %p44 = scmp.eq.s32.totalorder %s22, 1
      %p45 = por %p43, %p44
      %p47 = scmp.ne.s32.totalorder %s30, %s46
      %p48 = scmp.eq.s32.totalorder %s22, 0
      %p49 = por %p47, %p48
      %s51 = sadd.s32 %s50, 1
      %p54 = scmp.eq.s32.totalorder %s16, 1
      %p55 = scmp.ne.s32.totalorder %s50, %s52
      %p56 = scmp.eq.s32.totalorder %s16, 0
      %p57 = por %p55, %p56
      %p58 = scmp.ne.s32.totalorder %s50, %s52
      %p59 = scmp.eq.s32.totalorder %s21, 1
      %p60 = por %p58, %p59
      %p61 = scmp.ne.s32.totalorder %s52, %s53
      %p62 = scmp.eq.s32.totalorder %s21, 0
      %p63 = por %p61, %p62
      %p64 = scmp.ne.s32.totalorder %s52, %s53
      %p65 = scmp.eq.s32.totalorder %s22, 1
      %p66 = por %p64, %p65
      %p68 = scmp.ne.s32.totalorder %s53, %s67
      %p69 = scmp.eq.s32.totalorder %s22, 0
      %p70 = por %p68, %p69
      %s72 = sadd.s32 %s71, 1
      %p75 = scmp.eq.s32.totalorder %s16, 1
      %p76 = scmp.ne.s32.totalorder %s71, %s73
      %p77 = scmp.eq.s32.totalorder %s16, 0
      %p78 = por %p76, %p77
      %p79 = scmp.ne.s32.totalorder %s71, %s73
      %p80 = scmp.eq.s32.totalorder %s21, 1
      %p81 = por %p79, %p80
      %p82 = scmp.ne.s32.totalorder %s73, %s74
      %p83 = scmp.eq.s32.totalorder %s21, 0
      %p84 = por %p82, %p83
      %p85 = scmp.ne.s32.totalorder %s73, %s74
      %p86 = scmp.eq.s32.totalorder %s22, 1
      %p87 = por %p85, %p86
      %p89 = scmp.ne.s32.totalorder %s74, %s88
      %p90 = scmp.eq.s32.totalorder %s22, 0
      %p91 = por %p89, %p90
      %s93 = sadd.s32 %s92, 1
      %p96 = scmp.eq.s32.totalorder %s16, 1
      %p97 = scmp.ne.s32.totalorder %s92, %s94
      %p98 = scmp.eq.s32.totalorder %s16, 0
      %p99 = por %p97, %p98
      %p100 = scmp.ne.s32.totalorder %s92, %s94
      %p101 = scmp.eq.s32.totalorder %s21, 1
      %p102 = por %p100, %p101
      %p103 = scmp.ne.s32.totalorder %s94, %s95
      %p104 = scmp.eq.s32.totalorder %s21, 0
      %p105 = por %p103, %p104
      %p106 = scmp.ne.s32.totalorder %s94, %s95
      %p107 = scmp.eq.s32.totalorder %s22, 1
      %p108 = por %p106, %p107
      %p110 = scmp.ne.s32.totalorder %s95, %s109
      %p111 = scmp.eq.s32.totalorder %s22, 0
      %p112 = por %p110, %p111
      %s114 = sadd.s32 %s113, 1
      %p117 = scmp.eq.s32.totalorder %s16, 1
      %p118 = scmp.ne.s32.totalorder %s113, %s115
      %p119 = scmp.eq.s32.totalorder %s16, 0
      %p120 = por %p118, %p119
      %p121 = scmp.ne.s32.totalorder %s113, %s115
      %p122 = scmp.eq.s32.totalorder %s21, 1
      %p123 = por %p121, %p122
      %p124 = scmp.ne.s32.totalorder %s115, %s116
      %p125 = scmp.eq.s32.totalorder %s21, 0
      %p126 = por %p124, %p125
      %p127 = scmp.ne.s32.totalorder %s115, %s116
      %p128 = scmp.eq.s32.totalorder %s22, 1
      %p129 = por %p127, %p128
      %p131 = scmp.ne.s32.totalorder %s116, %s130
      %p132 = scmp.eq.s32.totalorder %s22, 0
      %p133 = por %p131, %p132
      %s135 = sadd.s32 %s134, 1
      %p138 = scmp.eq.s32.totalorder %s16, 1
      %p139 = scmp.ne.s32.totalorder %s134, %s136
      %p140 = scmp.eq.s32.totalorder %s16, 0
      %p141 = por %p139, %p140
      %p142 = scmp.ne.s32.totalorder %s134, %s136
      %p143 = scmp.eq.s32.totalorder %s21, 1
      %p144 = por %p142, %p143
      %p145 = scmp.ne.s32.totalorder %s136, %s137
      %p146 = scmp.eq.s32.totalorder %s21, 0
      %p147 = por %p145, %p146
      %p148 = scmp.ne.s32.totalorder %s136, %s137
      %p149 = scmp.eq.s32.totalorder %s22, 1
      %p150 = por %p148, %p149
      %p152 = scmp.ne.s32.totalorder %s137, %s151
      %p153 = scmp.eq.s32.totalorder %s22, 0
      %p154 = por %p152, %p153
      %s156 = sadd.s32 %s155, 1
      %p159 = scmp.eq.s32.totalorder %s16, 1
      %p160 = scmp.ne.s32.totalorder %s155, %s157
      %p161 = scmp.eq.s32.totalorder %s16, 0
      %p162 = por %p160, %p161
      %p163 = scmp.ne.s32.totalorder %s155, %s157
      %p164 = scmp.eq.s32.totalorder %s21, 1
      %p165 = por %p163, %p164
      %p166 = scmp.ne.s32.totalorder %s157, %s158
      %p167 = scmp.eq.s32.totalorder %s21, 0
      %p168 = por %p166, %p167
      %p169 = scmp.ne.s32.totalorder %s157, %s158
      %p170 = scmp.eq.s32.totalorder %s22, 1
      %p171 = por %p169, %p170
      %p173 = scmp.ne.s32.totalorder %s158, %s172
      %p174 = scmp.eq.s32.totalorder %s22, 0
      %p175 = por %p173, %p174
      %s176 = ssub.s32 %s16, %s23
      %p177 = scmp.eq.s32.totalorder %s176, 0
      %s179 = sadd.s32 %s178, 1
      %s180 = scalar_select %p177, %s178, %s179
      %p183 = pneg %p177
      %p184 = scmp.eq.s32.totalorder %s16, 1
      %p185 = por %p183, %p184
      %p186 = scmp.ne.s32.totalorder %s178, %s181
      %p187 = scmp.eq.s32.totalorder %s16, 0
      %p188 = por %p186, %p187
      %p189 = scmp.ne.s32.totalorder %s178, %s181
      %p190 = scmp.eq.s32.totalorder %s21, 1
      %p191 = por %p189, %p190
      %p192 = scmp.ne.s32.totalorder %s181, %s182
      %p193 = scmp.eq.s32.totalorder %s21, 0
      %p194 = por %p192, %p193
      %p195 = scmp.ne.s32.totalorder %s181, %s182
      %p196 = scmp.eq.s32.totalorder %s22, 1
      %p197 = por %p195, %p196
      %p199 = scmp.ne.s32.totalorder %s182, %s198
      %p200 = scmp.eq.s32.totalorder %s22, 0
      %p201 = por %p199, %p200
      %p202 = scmp.le.s32.totalorder 1, %s16
      %p203 = scmp.lt.s32.totalorder %s16, 3
      %p204 = pnand %p202, %p203
      %p205 = pneg %p204
      // Predicated region
      $region9: #{_lambda_.3} parent=5 // pred_check
        _
      $region10: #{_lambda_.3} parent=5 // pred_check_branch
        %207 = sbr.rel (%p204) target = $region12
      $region11: #{_lambda_.3} parent=5 // pred_region
        %s208 = ssub.s32 %s16, 1
        // Predicated region
        $region13: #{_lambda_.3} parent=11 // pred_check
          %p209 = pneg %p63
        $region14: #{_lambda_.3} parent=11 // pred_check_branch
          %211 = sbr.rel (%p209) target = $region16
        $region15: #{_lambda_.3} parent=11 // pred_region
          _
        $region16: #{_lambda_.3} parent=11 // pred_fallthru
          _
        // Predicated region
        $region17: #{_lambda_.3} parent=11 // pred_check
          %p212 = pneg %p84
        $region18: #{_lambda_.3} parent=11 // pred_check_branch
          %214 = sbr.rel (%p212) target = $region20
        $region19: #{_lambda_.3} parent=11 // pred_region
          _
        $region20: #{_lambda_.3} parent=11 // pred_fallthru
          _
        // Predicated region
        $region21: #{_lambda_.3} parent=11 // pred_check
          %p215 = pneg %p105
        $region22: #{_lambda_.3} parent=11 // pred_check_branch
          %217 = sbr.rel (%p215) target = $region24
        $region23: #{_lambda_.3} parent=11 // pred_region
          _
        $region24: #{_lambda_.3} parent=11 // pred_fallthru
          _
        // Predicated region
        $region25: #{_lambda_.3} parent=11 // pred_check
          %p218 = pneg %p126
        $region26: #{_lambda_.3} parent=11 // pred_check_branch
          %220 = sbr.rel (%p218) target = $region28
        $region27: #{_lambda_.3} parent=11 // pred_region
          _
        $region28: #{_lambda_.3} parent=11 // pred_fallthru
          _
        // Predicated region
        $region29: #{_lambda_.3} parent=11 // pred_check
          %p221 = pneg %p147
        $region30: #{_lambda_.3} parent=11 // pred_check_branch
          %223 = sbr.rel (%p221) target = $region32
        $region31: #{_lambda_.3} parent=11 // pred_region
          _
        $region32: #{_lambda_.3} parent=11 // pred_fallthru
          _
        // Predicated region
        $region33: #{_lambda_.3} parent=11 // pred_check
          %p224 = pneg %p168
        $region34: #{_lambda_.3} parent=11 // pred_check_branch
          %226 = sbr.rel (%p224) target = $region36
        $region35: #{_lambda_.3} parent=11 // pred_region
          _
        $region36: #{_lambda_.3} parent=11 // pred_fallthru
          _
      $region12: #{_lambda_.3} parent=5 // pred_fallthru
        _
      %p227 = scmp.lt.s32.totalorder %s16, 2
      // Predicated region
      $region37: #{_lambda_.3} parent=5 // pred_check
        %p228 = pneg %p227
      $region38: #{_lambda_.3} parent=5 // pred_check_branch
        %230 = sbr.rel (%p228) target = $region40
      $region39: #{_lambda_.3} parent=5 // pred_region
        // Predicated region
        $region41: #{_lambda_.3} parent=39 // pred_check
          %p231 = pneg %p36
        $region42: #{_lambda_.3} parent=39 // pred_check_branch
          %233 = sbr.rel (%p231) target = $region44
        $region43: #{_lambda_.3} parent=39 // pred_region
          %p234 = scmp.lt.s32.totalorder %s16, 1
          %s235 = scalar_select %p234, %s16, 1
          %s236 = smul.addr %s235, 36
          %s237 = smul.addr %s236, 4
          %s238 = scalar_lea.vmem %s0, %s237
        $region44: #{_lambda_.3} parent=39 // pred_fallthru
          _
      $region40: #{_lambda_.3} parent=5 // pred_fallthru
        _
      %p239 = scmp.le.s32.totalorder 1, %s16
      %p240 = scmp.lt.s32.totalorder %s16, 3
      %p241 = pnand %p239, %p240
      %p242 = pneg %p241
      // Predicated region
      $region45: #{_lambda_.3} parent=5 // pred_check
        _
      $region46: #{_lambda_.3} parent=5 // pred_check_branch
        %244 = sbr.rel (%p241) target = $region48
      $region47: #{_lambda_.3} parent=5 // pred_region
        %s245 = ssub.s32 %s16, 1
        %p246 = scmp.lt.s32.totalorder %s21, 1
        %s247 = scalar_select %p246, %s21, 1
        %s248 = smul.addr %s247, 36
        %s249 = smul.addr %s248, 4
        %s250 = scalar_lea.vmem %s0, %s249
        %p251 = pneg %p42
        %p252 = pneg %p39
        %p253 = pneg %p63
        %p254 = pneg %p60
        %p255 = pneg %p84
        %p256 = pneg %p81
        %p257 = pneg %p105
        %p258 = pneg %p102
        %p259 = pneg %p126
        %p260 = pneg %p123
        %p261 = pneg %p147
        %p262 = pneg %p144
        %p263 = pneg %p168
        %p264 = pneg %p165
        %p265 = pneg %p194
        %p266 = pneg %p191
        %s267 = sand.u32 %s181, 1
        %s268 = scalar_lea.sflag [#allocation4], %s267
        %s269 = sand.u32 %s181, 1
        %s270 = smul.addr %s269, 64
        %s271 = scalar_lea.vmem [#allocation3], %s270
        %p272 = scmp.lt.s32.totalorder %s21, 1
        %s273 = scalar_select %p272, %s21, 1
        %s274 = smul.addr %s273, 36
        %s275 = smul.addr %s274, 4
        %s276 = scalar_lea.vmem %s0, %s275
        %v278 = vld [vmem:[%s276] sm:$0xf]
        %v279 = vld [vmem:[%s276 + $0x10] sm:$0xf]
        %v280 = vld [vmem:[%s276 + $0x20] sm:$0xf]
        %v281 = vld [vmem:[%s276 + $0x30] sm:$0xf]
        %v282 = vld [vmem:[%s276 + $0x40] sm:$0xf]
        %v283 = vld [vmem:[%s276 + $0x50] sm:$0xf]
        %v284 = vld [vmem:[%s276 + $0x60] sm:$0xf]
        %v285 = vld [vmem:[%s276 + $0x70] sm:$0xf]
        %v286 = vld [vmem:[%s276 + $0x4] sm:$0x1]
        %v287 = vld [vmem:[%s276 + $0x14] sm:$0x1]
        %v288 = vld [vmem:[%s276 + $0x24] sm:$0x1]
        %v289 = vld [vmem:[%s276 + $0x34] sm:$0x1]
        %v290 = vld [vmem:[%s276 + $0x44] sm:$0x1]
        %v291 = vld [vmem:[%s276 + $0x54] sm:$0x1]
        %v292 = vld [vmem:[%s276 + $0x64] sm:$0x1]
        %v293 = vld [vmem:[%s276 + $0x74] sm:$0x1]
        %vm294 = vsmask.f32 3328
        %vm295 = vsmask.f32 7440
        %vm296 = vmor %vm294, %vm295
        %v298 = vshrl.u32 %v278, 16
        %v300 = vrot.slane %v298, 4
        %v301 = vshll.u32 %v278, 16
        %v303 = vrot.slane %v301, 5
        %v304 = vor.u32 %v300, %v303
        %v305 = vrot.slane %v304, 4
        %v307 = vshll.u32 %v286, 16
        %v309 = vrot.slane %v307, 5
        %v310 = vsel %vm296, %v305, %v309
        %v312 = vshrl.u32 %v279, 16
        %v314 = vrot.slane %v312, 4
        %v315 = vshll.u32 %v279, 16
        %v317 = vrot.slane %v315, 5
        %v318 = vor.u32 %v314, %v317
        %v319 = vrot.slane %v318, 4
        %v321 = vshll.u32 %v287, 16
        %v323 = vrot.slane %v321, 5
        %v324 = vsel %vm296, %v319, %v323
        %v326 = vshrl.u32 %v280, 16
        %v328 = vrot.slane %v326, 4
        %v329 = vshll.u32 %v280, 16
        %v331 = vrot.slane %v329, 5
        %v332 = vor.u32 %v328, %v331
        %v333 = vrot.slane %v332, 4
        %v335 = vshll.u32 %v288, 16
        %v337 = vrot.slane %v335, 5
        %v338 = vsel %vm296, %v333, %v337
        %v340 = vshrl.u32 %v281, 16
        %v342 = vrot.slane %v340, 4
        %v343 = vshll.u32 %v281, 16
        %v345 = vrot.slane %v343, 5
        %v346 = vor.u32 %v342, %v345
        %v347 = vrot.slane %v346, 4
        %v349 = vshll.u32 %v289, 16
        %v351 = vrot.slane %v349, 5
        %v352 = vsel %vm296, %v347, %v351
        %v354 = vshrl.u32 %v282, 16
        %v356 = vrot.slane %v354, 4
        %v357 = vshll.u32 %v282, 16
        %v359 = vrot.slane %v357, 5
        %v360 = vor.u32 %v356, %v359
        %v361 = vrot.slane %v360, 4
        %v363 = vshll.u32 %v290, 16
        %v365 = vrot.slane %v363, 5
        %v366 = vsel %vm296, %v361, %v365
        %v368 = vshrl.u32 %v283, 16
        %v370 = vrot.slane %v368, 4
        %v371 = vshll.u32 %v283, 16
        %v373 = vrot.slane %v371, 5
        %v374 = vor.u32 %v370, %v373
        %v375 = vrot.slane %v374, 4
        %v377 = vshll.u32 %v291, 16
        %v379 = vrot.slane %v377, 5
        %v380 = vsel %vm296, %v375, %v379
        %v382 = vshrl.u32 %v284, 16
        %v384 = vrot.slane %v382, 4
        %v385 = vshll.u32 %v284, 16
        %v387 = vrot.slane %v385, 5
        %v388 = vor.u32 %v384, %v387
        %v389 = vrot.slane %v388, 4
        %v391 = vshll.u32 %v292, 16
        %v393 = vrot.slane %v391, 5
        %v394 = vsel %vm296, %v389, %v393
        %v396 = vshrl.u32 %v285, 16
        %v398 = vrot.slane %v396, 4
        %v399 = vshll.u32 %v285, 16
        %v401 = vrot.slane %v399, 5
        %v402 = vor.u32 %v398, %v401
        %v403 = vrot.slane %v402, 4
        %v405 = vshll.u32 %v293, 16
        %v407 = vrot.slane %v405, 5
        %v408 = vsel %vm296, %v403, %v407
        %s409 = scalar_lea.vmem %s276, 8
        %v410 = vld [vmem:[%s409] sm:$0xf]
        %v411 = vld [vmem:[%s409 + $0x10] sm:$0xf]
        %v412 = vld [vmem:[%s409 + $0x20] sm:$0xf]
        %v413 = vld [vmem:[%s409 + $0x30] sm:$0xf]
        %v414 = vld [vmem:[%s409 + $0x40] sm:$0xf]
        %v415 = vld [vmem:[%s409 + $0x50] sm:$0xf]
        %v416 = vld [vmem:[%s409 + $0x60] sm:$0xf]
        %v417 = vld [vmem:[%s409 + $0x70] sm:$0xf]
        %v418 = vld [vmem:[%s409 + $0x4] sm:$0x1]
        %v419 = vld [vmem:[%s409 + $0x14] sm:$0x1]
        %v420 = vld [vmem:[%s409 + $0x24] sm:$0x1]
        %v421 = vld [vmem:[%s409 + $0x34] sm:$0x1]
        %v422 = vld [vmem:[%s409 + $0x44] sm:$0x1]
        %v423 = vld [vmem:[%s409 + $0x54] sm:$0x1]
        %v424 = vld [vmem:[%s409 + $0x64] sm:$0x1]
        %v425 = vld [vmem:[%s409 + $0x74] sm:$0x1]
        %v427 = vshrl.u32 %v410, 16
        %v429 = vrot.slane %v427, 4
        %v430 = vshll.u32 %v410, 16
        %v432 = vrot.slane %v430, 5
        %v433 = vor.u32 %v429, %v432
        %v434 = vrot.slane %v433, 4
        %v436 = vshll.u32 %v418, 16
        %v438 = vrot.slane %v436, 5
        %v439 = vsel %vm296, %v434, %v438
        %v441 = vshrl.u32 %v411, 16
        %v443 = vrot.slane %v441, 4
        %v444 = vshll.u32 %v411, 16
        %v446 = vrot.slane %v444, 5
        %v447 = vor.u32 %v443, %v446
        %v448 = vrot.slane %v447, 4
        %v450 = vshll.u32 %v419, 16
        %v452 = vrot.slane %v450, 5
        %v453 = vsel %vm296, %v448, %v452
        %v455 = vshrl.u32 %v412, 16
        %v457 = vrot.slane %v455, 4
        %v458 = vshll.u32 %v412, 16
        %v460 = vrot.slane %v458, 5
        %v461 = vor.u32 %v457, %v460
        %v462 = vrot.slane %v461, 4
        %v464 = vshll.u32 %v420, 16
        %v466 = vrot.slane %v464, 5
        %v467 = vsel %vm296, %v462, %v466
        %v469 = vshrl.u32 %v413, 16
        %v471 = vrot.slane %v469, 4
        %v472 = vshll.u32 %v413, 16
        %v474 = vrot.slane %v472, 5
        %v475 = vor.u32 %v471, %v474
        %v476 = vrot.slane %v475, 4
        %v478 = vshll.u32 %v421, 16
        %v480 = vrot.slane %v478, 5
        %v481 = vsel %vm296, %v476, %v480
        %v483 = vshrl.u32 %v414, 16
        %v485 = vrot.slane %v483, 4
        %v486 = vshll.u32 %v414, 16
        %v488 = vrot.slane %v486, 5
        %v489 = vor.u32 %v485, %v488
        %v490 = vrot.slane %v489, 4
        %v492 = vshll.u32 %v422, 16
        %v494 = vrot.slane %v492, 5
        %v495 = vsel %vm296, %v490, %v494
        %v497 = vshrl.u32 %v415, 16
        %v499 = vrot.slane %v497, 4
        %v500 = vshll.u32 %v415, 16
        %v502 = vrot.slane %v500, 5
        %v503 = vor.u32 %v499, %v502
        %v504 = vrot.slane %v503, 4
        %v506 = vshll.u32 %v423, 16
        %v508 = vrot.slane %v506, 5
        %v509 = vsel %vm296, %v504, %v508
        %v511 = vshrl.u32 %v416, 16
        %v513 = vrot.slane %v511, 4
        %v514 = vshll.u32 %v416, 16
        %v516 = vrot.slane %v514, 5
        %v517 = vor.u32 %v513, %v516
        %v518 = vrot.slane %v517, 4
        %v520 = vshll.u32 %v424, 16
        %v522 = vrot.slane %v520, 5
        %v523 = vsel %vm296, %v518, %v522
        %v525 = vshrl.u32 %v417, 16
        %v527 = vrot.slane %v525, 4
        %v528 = vshll.u32 %v417, 16
        %v530 = vrot.slane %v528, 5
        %v531 = vor.u32 %v527, %v530
        %v532 = vrot.slane %v531, 4
        %v534 = vshll.u32 %v425, 16
        %v536 = vrot.slane %v534, 5
        %v537 = vsel %vm296, %v532, %v536
        %s538 = scalar_lea.vmem %s276, 16
        %v539 = vld [vmem:[%s538] sm:$0xf]
        %v540 = vld [vmem:[%s538 + $0x10] sm:$0xf]
        %v541 = vld [vmem:[%s538 + $0x20] sm:$0xf]
        %v542 = vld [vmem:[%s538 + $0x30] sm:$0xf]
        %v543 = vld [vmem:[%s538 + $0x40] sm:$0xf]
        %v544 = vld [vmem:[%s538 + $0x50] sm:$0xf]
        %v545 = vld [vmem:[%s538 + $0x60] sm:$0xf]
        %v546 = vld [vmem:[%s538 + $0x70] sm:$0xf]
        %v547 = vld [vmem:[%s538 + $0x4] sm:$0x1]
        %v548 = vld [vmem:[%s538 + $0x14] sm:$0x1]
        %v549 = vld [vmem:[%s538 + $0x24] sm:$0x1]
        %v550 = vld [vmem:[%s538 + $0x34] sm:$0x1]
        %v551 = vld [vmem:[%s538 + $0x44] sm:$0x1]
        %v552 = vld [vmem:[%s538 + $0x54] sm:$0x1]
        %v553 = vld [vmem:[%s538 + $0x64] sm:$0x1]
        %v554 = vld [vmem:[%s538 + $0x74] sm:$0x1]
        %v556 = vshrl.u32 %v539, 16
        %v558 = vrot.slane %v556, 4
        %v559 = vshll.u32 %v539, 16
        %v561 = vrot.slane %v559, 5
        %v562 = vor.u32 %v558, %v561
        %v563 = vrot.slane %v562, 4
        %v565 = vshll.u32 %v547, 16
        %v567 = vrot.slane %v565, 5
        %v568 = vsel %vm296, %v563, %v567
        %v570 = vshrl.u32 %v540, 16
        %v572 = vrot.slane %v570, 4
        %v573 = vshll.u32 %v540, 16
        %v575 = vrot.slane %v573, 5
        %v576 = vor.u32 %v572, %v575
        %v577 = vrot.slane %v576, 4
        %v579 = vshll.u32 %v548, 16
        %v581 = vrot.slane %v579, 5
        %v582 = vsel %vm296, %v577, %v581
        %v584 = vshrl.u32 %v541, 16
        %v586 = vrot.slane %v584, 4
        %v587 = vshll.u32 %v541, 16
        %v589 = vrot.slane %v587, 5
        %v590 = vor.u32 %v586, %v589
        %v591 = vrot.slane %v590, 4
        %v593 = vshll.u32 %v549, 16
        %v595 = vrot.slane %v593, 5
        %v596 = vsel %vm296, %v591, %v595
        %v598 = vshrl.u32 %v542, 16
        %v600 = vrot.slane %v598, 4
        %v601 = vshll.u32 %v542, 16
        %v603 = vrot.slane %v601, 5
        %v604 = vor.u32 %v600, %v603
        %v605 = vrot.slane %v604, 4
        %v607 = vshll.u32 %v550, 16
        %v609 = vrot.slane %v607, 5
        %v610 = vsel %vm296, %v605, %v609
        %v612 = vshrl.u32 %v543, 16
        %v614 = vrot.slane %v612, 4
        %v615 = vshll.u32 %v543, 16
        %v617 = vrot.slane %v615, 5
        %v618 = vor.u32 %v614, %v617
        %v619 = vrot.slane %v618, 4
        %v621 = vshll.u32 %v551, 16
        %v623 = vrot.slane %v621, 5
        %v624 = vsel %vm296, %v619, %v623
        %v626 = vshrl.u32 %v544, 16
        %v628 = vrot.slane %v626, 4
        %v629 = vshll.u32 %v544, 16
        %v631 = vrot.slane %v629, 5
        %v632 = vor.u32 %v628, %v631
        %v633 = vrot.slane %v632, 4
        %v635 = vshll.u32 %v552, 16
        %v637 = vrot.slane %v635, 5
        %v638 = vsel %vm296, %v633, %v637
        %v640 = vshrl.u32 %v545, 16
        %v642 = vrot.slane %v640, 4
        %v643 = vshll.u32 %v545, 16
        %v645 = vrot.slane %v643, 5
        %v646 = vor.u32 %v642, %v645
        %v647 = vrot.slane %v646, 4
        %v649 = vshll.u32 %v553, 16
        %v651 = vrot.slane %v649, 5
        %v652 = vsel %vm296, %v647, %v651
        %v654 = vshrl.u32 %v546, 16
        %v656 = vrot.slane %v654, 4
        %v657 = vshll.u32 %v546, 16
        %v659 = vrot.slane %v657, 5
        %v660 = vor.u32 %v656, %v659
        %v661 = vrot.slane %v660, 4
        %v663 = vshll.u32 %v554, 16
        %v665 = vrot.slane %v663, 5
        %v666 = vsel %vm296, %v661, %v665
        %v675 = vunpack.c.l.b16 %v278
        %v676 = vunpack.c.l.b16 %v279
        %v677 = vunpack.c.l.b16 %v280
        %v678 = vunpack.c.l.b16 %v281
        %v679 = vunpack.c.l.b16 %v282
        %v680 = vunpack.c.l.b16 %v283
        %v681 = vunpack.c.l.b16 %v284
        %v682 = vunpack.c.l.b16 %v285
        %v683 = vpack.c.b16 %v676, %v675
        %v684 = vpack.c.b16 %v678, %v677
        %v685 = vpack.c.b16 %v680, %v679
        %v686 = vpack.c.b16 %v682, %v681
        %v691 = vunpack.c.l.b16 %v310
        %v692 = vunpack.c.l.b16 %v324
        %v693 = vunpack.c.l.b16 %v338
        %v694 = vunpack.c.l.b16 %v352
        %v695 = vunpack.c.l.b16 %v366
        %v696 = vunpack.c.l.b16 %v380
        %v697 = vunpack.c.l.b16 %v394
        %v698 = vunpack.c.l.b16 %v408
        %v699 = vpack.c.b16 %v692, %v691
        %v700 = vpack.c.b16 %v694, %v693
        %v701 = vpack.c.b16 %v696, %v695
        %v702 = vpack.c.b16 %v698, %v697
        %v715 = vunpack.c.l.b16 %v410
        %v716 = vunpack.c.l.b16 %v411
        %v717 = vunpack.c.l.b16 %v412
        %v718 = vunpack.c.l.b16 %v413
        %v719 = vunpack.c.l.b16 %v414
        %v720 = vunpack.c.l.b16 %v415
        %v721 = vunpack.c.l.b16 %v416
        %v722 = vunpack.c.l.b16 %v417
        %v723 = vpack.c.b16 %v716, %v715
        %v724 = vpack.c.b16 %v718, %v717
        %v725 = vpack.c.b16 %v720, %v719
        %v726 = vpack.c.b16 %v722, %v721
        %v731 = vunpack.c.l.b16 %v439
        %v732 = vunpack.c.l.b16 %v453
        %v733 = vunpack.c.l.b16 %v467
        %v734 = vunpack.c.l.b16 %v481
        %v735 = vunpack.c.l.b16 %v495
        %v736 = vunpack.c.l.b16 %v509
        %v737 = vunpack.c.l.b16 %v523
        %v738 = vunpack.c.l.b16 %v537
        %v739 = vpack.c.b16 %v732, %v731
        %v740 = vpack.c.b16 %v734, %v733
        %v741 = vpack.c.b16 %v736, %v735
        %v742 = vpack.c.b16 %v738, %v737
        %v755 = vunpack.c.l.b16 %v539
        %v756 = vunpack.c.l.b16 %v540
        %v757 = vunpack.c.l.b16 %v541
        %v758 = vunpack.c.l.b16 %v542
        %v759 = vunpack.c.l.b16 %v543
        %v760 = vunpack.c.l.b16 %v544
        %v761 = vunpack.c.l.b16 %v545
        %v762 = vunpack.c.l.b16 %v546
        %v763 = vpack.c.b16 %v756, %v755
        %v764 = vpack.c.b16 %v758, %v757
        %v765 = vpack.c.b16 %v760, %v759
        %v766 = vpack.c.b16 %v762, %v761
        %v771 = vunpack.c.l.b16 %v568
        %v772 = vunpack.c.l.b16 %v582
        %v773 = vunpack.c.l.b16 %v596
        %v774 = vunpack.c.l.b16 %v610
        %v775 = vunpack.c.l.b16 %v624
        %v776 = vunpack.c.l.b16 %v638
        %v777 = vunpack.c.l.b16 %v652
        %v778 = vunpack.c.l.b16 %v666
        %v779 = vpack.c.b16 %v772, %v771
        %v780 = vpack.c.b16 %v774, %v773
        %v781 = vpack.c.b16 %v776, %v775
        %v782 = vpack.c.b16 %v778, %v777
        %v787 = vld [vmem:[%s1] sm:$0xf]
        %v788 = vld [vmem:[%s1 + $0x4] sm:$0xf]
        %v789 = vld [vmem:[%s1 + $0x8] sm:$0xf]
        %v790 = vld [vmem:[%s1 + $0xc] sm:$0xf]
        %v791 = vld [vmem:[%s1 + $0x10] sm:$0xf]
        %v792 = vld [vmem:[%s1 + $0x14] sm:$0xf]
        %v793 = vld [vmem:[%s1 + $0x18] sm:$0xf]
        %v794 = vld [vmem:[%s1 + $0x1c] sm:$0xf]
        %v795 = vld [vmem:[%s1 + $0x20] sm:$0xf]
        %v796 = vld [vmem:[%s1 + $0x24] sm:$0xf]
        %v797 = vld [vmem:[%s1 + $0x28] sm:$0xf]
        %v798 = vld [vmem:[%s1 + $0x2c] sm:$0xf]
        %v799 = vld [vmem:[%s1 + $0x30] sm:$0xf]
        %v800 = vld [vmem:[%s1 + $0x34] sm:$0xf]
        %v801 = vld [vmem:[%s1 + $0x38] sm:$0xf]
        %v802 = vld [vmem:[%s1 + $0x3c] sm:$0xf]
        %v803 = vld [vmem:[%s1 + $0x40] sm:$0xf]
        %v804 = vld [vmem:[%s1 + $0x44] sm:$0xf]
        %v805 = vld [vmem:[%s1 + $0x48] sm:$0xf]
        %v806 = vld [vmem:[%s1 + $0x4c] sm:$0xf]
        %v807 = vld [vmem:[%s1 + $0x50] sm:$0xf]
        %v808 = vld [vmem:[%s1 + $0x54] sm:$0xf]
        %v809 = vld [vmem:[%s1 + $0x58] sm:$0xf]
        %v810 = vld [vmem:[%s1 + $0x5c] sm:$0xf]
        %v811 = vld [vmem:[%s1 + $0x60] sm:$0xf]
        %v812 = vld [vmem:[%s1 + $0x64] sm:$0xf]
        %v813 = vld [vmem:[%s1 + $0x68] sm:$0xf]
        %v814 = vld [vmem:[%s1 + $0x6c] sm:$0xf]
        %v815 = vld [vmem:[%s1 + $0x70] sm:$0xf]
        %v816 = vld [vmem:[%s1 + $0x74] sm:$0xf]
        %v817 = vld [vmem:[%s1 + $0x78] sm:$0xf]
        %v818 = vld [vmem:[%s1 + $0x7c] sm:$0xf]
        %v819 = vld [vmem:[%s1 + $0x80] sm:$0xf]
        %v820 = vld [vmem:[%s1 + $0x84] sm:$0xf]
        %v821 = vld [vmem:[%s1 + $0x88] sm:$0xf]
        %v822 = vld [vmem:[%s1 + $0x8c] sm:$0xf]
        %v823 = vld [vmem:[%s1 + $0x90] sm:$0xf]
        %v824 = vld [vmem:[%s1 + $0x94] sm:$0xf]
        %v825 = vld [vmem:[%s1 + $0x98] sm:$0xf]
        %v826 = vld [vmem:[%s1 + $0x9c] sm:$0xf]
        %v827 = vld [vmem:[%s1 + $0xa0] sm:$0xf]
        %v828 = vld [vmem:[%s1 + $0xa4] sm:$0xf]
        %v829 = vld [vmem:[%s1 + $0xa8] sm:$0xf]
        %v830 = vld [vmem:[%s1 + $0xac] sm:$0xf]
        %v831 = vld [vmem:[%s1 + $0xb0] sm:$0xf]
        %v832 = vld [vmem:[%s1 + $0xb4] sm:$0xf]
        %v833 = vld [vmem:[%s1 + $0xb8] sm:$0xf]
        %v834 = vld [vmem:[%s1 + $0xbc] sm:$0xf]
        %v835 = vld [vmem:[%s1 + $0xc0] sm:$0xf]
        %v836 = vld [vmem:[%s1 + $0xc4] sm:$0xf]
        %v837 = vld [vmem:[%s1 + $0xc8] sm:$0xf]
        %v838 = vld [vmem:[%s1 + $0xcc] sm:$0xf]
        %v839 = vld [vmem:[%s1 + $0xd0] sm:$0xf]
        %v840 = vld [vmem:[%s1 + $0xd4] sm:$0xf]
        %v841 = vld [vmem:[%s1 + $0xd8] sm:$0xf]
        %v842 = vld [vmem:[%s1 + $0xdc] sm:$0xf]
        %v843 = vld [vmem:[%s1 + $0xe0] sm:$0xf]
        %v844 = vld [vmem:[%s1 + $0xe4] sm:$0xf]
        %v845 = vld [vmem:[%s1 + $0xe8] sm:$0xf]
        %v846 = vld [vmem:[%s1 + $0xec] sm:$0xf]
        %v847 = vld [vmem:[%s1 + $0xf0] sm:$0xf]
        %v848 = vld [vmem:[%s1 + $0xf4] sm:$0xf]
        %v849 = vld [vmem:[%s1 + $0xf8] sm:$0xf]
        %v850 = vld [vmem:[%s1 + $0xfc] sm:$0xf]
        %v851 = vld [vmem:[%s1 + $0x100] sm:$0xf]
        %v852 = vld [vmem:[%s1 + $0x104] sm:$0xf]
        %v853 = vld [vmem:[%s1 + $0x108] sm:$0xf]
        %v854 = vld [vmem:[%s1 + $0x10c] sm:$0xf]
        %v855 = vld [vmem:[%s1 + $0x110] sm:$0xf]
        %v856 = vld [vmem:[%s1 + $0x114] sm:$0xf]
        %v857 = vld [vmem:[%s1 + $0x118] sm:$0xf]
        %v858 = vld [vmem:[%s1 + $0x11c] sm:$0xf]
        %v859 = vld [vmem:[%s1 + $0x120] sm:$0xf]
        %v860 = vld [vmem:[%s1 + $0x124] sm:$0xf]
        %v861 = vld [vmem:[%s1 + $0x128] sm:$0xf]
        %v862 = vld [vmem:[%s1 + $0x12c] sm:$0xf]
        %v863 = vld [vmem:[%s1 + $0x130] sm:$0xf]
        %v864 = vld [vmem:[%s1 + $0x134] sm:$0xf]
        %v865 = vld [vmem:[%s1 + $0x138] sm:$0xf]
        %v866 = vld [vmem:[%s1 + $0x13c] sm:$0xf]
        %v867 = vld [vmem:[%s1 + $0x140] sm:$0xf]
        %v868 = vld [vmem:[%s1 + $0x144] sm:$0xf]
        %v869 = vld [vmem:[%s1 + $0x148] sm:$0xf]
        %v870 = vld [vmem:[%s1 + $0x14c] sm:$0xf]
        %v871 = vld [vmem:[%s1 + $0x150] sm:$0xf]
        %v872 = vld [vmem:[%s1 + $0x154] sm:$0xf]
        %v873 = vld [vmem:[%s1 + $0x158] sm:$0xf]
        %v874 = vld [vmem:[%s1 + $0x15c] sm:$0xf]
        %v875 = vld [vmem:[%s1 + $0x160] sm:$0xf]
        %v876 = vld [vmem:[%s1 + $0x164] sm:$0xf]
        %v877 = vld [vmem:[%s1 + $0x168] sm:$0xf]
        %v878 = vld [vmem:[%s1 + $0x16c] sm:$0xf]
        %v879 = vld [vmem:[%s1 + $0x170] sm:$0xf]
        %v880 = vld [vmem:[%s1 + $0x174] sm:$0xf]
        %v881 = vld [vmem:[%s1 + $0x178] sm:$0xf]
        %v882 = vld [vmem:[%s1 + $0x17c] sm:$0xf]
        %v883 = vld [vmem:[%s2] sm:$0x1]
        %v885 = vlaneseq
        %v886 = vshrl.u32 %v885, 7
        %v887 = vsub.s32 0, %v886
        %v888 = vrot.slane %v883, %v887
        %v986 = vunpack.c.l.b16 %v787
        %v987 = vunpack.c.l.b16 %v788
        %v988 = vunpack.c.l.b16 %v789
        %v989 = vunpack.c.l.b16 %v790
        %v990 = vunpack.c.l.b16 %v791
        %v991 = vunpack.c.l.b16 %v792
        %v992 = vunpack.c.l.b16 %v793
        %v993 = vunpack.c.l.b16 %v794
        %v994 = vunpack.c.l.b16 %v795
        %v995 = vunpack.c.l.b16 %v796
        %v996 = vunpack.c.l.b16 %v797
        %v997 = vunpack.c.l.b16 %v798
        %v998 = vunpack.c.l.b16 %v799
        %v999 = vunpack.c.l.b16 %v800
        %v1000 = vunpack.c.l.b16 %v801
        %v1001 = vunpack.c.l.b16 %v802
        %v1002 = vunpack.c.l.b16 %v803
        %v1003 = vunpack.c.l.b16 %v804
        %v1004 = vunpack.c.l.b16 %v805
        %v1005 = vunpack.c.l.b16 %v806
        %v1006 = vunpack.c.l.b16 %v807
        %v1007 = vunpack.c.l.b16 %v808
        %v1008 = vunpack.c.l.b16 %v809
        %v1009 = vunpack.c.l.b16 %v810
        %v1010 = vunpack.c.l.b16 %v811
        %v1011 = vunpack.c.l.b16 %v812
        %v1012 = vunpack.c.l.b16 %v813
        %v1013 = vunpack.c.l.b16 %v814
        %v1014 = vunpack.c.l.b16 %v815
        %v1015 = vunpack.c.l.b16 %v816
        %v1016 = vunpack.c.l.b16 %v817
        %v1017 = vunpack.c.l.b16 %v818
        %v1018 = vunpack.c.l.b16 %v819
        %v1019 = vunpack.c.l.b16 %v820
        %v1020 = vunpack.c.l.b16 %v821
        %v1021 = vunpack.c.l.b16 %v822
        %v1022 = vunpack.c.l.b16 %v823
        %v1023 = vunpack.c.l.b16 %v824
        %v1024 = vunpack.c.l.b16 %v825
        %v1025 = vunpack.c.l.b16 %v826
        %v1026 = vunpack.c.l.b16 %v827
        %v1027 = vunpack.c.l.b16 %v828
        %v1028 = vunpack.c.l.b16 %v829
        %v1029 = vunpack.c.l.b16 %v830
        %v1030 = vunpack.c.l.b16 %v831
        %v1031 = vunpack.c.l.b16 %v832
        %v1032 = vunpack.c.l.b16 %v833
        %v1033 = vunpack.c.l.b16 %v834
        %v1034 = vunpack.c.l.b16 %v835
        %v1035 = vunpack.c.l.b16 %v836
        %v1036 = vunpack.c.l.b16 %v837
        %v1037 = vunpack.c.l.b16 %v838
        %v1038 = vunpack.c.l.b16 %v839
        %v1039 = vunpack.c.l.b16 %v840
        %v1040 = vunpack.c.l.b16 %v841
        %v1041 = vunpack.c.l.b16 %v842
        %v1042 = vunpack.c.l.b16 %v843
        %v1043 = vunpack.c.l.b16 %v844
        %v1044 = vunpack.c.l.b16 %v845
        %v1045 = vunpack.c.l.b16 %v846
        %v1046 = vunpack.c.l.b16 %v847
        %v1047 = vunpack.c.l.b16 %v848
        %v1048 = vunpack.c.l.b16 %v849
        %v1049 = vunpack.c.l.b16 %v850
        %v1050 = vunpack.c.l.b16 %v851
        %v1051 = vunpack.c.l.b16 %v852
        %v1052 = vunpack.c.l.b16 %v853
        %v1053 = vunpack.c.l.b16 %v854
        %v1054 = vunpack.c.l.b16 %v855
        %v1055 = vunpack.c.l.b16 %v856
        %v1056 = vunpack.c.l.b16 %v857
        %v1057 = vunpack.c.l.b16 %v858
        %v1058 = vunpack.c.l.b16 %v859
        %v1059 = vunpack.c.l.b16 %v860
        %v1060 = vunpack.c.l.b16 %v861
        %v1061 = vunpack.c.l.b16 %v862
        %v1062 = vunpack.c.l.b16 %v863
        %v1063 = vunpack.c.l.b16 %v864
        %v1064 = vunpack.c.l.b16 %v865
        %v1065 = vunpack.c.l.b16 %v866
        %v1066 = vunpack.c.l.b16 %v867
        %v1067 = vunpack.c.l.b16 %v868
        %v1068 = vunpack.c.l.b16 %v869
        %v1069 = vunpack.c.l.b16 %v870
        %v1070 = vunpack.c.l.b16 %v871
        %v1071 = vunpack.c.l.b16 %v872
        %v1072 = vunpack.c.l.b16 %v873
        %v1073 = vunpack.c.l.b16 %v874
        %v1074 = vunpack.c.l.b16 %v875
        %v1075 = vunpack.c.l.b16 %v876
        %v1076 = vunpack.c.l.b16 %v877
        %v1077 = vunpack.c.l.b16 %v878
        %v1078 = vunpack.c.l.b16 %v879
        %v1079 = vunpack.c.l.b16 %v880
        %v1080 = vunpack.c.l.b16 %v881
        %v1081 = vunpack.c.l.b16 %v882
        %v1082 = vpack.c.b16 %v987, %v986
        %v1083 = vpack.c.b16 %v989, %v988
        %v1084 = vpack.c.b16 %v991, %v990
        %v1085 = vpack.c.b16 %v993, %v992
        %v1086 = vpack.c.b16 %v995, %v994
        %v1087 = vpack.c.b16 %v997, %v996
        %v1088 = vpack.c.b16 %v999, %v998
        %v1089 = vpack.c.b16 %v1001, %v1000
        %v1090 = vpack.c.b16 %v1003, %v1002
        %v1091 = vpack.c.b16 %v1005, %v1004
        %v1092 = vpack.c.b16 %v1007, %v1006
        %v1093 = vpack.c.b16 %v1009, %v1008
        %v1094 = vpack.c.b16 %v1011, %v1010
        %v1095 = vpack.c.b16 %v1013, %v1012
        %v1096 = vpack.c.b16 %v1015, %v1014
        %v1097 = vpack.c.b16 %v1017, %v1016
        %v1098 = vpack.c.b16 %v1019, %v1018
        %v1099 = vpack.c.b16 %v1021, %v1020
        %v1100 = vpack.c.b16 %v1023, %v1022
        %v1101 = vpack.c.b16 %v1025, %v1024
        %v1102 = vpack.c.b16 %v1027, %v1026
        %v1103 = vpack.c.b16 %v1029, %v1028
        %v1104 = vpack.c.b16 %v1031, %v1030
        %v1105 = vpack.c.b16 %v1033, %v1032
        %v1106 = vpack.c.b16 %v1035, %v1034
        %v1107 = vpack.c.b16 %v1037, %v1036
        %v1108 = vpack.c.b16 %v1039, %v1038
        %v1109 = vpack.c.b16 %v1041, %v1040
        %v1110 = vpack.c.b16 %v1043, %v1042
        %v1111 = vpack.c.b16 %v1045, %v1044
        %v1112 = vpack.c.b16 %v1047, %v1046
        %v1113 = vpack.c.b16 %v1049, %v1048
        %v1114 = vpack.c.b16 %v1051, %v1050
        %v1115 = vpack.c.b16 %v1053, %v1052
        %v1116 = vpack.c.b16 %v1055, %v1054
        %v1117 = vpack.c.b16 %v1057, %v1056
        %v1118 = vpack.c.b16 %v1059, %v1058
        %v1119 = vpack.c.b16 %v1061, %v1060
        %v1120 = vpack.c.b16 %v1063, %v1062
        %v1121 = vpack.c.b16 %v1065, %v1064
        %v1122 = vpack.c.b16 %v1067, %v1066
        %v1123 = vpack.c.b16 %v1069, %v1068
        %v1124 = vpack.c.b16 %v1071, %v1070
        %v1125 = vpack.c.b16 %v1073, %v1072
        %v1126 = vpack.c.b16 %v1075, %v1074
        %v1127 = vpack.c.b16 %v1077, %v1076
        %v1128 = vpack.c.b16 %v1079, %v1078
        %v1129 = vpack.c.b16 %v1081, %v1080
        %1178 = vmatprep.subr.bf16.mxu0 0
        %1179 = vmatpush1.bf16.msra.mxu0 %v1082
        %1180 = vmatprep.subr.bf16.mxu0 0
        %1181 = vmatpush1.bf16.msra.mxu0 %v1083
        %1182 = vmatprep.subr.bf16.mxu0 0
        %1183 = vmatpush1.bf16.msra.mxu0 %v1084
        %1184 = vmatprep.subr.bf16.mxu0 0
        %1185 = vmatpush1.bf16.msra.mxu0 %v1085
        %1186 = vmatprep.subr.bf16.mxu0 0
        %1187 = vmatpush1.bf16.msra.mxu0 %v1086
        %1188 = vmatprep.subr.bf16.mxu0 0
        %1189 = vmatpush1.bf16.msra.mxu0 %v1087
        %1190 = vmatprep.subr.bf16.mxu0 0
        %1191 = vmatpush1.bf16.msra.mxu0 %v1088
        %1192 = vmatprep.subr.bf16.mxu0 0
        %1193 = vmatpush1.bf16.msra.mxu0 %v1089
        %1194 = vmatprep.subr.bf16.mxu0 0
        %1195 = vmatpush1.bf16.msra.mxu0 %v1090
        %1196 = vmatprep.subr.bf16.mxu0 0
        %1197 = vmatpush1.bf16.msra.mxu0 %v1091
        %1198 = vmatprep.subr.bf16.mxu0 0
        %1199 = vmatpush1.bf16.msra.mxu0 %v1092
        %1200 = vmatprep.subr.bf16.mxu0 0
        %1201 = vmatpush1.bf16.msra.mxu0 %v1093
        %1202 = vmatprep.subr.bf16.mxu0 0
        %1203 = vmatpush1.bf16.msra.mxu0 %v1094
        %1204 = vmatprep.subr.bf16.mxu0 0
        %1205 = vmatpush1.bf16.msra.mxu0 %v1095
        %1206 = vmatprep.subr.bf16.mxu0 0
        %1207 = vmatpush1.bf16.msra.mxu0 %v1096
        %1208 = vmatprep.subr.bf16.mxu0 0
        %1209 = vmatpush1.bf16.msra.mxu0 %v1097
        %1210 = vmatprep.mubr.bf16.mxu0 %v699
        %1211 = vmatmul.mubr.bf16.gmra.mrb[0].mxu0 %v683
        %v1212 = vpop.f32.mrb[0].mxu0
        %v1213 = vadd.f32 %v888, %v1212
        %v1214 = vpop.f32.mrb[0].mxu0
        %v1215 = vpop.f32.mrb[0].mxu0
        %v1216 = vadd.f32 %v888, %v1215
        %v1217 = vpop.f32.mrb[0].mxu0
        %1218 = vmatprep.mubr.bf16.mxu0 %v700
        %1219 = vmatmul.mubr.bf16.gmra.mrb[0].mxu0 %v684
        %v1220 = vpop.f32.mrb[0].mxu0
        %v1221 = vadd.f32 %v888, %v1220
        %v1222 = vpop.f32.mrb[0].mxu0
        %v1223 = vpop.f32.mrb[0].mxu0
        %v1224 = vadd.f32 %v888, %v1223
        %v1225 = vpop.f32.mrb[0].mxu0
        %1226 = vmatprep.mubr.bf16.mxu0 %v701
        %1227 = vmatmul.mubr.bf16.gmra.mrb[0].mxu0 %v685
        %v1228 = vpop.f32.mrb[0].mxu0
        %v1229 = vadd.f32 %v888, %v1228
        %v1230 = vpop.f32.mrb[0].mxu0
        %v1231 = vpop.f32.mrb[0].mxu0
        %v1232 = vadd.f32 %v888, %v1231
        %v1233 = vpop.f32.mrb[0].mxu0
        %1234 = vmatprep.mubr.bf16.mxu0 %v702
        %1235 = vmatmul.mubr.bf16.gmra.mrb[0].mxu0 %v686
        %v1236 = vpop.f32.mrb[0].mxu0
        %v1237 = vadd.f32 %v888, %v1236
        %v1238 = vpop.f32.mrb[0].mxu0
        %v1239 = vpop.f32.mrb[0].mxu0
        %v1240 = vadd.f32 %v888, %v1239
        %v1241 = vpop.f32.mrb[0].mxu0
        %1242 = vdwg.mxu0
        %1243 = vmatprep.subr.bf16.mxu0 0
        %1244 = vmatpush1.bf16.msra.mxu0 %v1098
        %1245 = vmatprep.subr.bf16.mxu0 0
        %1246 = vmatpush1.bf16.msra.mxu0 %v1099
        %1247 = vmatprep.subr.bf16.mxu0 0
        %1248 = vmatpush1.bf16.msra.mxu0 %v1100
        %1249 = vmatprep.subr.bf16.mxu0 0
        %1250 = vmatpush1.bf16.msra.mxu0 %v1101
        %1251 = vmatprep.subr.bf16.mxu0 0
        %1252 = vmatpush1.bf16.msra.mxu0 %v1102
        %1253 = vmatprep.subr.bf16.mxu0 0
        %1254 = vmatpush1.bf16.msra.mxu0 %v1103
        %1255 = vmatprep.subr.bf16.mxu0 0
        %1256 = vmatpush1.bf16.msra.mxu0 %v1104
        %1257 = vmatprep.subr.bf16.mxu0 0
        %1258 = vmatpush1.bf16.msra.mxu0 %v1105
        %1259 = vmatprep.subr.bf16.mxu0 0
        %1260 = vmatpush1.bf16.msra.mxu0 %v1106
        %1261 = vmatprep.subr.bf16.mxu0 0
        %1262 = vmatpush1.bf16.msra.mxu0 %v1107
        %1263 = vmatprep.subr.bf16.mxu0 0
        %1264 = vmatpush1.bf16.msra.mxu0 %v1108
        %1265 = vmatprep.subr.bf16.mxu0 0
        %1266 = vmatpush1.bf16.msra.mxu0 %v1109
        %1267 = vmatprep.subr.bf16.mxu0 0
        %1268 = vmatpush1.bf16.msra.mxu0 %v1110
        %1269 = vmatprep.subr.bf16.mxu0 0
        %1270 = vmatpush1.bf16.msra.mxu0 %v1111
        %1271 = vmatprep.subr.bf16.mxu0 0
        %1272 = vmatpush1.bf16.msra.mxu0 %v1112
        %1273 = vmatprep.subr.bf16.mxu0 0
        %1274 = vmatpush1.bf16.msra.mxu0 %v1113
        %1275 = vmatprep.mubr.bf16.mxu0 %v739
        %1276 = vmatmul.mubr.bf16.gmra.mrb[0].mxu0 %v723
        %v1277 = vpop.f32.mrb[0].mxu0
        %v1278 = vadd.f32 %v1213, %v1277
        %v1279 = vpop.f32.mrb[0].mxu0
        %v1280 = vpop.f32.mrb[0].mxu0
        %v1281 = vadd.f32 %v1216, %v1280
        %v1282 = vpop.f32.mrb[0].mxu0
        %1283 = vmatprep.mubr.bf16.mxu0 %v740
        %1284 = vmatmul.mubr.bf16.gmra.mrb[0].mxu0 %v724
        %v1285 = vpop.f32.mrb[0].mxu0
        %v1286 = vadd.f32 %v1221, %v1285
        %v1287 = vpop.f32.mrb[0].mxu0
        %v1288 = vpop.f32.mrb[0].mxu0
        %v1289 = vadd.f32 %v1224, %v1288
        %v1290 = vpop.f32.mrb[0].mxu0
        %1291 = vmatprep.mubr.bf16.mxu0 %v741
        %1292 = vmatmul.mubr.bf16.gmra.mrb[0].mxu0 %v725
        %v1293 = vpop.f32.mrb[0].mxu0
        %v1294 = vadd.f32 %v1229, %v1293
        %v1295 = vpop.f32.mrb[0].mxu0
        %v1296 = vpop.f32.mrb[0].mxu0
        %v1297 = vadd.f32 %v1232, %v1296
        %v1298 = vpop.f32.mrb[0].mxu0
        %1299 = vmatprep.mubr.bf16.mxu0 %v742
        %1300 = vmatmul.mubr.bf16.gmra.mrb[0].mxu0 %v726
        %v1301 = vpop.f32.mrb[0].mxu0
        %v1302 = vadd.f32 %v1237, %v1301
        %v1303 = vpop.f32.mrb[0].mxu0
        %v1304 = vpop.f32.mrb[0].mxu0
        %v1305 = vadd.f32 %v1240, %v1304
        %v1306 = vpop.f32.mrb[0].mxu0
        %1307 = vdwg.mxu0
        %1308 = vmatprep.subr.bf16.mxu0 0
        %1309 = vmatpush1.bf16.msra.mxu0 %v1114
        %1310 = vmatprep.subr.bf16.mxu0 0
        %1311 = vmatpush1.bf16.msra.mxu0 %v1115
        %1312 = vmatprep.subr.bf16.mxu0 0
        %1313 = vmatpush1.bf16.msra.mxu0 %v1116
        %1314 = vmatprep.subr.bf16.mxu0 0
        %1315 = vmatpush1.bf16.msra.mxu0 %v1117
        %1316 = vmatprep.subr.bf16.mxu0 0
        %1317 = vmatpush1.bf16.msra.mxu0 %v1118
        %1318 = vmatprep.subr.bf16.mxu0 0
        %1319 = vmatpush1.bf16.msra.mxu0 %v1119
        %1320 = vmatprep.subr.bf16.mxu0 0
        %1321 = vmatpush1.bf16.msra.mxu0 %v1120
        %1322 = vmatprep.subr.bf16.mxu0 0
        %1323 = vmatpush1.bf16.msra.mxu0 %v1121
        %1324 = vmatprep.subr.bf16.mxu0 0
        %1325 = vmatpush1.bf16.msra.mxu0 %v1122
        %1326 = vmatprep.subr.bf16.mxu0 0
        %1327 = vmatpush1.bf16.msra.mxu0 %v1123
        %1328 = vmatprep.subr.bf16.mxu0 0
        %1329 = vmatpush1.bf16.msra.mxu0 %v1124
        %1330 = vmatprep.subr.bf16.mxu0 0
        %1331 = vmatpush1.bf16.msra.mxu0 %v1125
        %1332 = vmatprep.subr.bf16.mxu0 0
        %1333 = vmatpush1.bf16.msra.mxu0 %v1126
        %1334 = vmatprep.subr.bf16.mxu0 0
        %1335 = vmatpush1.bf16.msra.mxu0 %v1127
        %1336 = vmatprep.subr.bf16.mxu0 0
        %1337 = vmatpush1.bf16.msra.mxu0 %v1128
        %1338 = vmatprep.subr.bf16.mxu0 0
        %1339 = vmatpush1.bf16.msra.mxu0 %v1129
        %1340 = vmatprep.mubr.bf16.mxu0 %v779
        %1341 = vmatmul.mubr.bf16.gmra.mrb[0].mxu0 %v763
        %v1342 = vpop.f32.mrb[0].mxu0
        %v1343 = vadd.f32 %v1278, %v1342
        %v1344 = vpop.f32.mrb[0].mxu0
        %v1345 = vpop.f32.mrb[0].mxu0
        %v1346 = vadd.f32 %v1281, %v1345
        %v1347 = vpop.f32.mrb[0].mxu0
        %1348 = vmatprep.mubr.bf16.mxu0 %v780
        %1349 = vmatmul.mubr.bf16.gmra.mrb[0].mxu0 %v764
        %v1350 = vpop.f32.mrb[0].mxu0
        %v1351 = vadd.f32 %v1286, %v1350
        %v1352 = vpop.f32.mrb[0].mxu0
        %v1353 = vpop.f32.mrb[0].mxu0
        %v1354 = vadd.f32 %v1289, %v1353
        %v1355 = vpop.f32.mrb[0].mxu0
        %1356 = vmatprep.mubr.bf16.mxu0 %v781
        %1357 = vmatmul.mubr.bf16.gmra.mrb[0].mxu0 %v765
        %v1358 = vpop.f32.mrb[0].mxu0
        %v1359 = vadd.f32 %v1294, %v1358
        %v1360 = vpop.f32.mrb[0].mxu0
        %v1361 = vpop.f32.mrb[0].mxu0
        %v1362 = vadd.f32 %v1297, %v1361
        %v1363 = vpop.f32.mrb[0].mxu0
        %1364 = vmatprep.mubr.bf16.mxu0 %v782
        %1365 = vmatmul.mubr.bf16.gmra.mrb[0].mxu0 %v766
        %v1366 = vpop.f32.mrb[0].mxu0
        %v1367 = vadd.f32 %v1302, %v1366
        %v1368 = vpop.f32.mrb[0].mxu0
        %v1369 = vpop.f32.mrb[0].mxu0
        %v1370 = vadd.f32 %v1305, %v1369
        %v1371 = vpop.f32.mrb[0].mxu0
        %1372 = vdwg.mxu0
        %v1373 = vmax.f32 %v1343, 0.0
        %v1374 = vmax.f32 %v1346, 0.0
        %v1375 = vmax.f32 %v1351, 0.0
        %v1376 = vmax.f32 %v1354, 0.0
        %v1377 = vmax.f32 %v1359, 0.0
        %v1378 = vmax.f32 %v1362, 0.0
        %v1379 = vmax.f32 %v1367, 0.0
        %v1380 = vmax.f32 %v1370, 0.0
        %v1381 = vld [vmem:[%s5] sm:$0xf]
        %v1382 = vld [vmem:[%s5 + $0x4] sm:$0xf]
        %v1383 = vld [vmem:[%s5 + $0x8] sm:$0xf]
        %v1384 = vld [vmem:[%s5 + $0xc] sm:$0xf]
        %v1385 = vld [vmem:[%s5 + $0x10] sm:$0xf]
        %v1386 = vld [vmem:[%s5 + $0x14] sm:$0xf]
        %v1387 = vld [vmem:[%s5 + $0x18] sm:$0xf]
        %v1388 = vld [vmem:[%s5 + $0x1c] sm:$0xf]
        %v1389 = vld [vmem:[%s5 + $0x20] sm:$0xf]
        %v1390 = vld [vmem:[%s5 + $0x24] sm:$0xf]
        %v1391 = vld [vmem:[%s5 + $0x28] sm:$0xf]
        %v1392 = vld [vmem:[%s5 + $0x2c] sm:$0xf]
        %v1393 = vld [vmem:[%s5 + $0x30] sm:$0xf]
        %v1394 = vld [vmem:[%s5 + $0x34] sm:$0xf]
        %v1395 = vld [vmem:[%s5 + $0x38] sm:$0xf]
        %v1396 = vld [vmem:[%s5 + $0x3c] sm:$0xf]
        %v1397 = vld [vmem:[%s6] sm:$0x1]
        %v1399 = vlaneseq
        %v1400 = vshrl.u32 %v1399, 7
        %v1401 = vsub.s32 0, %v1400
        %v1402 = vrot.slane %v1397, %v1401
        %v1420 = vunpack.c.l.b16 %v1381
        %v1421 = vunpack.c.l.b16 %v1382
        %v1422 = vunpack.c.l.b16 %v1383
        %v1423 = vunpack.c.l.b16 %v1384
        %v1424 = vunpack.c.l.b16 %v1385
        %v1425 = vunpack.c.l.b16 %v1386
        %v1426 = vunpack.c.l.b16 %v1387
        %v1427 = vunpack.c.l.b16 %v1388
        %v1428 = vunpack.c.l.b16 %v1389
        %v1429 = vunpack.c.l.b16 %v1390
        %v1430 = vunpack.c.l.b16 %v1391
        %v1431 = vunpack.c.l.b16 %v1392
        %v1432 = vunpack.c.l.b16 %v1393
        %v1433 = vunpack.c.l.b16 %v1394
        %v1434 = vunpack.c.l.b16 %v1395
        %v1435 = vunpack.c.l.b16 %v1396
        %v1436 = vpack.c.b16 %v1421, %v1420
        %v1437 = vpack.c.b16 %v1423, %v1422
        %v1438 = vpack.c.b16 %v1425, %v1424
        %v1439 = vpack.c.b16 %v1427, %v1426
        %v1440 = vpack.c.b16 %v1429, %v1428
        %v1441 = vpack.c.b16 %v1431, %v1430
        %v1442 = vpack.c.b16 %v1433, %v1432
        %v1443 = vpack.c.b16 %v1435, %v1434
        %1452 = vmatprep.subr.bf16.mxu0 0
        %1453 = vmatpush1.bf16.msra.mxu0 %v1436
        %1454 = vmatprep.subr.bf16.mxu0 0
        %1455 = vmatpush1.bf16.msra.mxu0 %v1437
        %1456 = vmatprep.subr.bf16.mxu0 0
        %1457 = vmatpush1.bf16.msra.mxu0 %v1438
        %1458 = vmatprep.subr.bf16.mxu0 0
        %1459 = vmatpush1.bf16.msra.mxu0 %v1439
        %1460 = vmatprep.subr.bf16.mxu0 0
        %1461 = vmatpush1.bf16.msra.mxu0 %v1440
        %1462 = vmatprep.subr.bf16.mxu0 0
        %1463 = vmatpush1.bf16.msra.mxu0 %v1441
        %1464 = vmatprep.subr.bf16.mxu0 0
        %1465 = vmatpush1.bf16.msra.mxu0 %v1442
        %1466 = vmatprep.subr.bf16.mxu0 0
        %1467 = vmatpush1.bf16.msra.mxu0 %v1443
        %1468 = vmatprep.subr.bf16.mxu0 0
        %1469 = vmatpush1.bf16.msra.mxu0 0
        %1470 = vmatprep.subr.bf16.mxu0 0
        %1471 = vmatpush1.bf16.msra.mxu0 0
        %1472 = vmatprep.subr.bf16.mxu0 0
        %1473 = vmatpush1.bf16.msra.mxu0 0
        %1474 = vmatprep.subr.bf16.mxu0 0
        %1475 = vmatpush1.bf16.msra.mxu0 0
        %1476 = vmatprep.subr.bf16.mxu0 0
        %1477 = vmatpush1.bf16.msra.mxu0 0
        %1478 = vmatprep.subr.bf16.mxu0 0
        %1479 = vmatpush1.bf16.msra.mxu0 0
        %1480 = vmatprep.subr.bf16.mxu0 0
        %1481 = vmatpush1.bf16.msra.mxu0 0
        %1482 = vmatprep.subr.bf16.mxu0 0
        %1483 = vmatpush1.bf16.msra.mxu0 0
        %1484 = vmatprep.mubr.bf16.mxu0 0
        %1485 = vmatmul.mubr.bf16.gmra.mrb[0].mxu0 %v723
        %v1486 = vpop.f32.mrb[0].mxu0
        %v1487 = vadd.f32 %v1402, %v1486
        %v1488 = vpop.f32.mrb[0].mxu0
        %v1489 = vpop.f32.mrb[0].mxu0
        %v1490 = vadd.f32 %v1402, %v1489
        %v1491 = vpop.f32.mrb[0].mxu0
        %1492 = vmatprep.mubr.bf16.mxu0 0
        %1493 = vmatmul.mubr.bf16.gmra.mrb[0].mxu0 %v724
        %v1494 = vpop.f32.mrb[0].mxu0
        %v1495 = vadd.f32 %v1402, %v1494
        %v1496 = vpop.f32.mrb[0].mxu0
        %v1497 = vpop.f32.mrb[0].mxu0
        %v1498 = vadd.f32 %v1402, %v1497
        %v1499 = vpop.f32.mrb[0].mxu0
        %1500 = vmatprep.mubr.bf16.mxu0 0
        %1501 = vmatmul.mubr.bf16.gmra.mrb[0].mxu0 %v725
        %v1502 = vpop.f32.mrb[0].mxu0
        %v1503 = vadd.f32 %v1402, %v1502
        %v1504 = vpop.f32.mrb[0].mxu0
        %v1505 = vpop.f32.mrb[0].mxu0
        %v1506 = vadd.f32 %v1402, %v1505
        %v1507 = vpop.f32.mrb[0].mxu0
        %1508 = vmatprep.mubr.bf16.mxu0 0
        %1509 = vmatmul.mubr.bf16.gmra.mrb[0].mxu0 %v726
        %v1510 = vpop.f32.mrb[0].mxu0
        %v1511 = vadd.f32 %v1402, %v1510
        %v1512 = vpop.f32.mrb[0].mxu0
        %v1513 = vpop.f32.mrb[0].mxu0
        %v1514 = vadd.f32 %v1402, %v1513
        %v1515 = vpop.f32.mrb[0].mxu0
        %1516 = vdwg.mxu0
        %1517 = vst [vmem:[#allocation2] sm:$0xff] 0.0
        %1518 = vst [vmem:[#allocation2 + $0x8] sm:$0x3] 0.0
        %1519 = vst [vmem:[#allocation2 + $0x10] sm:$0xff] 0.0
        %1520 = vst [vmem:[#allocation2 + $0x18] sm:$0x3] 0.0
        %1521 = vst [vmem:[#allocation2 + $0x20] sm:$0xff] 0.0
        %1522 = vst [vmem:[#allocation2 + $0x28] sm:$0x3] 0.0
        %1523 = vst [vmem:[#allocation2 + $0x30] sm:$0xff] 0.0
        %1524 = vst [vmem:[#allocation2 + $0x38] sm:$0x3] 0.0
        %1525 = vst [vmem:[#allocation2 + $0x40] sm:$0xff] 0.0
        %1526 = vst [vmem:[#allocation2 + $0x48] sm:$0x3] 0.0
        %1527 = vst [vmem:[#allocation2 + $0x50] sm:$0xff] 0.0
        %1528 = vst [vmem:[#allocation2 + $0x58] sm:$0x3] 0.0
        %1529 = vst [vmem:[#allocation2 + $0x60] sm:$0xff] 0.0
        %1530 = vst [vmem:[#allocation2 + $0x68] sm:$0x3] 0.0
        %1531 = vst [vmem:[#allocation2 + $0x70] sm:$0xff] 0.0
        %1532 = vst [vmem:[#allocation2 + $0x78] sm:$0x3] 0.0
        %1533 = vst [vmem:[#allocation2 + $0x80] sm:$0xff] 0.0
        %1534 = vst [vmem:[#allocation2 + $0x88] sm:$0x3] 0.0
        %1535 = vst [vmem:[#allocation2 + $0x90] sm:$0xff] 0.0
        %1536 = vst [vmem:[#allocation2 + $0x98] sm:$0x3] 0.0
        %s1537 = scalar_lea.vmem [#allocation2], 16
        %1538 = vst [vmem:[%s1537 + $0x1] sm:$0xff] %v1373
        %1539 = vst [vmem:[%s1537 + $0x11] sm:$0xff] %v1374
        %1540 = vst [vmem:[%s1537 + $0x21] sm:$0xff] %v1375
        %1541 = vst [vmem:[%s1537 + $0x31] sm:$0xff] %v1376
        %1542 = vst [vmem:[%s1537 + $0x41] sm:$0xff] %v1377
        %1543 = vst [vmem:[%s1537 + $0x51] sm:$0xff] %v1378
        %1544 = vst [vmem:[%s1537 + $0x61] sm:$0xff] %v1379
        %1545 = vst [vmem:[%s1537 + $0x71] sm:$0xff] %v1380
        %v1546 = vld [vmem:[#allocation2] sm:$0xff]
        %v1547 = vld [vmem:[#allocation2 + $0x10] sm:$0xff]
        %v1548 = vld [vmem:[#allocation2 + $0x20] sm:$0xff]
        %v1549 = vld [vmem:[#allocation2 + $0x30] sm:$0xff]
        %v1550 = vld [vmem:[#allocation2 + $0x40] sm:$0xff]
        %v1551 = vld [vmem:[#allocation2 + $0x50] sm:$0xff]
        %v1552 = vld [vmem:[#allocation2 + $0x60] sm:$0xff]
        %v1553 = vld [vmem:[#allocation2 + $0x70] sm:$0xff]
        %v1554 = vpack.c.bf16 %v1546, %v1546
        %v1555 = vpack.c.bf16 %v1547, %v1547
        %v1556 = vpack.c.bf16 %v1548, %v1548
        %v1557 = vpack.c.bf16 %v1549, %v1549
        %v1558 = vpack.c.bf16 %v1550, %v1550
        %v1559 = vpack.c.bf16 %v1551, %v1551
        %v1560 = vpack.c.bf16 %v1552, %v1552
        %v1561 = vpack.c.bf16 %v1553, %v1553
        %v1562 = vld [vmem:[#allocation2 + $0x1] sm:$0xff]
        %v1563 = vld [vmem:[#allocation2 + $0x11] sm:$0xff]
        %v1564 = vld [vmem:[#allocation2 + $0x21] sm:$0xff]
        %v1565 = vld [vmem:[#allocation2 + $0x31] sm:$0xff]
        %v1566 = vld [vmem:[#allocation2 + $0x41] sm:$0xff]
        %v1567 = vld [vmem:[#allocation2 + $0x51] sm:$0xff]
        %v1568 = vld [vmem:[#allocation2 + $0x61] sm:$0xff]
        %v1569 = vld [vmem:[#allocation2 + $0x71] sm:$0xff]
        %v1570 = vpack.c.bf16 %v1562, %v1562
        %v1571 = vpack.c.bf16 %v1563, %v1563
        %v1572 = vpack.c.bf16 %v1564, %v1564
        %v1573 = vpack.c.bf16 %v1565, %v1565
        %v1574 = vpack.c.bf16 %v1566, %v1566
        %v1575 = vpack.c.bf16 %v1567, %v1567
        %v1576 = vpack.c.bf16 %v1568, %v1568
        %v1577 = vpack.c.bf16 %v1569, %v1569
        %v1578 = vld [vmem:[#allocation2 + $0x2] sm:$0xff]
        %v1579 = vld [vmem:[#allocation2 + $0x12] sm:$0xff]
        %v1580 = vld [vmem:[#allocation2 + $0x22] sm:$0xff]
        %v1581 = vld [vmem:[#allocation2 + $0x32] sm:$0xff]
        %v1582 = vld [vmem:[#allocation2 + $0x42] sm:$0xff]
        %v1583 = vld [vmem:[#allocation2 + $0x52] sm:$0xff]
        %v1584 = vld [vmem:[#allocation2 + $0x62] sm:$0xff]
        %v1585 = vld [vmem:[#allocation2 + $0x72] sm:$0xff]
        %v1586 = vpack.c.bf16 %v1578, %v1578
        %v1587 = vpack.c.bf16 %v1579, %v1579
        %v1588 = vpack.c.bf16 %v1580, %v1580
        %v1589 = vpack.c.bf16 %v1581, %v1581
        %v1590 = vpack.c.bf16 %v1582, %v1582
        %v1591 = vpack.c.bf16 %v1583, %v1583
        %v1592 = vpack.c.bf16 %v1584, %v1584
        %v1593 = vpack.c.bf16 %v1585, %v1585
        %v1594 = vld [vmem:[%s1537] sm:$0xff]
        %v1595 = vld [vmem:[%s1537 + $0x10] sm:$0xff]
        %v1596 = vld [vmem:[%s1537 + $0x20] sm:$0xff]
        %v1597 = vld [vmem:[%s1537 + $0x30] sm:$0xff]
        %v1598 = vld [vmem:[%s1537 + $0x40] sm:$0xff]
        %v1599 = vld [vmem:[%s1537 + $0x50] sm:$0xff]
        %v1600 = vld [vmem:[%s1537 + $0x60] sm:$0xff]
        %v1601 = vld [vmem:[%s1537 + $0x70] sm:$0xff]
        %v1602 = vpack.c.bf16 %v1594, %v1594
        %v1603 = vpack.c.bf16 %v1595, %v1595
        %v1604 = vpack.c.bf16 %v1596, %v1596
        %v1605 = vpack.c.bf16 %v1597, %v1597
        %v1606 = vpack.c.bf16 %v1598, %v1598
        %v1607 = vpack.c.bf16 %v1599, %v1599
        %v1608 = vpack.c.bf16 %v1600, %v1600
        %v1609 = vpack.c.bf16 %v1601, %v1601
        %v1610 = vld [vmem:[%s1537 + $0x1] sm:$0xff]
        %v1611 = vld [vmem:[%s1537 + $0x11] sm:$0xff]
        %v1612 = vld [vmem:[%s1537 + $0x21] sm:$0xff]
        %v1613 = vld [vmem:[%s1537 + $0x31] sm:$0xff]
        %v1614 = vld [vmem:[%s1537 + $0x41] sm:$0xff]
        %v1615 = vld [vmem:[%s1537 + $0x51] sm:$0xff]
        %v1616 = vld [vmem:[%s1537 + $0x61] sm:$0xff]
        %v1617 = vld [vmem:[%s1537 + $0x71] sm:$0xff]
        %v1618 = vpack.c.bf16 %v1610, %v1610
        %v1619 = vpack.c.bf16 %v1611, %v1611
        %v1620 = vpack.c.bf16 %v1612, %v1612
        %v1621 = vpack.c.bf16 %v1613, %v1613
        %v1622 = vpack.c.bf16 %v1614, %v1614
        %v1623 = vpack.c.bf16 %v1615, %v1615
        %v1624 = vpack.c.bf16 %v1616, %v1616
        %v1625 = vpack.c.bf16 %v1617, %v1617
        %v1626 = vld [vmem:[%s1537 + $0x2] sm:$0xff]
        %v1627 = vld [vmem:[%s1537 + $0x12] sm:$0xff]
        %v1628 = vld [vmem:[%s1537 + $0x22] sm:$0xff]
        %v1629 = vld [vmem:[%s1537 + $0x32] sm:$0xff]
        %v1630 = vld [vmem:[%s1537 + $0x42] sm:$0xff]
        %v1631 = vld [vmem:[%s1537 + $0x52] sm:$0xff]
        %v1632 = vld [vmem:[%s1537 + $0x62] sm:$0xff]
        %v1633 = vld [vmem:[%s1537 + $0x72] sm:$0xff]
        %v1634 = vpack.c.bf16 %v1626, %v1626
        %v1635 = vpack.c.bf16 %v1627, %v1627
        %v1636 = vpack.c.bf16 %v1628, %v1628
        %v1637 = vpack.c.bf16 %v1629, %v1629
        %v1638 = vpack.c.bf16 %v1630, %v1630
        %v1639 = vpack.c.bf16 %v1631, %v1631
        %v1640 = vpack.c.bf16 %v1632, %v1632
        %v1641 = vpack.c.bf16 %v1633, %v1633
        %s1642 = scalar_lea.vmem [#allocation2], 32
        %v1643 = vld [vmem:[%s1642] sm:$0xff]
        %v1644 = vld [vmem:[%s1642 + $0x10] sm:$0xff]
        %v1645 = vld [vmem:[%s1642 + $0x20] sm:$0xff]
        %v1646 = vld [vmem:[%s1642 + $0x30] sm:$0xff]
        %v1647 = vld [vmem:[%s1642 + $0x40] sm:$0xff]
        %v1648 = vld [vmem:[%s1642 + $0x50] sm:$0xff]
        %v1649 = vld [vmem:[%s1642 + $0x60] sm:$0xff]
        %v1650 = vld [vmem:[%s1642 + $0x70] sm:$0xff]
        %v1651 = vpack.c.bf16 %v1643, %v1643
        %v1652 = vpack.c.bf16 %v1644, %v1644
        %v1653 = vpack.c.bf16 %v1645, %v1645
        %v1654 = vpack.c.bf16 %v1646, %v1646
        %v1655 = vpack.c.bf16 %v1647, %v1647
        %v1656 = vpack.c.bf16 %v1648, %v1648
        %v1657 = vpack.c.bf16 %v1649, %v1649
        %v1658 = vpack.c.bf16 %v1650, %v1650
        %v1659 = vld [vmem:[%s1642 + $0x1] sm:$0xff]
        %v1660 = vld [vmem:[%s1642 + $0x11] sm:$0xff]
        %v1661 = vld [vmem:[%s1642 + $0x21] sm:$0xff]
        %v1662 = vld [vmem:[%s1642 + $0x31] sm:$0xff]
        %v1663 = vld [vmem:[%s1642 + $0x41] sm:$0xff]
        %v1664 = vld [vmem:[%s1642 + $0x51] sm:$0xff]
        %v1665 = vld [vmem:[%s1642 + $0x61] sm:$0xff]
        %v1666 = vld [vmem:[%s1642 + $0x71] sm:$0xff]
        %v1667 = vpack.c.bf16 %v1659, %v1659
        %v1668 = vpack.c.bf16 %v1660, %v1660
        %v1669 = vpack.c.bf16 %v1661, %v1661
        %v1670 = vpack.c.bf16 %v1662, %v1662
        %v1671 = vpack.c.bf16 %v1663, %v1663
        %v1672 = vpack.c.bf16 %v1664, %v1664
        %v1673 = vpack.c.bf16 %v1665, %v1665
        %v1674 = vpack.c.bf16 %v1666, %v1666
        %v1675 = vld [vmem:[%s1642 + $0x2] sm:$0xff]
        %v1676 = vld [vmem:[%s1642 + $0x12] sm:$0xff]
        %v1677 = vld [vmem:[%s1642 + $0x22] sm:$0xff]
        %v1678 = vld [vmem:[%s1642 + $0x32] sm:$0xff]
        %v1679 = vld [vmem:[%s1642 + $0x42] sm:$0xff]
        %v1680 = vld [vmem:[%s1642 + $0x52] sm:$0xff]
        %v1681 = vld [vmem:[%s1642 + $0x62] sm:$0xff]
        %v1682 = vld [vmem:[%s1642 + $0x72] sm:$0xff]
        %v1683 = vpack.c.bf16 %v1675, %v1675
        %v1684 = vpack.c.bf16 %v1676, %v1676
        %v1685 = vpack.c.bf16 %v1677, %v1677
        %v1686 = vpack.c.bf16 %v1678, %v1678
        %v1687 = vpack.c.bf16 %v1679, %v1679
        %v1688 = vpack.c.bf16 %v1680, %v1680
        %v1689 = vpack.c.bf16 %v1681, %v1681
        %v1690 = vpack.c.bf16 %v1682, %v1682
        %v1699 = vunpack.c.l.b16 %v1554
        %v1700 = vunpack.c.l.b16 %v1555
        %v1701 = vunpack.c.l.b16 %v1556
        %v1702 = vunpack.c.l.b16 %v1557
        %v1703 = vunpack.c.l.b16 %v1558
        %v1704 = vunpack.c.l.b16 %v1559
        %v1705 = vunpack.c.l.b16 %v1560
        %v1706 = vunpack.c.l.b16 %v1561
        %v1707 = vpack.c.b16 %v1700, %v1699
        %v1708 = vpack.c.b16 %v1702, %v1701
        %v1709 = vpack.c.b16 %v1704, %v1703
        %v1710 = vpack.c.b16 %v1706, %v1705
        %v1723 = vunpack.c.l.b16 %v1570
        %v1724 = vunpack.c.l.b16 %v1571
        %v1725 = vunpack.c.l.b16 %v1572
        %v1726 = vunpack.c.l.b16 %v1573
        %v1727 = vunpack.c.l.b16 %v1574
        %v1728 = vunpack.c.l.b16 %v1575
        %v1729 = vunpack.c.l.b16 %v1576
        %v1730 = vunpack.c.l.b16 %v1577
        %v1731 = vpack.c.b16 %v1724, %v1723
        %v1732 = vpack.c.b16 %v1726, %v1725
        %v1733 = vpack.c.b16 %v1728, %v1727
        %v1734 = vpack.c.b16 %v1730, %v1729
        %v1747 = vunpack.c.l.b16 %v1586
        %v1748 = vunpack.c.l.b16 %v1587
        %v1749 = vunpack.c.l.b16 %v1588
        %v1750 = vunpack.c.l.b16 %v1589
        %v1751 = vunpack.c.l.b16 %v1590
        %v1752 = vunpack.c.l.b16 %v1591
        %v1753 = vunpack.c.l.b16 %v1592
        %v1754 = vunpack.c.l.b16 %v1593
        %v1755 = vpack.c.b16 %v1748, %v1747
        %v1756 = vpack.c.b16 %v1750, %v1749
        %v1757 = vpack.c.b16 %v1752, %v1751
        %v1758 = vpack.c.b16 %v1754, %v1753
        %v1771 = vunpack.c.l.b16 %v1602
        %v1772 = vunpack.c.l.b16 %v1603
        %v1773 = vunpack.c.l.b16 %v1604
        %v1774 = vunpack.c.l.b16 %v1605
        %v1775 = vunpack.c.l.b16 %v1606
        %v1776 = vunpack.c.l.b16 %v1607
        %v1777 = vunpack.c.l.b16 %v1608
        %v1778 = vunpack.c.l.b16 %v1609
        %v1779 = vpack.c.b16 %v1772, %v1771
        %v1780 = vpack.c.b16 %v1774, %v1773
        %v1781 = vpack.c.b16 %v1776, %v1775
        %v1782 = vpack.c.b16 %v1778, %v1777
        %v1795 = vunpack.c.l.b16 %v1618
        %v1796 = vunpack.c.l.b16 %v1619
        %v1797 = vunpack.c.l.b16 %v1620
        %v1798 = vunpack.c.l.b16 %v1621
        %v1799 = vunpack.c.l.b16 %v1622
        %v1800 = vunpack.c.l.b16 %v1623
        %v1801 = vunpack.c.l.b16 %v1624
        %v1802 = vunpack.c.l.b16 %v1625
        %v1803 = vpack.c.b16 %v1796, %v1795
        %v1804 = vpack.c.b16 %v1798, %v1797
        %v1805 = vpack.c.b16 %v1800, %v1799
        %v1806 = vpack.c.b16 %v1802, %v1801
        %v1819 = vunpack.c.l.b16 %v1634
        %v1820 = vunpack.c.l.b16 %v1635
        %v1821 = vunpack.c.l.b16 %v1636
        %v1822 = vunpack.c.l.b16 %v1637
        %v1823 = vunpack.c.l.b16 %v1638
        %v1824 = vunpack.c.l.b16 %v1639
        %v1825 = vunpack.c.l.b16 %v1640
        %v1826 = vunpack.c.l.b16 %v1641
        %v1827 = vpack.c.b16 %v1820, %v1819
        %v1828 = vpack.c.b16 %v1822, %v1821
        %v1829 = vpack.c.b16 %v1824, %v1823
        %v1830 = vpack.c.b16 %v1826, %v1825
        %v1843 = vunpack.c.l.b16 %v1651
        %v1844 = vunpack.c.l.b16 %v1652
        %v1845 = vunpack.c.l.b16 %v1653
        %v1846 = vunpack.c.l.b16 %v1654
        %v1847 = vunpack.c.l.b16 %v1655
        %v1848 = vunpack.c.l.b16 %v1656
        %v1849 = vunpack.c.l.b16 %v1657
        %v1850 = vunpack.c.l.b16 %v1658
        %v1851 = vpack.c.b16 %v1844, %v1843
        %v1852 = vpack.c.b16 %v1846, %v1845
        %v1853 = vpack.c.b16 %v1848, %v1847
        %v1854 = vpack.c.b16 %v1850, %v1849
        %v1867 = vunpack.c.l.b16 %v1667
        %v1868 = vunpack.c.l.b16 %v1668
        %v1869 = vunpack.c.l.b16 %v1669
        %v1870 = vunpack.c.l.b16 %v1670
        %v1871 = vunpack.c.l.b16 %v1671
        %v1872 = vunpack.c.l.b16 %v1672
        %v1873 = vunpack.c.l.b16 %v1673
        %v1874 = vunpack.c.l.b16 %v1674
        %v1875 = vpack.c.b16 %v1868, %v1867
        %v1876 = vpack.c.b16 %v1870, %v1869
        %v1877 = vpack.c.b16 %v1872, %v1871
        %v1878 = vpack.c.b16 %v1874, %v1873
        %v1891 = vunpack.c.l.b16 %v1683
        %v1892 = vunpack.c.l.b16 %v1684
        %v1893 = vunpack.c.l.b16 %v1685
        %v1894 = vunpack.c.l.b16 %v1686
        %v1895 = vunpack.c.l.b16 %v1687
        %v1896 = vunpack.c.l.b16 %v1688
        %v1897 = vunpack.c.l.b16 %v1689
        %v1898 = vunpack.c.l.b16 %v1690
        %v1899 = vpack.c.b16 %v1892, %v1891
        %v1900 = vpack.c.b16 %v1894, %v1893
        %v1901 = vpack.c.b16 %v1896, %v1895
        %v1902 = vpack.c.b16 %v1898, %v1897
        %v1907 = vld [vmem:[%s3] sm:$0xf]
        %v1908 = vld [vmem:[%s3 + $0x4] sm:$0xf]
        %v1909 = vld [vmem:[%s3 + $0x8] sm:$0xf]
        %v1910 = vld [vmem:[%s3 + $0xc] sm:$0xf]
        %v1911 = vld [vmem:[%s3 + $0x10] sm:$0xf]
        %v1912 = vld [vmem:[%s3 + $0x14] sm:$0xf]
        %v1913 = vld [vmem:[%s3 + $0x18] sm:$0xf]
        %v1914 = vld [vmem:[%s3 + $0x1c] sm:$0xf]
        %v1915 = vld [vmem:[%s3 + $0x20] sm:$0xf]
        %v1916 = vld [vmem:[%s3 + $0x24] sm:$0xf]
        %v1917 = vld [vmem:[%s3 + $0x28] sm:$0xf]
        %v1918 = vld [vmem:[%s3 + $0x2c] sm:$0xf]
        %v1919 = vld [vmem:[%s3 + $0x30] sm:$0xf]
        %v1920 = vld [vmem:[%s3 + $0x34] sm:$0xf]
        %v1921 = vld [vmem:[%s3 + $0x38] sm:$0xf]
        %v1922 = vld [vmem:[%s3 + $0x3c] sm:$0xf]
        %v1923 = vld [vmem:[%s3 + $0x40] sm:$0xf]
        %v1924 = vld [vmem:[%s3 + $0x44] sm:$0xf]
        %v1925 = vld [vmem:[%s3 + $0x48] sm:$0xf]
        %v1926 = vld [vmem:[%s3 + $0x4c] sm:$0xf]
        %v1927 = vld [vmem:[%s3 + $0x50] sm:$0xf]
        %v1928 = vld [vmem:[%s3 + $0x54] sm:$0xf]
        %v1929 = vld [vmem:[%s3 + $0x58] sm:$0xf]
        %v1930 = vld [vmem:[%s3 + $0x5c] sm:$0xf]
        %v1931 = vld [vmem:[%s3 + $0x60] sm:$0xf]
        %v1932 = vld [vmem:[%s3 + $0x64] sm:$0xf]
        %v1933 = vld [vmem:[%s3 + $0x68] sm:$0xf]
        %v1934 = vld [vmem:[%s3 + $0x6c] sm:$0xf]
        %v1935 = vld [vmem:[%s3 + $0x70] sm:$0xf]
        %v1936 = vld [vmem:[%s3 + $0x74] sm:$0xf]
        %v1937 = vld [vmem:[%s3 + $0x78] sm:$0xf]
        %v1938 = vld [vmem:[%s3 + $0x7c] sm:$0xf]
        %v1939 = vld [vmem:[%s3 + $0x80] sm:$0xf]
        %v1940 = vld [vmem:[%s3 + $0x84] sm:$0xf]
        %v1941 = vld [vmem:[%s3 + $0x88] sm:$0xf]
        %v1942 = vld [vmem:[%s3 + $0x8c] sm:$0xf]
        %v1943 = vld [vmem:[%s3 + $0x90] sm:$0xf]
        %v1944 = vld [vmem:[%s3 + $0x94] sm:$0xf]
        %v1945 = vld [vmem:[%s3 + $0x98] sm:$0xf]
        %v1946 = vld [vmem:[%s3 + $0x9c] sm:$0xf]
        %v1947 = vld [vmem:[%s3 + $0xa0] sm:$0xf]
        %v1948 = vld [vmem:[%s3 + $0xa4] sm:$0xf]
        %v1949 = vld [vmem:[%s3 + $0xa8] sm:$0xf]
        %v1950 = vld [vmem:[%s3 + $0xac] sm:$0xf]
        %v1951 = vld [vmem:[%s3 + $0xb0] sm:$0xf]
        %v1952 = vld [vmem:[%s3 + $0xb4] sm:$0xf]
        %v1953 = vld [vmem:[%s3 + $0xb8] sm:$0xf]
        %v1954 = vld [vmem:[%s3 + $0xbc] sm:$0xf]
        %v1955 = vld [vmem:[%s3 + $0xc0] sm:$0xf]
        %v1956 = vld [vmem:[%s3 + $0xc4] sm:$0xf]
        %v1957 = vld [vmem:[%s3 + $0xc8] sm:$0xf]
        %v1958 = vld [vmem:[%s3 + $0xcc] sm:$0xf]
        %v1959 = vld [vmem:[%s3 + $0xd0] sm:$0xf]
        %v1960 = vld [vmem:[%s3 + $0xd4] sm:$0xf]
        %v1961 = vld [vmem:[%s3 + $0xd8] sm:$0xf]
        %v1962 = vld [vmem:[%s3 + $0xdc] sm:$0xf]
        %v1963 = vld [vmem:[%s3 + $0xe0] sm:$0xf]
        %v1964 = vld [vmem:[%s3 + $0xe4] sm:$0xf]
        %v1965 = vld [vmem:[%s3 + $0xe8] sm:$0xf]
        %v1966 = vld [vmem:[%s3 + $0xec] sm:$0xf]
        %v1967 = vld [vmem:[%s3 + $0xf0] sm:$0xf]
        %v1968 = vld [vmem:[%s3 + $0xf4] sm:$0xf]
        %v1969 = vld [vmem:[%s3 + $0xf8] sm:$0xf]
        %v1970 = vld [vmem:[%s3 + $0xfc] sm:$0xf]
        %v1971 = vld [vmem:[%s3 + $0x100] sm:$0xf]
        %v1972 = vld [vmem:[%s3 + $0x104] sm:$0xf]
        %v1973 = vld [vmem:[%s3 + $0x108] sm:$0xf]
        %v1974 = vld [vmem:[%s3 + $0x10c] sm:$0xf]
        %v1975 = vld [vmem:[%s3 + $0x110] sm:$0xf]
        %v1976 = vld [vmem:[%s3 + $0x114] sm:$0xf]
        %v1977 = vld [vmem:[%s3 + $0x118] sm:$0xf]
        %v1978 = vld [vmem:[%s3 + $0x11c] sm:$0xf]
        %v1979 = vld [vmem:[%s3 + $0x120] sm:$0xf]
        %v1980 = vld [vmem:[%s3 + $0x124] sm:$0xf]
        %v1981 = vld [vmem:[%s3 + $0x128] sm:$0xf]
        %v1982 = vld [vmem:[%s3 + $0x12c] sm:$0xf]
        %v1983 = vld [vmem:[%s3 + $0x130] sm:$0xf]
        %v1984 = vld [vmem:[%s3 + $0x134] sm:$0xf]
        %v1985 = vld [vmem:[%s3 + $0x138] sm:$0xf]
        %v1986 = vld [vmem:[%s3 + $0x13c] sm:$0xf]
        %v1987 = vld [vmem:[%s3 + $0x140] sm:$0xf]
        %v1988 = vld [vmem:[%s3 + $0x144] sm:$0xf]
        %v1989 = vld [vmem:[%s3 + $0x148] sm:$0xf]
        %v1990 = vld [vmem:[%s3 + $0x14c] sm:$0xf]
        %v1991 = vld [vmem:[%s3 + $0x150] sm:$0xf]
        %v1992 = vld [vmem:[%s3 + $0x154] sm:$0xf]
        %v1993 = vld [vmem:[%s3 + $0x158] sm:$0xf]
        %v1994 = vld [vmem:[%s3 + $0x15c] sm:$0xf]
        %v1995 = vld [vmem:[%s3 + $0x160] sm:$0xf]
        %v1996 = vld [vmem:[%s3 + $0x164] sm:$0xf]
        %v1997 = vld [vmem:[%s3 + $0x168] sm:$0xf]
        %v1998 = vld [vmem:[%s3 + $0x16c] sm:$0xf]
        %v1999 = vld [vmem:[%s3 + $0x170] sm:$0xf]
        %v2000 = vld [vmem:[%s3 + $0x174] sm:$0xf]
        %v2001 = vld [vmem:[%s3 + $0x178] sm:$0xf]
        %v2002 = vld [vmem:[%s3 + $0x17c] sm:$0xf]
        %v2003 = vld [vmem:[%s3 + $0x180] sm:$0xf]
        %v2004 = vld [vmem:[%s3 + $0x184] sm:$0xf]
        %v2005 = vld [vmem:[%s3 + $0x188] sm:$0xf]
        %v2006 = vld [vmem:[%s3 + $0x18c] sm:$0xf]
        %v2007 = vld [vmem:[%s3 + $0x190] sm:$0xf]
        %v2008 = vld [vmem:[%s3 + $0x194] sm:$0xf]
        %v2009 = vld [vmem:[%s3 + $0x198] sm:$0xf]
        %v2010 = vld [vmem:[%s3 + $0x19c] sm:$0xf]
        %v2011 = vld [vmem:[%s3 + $0x1a0] sm:$0xf]
        %v2012 = vld [vmem:[%s3 + $0x1a4] sm:$0xf]
        %v2013 = vld [vmem:[%s3 + $0x1a8] sm:$0xf]
        %v2014 = vld [vmem:[%s3 + $0x1ac] sm:$0xf]
        %v2015 = vld [vmem:[%s3 + $0x1b0] sm:$0xf]
        %v2016 = vld [vmem:[%s3 + $0x1b4] sm:$0xf]
        %v2017 = vld [vmem:[%s3 + $0x1b8] sm:$0xf]
        %v2018 = vld [vmem:[%s3 + $0x1bc] sm:$0xf]
        %v2019 = vld [vmem:[%s3 + $0x1c0] sm:$0xf]
        %v2020 = vld [vmem:[%s3 + $0x1c4] sm:$0xf]
        %v2021 = vld [vmem:[%s3 + $0x1c8] sm:$0xf]
        %v2022 = vld [vmem:[%s3 + $0x1cc] sm:$0xf]
        %v2023 = vld [vmem:[%s3 + $0x1d0] sm:$0xf]
        %v2024 = vld [vmem:[%s3 + $0x1d4] sm:$0xf]
        %v2025 = vld [vmem:[%s3 + $0x1d8] sm:$0xf]
        %v2026 = vld [vmem:[%s3 + $0x1dc] sm:$0xf]
        %v2027 = vld [vmem:[%s3 + $0x1e0] sm:$0xf]
        %v2028 = vld [vmem:[%s3 + $0x1e4] sm:$0xf]
        %v2029 = vld [vmem:[%s3 + $0x1e8] sm:$0xf]
        %v2030 = vld [vmem:[%s3 + $0x1ec] sm:$0xf]
        %v2031 = vld [vmem:[%s3 + $0x1f0] sm:$0xf]
        %v2032 = vld [vmem:[%s3 + $0x1f4] sm:$0xf]
        %v2033 = vld [vmem:[%s3 + $0x1f8] sm:$0xf]
        %v2034 = vld [vmem:[%s3 + $0x1fc] sm:$0xf]
        %v2035 = vld [vmem:[%s3 + $0x200] sm:$0xf]
        %v2036 = vld [vmem:[%s3 + $0x204] sm:$0xf]
        %v2037 = vld [vmem:[%s3 + $0x208] sm:$0xf]
        %v2038 = vld [vmem:[%s3 + $0x20c] sm:$0xf]
        %v2039 = vld [vmem:[%s3 + $0x210] sm:$0xf]
        %v2040 = vld [vmem:[%s3 + $0x214] sm:$0xf]
        %v2041 = vld [vmem:[%s3 + $0x218] sm:$0xf]
        %v2042 = vld [vmem:[%s3 + $0x21c] sm:$0xf]
        %v2043 = vld [vmem:[%s3 + $0x220] sm:$0xf]
        %v2044 = vld [vmem:[%s3 + $0x224] sm:$0xf]
        %v2045 = vld [vmem:[%s3 + $0x228] sm:$0xf]
        %v2046 = vld [vmem:[%s3 + $0x22c] sm:$0xf]
        %v2047 = vld [vmem:[%s3 + $0x230] sm:$0xf]
        %v2048 = vld [vmem:[%s3 + $0x234] sm:$0xf]
        %v2049 = vld [vmem:[%s3 + $0x238] sm:$0xf]
        %v2050 = vld [vmem:[%s3 + $0x23c] sm:$0xf]
        %v2051 = vld [vmem:[%s4] sm:$0x1]
        %v2053 = vlaneseq
        %v2054 = vshrl.u32 %v2053, 7
        %v2055 = vsub.s32 0, %v2054
        %v2056 = vrot.slane %v2051, %v2055
        %v2202 = vunpack.c.l.b16 %v1907
        %v2203 = vunpack.c.l.b16 %v1908
        %v2204 = vunpack.c.l.b16 %v1909
        %v2205 = vunpack.c.l.b16 %v1910
        %v2206 = vunpack.c.l.b16 %v1911
        %v2207 = vunpack.c.l.b16 %v1912
        %v2208 = vunpack.c.l.b16 %v1913
        %v2209 = vunpack.c.l.b16 %v1914
        %v2210 = vunpack.c.l.b16 %v1915
        %v2211 = vunpack.c.l.b16 %v1916
        %v2212 = vunpack.c.l.b16 %v1917
        %v2213 = vunpack.c.l.b16 %v1918
        %v2214 = vunpack.c.l.b16 %v1919
        %v2215 = vunpack.c.l.b16 %v1920
        %v2216 = vunpack.c.l.b16 %v1921
        %v2217 = vunpack.c.l.b16 %v1922
        %v2218 = vunpack.c.l.b16 %v1923
        %v2219 = vunpack.c.l.b16 %v1924
        %v2220 = vunpack.c.l.b16 %v1925
        %v2221 = vunpack.c.l.b16 %v1926
        %v2222 = vunpack.c.l.b16 %v1927
        %v2223 = vunpack.c.l.b16 %v1928
        %v2224 = vunpack.c.l.b16 %v1929
        %v2225 = vunpack.c.l.b16 %v1930
        %v2226 = vunpack.c.l.b16 %v1931
        %v2227 = vunpack.c.l.b16 %v1932
        %v2228 = vunpack.c.l.b16 %v1933
        %v2229 = vunpack.c.l.b16 %v1934
        %v2230 = vunpack.c.l.b16 %v1935
        %v2231 = vunpack.c.l.b16 %v1936
        %v2232 = vunpack.c.l.b16 %v1937
        %v2233 = vunpack.c.l.b16 %v1938
        %v2234 = vunpack.c.l.b16 %v1939
        %v2235 = vunpack.c.l.b16 %v1940
        %v2236 = vunpack.c.l.b16 %v1941
        %v2237 = vunpack.c.l.b16 %v1942
        %v2238 = vunpack.c.l.b16 %v1943
        %v2239 = vunpack.c.l.b16 %v1944
        %v2240 = vunpack.c.l.b16 %v1945
        %v2241 = vunpack.c.l.b16 %v1946
        %v2242 = vunpack.c.l.b16 %v1947
        %v2243 = vunpack.c.l.b16 %v1948
        %v2244 = vunpack.c.l.b16 %v1949
        %v2245 = vunpack.c.l.b16 %v1950
        %v2246 = vunpack.c.l.b16 %v1951
        %v2247 = vunpack.c.l.b16 %v1952
        %v2248 = vunpack.c.l.b16 %v1953
        %v2249 = vunpack.c.l.b16 %v1954
        %v2250 = vunpack.c.l.b16 %v1955
        %v2251 = vunpack.c.l.b16 %v1956
        %v2252 = vunpack.c.l.b16 %v1957
        %v2253 = vunpack.c.l.b16 %v1958
        %v2254 = vunpack.c.l.b16 %v1959
        %v2255 = vunpack.c.l.b16 %v1960
        %v2256 = vunpack.c.l.b16 %v1961
        %v2257 = vunpack.c.l.b16 %v1962
        %v2258 = vunpack.c.l.b16 %v1963
        %v2259 = vunpack.c.l.b16 %v1964
        %v2260 = vunpack.c.l.b16 %v1965
        %v2261 = vunpack.c.l.b16 %v1966
        %v2262 = vunpack.c.l.b16 %v1967
        %v2263 = vunpack.c.l.b16 %v1968
        %v2264 = vunpack.c.l.b16 %v1969
        %v2265 = vunpack.c.l.b16 %v1970
        %v2266 = vunpack.c.l.b16 %v1971
        %v2267 = vunpack.c.l.b16 %v1972
        %v2268 = vunpack.c.l.b16 %v1973
        %v2269 = vunpack.c.l.b16 %v1974
        %v2270 = vunpack.c.l.b16 %v1975
        %v2271 = vunpack.c.l.b16 %v1976
        %v2272 = vunpack.c.l.b16 %v1977
        %v2273 = vunpack.c.l.b16 %v1978
        %v2274 = vunpack.c.l.b16 %v1979
        %v2275 = vunpack.c.l.b16 %v1980
        %v2276 = vunpack.c.l.b16 %v1981
        %v2277 = vunpack.c.l.b16 %v1982
        %v2278 = vunpack.c.l.b16 %v1983
        %v2279 = vunpack.c.l.b16 %v1984
        %v2280 = vunpack.c.l.b16 %v1985
        %v2281 = vunpack.c.l.b16 %v1986
        %v2282 = vunpack.c.l.b16 %v1987
        %v2283 = vunpack.c.l.b16 %v1988
        %v2284 = vunpack.c.l.b16 %v1989
        %v2285 = vunpack.c.l.b16 %v1990
        %v2286 = vunpack.c.l.b16 %v1991
        %v2287 = vunpack.c.l.b16 %v1992
        %v2288 = vunpack.c.l.b16 %v1993
        %v2289 = vunpack.c.l.b16 %v1994
        %v2290 = vunpack.c.l.b16 %v1995
        %v2291 = vunpack.c.l.b16 %v1996
        %v2292 = vunpack.c.l.b16 %v1997
        %v2293 = vunpack.c.l.b16 %v1998
        %v2294 = vunpack.c.l.b16 %v1999
        %v2295 = vunpack.c.l.b16 %v2000
        %v2296 = vunpack.c.l.b16 %v2001
        %v2297 = vunpack.c.l.b16 %v2002
        %v2298 = vunpack.c.l.b16 %v2003
        %v2299 = vunpack.c.l.b16 %v2004
        %v2300 = vunpack.c.l.b16 %v2005
        %v2301 = vunpack.c.l.b16 %v2006
        %v2302 = vunpack.c.l.b16 %v2007
        %v2303 = vunpack.c.l.b16 %v2008
        %v2304 = vunpack.c.l.b16 %v2009
        %v2305 = vunpack.c.l.b16 %v2010
        %v2306 = vunpack.c.l.b16 %v2011
        %v2307 = vunpack.c.l.b16 %v2012
        %v2308 = vunpack.c.l.b16 %v2013
        %v2309 = vunpack.c.l.b16 %v2014
        %v2310 = vunpack.c.l.b16 %v2015
        %v2311 = vunpack.c.l.b16 %v2016
        %v2312 = vunpack.c.l.b16 %v2017
        %v2313 = vunpack.c.l.b16 %v2018
        %v2314 = vunpack.c.l.b16 %v2019
        %v2315 = vunpack.c.l.b16 %v2020
        %v2316 = vunpack.c.l.b16 %v2021
        %v2317 = vunpack.c.l.b16 %v2022
        %v2318 = vunpack.c.l.b16 %v2023
        %v2319 = vunpack.c.l.b16 %v2024
        %v2320 = vunpack.c.l.b16 %v2025
        %v2321 = vunpack.c.l.b16 %v2026
        %v2322 = vunpack.c.l.b16 %v2027
        %v2323 = vunpack.c.l.b16 %v2028
        %v2324 = vunpack.c.l.b16 %v2029
        %v2325 = vunpack.c.l.b16 %v2030
        %v2326 = vunpack.c.l.b16 %v2031
        %v2327 = vunpack.c.l.b16 %v2032
        %v2328 = vunpack.c.l.b16 %v2033
        %v2329 = vunpack.c.l.b16 %v2034
        %v2330 = vunpack.c.l.b16 %v2035
        %v2331 = vunpack.c.l.b16 %v2036
        %v2332 = vunpack.c.l.b16 %v2037
        %v2333 = vunpack.c.l.b16 %v2038
        %v2334 = vunpack.c.l.b16 %v2039
        %v2335 = vunpack.c.l.b16 %v2040
        %v2336 = vunpack.c.l.b16 %v2041
        %v2337 = vunpack.c.l.b16 %v2042
        %v2338 = vunpack.c.l.b16 %v2043
        %v2339 = vunpack.c.l.b16 %v2044
        %v2340 = vunpack.c.l.b16 %v2045
        %v2341 = vunpack.c.l.b16 %v2046
        %v2342 = vunpack.c.l.b16 %v2047
        %v2343 = vunpack.c.l.b16 %v2048
        %v2344 = vunpack.c.l.b16 %v2049
        %v2345 = vunpack.c.l.b16 %v2050
        %v2346 = vpack.c.b16 %v2203, %v2202
        %v2347 = vpack.c.b16 %v2205, %v2204
        %v2348 = vpack.c.b16 %v2207, %v2206
        %v2349 = vpack.c.b16 %v2209, %v2208
        %v2350 = vpack.c.b16 %v2211, %v2210
        %v2351 = vpack.c.b16 %v2213, %v2212
        %v2352 = vpack.c.b16 %v2215, %v2214
        %v2353 = vpack.c.b16 %v2217, %v2216
        %v2354 = vpack.c.b16 %v2219, %v2218
        %v2355 = vpack.c.b16 %v2221, %v2220
        %v2356 = vpack.c.b16 %v2223, %v2222
        %v2357 = vpack.c.b16 %v2225, %v2224
        %v2358 = vpack.c.b16 %v2227, %v2226
        %v2359 = vpack.c.b16 %v2229, %v2228
        %v2360 = vpack.c.b16 %v2231, %v2230
        %v2361 = vpack.c.b16 %v2233, %v2232
        %v2362 = vpack.c.b16 %v2235, %v2234
        %v2363 = vpack.c.b16 %v2237, %v2236
        %v2364 = vpack.c.b16 %v2239, %v2238
        %v2365 = vpack.c.b16 %v2241, %v2240
        %v2366 = vpack.c.b16 %v2243, %v2242
        %v2367 = vpack.c.b16 %v2245, %v2244
        %v2368 = vpack.c.b16 %v2247, %v2246
        %v2369 = vpack.c.b16 %v2249, %v2248
        %v2370 = vpack.c.b16 %v2251, %v2250
        %v2371 = vpack.c.b16 %v2253, %v2252
        %v2372 = vpack.c.b16 %v2255, %v2254
        %v2373 = vpack.c.b16 %v2257, %v2256
        %v2374 = vpack.c.b16 %v2259, %v2258
        %v2375 = vpack.c.b16 %v2261, %v2260
        %v2376 = vpack.c.b16 %v2263, %v2262
        %v2377 = vpack.c.b16 %v2265, %v2264
        %v2378 = vpack.c.b16 %v2267, %v2266
        %v2379 = vpack.c.b16 %v2269, %v2268
        %v2380 = vpack.c.b16 %v2271, %v2270
        %v2381 = vpack.c.b16 %v2273, %v2272
        %v2382 = vpack.c.b16 %v2275, %v2274
        %v2383 = vpack.c.b16 %v2277, %v2276
        %v2384 = vpack.c.b16 %v2279, %v2278
        %v2385 = vpack.c.b16 %v2281, %v2280
        %v2386 = vpack.c.b16 %v2283, %v2282
        %v2387 = vpack.c.b16 %v2285, %v2284
        %v2388 = vpack.c.b16 %v2287, %v2286
        %v2389 = vpack.c.b16 %v2289, %v2288
        %v2390 = vpack.c.b16 %v2291, %v2290
        %v2391 = vpack.c.b16 %v2293, %v2292
        %v2392 = vpack.c.b16 %v2295, %v2294
        %v2393 = vpack.c.b16 %v2297, %v2296
        %v2394 = vpack.c.b16 %v2299, %v2298
        %v2395 = vpack.c.b16 %v2301, %v2300
        %v2396 = vpack.c.b16 %v2303, %v2302
        %v2397 = vpack.c.b16 %v2305, %v2304
        %v2398 = vpack.c.b16 %v2307, %v2306
        %v2399 = vpack.c.b16 %v2309, %v2308
        %v2400 = vpack.c.b16 %v2311, %v2310
        %v2401 = vpack.c.b16 %v2313, %v2312
        %v2402 = vpack.c.b16 %v2315, %v2314
        %v2403 = vpack.c.b16 %v2317, %v2316
        %v2404 = vpack.c.b16 %v2319, %v2318
        %v2405 = vpack.c.b16 %v2321, %v2320
        %v2406 = vpack.c.b16 %v2323, %v2322
        %v2407 = vpack.c.b16 %v2325, %v2324
        %v2408 = vpack.c.b16 %v2327, %v2326
        %v2409 = vpack.c.b16 %v2329, %v2328
        %v2410 = vpack.c.b16 %v2331, %v2330
        %v2411 = vpack.c.b16 %v2333, %v2332
        %v2412 = vpack.c.b16 %v2335, %v2334
        %v2413 = vpack.c.b16 %v2337, %v2336
        %v2414 = vpack.c.b16 %v2339, %v2338
        %v2415 = vpack.c.b16 %v2341, %v2340
        %v2416 = vpack.c.b16 %v2343, %v2342
        %v2417 = vpack.c.b16 %v2345, %v2344
        %2490 = vmatprep.subr.bf16.mxu0 0
        %2491 = vmatpush1.bf16.msra.mxu0 %v2346
        %2492 = vmatprep.subr.bf16.mxu0 0
        %2493 = vmatpush1.bf16.msra.mxu0 %v2347
        %2494 = vmatprep.subr.bf16.mxu0 0
        %2495 = vmatpush1.bf16.msra.mxu0 %v2348
        %2496 = vmatprep.subr.bf16.mxu0 0
        %2497 = vmatpush1.bf16.msra.mxu0 %v2349
        %2498 = vmatprep.subr.bf16.mxu0 0
        %2499 = vmatpush1.bf16.msra.mxu0 %v2350
        %2500 = vmatprep.subr.bf16.mxu0 0
        %2501 = vmatpush1.bf16.msra.mxu0 %v2351
        %2502 = vmatprep.subr.bf16.mxu0 0
        %2503 = vmatpush1.bf16.msra.mxu0 %v2352
        %2504 = vmatprep.subr.bf16.mxu0 0
        %2505 = vmatpush1.bf16.msra.mxu0 %v2353
        %2506 = vmatprep.subr.bf16.mxu0 0
        %2507 = vmatpush1.bf16.msra.mxu0 %v2354
        %2508 = vmatprep.subr.bf16.mxu0 0
        %2509 = vmatpush1.bf16.msra.mxu0 %v2355
        %2510 = vmatprep.subr.bf16.mxu0 0
        %2511 = vmatpush1.bf16.msra.mxu0 %v2356
        %2512 = vmatprep.subr.bf16.mxu0 0
        %2513 = vmatpush1.bf16.msra.mxu0 %v2357
        %2514 = vmatprep.subr.bf16.mxu0 0
        %2515 = vmatpush1.bf16.msra.mxu0 %v2358
        %2516 = vmatprep.subr.bf16.mxu0 0
        %2517 = vmatpush1.bf16.msra.mxu0 %v2359
        %2518 = vmatprep.subr.bf16.mxu0 0
        %2519 = vmatpush1.bf16.msra.mxu0 %v2360
        %2520 = vmatprep.subr.bf16.mxu0 0
        %2521 = vmatpush1.bf16.msra.mxu0 %v2361
        %2522 = vmatprep.mubr.bf16.mxu0 %v1731
        %2523 = vmatmul.mubr.bf16.gmra.mrb[0].mxu0 %v1707
        %v2524 = vpop.f32.mrb[0].mxu0
        %v2525 = vadd.f32 %v2056, %v2524
        %v2526 = vpop.f32.mrb[0].mxu0
        %v2527 = vpop.f32.mrb[0].mxu0
        %v2528 = vadd.f32 %v2056, %v2527
        %v2529 = vpop.f32.mrb[0].mxu0
        %2530 = vmatprep.mubr.bf16.mxu0 %v1732
        %2531 = vmatmul.mubr.bf16.gmra.mrb[0].mxu0 %v1708
        %v2532 = vpop.f32.mrb[0].mxu0
        %v2533 = vadd.f32 %v2056, %v2532
        %v2534 = vpop.f32.mrb[0].mxu0
        %v2535 = vpop.f32.mrb[0].mxu0
        %v2536 = vadd.f32 %v2056, %v2535
        %v2537 = vpop.f32.mrb[0].mxu0
        %2538 = vmatprep.mubr.bf16.mxu0 %v1733
        %2539 = vmatmul.mubr.bf16.gmra.mrb[0].mxu0 %v1709
        %v2540 = vpop.f32.mrb[0].mxu0
        %v2541 = vadd.f32 %v2056, %v2540
        %v2542 = vpop.f32.mrb[0].mxu0
        %v2543 = vpop.f32.mrb[0].mxu0
        %v2544 = vadd.f32 %v2056, %v2543
        %v2545 = vpop.f32.mrb[0].mxu0
        %2546 = vmatprep.mubr.bf16.mxu0 %v1734
        %2547 = vmatmul.mubr.bf16.gmra.mrb[0].mxu0 %v1710
        %v2548 = vpop.f32.mrb[0].mxu0
        %v2549 = vadd.f32 %v2056, %v2548
        %v2550 = vpop.f32.mrb[0].mxu0
        %v2551 = vpop.f32.mrb[0].mxu0
        %v2552 = vadd.f32 %v2056, %v2551
        %v2553 = vpop.f32.mrb[0].mxu0
        %2554 = vdwg.mxu0
        %2555 = vmatprep.subr.bf16.mxu0 0
        %2556 = vmatpush1.bf16.msra.mxu0 %v2362
        %2557 = vmatprep.subr.bf16.mxu0 0
        %2558 = vmatpush1.bf16.msra.mxu0 %v2363
        %2559 = vmatprep.subr.bf16.mxu0 0
        %2560 = vmatpush1.bf16.msra.mxu0 %v2364
        %2561 = vmatprep.subr.bf16.mxu0 0
        %2562 = vmatpush1.bf16.msra.mxu0 %v2365
        %2563 = vmatprep.subr.bf16.mxu0 0
        %2564 = vmatpush1.bf16.msra.mxu0 %v2366
        %2565 = vmatprep.subr.bf16.mxu0 0
        %2566 = vmatpush1.bf16.msra.mxu0 %v2367
        %2567 = vmatprep.subr.bf16.mxu0 0
        %2568 = vmatpush1.bf16.msra.mxu0 %v2368
        %2569 = vmatprep.subr.bf16.mxu0 0
        %2570 = vmatpush1.bf16.msra.mxu0 %v2369
        %2571 = vmatprep.subr.bf16.mxu0 0
        %2572 = vmatpush1.bf16.msra.mxu0 %v2370
        %2573 = vmatprep.subr.bf16.mxu0 0
        %2574 = vmatpush1.bf16.msra.mxu0 %v2371
        %2575 = vmatprep.subr.bf16.mxu0 0
        %2576 = vmatpush1.bf16.msra.mxu0 %v2372
        %2577 = vmatprep.subr.bf16.mxu0 0
        %2578 = vmatpush1.bf16.msra.mxu0 %v2373
        %2579 = vmatprep.subr.bf16.mxu0 0
        %2580 = vmatpush1.bf16.msra.mxu0 %v2374
        %2581 = vmatprep.subr.bf16.mxu0 0
        %2582 = vmatpush1.bf16.msra.mxu0 %v2375
        %2583 = vmatprep.subr.bf16.mxu0 0
        %2584 = vmatpush1.bf16.msra.mxu0 %v2376
        %2585 = vmatprep.subr.bf16.mxu0 0
        %2586 = vmatpush1.bf16.msra.mxu0 %v2377
        %2587 = vmatprep.mubr.bf16.mxu0 %v1779
        %2588 = vmatmul.mubr.bf16.gmra.mrb[0].mxu0 %v1755
        %v2589 = vpop.f32.mrb[0].mxu0
        %v2590 = vadd.f32 %v2525, %v2589
        %v2591 = vpop.f32.mrb[0].mxu0
        %v2592 = vpop.f32.mrb[0].mxu0
        %v2593 = vadd.f32 %v2528, %v2592
        %v2594 = vpop.f32.mrb[0].mxu0
        %2595 = vmatprep.mubr.bf16.mxu0 %v1780
        %2596 = vmatmul.mubr.bf16.gmra.mrb[0].mxu0 %v1756
        %v2597 = vpop.f32.mrb[0].mxu0
        %v2598 = vadd.f32 %v2533, %v2597
        %v2599 = vpop.f32.mrb[0].mxu0
        %v2600 = vpop.f32.mrb[0].mxu0
        %v2601 = vadd.f32 %v2536, %v2600
        %v2602 = vpop.f32.mrb[0].mxu0
        %2603 = vmatprep.mubr.bf16.mxu0 %v1781
        %2604 = vmatmul.mubr.bf16.gmra.mrb[0].mxu0 %v1757
        %v2605 = vpop.f32.mrb[0].mxu0
        %v2606 = vadd.f32 %v2541, %v2605
        %v2607 = vpop.f32.mrb[0].mxu0
        %v2608 = vpop.f32.mrb[0].mxu0
        %v2609 = vadd.f32 %v2544, %v2608
        %v2610 = vpop.f32.mrb[0].mxu0
        %2611 = vmatprep.mubr.bf16.mxu0 %v1782
        %2612 = vmatmul.mubr.bf16.gmra.mrb[0].mxu0 %v1758
        %v2613 = vpop.f32.mrb[0].mxu0
        %v2614 = vadd.f32 %v2549, %v2613
        %v2615 = vpop.f32.mrb[0].mxu0
        %v2616 = vpop.f32.mrb[0].mxu0
        %v2617 = vadd.f32 %v2552, %v2616
        %v2618 = vpop.f32.mrb[0].mxu0
        %2619 = vdwg.mxu0
        %2620 = vmatprep.subr.bf16.mxu0 0
        %2621 = vmatpush1.bf16.msra.mxu0 %v2378
        %2622 = vmatprep.subr.bf16.mxu0 0
        %2623 = vmatpush1.bf16.msra.mxu0 %v2379
        %2624 = vmatprep.subr.bf16.mxu0 0
        %2625 = vmatpush1.bf16.msra.mxu0 %v2380
        %2626 = vmatprep.subr.bf16.mxu0 0
        %2627 = vmatpush1.bf16.msra.mxu0 %v2381
        %2628 = vmatprep.subr.bf16.mxu0 0
        %2629 = vmatpush1.bf16.msra.mxu0 %v2382
        %2630 = vmatprep.subr.bf16.mxu0 0
        %2631 = vmatpush1.bf16.msra.mxu0 %v2383
        %2632 = vmatprep.subr.bf16.mxu0 0
        %2633 = vmatpush1.bf16.msra.mxu0 %v2384
        %2634 = vmatprep.subr.bf16.mxu0 0
        %2635 = vmatpush1.bf16.msra.mxu0 %v2385
        %2636 = vmatprep.subr.bf16.mxu0 0
        %2637 = vmatpush1.bf16.msra.mxu0 %v2386
        %2638 = vmatprep.subr.bf16.mxu0 0
        %2639 = vmatpush1.bf16.msra.mxu0 %v2387
        %2640 = vmatprep.subr.bf16.mxu0 0
        %2641 = vmatpush1.bf16.msra.mxu0 %v2388
        %2642 = vmatprep.subr.bf16.mxu0 0
        %2643 = vmatpush1.bf16.msra.mxu0 %v2389
        %2644 = vmatprep.subr.bf16.mxu0 0
        %2645 = vmatpush1.bf16.msra.mxu0 %v2390
        %2646 = vmatprep.subr.bf16.mxu0 0
        %2647 = vmatpush1.bf16.msra.mxu0 %v2391
        %2648 = vmatprep.subr.bf16.mxu0 0
        %2649 = vmatpush1.bf16.msra.mxu0 %v2392
        %2650 = vmatprep.subr.bf16.mxu0 0
        %2651 = vmatpush1.bf16.msra.mxu0 %v2393
        %2652 = vmatprep.mubr.bf16.mxu0 %v1827
        %2653 = vmatmul.mubr.bf16.gmra.mrb[0].mxu0 %v1803
        %v2654 = vpop.f32.mrb[0].mxu0
        %v2655 = vadd.f32 %v2590, %v2654
        %v2656 = vpop.f32.mrb[0].mxu0
        %v2657 = vpop.f32.mrb[0].mxu0
        %v2658 = vadd.f32 %v2593, %v2657
        %v2659 = vpop.f32.mrb[0].mxu0
        %2660 = vmatprep.mubr.bf16.mxu0 %v1828
        %2661 = vmatmul.mubr.bf16.gmra.mrb[0].mxu0 %v1804
        %v2662 = vpop.f32.mrb[0].mxu0
        %v2663 = vadd.f32 %v2598, %v2662
        %v2664 = vpop.f32.mrb[0].mxu0
        %v2665 = vpop.f32.mrb[0].mxu0
        %v2666 = vadd.f32 %v2601, %v2665
        %v2667 = vpop.f32.mrb[0].mxu0
        %2668 = vmatprep.mubr.bf16.mxu0 %v1829
        %2669 = vmatmul.mubr.bf16.gmra.mrb[0].mxu0 %v1805
        %v2670 = vpop.f32.mrb[0].mxu0
        %v2671 = vadd.f32 %v2606, %v2670
        %v2672 = vpop.f32.mrb[0].mxu0
        %v2673 = vpop.f32.mrb[0].mxu0
        %v2674 = vadd.f32 %v2609, %v2673
        %v2675 = vpop.f32.mrb[0].mxu0
        %2676 = vmatprep.mubr.bf16.mxu0 %v1830
        %2677 = vmatmul.mubr.bf16.gmra.mrb[0].mxu0 %v1806
        %v2678 = vpop.f32.mrb[0].mxu0
        %v2679 = vadd.f32 %v2614, %v2678
        %v2680 = vpop.f32.mrb[0].mxu0
        %v2681 = vpop.f32.mrb[0].mxu0
        %v2682 = vadd.f32 %v2617, %v2681
        %v2683 = vpop.f32.mrb[0].mxu0
        %2684 = vdwg.mxu0
        %2685 = vmatprep.subr.bf16.mxu0 0
        %2686 = vmatpush1.bf16.msra.mxu0 %v2394
        %2687 = vmatprep.subr.bf16.mxu0 0
        %2688 = vmatpush1.bf16.msra.mxu0 %v2395
        %2689 = vmatprep.subr.bf16.mxu0 0
        %2690 = vmatpush1.bf16.msra.mxu0 %v2396
        %2691 = vmatprep.subr.bf16.mxu0 0
        %2692 = vmatpush1.bf16.msra.mxu0 %v2397
        %2693 = vmatprep.subr.bf16.mxu0 0
        %2694 = vmatpush1.bf16.msra.mxu0 %v2398
        %2695 = vmatprep.subr.bf16.mxu0 0
        %2696 = vmatpush1.bf16.msra.mxu0 %v2399
        %2697 = vmatprep.subr.bf16.mxu0 0
        %2698 = vmatpush1.bf16.msra.mxu0 %v2400
        %2699 = vmatprep.subr.bf16.mxu0 0
        %2700 = vmatpush1.bf16.msra.mxu0 %v2401
        %2701 = vmatprep.subr.bf16.mxu0 0
        %2702 = vmatpush1.bf16.msra.mxu0 %v2402
        %2703 = vmatprep.subr.bf16.mxu0 0
        %2704 = vmatpush1.bf16.msra.mxu0 %v2403
        %2705 = vmatprep.subr.bf16.mxu0 0
        %2706 = vmatpush1.bf16.msra.mxu0 %v2404
        %2707 = vmatprep.subr.bf16.mxu0 0
        %2708 = vmatpush1.bf16.msra.mxu0 %v2405
        %2709 = vmatprep.subr.bf16.mxu0 0
        %2710 = vmatpush1.bf16.msra.mxu0 %v2406
        %2711 = vmatprep.subr.bf16.mxu0 0
        %2712 = vmatpush1.bf16.msra.mxu0 %v2407
        %2713 = vmatprep.subr.bf16.mxu0 0
        %2714 = vmatpush1.bf16.msra.mxu0 %v2408
        %2715 = vmatprep.subr.bf16.mxu0 0
        %2716 = vmatpush1.bf16.msra.mxu0 %v2409
        %2717 = vmatprep.mubr.bf16.mxu0 %v1875
        %2718 = vmatmul.mubr.bf16.gmra.mrb[0].mxu0 %v1851
        %v2719 = vpop.f32.mrb[0].mxu0
        %v2720 = vadd.f32 %v2655, %v2719
        %v2721 = vpop.f32.mrb[0].mxu0
        %v2722 = vpop.f32.mrb[0].mxu0
        %v2723 = vadd.f32 %v2658, %v2722
        %v2724 = vpop.f32.mrb[0].mxu0
        %2725 = vmatprep.mubr.bf16.mxu0 %v1876
        %2726 = vmatmul.mubr.bf16.gmra.mrb[0].mxu0 %v1852
        %v2727 = vpop.f32.mrb[0].mxu0
        %v2728 = vadd.f32 %v2663, %v2727
        %v2729 = vpop.f32.mrb[0].mxu0
        %v2730 = vpop.f32.mrb[0].mxu0
        %v2731 = vadd.f32 %v2666, %v2730
        %v2732 = vpop.f32.mrb[0].mxu0
        %2733 = vmatprep.mubr.bf16.mxu0 %v1877
        %2734 = vmatmul.mubr.bf16.gmra.mrb[0].mxu0 %v1853
        %v2735 = vpop.f32.mrb[0].mxu0
        %v2736 = vadd.f32 %v2671, %v2735
        %v2737 = vpop.f32.mrb[0].mxu0
        %v2738 = vpop.f32.mrb[0].mxu0
        %v2739 = vadd.f32 %v2674, %v2738
        %v2740 = vpop.f32.mrb[0].mxu0
        %2741 = vmatprep.mubr.bf16.mxu0 %v1878
        %2742 = vmatmul.mubr.bf16.gmra.mrb[0].mxu0 %v1854
        %v2743 = vpop.f32.mrb[0].mxu0
        %v2744 = vadd.f32 %v2679, %v2743
        %v2745 = vpop.f32.mrb[0].mxu0
        %v2746 = vpop.f32.mrb[0].mxu0
        %v2747 = vadd.f32 %v2682, %v2746
        %v2748 = vpop.f32.mrb[0].mxu0
        %2749 = vdwg.mxu0
        %2750 = vmatprep.subr.bf16.mxu0 0
        %2751 = vmatpush1.bf16.msra.mxu0 %v2410
        %2752 = vmatprep.subr.bf16.mxu0 0
        %2753 = vmatpush1.bf16.msra.mxu0 %v2411
        %2754 = vmatprep.subr.bf16.mxu0 0
        %2755 = vmatpush1.bf16.msra.mxu0 %v2412
        %2756 = vmatprep.subr.bf16.mxu0 0
        %2757 = vmatpush1.bf16.msra.mxu0 %v2413
        %2758 = vmatprep.subr.bf16.mxu0 0
        %2759 = vmatpush1.bf16.msra.mxu0 %v2414
        %2760 = vmatprep.subr.bf16.mxu0 0
        %2761 = vmatpush1.bf16.msra.mxu0 %v2415
        %2762 = vmatprep.subr.bf16.mxu0 0
        %2763 = vmatpush1.bf16.msra.mxu0 %v2416
        %2764 = vmatprep.subr.bf16.mxu0 0
        %2765 = vmatpush1.bf16.msra.mxu0 %v2417
        %2766 = vmatprep.subr.bf16.mxu0 0
        %2767 = vmatpush1.bf16.msra.mxu0 0
        %2768 = vmatprep.subr.bf16.mxu0 0
        %2769 = vmatpush1.bf16.msra.mxu0 0
        %2770 = vmatprep.subr.bf16.mxu0 0
        %2771 = vmatpush1.bf16.msra.mxu0 0
        %2772 = vmatprep.subr.bf16.mxu0 0
        %2773 = vmatpush1.bf16.msra.mxu0 0
        %2774 = vmatprep.subr.bf16.mxu0 0
        %2775 = vmatpush1.bf16.msra.mxu0 0
        %2776 = vmatprep.subr.bf16.mxu0 0
        %2777 = vmatpush1.bf16.msra.mxu0 0
        %2778 = vmatprep.subr.bf16.mxu0 0
        %2779 = vmatpush1.bf16.msra.mxu0 0
        %2780 = vmatprep.subr.bf16.mxu0 0
        %2781 = vmatpush1.bf16.msra.mxu0 0
        %2782 = vmatprep.mubr.bf16.mxu0 0
        %2783 = vmatmul.mubr.bf16.gmra.mrb[0].mxu0 %v1899
        %v2784 = vpop.f32.mrb[0].mxu0
        %v2785 = vadd.f32 %v2720, %v2784
        %v2786 = vpop.f32.mrb[0].mxu0
        %v2787 = vpop.f32.mrb[0].mxu0
        %v2788 = vadd.f32 %v2723, %v2787
        %v2789 = vpop.f32.mrb[0].mxu0
        %2790 = vmatprep.mubr.bf16.mxu0 0
        %2791 = vmatmul.mubr.bf16.gmra.mrb[0].mxu0 %v1900
        %v2792 = vpop.f32.mrb[0].mxu0
        %v2793 = vadd.f32 %v2728, %v2792
        %v2794 = vpop.f32.mrb[0].mxu0
        %v2795 = vpop.f32.mrb[0].mxu0
        %v2796 = vadd.f32 %v2731, %v2795
        %v2797 = vpop.f32.mrb[0].mxu0
        %2798 = vmatprep.mubr.bf16.mxu0 0
        %2799 = vmatmul.mubr.bf16.gmra.mrb[0].mxu0 %v1901
        %v2800 = vpop.f32.mrb[0].mxu0
        %v2801 = vadd.f32 %v2736, %v2800
        %v2802 = vpop.f32.mrb[0].mxu0
        %v2803 = vpop.f32.mrb[0].mxu0
        %v2804 = vadd.f32 %v2739, %v2803
        %v2805 = vpop.f32.mrb[0].mxu0
        %2806 = vmatprep.mubr.bf16.mxu0 0
        %2807 = vmatmul.mubr.bf16.gmra.mrb[0].mxu0 %v1902
        %v2808 = vpop.f32.mrb[0].mxu0
        %v2809 = vadd.f32 %v2744, %v2808
        %v2810 = vpop.f32.mrb[0].mxu0
        %v2811 = vpop.f32.mrb[0].mxu0
        %v2812 = vadd.f32 %v2747, %v2811
        %v2813 = vpop.f32.mrb[0].mxu0
        %2814 = vdwg.mxu0
        %v2815 = vadd.f32 %v2785, %v1487
        %v2816 = vadd.f32 %v2788, %v1490
        %v2817 = vadd.f32 %v2793, %v1495
        %v2818 = vadd.f32 %v2796, %v1498
        %v2819 = vadd.f32 %v2801, %v1503
        %v2820 = vadd.f32 %v2804, %v1506
        %v2821 = vadd.f32 %v2809, %v1511
        %v2822 = vadd.f32 %v2812, %v1514
        %v2823 = vmax.f32 %v2815, 0.0
        %v2824 = vmax.f32 %v2816, 0.0
        %v2825 = vmax.f32 %v2817, 0.0
        %v2826 = vmax.f32 %v2818, 0.0
        %v2827 = vmax.f32 %v2819, 0.0
        %v2828 = vmax.f32 %v2820, 0.0
        %v2829 = vmax.f32 %v2821, 0.0
        %v2830 = vmax.f32 %v2822, 0.0
        %2831 = vst [vmem:[%s271] sm:$0xff] %v2823
        %2832 = vst [vmem:[%s271 + $0x8] sm:$0xff] %v2824
        %2833 = vst [vmem:[%s271 + $0x10] sm:$0xff] %v2825
        %2834 = vst [vmem:[%s271 + $0x18] sm:$0xff] %v2826
        %2835 = vst [vmem:[%s271 + $0x20] sm:$0xff] %v2827
        %2836 = vst [vmem:[%s271 + $0x28] sm:$0xff] %v2828
        %2837 = vst [vmem:[%s271 + $0x30] sm:$0xff] %v2829
        %2838 = vst [vmem:[%s271 + $0x38] sm:$0xff] %v2830
        %s2839 = sand.u32 %s181, 1
        %s2840 = scalar_lea.sflag [#allocation4], %s2839
        %s2841 = sand.u32 %s181, 1
        %s2842 = smul.addr %s2841, 64
        %s2843 = scalar_lea.vmem [#allocation3], %s2842
        // Predicated region
        $region49: #{_lambda_.3} parent=47 // pred_check
          %p2844 = pneg %p191
        $region50: #{_lambda_.3} parent=47 // pred_check_branch
          %2846 = sbr.rel (%p2844) target = $region52
        $region51: #{_lambda_.3} parent=47 // pred_region
          %s2848 = ssub.s32 1024, 1024
          %2849 = vsyncadd %s2840, %s2848
          %s2850 = smul.addr %s21, 8
          %s2851 = smul.addr %s2850, 128
          %s2852 = scalar_lea.hbm %s7, %s2851
          %s2853 = sshll.u32 %s2843, 4
          %s2854 = int_to_ptr.vmem [resolvable:$true] %s2853
          %2859 = dma.vmem_to_hbm [thread:$0]  %s2854, 1024, %s2852, %s2840, 128, 128, 8
        $region52: #{_lambda_.3} parent=47 // pred_fallthru
          _
      $region48: #{_lambda_.3} parent=5 // pred_fallthru
        _
      %p2860 = scmp.le.s32.totalorder 2, %s16
      // Predicated region
      $region53: #{_lambda_.3} parent=5 // pred_check
        %p2861 = pneg %p2860
      $region54: #{_lambda_.3} parent=5 // pred_check_branch
        %2863 = sbr.rel (%p2861) target = $region56
      $region55: #{_lambda_.3} parent=5 // pred_region
        %s2864 = ssub.s32 %s16, 2
        // Predicated region
        $region57: #{_lambda_.3} parent=55 // pred_check
          %p2865 = pneg %p197
        $region58: #{_lambda_.3} parent=55 // pred_check_branch
          %2867 = sbr.rel (%p2865) target = $region60
        $region59: #{_lambda_.3} parent=55 // pred_region
          %s2868 = sand.u32 %s182, 1
          %s2869 = scalar_lea.sflag [#allocation4], %s2868
          %s2870 = sand.u32 %s182, 1
          %s2871 = smul.addr %s2870, 64
          %s2872 = scalar_lea.vmem [#allocation3], %s2871
          %2873 = dma.done %s2869, 1024
        $region60: #{_lambda_.3} parent=55 // pred_fallthru
          _
      $region56: #{_lambda_.3} parent=5 // pred_fallthru
        _
    $region6: #{_lambda_.3} parent=1 // loop_footer
      %s20 = sadd.s32 1, %s16
    $region7: #{_lambda_.3} parent=1 // loop_footer_branch
      %15 = sbr.rel target = $region3
    $region8: #{_lambda_.3} parent=1 // loop_exit
      _
    %2874 = vsyncpa [#allocation4], 1
    %s2875 = scalar_lea.sflag [#allocation4], 1
    %2876 = vsyncpa %s2875, 1

// kernel: _lambda_.2
$region0: #{_lambda_.2}
  #allocation0 [shape = 'u32[]', space=smem, size = 0x4, offset = 0x4, fixed_abs, tag = 'smem constant byte address 0x4 - core index']
  #allocation1 [shape = 'u32[144,128]{1,0:T(1,128)}', space=vmem, size = 0x12000, scoped, tag = 'internal scratch']
  #allocation2 [shape = 'f32[18,18,64]{2,1,0:T(8,128)}', space=vmem, size = 0x36000, scoped, tag = 'scratch operand']
  #allocation3 [shape = 'f32[18,18,64]{2,1,0:T(8,128)}', space=vmem, size = 0x36000, scoped, tag = 'scratch operand']
  %s0 = inlined_call_operand.vmem [shape: f32[2,16,16,64], index: 0, kind: input, shape index: {}]
  %s1 = inlined_call_operand.vmem [shape: bf16[576,64], index: 1, kind: input, shape index: {}]
  %s2 = inlined_call_operand.vmem [shape: f32[1,64], index: 2, kind: input, shape index: {}, may-alias: {2,4}]
  %s3 = inlined_call_operand.vmem [shape: bf16[576,64], index: 3, kind: input, shape index: {}]
  %s4 = inlined_call_operand.vmem [shape: f32[1,64], index: 4, kind: input, shape index: {}, may-alias: {2,4}]
  %s5 = inlined_call_operand.hbm [shape: f32[2,16,16,64], index: 5, kind: output, shape index: {}]
  %s6 = sld [smem:[#allocation0]]
  $region53: #{_lambda_.2} parent=0
    _
  %s8 = ssub.s32 1, %s6
  %s9 = scalar_select 0, %s8, %s6
  $region1: #{_lambda_.2} parent=0
    #allocation4 [shape = 'u8[262144]{0}', space=vmem, size = 0x40000, scoped, tag = 'output window, operand 0']
    #allocation5 [shape = 's32[2]{0}', space=sflag, size = 0x8, scoped, tag = 'scoped memory for _lambda_.2']
    %10 = vsyncpa [#allocation5], 0
    %s11 = scalar_lea.sflag [#allocation5], 1
    %12 = vsyncpa %s11, 0
    loop: start=0, step=1, limit=4
    $region2: #{_lambda_.2} parent=1 // loop_pre_header
      _
    $region3: #{_lambda_.2} parent=1 // loop_header
      %s14 = sphi 0, %s18
      %p15 = scmp.ge.s32.totalorder %s14, 4
      %s24 = sphi 0, %s26
      %s27 = sphi 0, %s24
      %s28 = sphi 0, %s27
      %s44 = sphi 0, %s28
      %s48 = sphi 0, %s48
      %s50 = sphi 0, %s48
      %s51 = sphi 0, %s50
      %s65 = sphi 0, %s51
      %s69 = sphi 0, %s69
      %s71 = sphi 0, %s69
      %s72 = sphi 0, %s71
      %s86 = sphi 0, %s72
      %s90 = sphi 0, %s90
      %s92 = sphi 0, %s90
      %s93 = sphi 0, %s92
      %s107 = sphi 0, %s93
      %s111 = sphi 0, %s111
      %s113 = sphi 0, %s111
      %s114 = sphi 0, %s113
      %s128 = sphi 0, %s114
      %s134 = sphi 0, %s136
      %s137 = sphi 0, %s134
      %s138 = sphi 0, %s137
      %s154 = sphi 0, %s138
    $region4: #{_lambda_.2} parent=1 // loop_header_branch
      %17 = sbr.rel (%p15) target = $region8
    $region5: #{_lambda_.2} parent=1 // loop_body
      %s19 = ssub.s32 %s14, 1
      %s20 = ssub.s32 %s14, 2
      %s21 = sadd.s32 %s14, 1
      %s22 = ssub.s32 %s14, %s21
      %p23 = scmp.eq.s32.totalorder %s22, 0
      %s25 = sadd.s32 %s24, 1
      %s26 = scalar_select %p23, %s24, %s25
      %p29 = pneg %p23
      %p30 = scmp.eq.s32.totalorder %s14, 1
      %p31 = por %p29, %p30
      %p32 = scmp.ne.s32.totalorder %s24, %s27
      %p33 = scmp.eq.s32.totalorder %s14, 0
      %p34 = por %p32, %p33
      %p35 = scmp.ne.s32.totalorder %s24, %s27
      %p36 = scmp.eq.s32.totalorder %s19, 1
      %p37 = por %p35, %p36
      %p38 = scmp.ne.s32.totalorder %s27, %s28
      %p39 = scmp.eq.s32.totalorder %s19, 0
      %p40 = por %p38, %p39
      %p41 = scmp.ne.s32.totalorder %s27, %s28
      %p42 = scmp.eq.s32.totalorder %s20, 1
      %p43 = por %p41, %p42
      %p45 = scmp.ne.s32.totalorder %s28, %s44
      %p46 = scmp.eq.s32.totalorder %s20, 0
      %p47 = por %p45, %p46
      %s49 = sadd.s32 %s48, 1
      %p52 = scmp.eq.s32.totalorder %s14, 1
      %p53 = scmp.ne.s32.totalorder %s48, %s50
      %p54 = scmp.eq.s32.totalorder %s14, 0
      %p55 = por %p53, %p54
      %p56 = scmp.ne.s32.totalorder %s48, %s50
      %p57 = scmp.eq.s32.totalorder %s19, 1
      %p58 = por %p56, %p57
      %p59 = scmp.ne.s32.totalorder %s50, %s51
      %p60 = scmp.eq.s32.totalorder %s19, 0
      %p61 = por %p59, %p60
      %p62 = scmp.ne.s32.totalorder %s50, %s51
      %p63 = scmp.eq.s32.totalorder %s20, 1
      %p64 = por %p62, %p63
      %p66 = scmp.ne.s32.totalorder %s51, %s65
      %p67 = scmp.eq.s32.totalorder %s20, 0
      %p68 = por %p66, %p67
      %s70 = sadd.s32 %s69, 1
      %p73 = scmp.eq.s32.totalorder %s14, 1
      %p74 = scmp.ne.s32.totalorder %s69, %s71
      %p75 = scmp.eq.s32.totalorder %s14, 0
      %p76 = por %p74, %p75
      %p77 = scmp.ne.s32.totalorder %s69, %s71
      %p78 = scmp.eq.s32.totalorder %s19, 1
      %p79 = por %p77, %p78
      %p80 = scmp.ne.s32.totalorder %s71, %s72
      %p81 = scmp.eq.s32.totalorder %s19, 0
      %p82 = por %p80, %p81
      %p83 = scmp.ne.s32.totalorder %s71, %s72
      %p84 = scmp.eq.s32.totalorder %s20, 1
      %p85 = por %p83, %p84
      %p87 = scmp.ne.s32.totalorder %s72, %s86
      %p88 = scmp.eq.s32.totalorder %s20, 0
      %p89 = por %p87, %p88
      %s91 = sadd.s32 %s90, 1
      %p94 = scmp.eq.s32.totalorder %s14, 1
      %p95 = scmp.ne.s32.totalorder %s90, %s92
      %p96 = scmp.eq.s32.totalorder %s14, 0
      %p97 = por %p95, %p96
      %p98 = scmp.ne.s32.totalorder %s90, %s92
      %p99 = scmp.eq.s32.totalorder %s19, 1
      %p100 = por %p98, %p99
      %p101 = scmp.ne.s32.totalorder %s92, %s93
      %p102 = scmp.eq.s32.totalorder %s19, 0
      %p103 = por %p101, %p102
      %p104 = scmp.ne.s32.totalorder %s92, %s93
      %p105 = scmp.eq.s32.totalorder %s20, 1
      %p106 = por %p104, %p105
      %p108 = scmp.ne.s32.totalorder %s93, %s107
      %p109 = scmp.eq.s32.totalorder %s20, 0
      %p110 = por %p108, %p109
      %s112 = sadd.s32 %s111, 1
      %p115 = scmp.eq.s32.totalorder %s14, 1
      %p116 = scmp.ne.s32.totalorder %s111, %s113
      %p117 = scmp.eq.s32.totalorder %s14, 0
      %p118 = por %p116, %p117
      %p119 = scmp.ne.s32.totalorder %s111, %s113
      %p120 = scmp.eq.s32.totalorder %s19, 1
      %p121 = por %p119, %p120
      %p122 = scmp.ne.s32.totalorder %s113, %s114
      %p123 = scmp.eq.s32.totalorder %s19, 0
      %p124 = por %p122, %p123
      %p125 = scmp.ne.s32.totalorder %s113, %s114
      %p126 = scmp.eq.s32.totalorder %s20, 1
      %p127 = por %p125, %p126
      %p129 = scmp.ne.s32.totalorder %s114, %s128
      %p130 = scmp.eq.s32.totalorder %s20, 0
      %p131 = por %p129, %p130
      %s132 = ssub.s32 %s14, %s21
      %p133 = scmp.eq.s32.totalorder %s132, 0
      %s135 = sadd.s32 %s134, 1
      %s136 = scalar_select %p133, %s134, %s135
      %p139 = pneg %p133
      %p140 = scmp.eq.s32.totalorder %s14, 1
      %p141 = por %p139, %p140
      %p142 = scmp.ne.s32.totalorder %s134, %s137
      %p143 = scmp.eq.s32.totalorder %s14, 0
      %p144 = por %p142, %p143
      %p145 = scmp.ne.s32.totalorder %s134, %s137
      %p146 = scmp.eq.s32.totalorder %s19, 1
      %p147 = por %p145, %p146
      %p148 = scmp.ne.s32.totalorder %s137, %s138
      %p149 = scmp.eq.s32.totalorder %s19, 0
      %p150 = por %p148, %p149
      %p151 = scmp.ne.s32.totalorder %s137, %s138
      %p152 = scmp.eq.s32.totalorder %s20, 1
      %p153 = por %p151, %p152
      %p155 = scmp.ne.s32.totalorder %s138, %s154
      %p156 = scmp.eq.s32.totalorder %s20, 0
      %p157 = por %p155, %p156
      %p158 = scmp.le.s32.totalorder 1, %s14
      %p159 = scmp.lt.s32.totalorder %s14, 3
      %p160 = pnand %p158, %p159
      %p161 = pneg %p160
      // Predicated region
      $region9: #{_lambda_.2} parent=5 // pred_check
        _
      $region10: #{_lambda_.2} parent=5 // pred_check_branch
        %163 = sbr.rel (%p160) target = $region12
      $region11: #{_lambda_.2} parent=5 // pred_region
        %s164 = ssub.s32 %s14, 1
        // Predicated region
        $region13: #{_lambda_.2} parent=11 // pred_check
          %p165 = pneg %p61
        $region14: #{_lambda_.2} parent=11 // pred_check_branch
          %167 = sbr.rel (%p165) target = $region16
        $region15: #{_lambda_.2} parent=11 // pred_region
          _
        $region16: #{_lambda_.2} parent=11 // pred_fallthru
          _
        // Predicated region
        $region17: #{_lambda_.2} parent=11 // pred_check
          %p168 = pneg %p82
        $region18: #{_lambda_.2} parent=11 // pred_check_branch
          %170 = sbr.rel (%p168) target = $region20
        $region19: #{_lambda_.2} parent=11 // pred_region
          _
        $region20: #{_lambda_.2} parent=11 // pred_fallthru
          _
        // Predicated region
        $region21: #{_lambda_.2} parent=11 // pred_check
          %p171 = pneg %p103
        $region22: #{_lambda_.2} parent=11 // pred_check_branch
          %173 = sbr.rel (%p171) target = $region24
        $region23: #{_lambda_.2} parent=11 // pred_region
          _
        $region24: #{_lambda_.2} parent=11 // pred_fallthru
          _
        // Predicated region
        $region25: #{_lambda_.2} parent=11 // pred_check
          %p174 = pneg %p124
        $region26: #{_lambda_.2} parent=11 // pred_check_branch
          %176 = sbr.rel (%p174) target = $region28
        $region27: #{_lambda_.2} parent=11 // pred_region
          _
        $region28: #{_lambda_.2} parent=11 // pred_fallthru
          _
      $region12: #{_lambda_.2} parent=5 // pred_fallthru
        _
      %p177 = scmp.lt.s32.totalorder %s14, 2
      // Predicated region
      $region29: #{_lambda_.2} parent=5 // pred_check
        %p178 = pneg %p177
      $region30: #{_lambda_.2} parent=5 // pred_check_branch
        %180 = sbr.rel (%p178) target = $region32
      $region31: #{_lambda_.2} parent=5 // pred_region
        // Predicated region
        $region33: #{_lambda_.2} parent=31 // pred_check
          %p181 = pneg %p34
        $region34: #{_lambda_.2} parent=31 // pred_check_branch
          %183 = sbr.rel (%p181) target = $region36
        $region35: #{_lambda_.2} parent=31 // pred_region
          %p184 = scmp.lt.s32.totalorder %s14, 1
          %s185 = scalar_select %p184, %s14, 1
          %s186 = smul.addr %s185, 32
          %s187 = smul.addr %s186, 8
          %s188 = scalar_lea.vmem %s0, %s187
        $region36: #{_lambda_.2} parent=31 // pred_fallthru
          _
      $region32: #{_lambda_.2} parent=5 // pred_fallthru
        _
      %p189 = scmp.le.s32.totalorder 1, %s14
      %p190 = scmp.lt.s32.totalorder %s14, 3
      %p191 = pnand %p189, %p190
      %p192 = pneg %p191
      // Predicated region
      $region37: #{_lambda_.2} parent=5 // pred_check
        _
      $region38: #{_lambda_.2} parent=5 // pred_check_branch
        %194 = sbr.rel (%p191) target = $region40
      $region39: #{_lambda_.2} parent=5 // pred_region
        %s195 = ssub.s32 %s14, 1
        %p196 = scmp.lt.s32.totalorder %s19, 1
        %s197 = scalar_select %p196, %s19, 1
        %s198 = smul.addr %s197, 32
        %s199 = smul.addr %s198, 8
        %s200 = scalar_lea.vmem %s0, %s199
        %p201 = pneg %p40
        %p202 = pneg %p37
        %p203 = pneg %p61
        %p204 = pneg %p58
        %p205 = pneg %p82
        %p206 = pneg %p79
        %p207 = pneg %p103
        %p208 = pneg %p100
        %p209 = pneg %p124
        %p210 = pneg %p121
        %p211 = pneg %p150
        %p212 = pneg %p147
        %s213 = sand.u32 %s137, 1
        %s214 = scalar_lea.sflag [#allocation5], %s213
        %s215 = sand.u32 %s137, 1
        %s216 = smul.addr %s215, 256
        %s217 = scalar_lea.vmem [#allocation4], %s216
        %p218 = scmp.lt.s32.totalorder %s19, 1
        %s219 = scalar_select %p218, %s19, 1
        %s220 = smul.addr %s219, 32
        %s221 = smul.addr %s220, 8
        %s222 = scalar_lea.vmem %s0, %s221
        %vm224 = vcmask 523264
        %225 = vst.msk [vmem:[#allocation2] sm:$0xff] %vm224, 0.0
        %226 = vst.msk [vmem:[#allocation2 + $0x8] sm:$0xff] %vm224, 0.0
        %vm227 = vcmask 517120
        %228 = vst.msk [vmem:[#allocation2 + $0x10] sm:$0x3] %vm227, 0.0
        %229 = vst.msk [vmem:[#allocation2 + $0x18] sm:$0xff] %vm224, 0.0
        %230 = vst.msk [vmem:[#allocation2 + $0x20] sm:$0xff] %vm224, 0.0
        %231 = vst.msk [vmem:[#allocation2 + $0x28] sm:$0x3] %vm227, 0.0
        %232 = vst.msk [vmem:[#allocation2 + $0x30] sm:$0xff] %vm224, 0.0
        %233 = vst.msk [vmem:[#allocation2 + $0x38] sm:$0xff] %vm224, 0.0
        %234 = vst.msk [vmem:[#allocation2 + $0x40] sm:$0x3] %vm227, 0.0
        %235 = vst.msk [vmem:[#allocation2 + $0x48] sm:$0xff] %vm224, 0.0
        %236 = vst.msk [vmem:[#allocation2 + $0x50] sm:$0xff] %vm224, 0.0
        %237 = vst.msk [vmem:[#allocation2 + $0x58] sm:$0x3] %vm227, 0.0
        %238 = vst.msk [vmem:[#allocation2 + $0x60] sm:$0xff] %vm224, 0.0
        %239 = vst.msk [vmem:[#allocation2 + $0x68] sm:$0xff] %vm224, 0.0
        %240 = vst.msk [vmem:[#allocation2 + $0x70] sm:$0x3] %vm227, 0.0
        %241 = vst.msk [vmem:[#allocation2 + $0x78] sm:$0xff] %vm224, 0.0
        %242 = vst.msk [vmem:[#allocation2 + $0x80] sm:$0xff] %vm224, 0.0
        %243 = vst.msk [vmem:[#allocation2 + $0x88] sm:$0x3] %vm227, 0.0
        %244 = vst.msk [vmem:[#allocation2 + $0x90] sm:$0xff] %vm224, 0.0
        %245 = vst.msk [vmem:[#allocation2 + $0x98] sm:$0xff] %vm224, 0.0
        %246 = vst.msk [vmem:[#allocation2 + $0xa0] sm:$0x3] %vm227, 0.0
        %247 = vst.msk [vmem:[#allocation2 + $0xa8] sm:$0xff] %vm224, 0.0
        %248 = vst.msk [vmem:[#allocation2 + $0xb0] sm:$0xff] %vm224, 0.0
        %249 = vst.msk [vmem:[#allocation2 + $0xb8] sm:$0x3] %vm227, 0.0
        %250 = vst.msk [vmem:[#allocation2 + $0xc0] sm:$0xff] %vm224, 0.0
        %251 = vst.msk [vmem:[#allocation2 + $0xc8] sm:$0xff] %vm224, 0.0
        %252 = vst.msk [vmem:[#allocation2 + $0xd0] sm:$0x3] %vm227, 0.0
        %253 = vst.msk [vmem:[#allocation2 + $0xd8] sm:$0xff] %vm224, 0.0
        %254 = vst.msk [vmem:[#allocation2 + $0xe0] sm:$0xff] %vm224, 0.0
        %255 = vst.msk [vmem:[#allocation2 + $0xe8] sm:$0x3] %vm227, 0.0
        %256 = vst.msk [vmem:[#allocation2 + $0xf0] sm:$0xff] %vm224, 0.0
        %257 = vst.msk [vmem:[#allocation2 + $0xf8] sm:$0xff] %vm224, 0.0
        %258 = vst.msk [vmem:[#allocation2 + $0x100] sm:$0x3] %vm227, 0.0
        %259 = vst.msk [vmem:[#allocation2 + $0x108] sm:$0xff] %vm224, 0.0
        %260 = vst.msk [vmem:[#allocation2 + $0x110] sm:$0xff] %vm224, 0.0
        %261 = vst.msk [vmem:[#allocation2 + $0x118] sm:$0x3] %vm227, 0.0
        %262 = vst.msk [vmem:[#allocation2 + $0x120] sm:$0xff] %vm224, 0.0
        %263 = vst.msk [vmem:[#allocation2 + $0x128] sm:$0xff] %vm224, 0.0
        %264 = vst.msk [vmem:[#allocation2 + $0x130] sm:$0x3] %vm227, 0.0
        %265 = vst.msk [vmem:[#allocation2 + $0x138] sm:$0xff] %vm224, 0.0
        %266 = vst.msk [vmem:[#allocation2 + $0x140] sm:$0xff] %vm224, 0.0
        %267 = vst.msk [vmem:[#allocation2 + $0x148] sm:$0x3] %vm227, 0.0
        %268 = vst.msk [vmem:[#allocation2 + $0x150] sm:$0xff] %vm224, 0.0
        %269 = vst.msk [vmem:[#allocation2 + $0x158] sm:$0xff] %vm224, 0.0
        %270 = vst.msk [vmem:[#allocation2 + $0x160] sm:$0x3] %vm227, 0.0
        %271 = vst.msk [vmem:[#allocation2 + $0x168] sm:$0xff] %vm224, 0.0
        %272 = vst.msk [vmem:[#allocation2 + $0x170] sm:$0xff] %vm224, 0.0
        %273 = vst.msk [vmem:[#allocation2 + $0x178] sm:$0x3] %vm227, 0.0
        %274 = vst.msk [vmem:[#allocation2 + $0x180] sm:$0xff] %vm224, 0.0
        %275 = vst.msk [vmem:[#allocation2 + $0x188] sm:$0xff] %vm224, 0.0
        %276 = vst.msk [vmem:[#allocation2 + $0x190] sm:$0x3] %vm227, 0.0
        %277 = vst.msk [vmem:[#allocation2 + $0x198] sm:$0xff] %vm224, 0.0
        %278 = vst.msk [vmem:[#allocation2 + $0x1a0] sm:$0xff] %vm224, 0.0
        %279 = vst.msk [vmem:[#allocation2 + $0x1a8] sm:$0x3] %vm227, 0.0
        %v280 = vld [vmem:[%s222] sm:$0xff]
        %v281 = vld [vmem:[%s222 + $0x8] sm:$0xff]
        %v282 = vld [vmem:[%s222 + $0x10] sm:$0xff]
        %v283 = vld [vmem:[%s222 + $0x18] sm:$0xff]
        %v284 = vld [vmem:[%s222 + $0x20] sm:$0xff]
        %v285 = vld [vmem:[%s222 + $0x28] sm:$0xff]
        %v286 = vld [vmem:[%s222 + $0x30] sm:$0xff]
        %v287 = vld [vmem:[%s222 + $0x38] sm:$0xff]
        %v288 = vld [vmem:[%s222 + $0x40] sm:$0xff]
        %v289 = vld [vmem:[%s222 + $0x48] sm:$0xff]
        %v290 = vld [vmem:[%s222 + $0x50] sm:$0xff]
        %v291 = vld [vmem:[%s222 + $0x58] sm:$0xff]
        %v292 = vld [vmem:[%s222 + $0x60] sm:$0xff]
        %v293 = vld [vmem:[%s222 + $0x68] sm:$0xff]
        %v294 = vld [vmem:[%s222 + $0x70] sm:$0xff]
        %v295 = vld [vmem:[%s222 + $0x78] sm:$0xff]
        %v296 = vld [vmem:[%s222 + $0x80] sm:$0xff]
        %v297 = vld [vmem:[%s222 + $0x88] sm:$0xff]
        %v298 = vld [vmem:[%s222 + $0x90] sm:$0xff]
        %v299 = vld [vmem:[%s222 + $0x98] sm:$0xff]
        %v300 = vld [vmem:[%s222 + $0xa0] sm:$0xff]
        %v301 = vld [vmem:[%s222 + $0xa8] sm:$0xff]
        %v302 = vld [vmem:[%s222 + $0xb0] sm:$0xff]
        %v303 = vld [vmem:[%s222 + $0xb8] sm:$0xff]
        %v304 = vld [vmem:[%s222 + $0xc0] sm:$0xff]
        %v305 = vld [vmem:[%s222 + $0xc8] sm:$0xff]
        %v306 = vld [vmem:[%s222 + $0xd0] sm:$0xff]
        %v307 = vld [vmem:[%s222 + $0xd8] sm:$0xff]
        %v308 = vld [vmem:[%s222 + $0xe0] sm:$0xff]
        %v309 = vld [vmem:[%s222 + $0xe8] sm:$0xff]
        %v310 = vld [vmem:[%s222 + $0xf0] sm:$0xff]
        %v311 = vld [vmem:[%s222 + $0xf8] sm:$0xff]
        %s312 = scalar_lea.vmem [#allocation2], 24
        %313 = vst.msk [vmem:[%s312 + $0x1] sm:$0xff] %vm224, %v280
        %314 = vst.msk [vmem:[%s312 + $0x9] sm:$0xff] %vm224, %v281
        %315 = vst.msk [vmem:[%s312 + $0x19] sm:$0xff] %vm224, %v282
        %316 = vst.msk [vmem:[%s312 + $0x21] sm:$0xff] %vm224, %v283
        %317 = vst.msk [vmem:[%s312 + $0x31] sm:$0xff] %vm224, %v284
        %318 = vst.msk [vmem:[%s312 + $0x39] sm:$0xff] %vm224, %v285
        %319 = vst.msk [vmem:[%s312 + $0x49] sm:$0xff] %vm224, %v286
        %320 = vst.msk [vmem:[%s312 + $0x51] sm:$0xff] %vm224, %v287
        %321 = vst.msk [vmem:[%s312 + $0x61] sm:$0xff] %vm224, %v288
        %322 = vst.msk [vmem:[%s312 + $0x69] sm:$0xff] %vm224, %v289
        %323 = vst.msk [vmem:[%s312 + $0x79] sm:$0xff] %vm224, %v290
        %324 = vst.msk [vmem:[%s312 + $0x81] sm:$0xff] %vm224, %v291
        %325 = vst.msk [vmem:[%s312 + $0x91] sm:$0xff] %vm224, %v292
        %326 = vst.msk [vmem:[%s312 + $0x99] sm:$0xff] %vm224, %v293
        %327 = vst.msk [vmem:[%s312 + $0xa9] sm:$0xff] %vm224, %v294
        %328 = vst.msk [vmem:[%s312 + $0xb1] sm:$0xff] %vm224, %v295
        %329 = vst.msk [vmem:[%s312 + $0xc1] sm:$0xff] %vm224, %v296
        %330 = vst.msk [vmem:[%s312 + $0xc9] sm:$0xff] %vm224, %v297
        %331 = vst.msk [vmem:[%s312 + $0xd9] sm:$0xff] %vm224, %v298
        %332 = vst.msk [vmem:[%s312 + $0xe1] sm:$0xff] %vm224, %v299
        %333 = vst.msk [vmem:[%s312 + $0xf1] sm:$0xff] %vm224, %v300
        %334 = vst.msk [vmem:[%s312 + $0xf9] sm:$0xff] %vm224, %v301
        %335 = vst.msk [vmem:[%s312 + $0x109] sm:$0xff] %vm224, %v302
        %336 = vst.msk [vmem:[%s312 + $0x111] sm:$0xff] %vm224, %v303
        %337 = vst.msk [vmem:[%s312 + $0x121] sm:$0xff] %vm224, %v304
        %338 = vst.msk [vmem:[%s312 + $0x129] sm:$0xff] %vm224, %v305
        %339 = vst.msk [vmem:[%s312 + $0x139] sm:$0xff] %vm224, %v306
        %340 = vst.msk [vmem:[%s312 + $0x141] sm:$0xff] %vm224, %v307
        %341 = vst.msk [vmem:[%s312 + $0x151] sm:$0xff] %vm224, %v308
        %342 = vst.msk [vmem:[%s312 + $0x159] sm:$0xff] %vm224, %v309
        %343 = vst.msk [vmem:[%s312 + $0x169] sm:$0xff] %vm224, %v310
        %344 = vst.msk [vmem:[%s312 + $0x171] sm:$0xff] %vm224, %v311
        %v345 = vld [vmem:[#allocation2] sm:$0xff]
        %v346 = vld [vmem:[#allocation2 + $0x8] sm:$0xff]
        %v347 = vld [vmem:[#allocation2 + $0x18] sm:$0xff]
        %v348 = vld [vmem:[#allocation2 + $0x20] sm:$0xff]
        %v349 = vld [vmem:[#allocation2 + $0x30] sm:$0xff]
        %v350 = vld [vmem:[#allocation2 + $0x38] sm:$0xff]
        %v351 = vld [vmem:[#allocation2 + $0x48] sm:$0xff]
        %v352 = vld [vmem:[#allocation2 + $0x50] sm:$0xff]
        %v353 = vld [vmem:[#allocation2 + $0x60] sm:$0xff]
        %v354 = vld [vmem:[#allocation2 + $0x68] sm:$0xff]
        %v355 = vld [vmem:[#allocation2 + $0x78] sm:$0xff]
        %v356 = vld [vmem:[#allocation2 + $0x80] sm:$0xff]
        %v357 = vld [vmem:[#allocation2 + $0x90] sm:$0xff]
        %v358 = vld [vmem:[#allocation2 + $0x98] sm:$0xff]
        %v359 = vld [vmem:[#allocation2 + $0xa8] sm:$0xff]
        %v360 = vld [vmem:[#allocation2 + $0xb0] sm:$0xff]
        %v361 = vld [vmem:[#allocation2 + $0xc0] sm:$0xff]
        %v362 = vld [vmem:[#allocation2 + $0xc8] sm:$0xff]
        %v363 = vld [vmem:[#allocation2 + $0xd8] sm:$0xff]
        %v364 = vld [vmem:[#allocation2 + $0xe0] sm:$0xff]
        %v365 = vld [vmem:[#allocation2 + $0xf0] sm:$0xff]
        %v366 = vld [vmem:[#allocation2 + $0xf8] sm:$0xff]
        %v367 = vld [vmem:[#allocation2 + $0x108] sm:$0xff]
        %v368 = vld [vmem:[#allocation2 + $0x110] sm:$0xff]
        %v369 = vld [vmem:[#allocation2 + $0x120] sm:$0xff]
        %v370 = vld [vmem:[#allocation2 + $0x128] sm:$0xff]
        %v371 = vld [vmem:[#allocation2 + $0x138] sm:$0xff]
        %v372 = vld [vmem:[#allocation2 + $0x140] sm:$0xff]
        %v373 = vld [vmem:[#allocation2 + $0x150] sm:$0xff]
        %v374 = vld [vmem:[#allocation2 + $0x158] sm:$0xff]
        %v375 = vld [vmem:[#allocation2 + $0x168] sm:$0xff]
        %v376 = vld [vmem:[#allocation2 + $0x170] sm:$0xff]
        %v377 = vpack.c.bf16 %v346, %v345
        %v378 = vpack.c.bf16 %v348, %v347
        %v379 = vpack.c.bf16 %v350, %v349
        %v380 = vpack.c.bf16 %v352, %v351
        %v381 = vpack.c.bf16 %v354, %v353
        %v382 = vpack.c.bf16 %v356, %v355
        %v383 = vpack.c.bf16 %v358, %v357
        %v384 = vpack.c.bf16 %v360, %v359
        %v385 = vpack.c.bf16 %v362, %v361
        %v386 = vpack.c.bf16 %v364, %v363
        %v387 = vpack.c.bf16 %v366, %v365
        %v388 = vpack.c.bf16 %v368, %v367
        %v389 = vpack.c.bf16 %v370, %v369
        %v390 = vpack.c.bf16 %v372, %v371
        %v391 = vpack.c.bf16 %v374, %v373
        %v392 = vpack.c.bf16 %v376, %v375
        %v393 = vld [vmem:[#allocation2 + $0x1] sm:$0xff]
        %v394 = vld [vmem:[#allocation2 + $0x9] sm:$0xff]
        %v395 = vld [vmem:[#allocation2 + $0x19] sm:$0xff]
        %v396 = vld [vmem:[#allocation2 + $0x21] sm:$0xff]
        %v397 = vld [vmem:[#allocation2 + $0x31] sm:$0xff]
        %v398 = vld [vmem:[#allocation2 + $0x39] sm:$0xff]
        %v399 = vld [vmem:[#allocation2 + $0x49] sm:$0xff]
        %v400 = vld [vmem:[#allocation2 + $0x51] sm:$0xff]
        %v401 = vld [vmem:[#allocation2 + $0x61] sm:$0xff]
        %v402 = vld [vmem:[#allocation2 + $0x69] sm:$0xff]
        %v403 = vld [vmem:[#allocation2 + $0x79] sm:$0xff]
        %v404 = vld [vmem:[#allocation2 + $0x81] sm:$0xff]
        %v405 = vld [vmem:[#allocation2 + $0x91] sm:$0xff]
        %v406 = vld [vmem:[#allocation2 + $0x99] sm:$0xff]
        %v407 = vld [vmem:[#allocation2 + $0xa9] sm:$0xff]
        %v408 = vld [vmem:[#allocation2 + $0xb1] sm:$0xff]
        %v409 = vld [vmem:[#allocation2 + $0xc1] sm:$0xff]
        %v410 = vld [vmem:[#allocation2 + $0xc9] sm:$0xff]
        %v411 = vld [vmem:[#allocation2 + $0xd9] sm:$0xff]
        %v412 = vld [vmem:[#allocation2 + $0xe1] sm:$0xff]
        %v413 = vld [vmem:[#allocation2 + $0xf1] sm:$0xff]
        %v414 = vld [vmem:[#allocation2 + $0xf9] sm:$0xff]
        %v415 = vld [vmem:[#allocation2 + $0x109] sm:$0xff]
        %v416 = vld [vmem:[#allocation2 + $0x111] sm:$0xff]
        %v417 = vld [vmem:[#allocation2 + $0x121] sm:$0xff]
        %v418 = vld [vmem:[#allocation2 + $0x129] sm:$0xff]
        %v419 = vld [vmem:[#allocation2 + $0x139] sm:$0xff]
        %v420 = vld [vmem:[#allocation2 + $0x141] sm:$0xff]
        %v421 = vld [vmem:[#allocation2 + $0x151] sm:$0xff]
        %v422 = vld [vmem:[#allocation2 + $0x159] sm:$0xff]
        %v423 = vld [vmem:[#allocation2 + $0x169] sm:$0xff]
        %v424 = vld [vmem:[#allocation2 + $0x171] sm:$0xff]
        %v425 = vpack.c.bf16 %v394, %v393
        %v426 = vpack.c.bf16 %v396, %v395
        %v427 = vpack.c.bf16 %v398, %v397
        %v428 = vpack.c.bf16 %v400, %v399
        %v429 = vpack.c.bf16 %v402, %v401
        %v430 = vpack.c.bf16 %v404, %v403
        %v431 = vpack.c.bf16 %v406, %v405
        %v432 = vpack.c.bf16 %v408, %v407
        %v433 = vpack.c.bf16 %v410, %v409
        %v434 = vpack.c.bf16 %v412, %v411
        %v435 = vpack.c.bf16 %v414, %v413
        %v436 = vpack.c.bf16 %v416, %v415
        %v437 = vpack.c.bf16 %v418, %v417
        %v438 = vpack.c.bf16 %v420, %v419
        %v439 = vpack.c.bf16 %v422, %v421
        %v440 = vpack.c.bf16 %v424, %v423
        %v441 = vld [vmem:[#allocation2 + $0x2] sm:$0xff]
        %v442 = vld [vmem:[#allocation2 + $0xa] sm:$0xff]
        %v443 = vld [vmem:[#allocation2 + $0x1a] sm:$0xff]
        %v444 = vld [vmem:[#allocation2 + $0x22] sm:$0xff]
        %v445 = vld [vmem:[#allocation2 + $0x32] sm:$0xff]
        %v446 = vld [vmem:[#allocation2 + $0x3a] sm:$0xff]
        %v447 = vld [vmem:[#allocation2 + $0x4a] sm:$0xff]
        %v448 = vld [vmem:[#allocation2 + $0x52] sm:$0xff]
        %v449 = vld [vmem:[#allocation2 + $0x62] sm:$0xff]
        %v450 = vld [vmem:[#allocation2 + $0x6a] sm:$0xff]
        %v451 = vld [vmem:[#allocation2 + $0x7a] sm:$0xff]
        %v452 = vld [vmem:[#allocation2 + $0x82] sm:$0xff]
        %v453 = vld [vmem:[#allocation2 + $0x92] sm:$0xff]
        %v454 = vld [vmem:[#allocation2 + $0x9a] sm:$0xff]
        %v455 = vld [vmem:[#allocation2 + $0xaa] sm:$0xff]
        %v456 = vld [vmem:[#allocation2 + $0xb2] sm:$0xff]
        %v457 = vld [vmem:[#allocation2 + $0xc2] sm:$0xff]
        %v458 = vld [vmem:[#allocation2 + $0xca] sm:$0xff]
        %v459 = vld [vmem:[#allocation2 + $0xda] sm:$0xff]
        %v460 = vld [vmem:[#allocation2 + $0xe2] sm:$0xff]
        %v461 = vld [vmem:[#allocation2 + $0xf2] sm:$0xff]
        %v462 = vld [vmem:[#allocation2 + $0xfa] sm:$0xff]
        %v463 = vld [vmem:[#allocation2 + $0x10a] sm:$0xff]
        %v464 = vld [vmem:[#allocation2 + $0x112] sm:$0xff]
        %v465 = vld [vmem:[#allocation2 + $0x122] sm:$0xff]
        %v466 = vld [vmem:[#allocation2 + $0x12a] sm:$0xff]
        %v467 = vld [vmem:[#allocation2 + $0x13a] sm:$0xff]
        %v468 = vld [vmem:[#allocation2 + $0x142] sm:$0xff]
        %v469 = vld [vmem:[#allocation2 + $0x152] sm:$0xff]
        %v470 = vld [vmem:[#allocation2 + $0x15a] sm:$0xff]
        %v471 = vld [vmem:[#allocation2 + $0x16a] sm:$0xff]
        %v472 = vld [vmem:[#allocation2 + $0x172] sm:$0xff]
        %v473 = vpack.c.bf16 %v442, %v441
        %v474 = vpack.c.bf16 %v444, %v443
        %v475 = vpack.c.bf16 %v446, %v445
        %v476 = vpack.c.bf16 %v448, %v447
        %v477 = vpack.c.bf16 %v450, %v449
        %v478 = vpack.c.bf16 %v452, %v451
        %v479 = vpack.c.bf16 %v454, %v453
        %v480 = vpack.c.bf16 %v456, %v455
        %v481 = vpack.c.bf16 %v458, %v457
        %v482 = vpack.c.bf16 %v460, %v459
        %v483 = vpack.c.bf16 %v462, %v461
        %v484 = vpack.c.bf16 %v464, %v463
        %v485 = vpack.c.bf16 %v466, %v465
        %v486 = vpack.c.bf16 %v468, %v467
        %v487 = vpack.c.bf16 %v470, %v469
        %v488 = vpack.c.bf16 %v472, %v471
        %v489 = vld [vmem:[%s312] sm:$0xff]
        %v490 = vld [vmem:[%s312 + $0x8] sm:$0xff]
        %v491 = vld [vmem:[%s312 + $0x18] sm:$0xff]
        %v492 = vld [vmem:[%s312 + $0x20] sm:$0xff]
        %v493 = vld [vmem:[%s312 + $0x30] sm:$0xff]
        %v494 = vld [vmem:[%s312 + $0x38] sm:$0xff]
        %v495 = vld [vmem:[%s312 + $0x48] sm:$0xff]
        %v496 = vld [vmem:[%s312 + $0x50] sm:$0xff]
        %v497 = vld [vmem:[%s312 + $0x60] sm:$0xff]
        %v498 = vld [vmem:[%s312 + $0x68] sm:$0xff]
        %v499 = vld [vmem:[%s312 + $0x78] sm:$0xff]
        %v500 = vld [vmem:[%s312 + $0x80] sm:$0xff]
        %v501 = vld [vmem:[%s312 + $0x90] sm:$0xff]
        %v502 = vld [vmem:[%s312 + $0x98] sm:$0xff]
        %v503 = vld [vmem:[%s312 + $0xa8] sm:$0xff]
        %v504 = vld [vmem:[%s312 + $0xb0] sm:$0xff]
        %v505 = vld [vmem:[%s312 + $0xc0] sm:$0xff]
        %v506 = vld [vmem:[%s312 + $0xc8] sm:$0xff]
        %v507 = vld [vmem:[%s312 + $0xd8] sm:$0xff]
        %v508 = vld [vmem:[%s312 + $0xe0] sm:$0xff]
        %v509 = vld [vmem:[%s312 + $0xf0] sm:$0xff]
        %v510 = vld [vmem:[%s312 + $0xf8] sm:$0xff]
        %v511 = vld [vmem:[%s312 + $0x108] sm:$0xff]
        %v512 = vld [vmem:[%s312 + $0x110] sm:$0xff]
        %v513 = vld [vmem:[%s312 + $0x120] sm:$0xff]
        %v514 = vld [vmem:[%s312 + $0x128] sm:$0xff]
        %v515 = vld [vmem:[%s312 + $0x138] sm:$0xff]
        %v516 = vld [vmem:[%s312 + $0x140] sm:$0xff]
        %v517 = vld [vmem:[%s312 + $0x150] sm:$0xff]
        %v518 = vld [vmem:[%s312 + $0x158] sm:$0xff]
        %v519 = vld [vmem:[%s312 + $0x168] sm:$0xff]
        %v520 = vld [vmem:[%s312 + $0x170] sm:$0xff]
        %v521 = vpack.c.bf16 %v490, %v489
        %v522 = vpack.c.bf16 %v492, %v491
        %v523 = vpack.c.bf16 %v494, %v493
        %v524 = vpack.c.bf16 %v496, %v495
        %v525 = vpack.c.bf16 %v498, %v497
        %v526 = vpack.c.bf16 %v500, %v499
        %v527 = vpack.c.bf16 %v502, %v501
        %v528 = vpack.c.bf16 %v504, %v503
        %v529 = vpack.c.bf16 %v506, %v505
        %v530 = vpack.c.bf16 %v508, %v507
        %v531 = vpack.c.bf16 %v510, %v509
        %v532 = vpack.c.bf16 %v512, %v511
        %v533 = vpack.c.bf16 %v514, %v513
        %v534 = vpack.c.bf16 %v516, %v515
        %v535 = vpack.c.bf16 %v518, %v517
        %v536 = vpack.c.bf16 %v520, %v519
        %v537 = vld [vmem:[%s312 + $0x1] sm:$0xff]
        %v538 = vld [vmem:[%s312 + $0x9] sm:$0xff]
        %v539 = vld [vmem:[%s312 + $0x19] sm:$0xff]
        %v540 = vld [vmem:[%s312 + $0x21] sm:$0xff]
        %v541 = vld [vmem:[%s312 + $0x31] sm:$0xff]
        %v542 = vld [vmem:[%s312 + $0x39] sm:$0xff]
        %v543 = vld [vmem:[%s312 + $0x49] sm:$0xff]
        %v544 = vld [vmem:[%s312 + $0x51] sm:$0xff]
        %v545 = vld [vmem:[%s312 + $0x61] sm:$0xff]
        %v546 = vld [vmem:[%s312 + $0x69] sm:$0xff]
        %v547 = vld [vmem:[%s312 + $0x79] sm:$0xff]
        %v548 = vld [vmem:[%s312 + $0x81] sm:$0xff]
        %v549 = vld [vmem:[%s312 + $0x91] sm:$0xff]
        %v550 = vld [vmem:[%s312 + $0x99] sm:$0xff]
        %v551 = vld [vmem:[%s312 + $0xa9] sm:$0xff]
        %v552 = vld [vmem:[%s312 + $0xb1] sm:$0xff]
        %v553 = vld [vmem:[%s312 + $0xc1] sm:$0xff]
        %v554 = vld [vmem:[%s312 + $0xc9] sm:$0xff]
        %v555 = vld [vmem:[%s312 + $0xd9] sm:$0xff]
        %v556 = vld [vmem:[%s312 + $0xe1] sm:$0xff]
        %v557 = vld [vmem:[%s312 + $0xf1] sm:$0xff]
        %v558 = vld [vmem:[%s312 + $0xf9] sm:$0xff]
        %v559 = vld [vmem:[%s312 + $0x109] sm:$0xff]
        %v560 = vld [vmem:[%s312 + $0x111] sm:$0xff]
        %v561 = vld [vmem:[%s312 + $0x121] sm:$0xff]
        %v562 = vld [vmem:[%s312 + $0x129] sm:$0xff]
        %v563 = vld [vmem:[%s312 + $0x139] sm:$0xff]
        %v564 = vld [vmem:[%s312 + $0x141] sm:$0xff]
        %v565 = vld [vmem:[%s312 + $0x151] sm:$0xff]
        %v566 = vld [vmem:[%s312 + $0x159] sm:$0xff]
        %v567 = vld [vmem:[%s312 + $0x169] sm:$0xff]
        %v568 = vld [vmem:[%s312 + $0x171] sm:$0xff]
        %v569 = vpack.c.bf16 %v538, %v537
        %v570 = vpack.c.bf16 %v540, %v539
        %v571 = vpack.c.bf16 %v542, %v541
        %v572 = vpack.c.bf16 %v544, %v543
        %v573 = vpack.c.bf16 %v546, %v545
        %v574 = vpack.c.bf16 %v548, %v547
        %v575 = vpack.c.bf16 %v550, %v549
        %v576 = vpack.c.bf16 %v552, %v551
        %v577 = vpack.c.bf16 %v554, %v553
        %v578 = vpack.c.bf16 %v556, %v555
        %v579 = vpack.c.bf16 %v558, %v557
        %v580 = vpack.c.bf16 %v560, %v559
        %v581 = vpack.c.bf16 %v562, %v561
        %v582 = vpack.c.bf16 %v564, %v563
        %v583 = vpack.c.bf16 %v566, %v565
        %v584 = vpack.c.bf16 %v568, %v567
        %v585 = vld [vmem:[%s312 + $0x2] sm:$0xff]
        %v586 = vld [vmem:[%s312 + $0xa] sm:$0xff]
        %v587 = vld [vmem:[%s312 + $0x1a] sm:$0xff]
        %v588 = vld [vmem:[%s312 + $0x22] sm:$0xff]
        %v589 = vld [vmem:[%s312 + $0x32] sm:$0xff]
        %v590 = vld [vmem:[%s312 + $0x3a] sm:$0xff]
        %v591 = vld [vmem:[%s312 + $0x4a] sm:$0xff]
        %v592 = vld [vmem:[%s312 + $0x52] sm:$0xff]
        %v593 = vld [vmem:[%s312 + $0x62] sm:$0xff]
        %v594 = vld [vmem:[%s312 + $0x6a] sm:$0xff]
        %v595 = vld [vmem:[%s312 + $0x7a] sm:$0xff]
        %v596 = vld [vmem:[%s312 + $0x82] sm:$0xff]
        %v597 = vld [vmem:[%s312 + $0x92] sm:$0xff]
        %v598 = vld [vmem:[%s312 + $0x9a] sm:$0xff]
        %v599 = vld [vmem:[%s312 + $0xaa] sm:$0xff]
        %v600 = vld [vmem:[%s312 + $0xb2] sm:$0xff]
        %v601 = vld [vmem:[%s312 + $0xc2] sm:$0xff]
        %v602 = vld [vmem:[%s312 + $0xca] sm:$0xff]
        %v603 = vld [vmem:[%s312 + $0xda] sm:$0xff]
        %v604 = vld [vmem:[%s312 + $0xe2] sm:$0xff]
        %v605 = vld [vmem:[%s312 + $0xf2] sm:$0xff]
        %v606 = vld [vmem:[%s312 + $0xfa] sm:$0xff]
        %v607 = vld [vmem:[%s312 + $0x10a] sm:$0xff]
        %v608 = vld [vmem:[%s312 + $0x112] sm:$0xff]
        %v609 = vld [vmem:[%s312 + $0x122] sm:$0xff]
        %v610 = vld [vmem:[%s312 + $0x12a] sm:$0xff]
        %v611 = vld [vmem:[%s312 + $0x13a] sm:$0xff]
        %v612 = vld [vmem:[%s312 + $0x142] sm:$0xff]
        %v613 = vld [vmem:[%s312 + $0x152] sm:$0xff]
        %v614 = vld [vmem:[%s312 + $0x15a] sm:$0xff]
        %v615 = vld [vmem:[%s312 + $0x16a] sm:$0xff]
        %v616 = vld [vmem:[%s312 + $0x172] sm:$0xff]
        %v617 = vpack.c.bf16 %v586, %v585
        %v618 = vpack.c.bf16 %v588, %v587
        %v619 = vpack.c.bf16 %v590, %v589
        %v620 = vpack.c.bf16 %v592, %v591
        %v621 = vpack.c.bf16 %v594, %v593
        %v622 = vpack.c.bf16 %v596, %v595
        %v623 = vpack.c.bf16 %v598, %v597
        %v624 = vpack.c.bf16 %v600, %v599
        %v625 = vpack.c.bf16 %v602, %v601
        %v626 = vpack.c.bf16 %v604, %v603
        %v627 = vpack.c.bf16 %v606, %v605
        %v628 = vpack.c.bf16 %v608, %v607
        %v629 = vpack.c.bf16 %v610, %v609
        %v630 = vpack.c.bf16 %v612, %v611
        %v631 = vpack.c.bf16 %v614, %v613
        %v632 = vpack.c.bf16 %v616, %v615
        %s633 = scalar_lea.vmem [#allocation2], 48
        %v634 = vld [vmem:[%s633] sm:$0xff]
        %v635 = vld [vmem:[%s633 + $0x8] sm:$0xff]
        %v636 = vld [vmem:[%s633 + $0x18] sm:$0xff]
        %v637 = vld [vmem:[%s633 + $0x20] sm:$0xff]
        %v638 = vld [vmem:[%s633 + $0x30] sm:$0xff]
        %v639 = vld [vmem:[%s633 + $0x38] sm:$0xff]
        %v640 = vld [vmem:[%s633 + $0x48] sm:$0xff]
        %v641 = vld [vmem:[%s633 + $0x50] sm:$0xff]
        %v642 = vld [vmem:[%s633 + $0x60] sm:$0xff]
        %v643 = vld [vmem:[%s633 + $0x68] sm:$0xff]
        %v644 = vld [vmem:[%s633 + $0x78] sm:$0xff]
        %v645 = vld [vmem:[%s633 + $0x80] sm:$0xff]
        %v646 = vld [vmem:[%s633 + $0x90] sm:$0xff]
        %v647 = vld [vmem:[%s633 + $0x98] sm:$0xff]
        %v648 = vld [vmem:[%s633 + $0xa8] sm:$0xff]
        %v649 = vld [vmem:[%s633 + $0xb0] sm:$0xff]
        %v650 = vld [vmem:[%s633 + $0xc0] sm:$0xff]
        %v651 = vld [vmem:[%s633 + $0xc8] sm:$0xff]
        %v652 = vld [vmem:[%s633 + $0xd8] sm:$0xff]
        %v653 = vld [vmem:[%s633 + $0xe0] sm:$0xff]
        %v654 = vld [vmem:[%s633 + $0xf0] sm:$0xff]
        %v655 = vld [vmem:[%s633 + $0xf8] sm:$0xff]
        %v656 = vld [vmem:[%s633 + $0x108] sm:$0xff]
        %v657 = vld [vmem:[%s633 + $0x110] sm:$0xff]
        %v658 = vld [vmem:[%s633 + $0x120] sm:$0xff]
        %v659 = vld [vmem:[%s633 + $0x128] sm:$0xff]
        %v660 = vld [vmem:[%s633 + $0x138] sm:$0xff]
        %v661 = vld [vmem:[%s633 + $0x140] sm:$0xff]
        %v662 = vld [vmem:[%s633 + $0x150] sm:$0xff]
        %v663 = vld [vmem:[%s633 + $0x158] sm:$0xff]
        %v664 = vld [vmem:[%s633 + $0x168] sm:$0xff]
        %v665 = vld [vmem:[%s633 + $0x170] sm:$0xff]
        %v666 = vpack.c.bf16 %v635, %v634
        %v667 = vpack.c.bf16 %v637, %v636
        %v668 = vpack.c.bf16 %v639, %v638
        %v669 = vpack.c.bf16 %v641, %v640
        %v670 = vpack.c.bf16 %v643, %v642
        %v671 = vpack.c.bf16 %v645, %v644
        %v672 = vpack.c.bf16 %v647, %v646
        %v673 = vpack.c.bf16 %v649, %v648
        %v674 = vpack.c.bf16 %v651, %v650
        %v675 = vpack.c.bf16 %v653, %v652
        %v676 = vpack.c.bf16 %v655, %v654
        %v677 = vpack.c.bf16 %v657, %v656
        %v678 = vpack.c.bf16 %v659, %v658
        %v679 = vpack.c.bf16 %v661, %v660
        %v680 = vpack.c.bf16 %v663, %v662
        %v681 = vpack.c.bf16 %v665, %v664
        %v682 = vld [vmem:[%s633 + $0x1] sm:$0xff]
        %v683 = vld [vmem:[%s633 + $0x9] sm:$0xff]
        %v684 = vld [vmem:[%s633 + $0x19] sm:$0xff]
        %v685 = vld [vmem:[%s633 + $0x21] sm:$0xff]
        %v686 = vld [vmem:[%s633 + $0x31] sm:$0xff]
        %v687 = vld [vmem:[%s633 + $0x39] sm:$0xff]
        %v688 = vld [vmem:[%s633 + $0x49] sm:$0xff]
        %v689 = vld [vmem:[%s633 + $0x51] sm:$0xff]
        %v690 = vld [vmem:[%s633 + $0x61] sm:$0xff]
        %v691 = vld [vmem:[%s633 + $0x69] sm:$0xff]
        %v692 = vld [vmem:[%s633 + $0x79] sm:$0xff]
        %v693 = vld [vmem:[%s633 + $0x81] sm:$0xff]
        %v694 = vld [vmem:[%s633 + $0x91] sm:$0xff]
        %v695 = vld [vmem:[%s633 + $0x99] sm:$0xff]
        %v696 = vld [vmem:[%s633 + $0xa9] sm:$0xff]
        %v697 = vld [vmem:[%s633 + $0xb1] sm:$0xff]
        %v698 = vld [vmem:[%s633 + $0xc1] sm:$0xff]
        %v699 = vld [vmem:[%s633 + $0xc9] sm:$0xff]
        %v700 = vld [vmem:[%s633 + $0xd9] sm:$0xff]
        %v701 = vld [vmem:[%s633 + $0xe1] sm:$0xff]
        %v702 = vld [vmem:[%s633 + $0xf1] sm:$0xff]
        %v703 = vld [vmem:[%s633 + $0xf9] sm:$0xff]
        %v704 = vld [vmem:[%s633 + $0x109] sm:$0xff]
        %v705 = vld [vmem:[%s633 + $0x111] sm:$0xff]
        %v706 = vld [vmem:[%s633 + $0x121] sm:$0xff]
        %v707 = vld [vmem:[%s633 + $0x129] sm:$0xff]
        %v708 = vld [vmem:[%s633 + $0x139] sm:$0xff]
        %v709 = vld [vmem:[%s633 + $0x141] sm:$0xff]
        %v710 = vld [vmem:[%s633 + $0x151] sm:$0xff]
        %v711 = vld [vmem:[%s633 + $0x159] sm:$0xff]
        %v712 = vld [vmem:[%s633 + $0x169] sm:$0xff]
        %v713 = vld [vmem:[%s633 + $0x171] sm:$0xff]
        %v714 = vpack.c.bf16 %v683, %v682
        %v715 = vpack.c.bf16 %v685, %v684
        %v716 = vpack.c.bf16 %v687, %v686
        %v717 = vpack.c.bf16 %v689, %v688
        %v718 = vpack.c.bf16 %v691, %v690
        %v719 = vpack.c.bf16 %v693, %v692
        %v720 = vpack.c.bf16 %v695, %v694
        %v721 = vpack.c.bf16 %v697, %v696
        %v722 = vpack.c.bf16 %v699, %v698
        %v723 = vpack.c.bf16 %v701, %v700
        %v724 = vpack.c.bf16 %v703, %v702
        %v725 = vpack.c.bf16 %v705, %v704
        %v726 = vpack.c.bf16 %v707, %v706
        %v727 = vpack.c.bf16 %v709, %v708
        %v728 = vpack.c.bf16 %v711, %v710
        %v729 = vpack.c.bf16 %v713, %v712
        %v730 = vld [vmem:[%s633 + $0x2] sm:$0xff]
        %v731 = vld [vmem:[%s633 + $0xa] sm:$0xff]
        %v732 = vld [vmem:[%s633 + $0x1a] sm:$0xff]
        %v733 = vld [vmem:[%s633 + $0x22] sm:$0xff]
        %v734 = vld [vmem:[%s633 + $0x32] sm:$0xff]
        %v735 = vld [vmem:[%s633 + $0x3a] sm:$0xff]
        %v736 = vld [vmem:[%s633 + $0x4a] sm:$0xff]
        %v737 = vld [vmem:[%s633 + $0x52] sm:$0xff]
        %v738 = vld [vmem:[%s633 + $0x62] sm:$0xff]
        %v739 = vld [vmem:[%s633 + $0x6a] sm:$0xff]
        %v740 = vld [vmem:[%s633 + $0x7a] sm:$0xff]
        %v741 = vld [vmem:[%s633 + $0x82] sm:$0xff]
        %v742 = vld [vmem:[%s633 + $0x92] sm:$0xff]
        %v743 = vld [vmem:[%s633 + $0x9a] sm:$0xff]
        %v744 = vld [vmem:[%s633 + $0xaa] sm:$0xff]
        %v745 = vld [vmem:[%s633 + $0xb2] sm:$0xff]
        %v746 = vld [vmem:[%s633 + $0xc2] sm:$0xff]
        %v747 = vld [vmem:[%s633 + $0xca] sm:$0xff]
        %v748 = vld [vmem:[%s633 + $0xda] sm:$0xff]
        %v749 = vld [vmem:[%s633 + $0xe2] sm:$0xff]
        %v750 = vld [vmem:[%s633 + $0xf2] sm:$0xff]
        %v751 = vld [vmem:[%s633 + $0xfa] sm:$0xff]
        %v752 = vld [vmem:[%s633 + $0x10a] sm:$0xff]
        %v753 = vld [vmem:[%s633 + $0x112] sm:$0xff]
        %v754 = vld [vmem:[%s633 + $0x122] sm:$0xff]
        %v755 = vld [vmem:[%s633 + $0x12a] sm:$0xff]
        %v756 = vld [vmem:[%s633 + $0x13a] sm:$0xff]
        %v757 = vld [vmem:[%s633 + $0x142] sm:$0xff]
        %v758 = vld [vmem:[%s633 + $0x152] sm:$0xff]
        %v759 = vld [vmem:[%s633 + $0x15a] sm:$0xff]
        %v760 = vld [vmem:[%s633 + $0x16a] sm:$0xff]
        %v761 = vld [vmem:[%s633 + $0x172] sm:$0xff]
        %v762 = vpack.c.bf16 %v731, %v730
        %v763 = vpack.c.bf16 %v733, %v732
        %v764 = vpack.c.bf16 %v735, %v734
        %v765 = vpack.c.bf16 %v737, %v736
        %v766 = vpack.c.bf16 %v739, %v738
        %v767 = vpack.c.bf16 %v741, %v740
        %v768 = vpack.c.bf16 %v743, %v742
        %v769 = vpack.c.bf16 %v745, %v744
        %v770 = vpack.c.bf16 %v747, %v746
        %v771 = vpack.c.bf16 %v749, %v748
        %v772 = vpack.c.bf16 %v751, %v750
        %v773 = vpack.c.bf16 %v753, %v752
        %v774 = vpack.c.bf16 %v755, %v754
        %v775 = vpack.c.bf16 %v757, %v756
        %v776 = vpack.c.bf16 %v759, %v758
        %v777 = vpack.c.bf16 %v761, %v760
        %794 = vrot.lane.b32.xlu0 %v425, 64
        %v795 = vpop.permute.xlu0 %794
        %796 = vrot.lane.b32.xlu0 %v426, 64
        %v797 = vpop.permute.xlu0 %796
        %798 = vrot.lane.b32.xlu0 %v427, 64
        %v799 = vpop.permute.xlu0 %798
        %800 = vrot.lane.b32.xlu0 %v428, 64
        %v801 = vpop.permute.xlu0 %800
        %802 = vrot.lane.b32.xlu0 %v429, 64
        %v803 = vpop.permute.xlu0 %802
        %804 = vrot.lane.b32.xlu0 %v430, 64
        %v805 = vpop.permute.xlu0 %804
        %806 = vrot.lane.b32.xlu0 %v431, 64
        %v807 = vpop.permute.xlu0 %806
        %808 = vrot.lane.b32.xlu0 %v432, 64
        %v809 = vpop.permute.xlu0 %808
        %810 = vrot.lane.b32.xlu0 %v433, 64
        %v811 = vpop.permute.xlu0 %810
        %812 = vrot.lane.b32.xlu0 %v434, 64
        %v813 = vpop.permute.xlu0 %812
        %814 = vrot.lane.b32.xlu0 %v435, 64
        %v815 = vpop.permute.xlu0 %814
        %816 = vrot.lane.b32.xlu0 %v436, 64
        %v817 = vpop.permute.xlu0 %816
        %818 = vrot.lane.b32.xlu0 %v437, 64
        %v819 = vpop.permute.xlu0 %818
        %820 = vrot.lane.b32.xlu0 %v438, 64
        %v821 = vpop.permute.xlu0 %820
        %822 = vrot.lane.b32.xlu0 %v439, 64
        %v823 = vpop.permute.xlu0 %822
        %824 = vrot.lane.b32.xlu0 %v440, 64
        %v825 = vpop.permute.xlu0 %824
        %842 = vrot.lane.b32.xlu0 %v521, 64
        %v843 = vpop.permute.xlu0 %842
        %844 = vrot.lane.b32.xlu0 %v522, 64
        %v845 = vpop.permute.xlu0 %844
        %846 = vrot.lane.b32.xlu0 %v523, 64
        %v847 = vpop.permute.xlu0 %846
        %848 = vrot.lane.b32.xlu0 %v524, 64
        %v849 = vpop.permute.xlu0 %848
        %850 = vrot.lane.b32.xlu0 %v525, 64
        %v851 = vpop.permute.xlu0 %850
        %852 = vrot.lane.b32.xlu0 %v526, 64
        %v853 = vpop.permute.xlu0 %852
        %854 = vrot.lane.b32.xlu0 %v527, 64
        %v855 = vpop.permute.xlu0 %854
        %856 = vrot.lane.b32.xlu0 %v528, 64
        %v857 = vpop.permute.xlu0 %856
        %858 = vrot.lane.b32.xlu0 %v529, 64
        %v859 = vpop.permute.xlu0 %858
        %860 = vrot.lane.b32.xlu0 %v530, 64
        %v861 = vpop.permute.xlu0 %860
        %862 = vrot.lane.b32.xlu0 %v531, 64
        %v863 = vpop.permute.xlu0 %862
        %864 = vrot.lane.b32.xlu0 %v532, 64
        %v865 = vpop.permute.xlu0 %864
        %866 = vrot.lane.b32.xlu0 %v533, 64
        %v867 = vpop.permute.xlu0 %866
        %868 = vrot.lane.b32.xlu0 %v534, 64
        %v869 = vpop.permute.xlu0 %868
        %870 = vrot.lane.b32.xlu0 %v535, 64
        %v871 = vpop.permute.xlu0 %870
        %872 = vrot.lane.b32.xlu0 %v536, 64
        %v873 = vpop.permute.xlu0 %872
        %890 = vrot.lane.b32.xlu0 %v617, 64
        %v891 = vpop.permute.xlu0 %890
        %892 = vrot.lane.b32.xlu0 %v618, 64
        %v893 = vpop.permute.xlu0 %892
        %894 = vrot.lane.b32.xlu0 %v619, 64
        %v895 = vpop.permute.xlu0 %894
        %896 = vrot.lane.b32.xlu0 %v620, 64
        %v897 = vpop.permute.xlu0 %896
        %898 = vrot.lane.b32.xlu0 %v621, 64
        %v899 = vpop.permute.xlu0 %898
        %900 = vrot.lane.b32.xlu0 %v622, 64
        %v901 = vpop.permute.xlu0 %900
        %902 = vrot.lane.b32.xlu0 %v623, 64
        %v903 = vpop.permute.xlu0 %902
        %904 = vrot.lane.b32.xlu0 %v624, 64
        %v905 = vpop.permute.xlu0 %904
        %906 = vrot.lane.b32.xlu0 %v625, 64
        %v907 = vpop.permute.xlu0 %906
        %908 = vrot.lane.b32.xlu0 %v626, 64
        %v909 = vpop.permute.xlu0 %908
        %910 = vrot.lane.b32.xlu0 %v627, 64
        %v911 = vpop.permute.xlu0 %910
        %912 = vrot.lane.b32.xlu0 %v628, 64
        %v913 = vpop.permute.xlu0 %912
        %914 = vrot.lane.b32.xlu0 %v629, 64
        %v915 = vpop.permute.xlu0 %914
        %916 = vrot.lane.b32.xlu0 %v630, 64
        %v917 = vpop.permute.xlu0 %916
        %918 = vrot.lane.b32.xlu0 %v631, 64
        %v919 = vpop.permute.xlu0 %918
        %920 = vrot.lane.b32.xlu0 %v632, 64
        %v921 = vpop.permute.xlu0 %920
        %938 = vrot.lane.b32.xlu0 %v714, 64
        %v939 = vpop.permute.xlu0 %938
        %940 = vrot.lane.b32.xlu0 %v715, 64
        %v941 = vpop.permute.xlu0 %940
        %942 = vrot.lane.b32.xlu0 %v716, 64
        %v943 = vpop.permute.xlu0 %942
        %944 = vrot.lane.b32.xlu0 %v717, 64
        %v945 = vpop.permute.xlu0 %944
        %946 = vrot.lane.b32.xlu0 %v718, 64
        %v947 = vpop.permute.xlu0 %946
        %948 = vrot.lane.b32.xlu0 %v719, 64
        %v949 = vpop.permute.xlu0 %948
        %950 = vrot.lane.b32.xlu0 %v720, 64
        %v951 = vpop.permute.xlu0 %950
        %952 = vrot.lane.b32.xlu0 %v721, 64
        %v953 = vpop.permute.xlu0 %952
        %954 = vrot.lane.b32.xlu0 %v722, 64
        %v955 = vpop.permute.xlu0 %954
        %956 = vrot.lane.b32.xlu0 %v723, 64
        %v957 = vpop.permute.xlu0 %956
        %958 = vrot.lane.b32.xlu0 %v724, 64
        %v959 = vpop.permute.xlu0 %958
        %960 = vrot.lane.b32.xlu0 %v725, 64
        %v961 = vpop.permute.xlu0 %960
        %962 = vrot.lane.b32.xlu0 %v726, 64
        %v963 = vpop.permute.xlu0 %962
        %964 = vrot.lane.b32.xlu0 %v727, 64
        %v965 = vpop.permute.xlu0 %964
        %966 = vrot.lane.b32.xlu0 %v728, 64
        %v967 = vpop.permute.xlu0 %966
        %968 = vrot.lane.b32.xlu0 %v729, 64
        %v969 = vpop.permute.xlu0 %968
        %v972 = vsel %vm224, %v377, %v795
        %v976 = vsel %vm224, %v378, %v797
        %v980 = vsel %vm224, %v379, %v799
        %v984 = vsel %vm224, %v380, %v801
        %v988 = vsel %vm224, %v381, %v803
        %v992 = vsel %vm224, %v382, %v805
        %v996 = vsel %vm224, %v383, %v807
        %v1000 = vsel %vm224, %v384, %v809
        %v1004 = vsel %vm224, %v385, %v811
        %v1008 = vsel %vm224, %v386, %v813
        %v1012 = vsel %vm224, %v387, %v815
        %v1016 = vsel %vm224, %v388, %v817
        %v1020 = vsel %vm224, %v389, %v819
        %v1024 = vsel %vm224, %v390, %v821
        %v1028 = vsel %vm224, %v391, %v823
        %v1032 = vsel %vm224, %v392, %v825
        %v1036 = vsel %vm224, %v473, %v843
        %v1040 = vsel %vm224, %v474, %v845
        %v1044 = vsel %vm224, %v475, %v847
        %v1048 = vsel %vm224, %v476, %v849
        %v1052 = vsel %vm224, %v477, %v851
        %v1056 = vsel %vm224, %v478, %v853
        %v1060 = vsel %vm224, %v479, %v855
        %v1064 = vsel %vm224, %v480, %v857
        %v1068 = vsel %vm224, %v481, %v859
        %v1072 = vsel %vm224, %v482, %v861
        %v1076 = vsel %vm224, %v483, %v863
        %v1080 = vsel %vm224, %v484, %v865
        %v1084 = vsel %vm224, %v485, %v867
        %v1088 = vsel %vm224, %v486, %v869
        %v1092 = vsel %vm224, %v487, %v871
        %v1096 = vsel %vm224, %v488, %v873
        %v1100 = vsel %vm224, %v569, %v891
        %v1104 = vsel %vm224, %v570, %v893
        %v1108 = vsel %vm224, %v571, %v895
        %v1112 = vsel %vm224, %v572, %v897
        %v1116 = vsel %vm224, %v573, %v899
        %v1120 = vsel %vm224, %v574, %v901
        %v1124 = vsel %vm224, %v575, %v903
        %v1128 = vsel %vm224, %v576, %v905
        %v1132 = vsel %vm224, %v577, %v907
        %v1136 = vsel %vm224, %v578, %v909
        %v1140 = vsel %vm224, %v579, %v911
        %v1144 = vsel %vm224, %v580, %v913
        %v1148 = vsel %vm224, %v581, %v915
        %v1152 = vsel %vm224, %v582, %v917
        %v1156 = vsel %vm224, %v583, %v919
        %v1160 = vsel %vm224, %v584, %v921
        %v1164 = vsel %vm224, %v666, %v939
        %v1168 = vsel %vm224, %v667, %v941
        %v1172 = vsel %vm224, %v668, %v943
        %v1176 = vsel %vm224, %v669, %v945
        %v1180 = vsel %vm224, %v670, %v947
        %v1184 = vsel %vm224, %v671, %v949
        %v1188 = vsel %vm224, %v672, %v951
        %v1192 = vsel %vm224, %v673, %v953
        %v1196 = vsel %vm224, %v674, %v955
        %v1200 = vsel %vm224, %v675, %v957
        %v1204 = vsel %vm224, %v676, %v959
        %v1208 = vsel %vm224, %v677, %v961
        %v1212 = vsel %vm224, %v678, %v963
        %v1216 = vsel %vm224, %v679, %v965
        %v1220 = vsel %vm224, %v680, %v967
        %v1224 = vsel %vm224, %v681, %v969
        %v1226 = vld [vmem:[%s1] sm:$0xf]
        %v1227 = vld [vmem:[%s1 + $0x4] sm:$0xf]
        %v1228 = vld [vmem:[%s1 + $0x8] sm:$0xf]
        %v1229 = vld [vmem:[%s1 + $0xc] sm:$0xf]
        %v1230 = vld [vmem:[%s1 + $0x10] sm:$0xf]
        %v1231 = vld [vmem:[%s1 + $0x14] sm:$0xf]
        %v1232 = vld [vmem:[%s1 + $0x18] sm:$0xf]
        %v1233 = vld [vmem:[%s1 + $0x1c] sm:$0xf]
        %v1234 = vld [vmem:[%s1 + $0x20] sm:$0xf]
        %v1235 = vld [vmem:[%s1 + $0x24] sm:$0xf]
        %v1236 = vld [vmem:[%s1 + $0x28] sm:$0xf]
        %v1237 = vld [vmem:[%s1 + $0x2c] sm:$0xf]
        %v1238 = vld [vmem:[%s1 + $0x30] sm:$0xf]
        %v1239 = vld [vmem:[%s1 + $0x34] sm:$0xf]
        %v1240 = vld [vmem:[%s1 + $0x38] sm:$0xf]
        %v1241 = vld [vmem:[%s1 + $0x3c] sm:$0xf]
        %v1242 = vld [vmem:[%s1 + $0x40] sm:$0xf]
        %v1243 = vld [vmem:[%s1 + $0x44] sm:$0xf]
        %v1244 = vld [vmem:[%s1 + $0x48] sm:$0xf]
        %v1245 = vld [vmem:[%s1 + $0x4c] sm:$0xf]
        %v1246 = vld [vmem:[%s1 + $0x50] sm:$0xf]
        %v1247 = vld [vmem:[%s1 + $0x54] sm:$0xf]
        %v1248 = vld [vmem:[%s1 + $0x58] sm:$0xf]
        %v1249 = vld [vmem:[%s1 + $0x5c] sm:$0xf]
        %v1250 = vld [vmem:[%s1 + $0x60] sm:$0xf]
        %v1251 = vld [vmem:[%s1 + $0x64] sm:$0xf]
        %v1252 = vld [vmem:[%s1 + $0x68] sm:$0xf]
        %v1253 = vld [vmem:[%s1 + $0x6c] sm:$0xf]
        %v1254 = vld [vmem:[%s1 + $0x70] sm:$0xf]
        %v1255 = vld [vmem:[%s1 + $0x74] sm:$0xf]
        %v1256 = vld [vmem:[%s1 + $0x78] sm:$0xf]
        %v1257 = vld [vmem:[%s1 + $0x7c] sm:$0xf]
        %v1258 = vld [vmem:[%s1 + $0x80] sm:$0xf]
        %v1259 = vld [vmem:[%s1 + $0x84] sm:$0xf]
        %v1260 = vld [vmem:[%s1 + $0x88] sm:$0xf]
        %v1261 = vld [vmem:[%s1 + $0x8c] sm:$0xf]
        %v1262 = vld [vmem:[%s1 + $0x90] sm:$0xf]
        %v1263 = vld [vmem:[%s1 + $0x94] sm:$0xf]
        %v1264 = vld [vmem:[%s1 + $0x98] sm:$0xf]
        %v1265 = vld [vmem:[%s1 + $0x9c] sm:$0xf]
        %v1266 = vld [vmem:[%s1 + $0xa0] sm:$0xf]
        %v1267 = vld [vmem:[%s1 + $0xa4] sm:$0xf]
        %v1268 = vld [vmem:[%s1 + $0xa8] sm:$0xf]
        %v1269 = vld [vmem:[%s1 + $0xac] sm:$0xf]
        %v1270 = vld [vmem:[%s1 + $0xb0] sm:$0xf]
        %v1271 = vld [vmem:[%s1 + $0xb4] sm:$0xf]
        %v1272 = vld [vmem:[%s1 + $0xb8] sm:$0xf]
        %v1273 = vld [vmem:[%s1 + $0xbc] sm:$0xf]
        %v1274 = vld [vmem:[%s1 + $0xc0] sm:$0xf]
        %v1275 = vld [vmem:[%s1 + $0xc4] sm:$0xf]
        %v1276 = vld [vmem:[%s1 + $0xc8] sm:$0xf]
        %v1277 = vld [vmem:[%s1 + $0xcc] sm:$0xf]
        %v1278 = vld [vmem:[%s1 + $0xd0] sm:$0xf]
        %v1279 = vld [vmem:[%s1 + $0xd4] sm:$0xf]
        %v1280 = vld [vmem:[%s1 + $0xd8] sm:$0xf]
        %v1281 = vld [vmem:[%s1 + $0xdc] sm:$0xf]
        %v1282 = vld [vmem:[%s1 + $0xe0] sm:$0xf]
        %v1283 = vld [vmem:[%s1 + $0xe4] sm:$0xf]
        %v1284 = vld [vmem:[%s1 + $0xe8] sm:$0xf]
        %v1285 = vld [vmem:[%s1 + $0xec] sm:$0xf]
        %v1286 = vld [vmem:[%s1 + $0xf0] sm:$0xf]
        %v1287 = vld [vmem:[%s1 + $0xf4] sm:$0xf]
        %v1288 = vld [vmem:[%s1 + $0xf8] sm:$0xf]
        %v1289 = vld [vmem:[%s1 + $0xfc] sm:$0xf]
        %v1290 = vld [vmem:[%s1 + $0x100] sm:$0xf]
        %v1291 = vld [vmem:[%s1 + $0x104] sm:$0xf]
        %v1292 = vld [vmem:[%s1 + $0x108] sm:$0xf]
        %v1293 = vld [vmem:[%s1 + $0x10c] sm:$0xf]
        %v1294 = vld [vmem:[%s1 + $0x110] sm:$0xf]
        %v1295 = vld [vmem:[%s1 + $0x114] sm:$0xf]
        %v1296 = vld [vmem:[%s1 + $0x118] sm:$0xf]
        %v1297 = vld [vmem:[%s1 + $0x11c] sm:$0xf]
        %v1298 = vld [vmem:[%s2] sm:$0x1]
        %v1300 = vlaneseq
        %v1301 = vshrl.u32 %v1300, 7
        %v1302 = vsub.s32 0, %v1301
        %v1303 = vrot.slane %v1298, %v1302
        %v1377 = vunpack.c.l.b16 %v1226
        %v1378 = vunpack.c.l.b16 %v1227
        %v1379 = vunpack.c.l.b16 %v1228
        %v1380 = vunpack.c.l.b16 %v1229
        %v1381 = vunpack.c.l.b16 %v1230
        %v1382 = vunpack.c.l.b16 %v1231
        %v1383 = vunpack.c.l.b16 %v1232
        %v1384 = vunpack.c.l.b16 %v1233
        %v1385 = vunpack.c.l.b16 %v1234
        %v1386 = vunpack.c.l.b16 %v1235
        %v1387 = vunpack.c.l.b16 %v1236
        %v1388 = vunpack.c.l.b16 %v1237
        %v1389 = vunpack.c.l.b16 %v1238
        %v1390 = vunpack.c.l.b16 %v1239
        %v1391 = vunpack.c.l.b16 %v1240
        %v1392 = vunpack.c.l.b16 %v1241
        %v1393 = vunpack.c.l.b16 %v1242
        %v1394 = vunpack.c.l.b16 %v1243
        %v1395 = vunpack.c.l.b16 %v1244
        %v1396 = vunpack.c.l.b16 %v1245
        %v1397 = vunpack.c.l.b16 %v1246
        %v1398 = vunpack.c.l.b16 %v1247
        %v1399 = vunpack.c.l.b16 %v1248
        %v1400 = vunpack.c.l.b16 %v1249
        %v1401 = vunpack.c.l.b16 %v1250
        %v1402 = vunpack.c.l.b16 %v1251
        %v1403 = vunpack.c.l.b16 %v1252
        %v1404 = vunpack.c.l.b16 %v1253
        %v1405 = vunpack.c.l.b16 %v1254
        %v1406 = vunpack.c.l.b16 %v1255
        %v1407 = vunpack.c.l.b16 %v1256
        %v1408 = vunpack.c.l.b16 %v1257
        %v1409 = vunpack.c.l.b16 %v1258
        %v1410 = vunpack.c.l.b16 %v1259
        %v1411 = vunpack.c.l.b16 %v1260
        %v1412 = vunpack.c.l.b16 %v1261
        %v1413 = vunpack.c.l.b16 %v1262
        %v1414 = vunpack.c.l.b16 %v1263
        %v1415 = vunpack.c.l.b16 %v1264
        %v1416 = vunpack.c.l.b16 %v1265
        %v1417 = vunpack.c.l.b16 %v1266
        %v1418 = vunpack.c.l.b16 %v1267
        %v1419 = vunpack.c.l.b16 %v1268
        %v1420 = vunpack.c.l.b16 %v1269
        %v1421 = vunpack.c.l.b16 %v1270
        %v1422 = vunpack.c.l.b16 %v1271
        %v1423 = vunpack.c.l.b16 %v1272
        %v1424 = vunpack.c.l.b16 %v1273
        %v1425 = vunpack.c.l.b16 %v1274
        %v1426 = vunpack.c.l.b16 %v1275
        %v1427 = vunpack.c.l.b16 %v1276
        %v1428 = vunpack.c.l.b16 %v1277
        %v1429 = vunpack.c.l.b16 %v1278
        %v1430 = vunpack.c.l.b16 %v1279
        %v1431 = vunpack.c.l.b16 %v1280
        %v1432 = vunpack.c.l.b16 %v1281
        %v1433 = vunpack.c.l.b16 %v1282
        %v1434 = vunpack.c.l.b16 %v1283
        %v1435 = vunpack.c.l.b16 %v1284
        %v1436 = vunpack.c.l.b16 %v1285
        %v1437 = vunpack.c.l.b16 %v1286
        %v1438 = vunpack.c.l.b16 %v1287
        %v1439 = vunpack.c.l.b16 %v1288
        %v1440 = vunpack.c.l.b16 %v1289
        %v1441 = vunpack.c.l.b16 %v1290
        %v1442 = vunpack.c.l.b16 %v1291
        %v1443 = vunpack.c.l.b16 %v1292
        %v1444 = vunpack.c.l.b16 %v1293
        %v1445 = vunpack.c.l.b16 %v1294
        %v1446 = vunpack.c.l.b16 %v1295
        %v1447 = vunpack.c.l.b16 %v1296
        %v1448 = vunpack.c.l.b16 %v1297
        %v1449 = vpack.c.b16 %v1378, %v1377
        %v1450 = vpack.c.b16 %v1380, %v1379
        %v1451 = vpack.c.b16 %v1382, %v1381
        %v1452 = vpack.c.b16 %v1384, %v1383
        %v1453 = vpack.c.b16 %v1386, %v1385
        %v1454 = vpack.c.b16 %v1388, %v1387
        %v1455 = vpack.c.b16 %v1390, %v1389
        %v1456 = vpack.c.b16 %v1392, %v1391
        %v1457 = vpack.c.b16 %v1394, %v1393
        %v1458 = vpack.c.b16 %v1396, %v1395
        %v1459 = vpack.c.b16 %v1398, %v1397
        %v1460 = vpack.c.b16 %v1400, %v1399
        %v1461 = vpack.c.b16 %v1402, %v1401
        %v1462 = vpack.c.b16 %v1404, %v1403
        %v1463 = vpack.c.b16 %v1406, %v1405
        %v1464 = vpack.c.b16 %v1408, %v1407
        %v1465 = vpack.c.b16 %v1410, %v1409
        %v1466 = vpack.c.b16 %v1412, %v1411
        %v1467 = vpack.c.b16 %v1414, %v1413
        %v1468 = vpack.c.b16 %v1416, %v1415
        %v1469 = vpack.c.b16 %v1418, %v1417
        %v1470 = vpack.c.b16 %v1420, %v1419
        %v1471 = vpack.c.b16 %v1422, %v1421
        %v1472 = vpack.c.b16 %v1424, %v1423
        %v1473 = vpack.c.b16 %v1426, %v1425
        %v1474 = vpack.c.b16 %v1428, %v1427
        %v1475 = vpack.c.b16 %v1430, %v1429
        %v1476 = vpack.c.b16 %v1432, %v1431
        %v1477 = vpack.c.b16 %v1434, %v1433
        %v1478 = vpack.c.b16 %v1436, %v1435
        %v1479 = vpack.c.b16 %v1438, %v1437
        %v1480 = vpack.c.b16 %v1440, %v1439
        %v1481 = vpack.c.b16 %v1442, %v1441
        %v1482 = vpack.c.b16 %v1444, %v1443
        %v1483 = vpack.c.b16 %v1446, %v1445
        %v1484 = vpack.c.b16 %v1448, %v1447
        %v1522 = vsel %vm224, %v762, 0
        %v1525 = vsel %vm224, %v763, 0
        %v1528 = vsel %vm224, %v764, 0
        %v1531 = vsel %vm224, %v765, 0
        %v1534 = vsel %vm224, %v766, 0
        %v1537 = vsel %vm224, %v767, 0
        %v1540 = vsel %vm224, %v768, 0
        %v1543 = vsel %vm224, %v769, 0
        %v1546 = vsel %vm224, %v770, 0
        %v1549 = vsel %vm224, %v771, 0
        %v1552 = vsel %vm224, %v772, 0
        %v1555 = vsel %vm224, %v773, 0
        %v1558 = vsel %vm224, %v774, 0
        %v1561 = vsel %vm224, %v775, 0
        %v1564 = vsel %vm224, %v776, 0
        %v1567 = vsel %vm224, %v777, 0
        %1569 = vmatprep.subr.bf16.mxu0 0
        %1570 = vmatpush1.bf16.msra.mxu0 %v1449
        %1571 = vmatprep.subr.bf16.mxu0 0
        %1572 = vmatpush1.bf16.msra.mxu0 %v1450
        %1573 = vmatprep.subr.bf16.mxu0 0
        %1574 = vmatpush1.bf16.msra.mxu0 %v1451
        %1575 = vmatprep.subr.bf16.mxu0 0
        %1576 = vmatpush1.bf16.msra.mxu0 %v1452
        %1577 = vmatprep.subr.bf16.mxu0 0
        %1578 = vmatpush1.bf16.msra.mxu0 %v1453
        %1579 = vmatprep.subr.bf16.mxu0 0
        %1580 = vmatpush1.bf16.msra.mxu0 %v1454
        %1581 = vmatprep.subr.bf16.mxu0 0
        %1582 = vmatpush1.bf16.msra.mxu0 %v1455
        %1583 = vmatprep.subr.bf16.mxu0 0
        %1584 = vmatpush1.bf16.msra.mxu0 %v1456
        %1585 = vmatprep.subr.bf16.mxu0 0
        %1586 = vmatpush1.bf16.msra.mxu0 %v1457
        %1587 = vmatprep.subr.bf16.mxu0 0
        %1588 = vmatpush1.bf16.msra.mxu0 %v1458
        %1589 = vmatprep.subr.bf16.mxu0 0
        %1590 = vmatpush1.bf16.msra.mxu0 %v1459
        %1591 = vmatprep.subr.bf16.mxu0 0
        %1592 = vmatpush1.bf16.msra.mxu0 %v1460
        %1593 = vmatprep.subr.bf16.mxu0 0
        %1594 = vmatpush1.bf16.msra.mxu0 %v1461
        %1595 = vmatprep.subr.bf16.mxu0 0
        %1596 = vmatpush1.bf16.msra.mxu0 %v1462
        %1597 = vmatprep.subr.bf16.mxu0 0
        %1598 = vmatpush1.bf16.msra.mxu0 %v1463
        %1599 = vmatprep.subr.bf16.mxu0 0
        %1600 = vmatpush1.bf16.msra.mxu0 %v1464
        %1601 = vmatprep.mubr.bf16.mxu0 %v1036
        %1602 = vmatmul.mubr.bf16.gmra.mrb[0].mxu0 %v972
        %v1603 = vpop.f32.mrb[0].mxu0
        %v1604 = vadd.f32 %v1303, %v1603
        %v1605 = vpop.f32.mrb[0].mxu0
        %v1606 = vpop.f32.mrb[0].mxu0
        %v1607 = vadd.f32 %v1303, %v1606
        %v1608 = vpop.f32.mrb[0].mxu0
        %1609 = vmatprep.mubr.bf16.mxu0 %v1040
        %1610 = vmatmul.mubr.bf16.gmra.mrb[0].mxu0 %v976
        %v1611 = vpop.f32.mrb[0].mxu0
        %v1612 = vadd.f32 %v1303, %v1611
        %v1613 = vpop.f32.mrb[0].mxu0
        %v1614 = vpop.f32.mrb[0].mxu0
        %v1615 = vadd.f32 %v1303, %v1614
        %v1616 = vpop.f32.mrb[0].mxu0
        %1617 = vmatprep.mubr.bf16.mxu0 %v1044
        %1618 = vmatmul.mubr.bf16.gmra.mrb[0].mxu0 %v980
        %v1619 = vpop.f32.mrb[0].mxu0
        %v1620 = vadd.f32 %v1303, %v1619
        %v1621 = vpop.f32.mrb[0].mxu0
        %v1622 = vpop.f32.mrb[0].mxu0
        %v1623 = vadd.f32 %v1303, %v1622
        %v1624 = vpop.f32.mrb[0].mxu0
        %1625 = vmatprep.mubr.bf16.mxu0 %v1048
        %1626 = vmatmul.mubr.bf16.gmra.mrb[0].mxu0 %v984
        %v1627 = vpop.f32.mrb[0].mxu0
        %v1628 = vadd.f32 %v1303, %v1627
        %v1629 = vpop.f32.mrb[0].mxu0
        %v1630 = vpop.f32.mrb[0].mxu0
        %v1631 = vadd.f32 %v1303, %v1630
        %v1632 = vpop.f32.mrb[0].mxu0
        %1633 = vmatprep.mubr.bf16.mxu0 %v1052
        %1634 = vmatmul.mubr.bf16.gmra.mrb[0].mxu0 %v988
        %v1635 = vpop.f32.mrb[0].mxu0
        %v1636 = vadd.f32 %v1303, %v1635
        %v1637 = vpop.f32.mrb[0].mxu0
        %v1638 = vpop.f32.mrb[0].mxu0
        %v1639 = vadd.f32 %v1303, %v1638
        %v1640 = vpop.f32.mrb[0].mxu0
        %1641 = vmatprep.mubr.bf16.mxu0 %v1056
        %1642 = vmatmul.mubr.bf16.gmra.mrb[0].mxu0 %v992
        %v1643 = vpop.f32.mrb[0].mxu0
        %v1644 = vadd.f32 %v1303, %v1643
        %v1645 = vpop.f32.mrb[0].mxu0
        %v1646 = vpop.f32.mrb[0].mxu0
        %v1647 = vadd.f32 %v1303, %v1646
        %v1648 = vpop.f32.mrb[0].mxu0
        %1649 = vmatprep.mubr.bf16.mxu0 %v1060
        %1650 = vmatmul.mubr.bf16.gmra.mrb[0].mxu0 %v996
        %v1651 = vpop.f32.mrb[0].mxu0
        %v1652 = vadd.f32 %v1303, %v1651
        %v1653 = vpop.f32.mrb[0].mxu0
        %v1654 = vpop.f32.mrb[0].mxu0
        %v1655 = vadd.f32 %v1303, %v1654
        %v1656 = vpop.f32.mrb[0].mxu0
        %1657 = vmatprep.mubr.bf16.mxu0 %v1064
        %1658 = vmatmul.mubr.bf16.gmra.mrb[0].mxu0 %v1000
        %v1659 = vpop.f32.mrb[0].mxu0
        %v1660 = vadd.f32 %v1303, %v1659
        %v1661 = vpop.f32.mrb[0].mxu0
        %v1662 = vpop.f32.mrb[0].mxu0
        %v1663 = vadd.f32 %v1303, %v1662
        %v1664 = vpop.f32.mrb[0].mxu0
        %1665 = vmatprep.mubr.bf16.mxu0 %v1068
        %1666 = vmatmul.mubr.bf16.gmra.mrb[0].mxu0 %v1004
        %v1667 = vpop.f32.mrb[0].mxu0
        %v1668 = vadd.f32 %v1303, %v1667
        %v1669 = vpop.f32.mrb[0].mxu0
        %v1670 = vpop.f32.mrb[0].mxu0
        %v1671 = vadd.f32 %v1303, %v1670
        %v1672 = vpop.f32.mrb[0].mxu0
        %1673 = vmatprep.mubr.bf16.mxu0 %v1072
        %1674 = vmatmul.mubr.bf16.gmra.mrb[0].mxu0 %v1008
        %v1675 = vpop.f32.mrb[0].mxu0
        %v1676 = vadd.f32 %v1303, %v1675
        %v1677 = vpop.f32.mrb[0].mxu0
        %v1678 = vpop.f32.mrb[0].mxu0
        %v1679 = vadd.f32 %v1303, %v1678
        %v1680 = vpop.f32.mrb[0].mxu0
        %1681 = vmatprep.mubr.bf16.mxu0 %v1076
        %1682 = vmatmul.mubr.bf16.gmra.mrb[0].mxu0 %v1012
        %v1683 = vpop.f32.mrb[0].mxu0
        %v1684 = vadd.f32 %v1303, %v1683
        %v1685 = vpop.f32.mrb[0].mxu0
        %v1686 = vpop.f32.mrb[0].mxu0
        %v1687 = vadd.f32 %v1303, %v1686
        %v1688 = vpop.f32.mrb[0].mxu0
        %1689 = vmatprep.mubr.bf16.mxu0 %v1080
        %1690 = vmatmul.mubr.bf16.gmra.mrb[0].mxu0 %v1016
        %v1691 = vpop.f32.mrb[0].mxu0
        %v1692 = vadd.f32 %v1303, %v1691
        %v1693 = vpop.f32.mrb[0].mxu0
        %v1694 = vpop.f32.mrb[0].mxu0
        %v1695 = vadd.f32 %v1303, %v1694
        %v1696 = vpop.f32.mrb[0].mxu0
        %1697 = vmatprep.mubr.bf16.mxu0 %v1084
        %1698 = vmatmul.mubr.bf16.gmra.mrb[0].mxu0 %v1020
        %v1699 = vpop.f32.mrb[0].mxu0
        %v1700 = vadd.f32 %v1303, %v1699
        %v1701 = vpop.f32.mrb[0].mxu0
        %v1702 = vpop.f32.mrb[0].mxu0
        %v1703 = vadd.f32 %v1303, %v1702
        %v1704 = vpop.f32.mrb[0].mxu0
        %1705 = vmatprep.mubr.bf16.mxu0 %v1088
        %1706 = vmatmul.mubr.bf16.gmra.mrb[0].mxu0 %v1024
        %v1707 = vpop.f32.mrb[0].mxu0
        %v1708 = vadd.f32 %v1303, %v1707
        %v1709 = vpop.f32.mrb[0].mxu0
        %v1710 = vpop.f32.mrb[0].mxu0
        %v1711 = vadd.f32 %v1303, %v1710
        %v1712 = vpop.f32.mrb[0].mxu0
        %1713 = vmatprep.mubr.bf16.mxu0 %v1092
        %1714 = vmatmul.mubr.bf16.gmra.mrb[0].mxu0 %v1028
        %v1715 = vpop.f32.mrb[0].mxu0
        %v1716 = vadd.f32 %v1303, %v1715
        %v1717 = vpop.f32.mrb[0].mxu0
        %v1718 = vpop.f32.mrb[0].mxu0
        %v1719 = vadd.f32 %v1303, %v1718
        %v1720 = vpop.f32.mrb[0].mxu0
        %1721 = vmatprep.mubr.bf16.mxu0 %v1096
        %1722 = vmatmul.mubr.bf16.gmra.mrb[0].mxu0 %v1032
        %v1723 = vpop.f32.mrb[0].mxu0
        %v1724 = vadd.f32 %v1303, %v1723
        %v1725 = vpop.f32.mrb[0].mxu0
        %v1726 = vpop.f32.mrb[0].mxu0
        %v1727 = vadd.f32 %v1303, %v1726
        %v1728 = vpop.f32.mrb[0].mxu0
        %1729 = vdwg.mxu0
        %1730 = vmatprep.subr.bf16.mxu0 0
        %1731 = vmatpush1.bf16.msra.mxu0 %v1465
        %1732 = vmatprep.subr.bf16.mxu0 0
        %1733 = vmatpush1.bf16.msra.mxu0 %v1466
        %1734 = vmatprep.subr.bf16.mxu0 0
        %1735 = vmatpush1.bf16.msra.mxu0 %v1467
        %1736 = vmatprep.subr.bf16.mxu0 0
        %1737 = vmatpush1.bf16.msra.mxu0 %v1468
        %1738 = vmatprep.subr.bf16.mxu0 0
        %1739 = vmatpush1.bf16.msra.mxu0 %v1469
        %1740 = vmatprep.subr.bf16.mxu0 0
        %1741 = vmatpush1.bf16.msra.mxu0 %v1470
        %1742 = vmatprep.subr.bf16.mxu0 0
        %1743 = vmatpush1.bf16.msra.mxu0 %v1471
        %1744 = vmatprep.subr.bf16.mxu0 0
        %1745 = vmatpush1.bf16.msra.mxu0 %v1472
        %1746 = vmatprep.subr.bf16.mxu0 0
        %1747 = vmatpush1.bf16.msra.mxu0 %v1473
        %1748 = vmatprep.subr.bf16.mxu0 0
        %1749 = vmatpush1.bf16.msra.mxu0 %v1474
        %1750 = vmatprep.subr.bf16.mxu0 0
        %1751 = vmatpush1.bf16.msra.mxu0 %v1475
        %1752 = vmatprep.subr.bf16.mxu0 0
        %1753 = vmatpush1.bf16.msra.mxu0 %v1476
        %1754 = vmatprep.subr.bf16.mxu0 0
        %1755 = vmatpush1.bf16.msra.mxu0 %v1477
        %1756 = vmatprep.subr.bf16.mxu0 0
        %1757 = vmatpush1.bf16.msra.mxu0 %v1478
        %1758 = vmatprep.subr.bf16.mxu0 0
        %1759 = vmatpush1.bf16.msra.mxu0 %v1479
        %1760 = vmatprep.subr.bf16.mxu0 0
        %1761 = vmatpush1.bf16.msra.mxu0 %v1480
        %1762 = vmatprep.mubr.bf16.mxu0 %v1164
        %1763 = vmatmul.mubr.bf16.gmra.mrb[0].mxu0 %v1100
        %v1764 = vpop.f32.mrb[0].mxu0
        %v1765 = vadd.f32 %v1604, %v1764
        %v1766 = vpop.f32.mrb[0].mxu0
        %v1767 = vpop.f32.mrb[0].mxu0
        %v1768 = vadd.f32 %v1607, %v1767
        %v1769 = vpop.f32.mrb[0].mxu0
        %1770 = vmatprep.mubr.bf16.mxu0 %v1168
        %1771 = vmatmul.mubr.bf16.gmra.mrb[0].mxu0 %v1104
        %v1772 = vpop.f32.mrb[0].mxu0
        %v1773 = vadd.f32 %v1612, %v1772
        %v1774 = vpop.f32.mrb[0].mxu0
        %v1775 = vpop.f32.mrb[0].mxu0
        %v1776 = vadd.f32 %v1615, %v1775
        %v1777 = vpop.f32.mrb[0].mxu0
        %1778 = vmatprep.mubr.bf16.mxu0 %v1172
        %1779 = vmatmul.mubr.bf16.gmra.mrb[0].mxu0 %v1108
        %v1780 = vpop.f32.mrb[0].mxu0
        %v1781 = vadd.f32 %v1620, %v1780
        %v1782 = vpop.f32.mrb[0].mxu0
        %v1783 = vpop.f32.mrb[0].mxu0
        %v1784 = vadd.f32 %v1623, %v1783
        %v1785 = vpop.f32.mrb[0].mxu0
        %1786 = vmatprep.mubr.bf16.mxu0 %v1176
        %1787 = vmatmul.mubr.bf16.gmra.mrb[0].mxu0 %v1112
        %v1788 = vpop.f32.mrb[0].mxu0
        %v1789 = vadd.f32 %v1628, %v1788
        %v1790 = vpop.f32.mrb[0].mxu0
        %v1791 = vpop.f32.mrb[0].mxu0
        %v1792 = vadd.f32 %v1631, %v1791
        %v1793 = vpop.f32.mrb[0].mxu0
        %1794 = vmatprep.mubr.bf16.mxu0 %v1180
        %1795 = vmatmul.mubr.bf16.gmra.mrb[0].mxu0 %v1116
        %v1796 = vpop.f32.mrb[0].mxu0
        %v1797 = vadd.f32 %v1636, %v1796
        %v1798 = vpop.f32.mrb[0].mxu0
        %v1799 = vpop.f32.mrb[0].mxu0
        %v1800 = vadd.f32 %v1639, %v1799
        %v1801 = vpop.f32.mrb[0].mxu0
        %1802 = vmatprep.mubr.bf16.mxu0 %v1184
        %1803 = vmatmul.mubr.bf16.gmra.mrb[0].mxu0 %v1120
        %v1804 = vpop.f32.mrb[0].mxu0
        %v1805 = vadd.f32 %v1644, %v1804
        %v1806 = vpop.f32.mrb[0].mxu0
        %v1807 = vpop.f32.mrb[0].mxu0
        %v1808 = vadd.f32 %v1647, %v1807
        %v1809 = vpop.f32.mrb[0].mxu0
        %1810 = vmatprep.mubr.bf16.mxu0 %v1188
        %1811 = vmatmul.mubr.bf16.gmra.mrb[0].mxu0 %v1124
        %v1812 = vpop.f32.mrb[0].mxu0
        %v1813 = vadd.f32 %v1652, %v1812
        %v1814 = vpop.f32.mrb[0].mxu0
        %v1815 = vpop.f32.mrb[0].mxu0
        %v1816 = vadd.f32 %v1655, %v1815
        %v1817 = vpop.f32.mrb[0].mxu0
        %1818 = vmatprep.mubr.bf16.mxu0 %v1192
        %1819 = vmatmul.mubr.bf16.gmra.mrb[0].mxu0 %v1128
        %v1820 = vpop.f32.mrb[0].mxu0
        %v1821 = vadd.f32 %v1660, %v1820
        %v1822 = vpop.f32.mrb[0].mxu0
        %v1823 = vpop.f32.mrb[0].mxu0
        %v1824 = vadd.f32 %v1663, %v1823
        %v1825 = vpop.f32.mrb[0].mxu0
        %1826 = vmatprep.mubr.bf16.mxu0 %v1196
        %1827 = vmatmul.mubr.bf16.gmra.mrb[0].mxu0 %v1132
        %v1828 = vpop.f32.mrb[0].mxu0
        %v1829 = vadd.f32 %v1668, %v1828
        %v1830 = vpop.f32.mrb[0].mxu0
        %v1831 = vpop.f32.mrb[0].mxu0
        %v1832 = vadd.f32 %v1671, %v1831
        %v1833 = vpop.f32.mrb[0].mxu0
        %1834 = vmatprep.mubr.bf16.mxu0 %v1200
        %1835 = vmatmul.mubr.bf16.gmra.mrb[0].mxu0 %v1136
        %v1836 = vpop.f32.mrb[0].mxu0
        %v1837 = vadd.f32 %v1676, %v1836
        %v1838 = vpop.f32.mrb[0].mxu0
        %v1839 = vpop.f32.mrb[0].mxu0
        %v1840 = vadd.f32 %v1679, %v1839
        %v1841 = vpop.f32.mrb[0].mxu0
        %1842 = vmatprep.mubr.bf16.mxu0 %v1204
        %1843 = vmatmul.mubr.bf16.gmra.mrb[0].mxu0 %v1140
        %v1844 = vpop.f32.mrb[0].mxu0
        %v1845 = vadd.f32 %v1684, %v1844
        %v1846 = vpop.f32.mrb[0].mxu0
        %v1847 = vpop.f32.mrb[0].mxu0
        %v1848 = vadd.f32 %v1687, %v1847
        %v1849 = vpop.f32.mrb[0].mxu0
        %1850 = vmatprep.mubr.bf16.mxu0 %v1208
        %1851 = vmatmul.mubr.bf16.gmra.mrb[0].mxu0 %v1144
        %v1852 = vpop.f32.mrb[0].mxu0
        %v1853 = vadd.f32 %v1692, %v1852
        %v1854 = vpop.f32.mrb[0].mxu0
        %v1855 = vpop.f32.mrb[0].mxu0
        %v1856 = vadd.f32 %v1695, %v1855
        %v1857 = vpop.f32.mrb[0].mxu0
        %1858 = vmatprep.mubr.bf16.mxu0 %v1212
        %1859 = vmatmul.mubr.bf16.gmra.mrb[0].mxu0 %v1148
        %v1860 = vpop.f32.mrb[0].mxu0
        %v1861 = vadd.f32 %v1700, %v1860
        %v1862 = vpop.f32.mrb[0].mxu0
        %v1863 = vpop.f32.mrb[0].mxu0
        %v1864 = vadd.f32 %v1703, %v1863
        %v1865 = vpop.f32.mrb[0].mxu0
        %1866 = vmatprep.mubr.bf16.mxu0 %v1216
        %1867 = vmatmul.mubr.bf16.gmra.mrb[0].mxu0 %v1152
        %v1868 = vpop.f32.mrb[0].mxu0
        %v1869 = vadd.f32 %v1708, %v1868
        %v1870 = vpop.f32.mrb[0].mxu0
        %v1871 = vpop.f32.mrb[0].mxu0
        %v1872 = vadd.f32 %v1711, %v1871
        %v1873 = vpop.f32.mrb[0].mxu0
        %1874 = vmatprep.mubr.bf16.mxu0 %v1220
        %1875 = vmatmul.mubr.bf16.gmra.mrb[0].mxu0 %v1156
        %v1876 = vpop.f32.mrb[0].mxu0
        %v1877 = vadd.f32 %v1716, %v1876
        %v1878 = vpop.f32.mrb[0].mxu0
        %v1879 = vpop.f32.mrb[0].mxu0
        %v1880 = vadd.f32 %v1719, %v1879
        %v1881 = vpop.f32.mrb[0].mxu0
        %1882 = vmatprep.mubr.bf16.mxu0 %v1224
        %1883 = vmatmul.mubr.bf16.gmra.mrb[0].mxu0 %v1160
        %v1884 = vpop.f32.mrb[0].mxu0
        %v1885 = vadd.f32 %v1724, %v1884
        %v1886 = vpop.f32.mrb[0].mxu0
        %v1887 = vpop.f32.mrb[0].mxu0
        %v1888 = vadd.f32 %v1727, %v1887
        %v1889 = vpop.f32.mrb[0].mxu0
        %1890 = vdwg.mxu0
        %1891 = vmatprep.subr.bf16.mxu0 0
        %1892 = vmatpush1.bf16.msra.mxu0 %v1481
        %1893 = vmatprep.subr.bf16.mxu0 0
        %1894 = vmatpush1.bf16.msra.mxu0 %v1482
        %1895 = vmatprep.subr.bf16.mxu0 0
        %1896 = vmatpush1.bf16.msra.mxu0 %v1483
        %1897 = vmatprep.subr.bf16.mxu0 0
        %1898 = vmatpush1.bf16.msra.mxu0 %v1484
        %1899 = vmatprep.subr.bf16.mxu0 0
        %1900 = vmatpush1.bf16.msra.mxu0 0
        %1901 = vmatprep.subr.bf16.mxu0 0
        %1902 = vmatpush1.bf16.msra.mxu0 0
        %1903 = vmatprep.subr.bf16.mxu0 0
        %1904 = vmatpush1.bf16.msra.mxu0 0
        %1905 = vmatprep.subr.bf16.mxu0 0
        %1906 = vmatpush1.bf16.msra.mxu0 0
        %1907 = vmatprep.subr.bf16.mxu0 0
        %1908 = vmatpush1.bf16.msra.mxu0 0
        %1909 = vmatprep.subr.bf16.mxu0 0
        %1910 = vmatpush1.bf16.msra.mxu0 0
        %1911 = vmatprep.subr.bf16.mxu0 0
        %1912 = vmatpush1.bf16.msra.mxu0 0
        %1913 = vmatprep.subr.bf16.mxu0 0
        %1914 = vmatpush1.bf16.msra.mxu0 0
        %1915 = vmatprep.subr.bf16.mxu0 0
        %1916 = vmatpush1.bf16.msra.mxu0 0
        %1917 = vmatprep.subr.bf16.mxu0 0
        %1918 = vmatpush1.bf16.msra.mxu0 0
        %1919 = vmatprep.subr.bf16.mxu0 0
        %1920 = vmatpush1.bf16.msra.mxu0 0
        %1921 = vmatprep.subr.bf16.mxu0 0
        %1922 = vmatpush1.bf16.msra.mxu0 0
        %1923 = vmatprep.mubr.bf16.mxu0 0
        %1924 = vmatmul.mubr.bf16.gmra.mrb[0].mxu0 %v1522
        %v1925 = vpop.f32.mrb[0].mxu0
        %v1926 = vadd.f32 %v1765, %v1925
        %v1927 = vpop.f32.mrb[0].mxu0
        %v1928 = vpop.f32.mrb[0].mxu0
        %v1929 = vadd.f32 %v1768, %v1928
        %v1930 = vpop.f32.mrb[0].mxu0
        %1931 = vmatprep.mubr.bf16.mxu0 0
        %1932 = vmatmul.mubr.bf16.gmra.mrb[0].mxu0 %v1525
        %v1933 = vpop.f32.mrb[0].mxu0
        %v1934 = vadd.f32 %v1773, %v1933
        %v1935 = vpop.f32.mrb[0].mxu0
        %v1936 = vpop.f32.mrb[0].mxu0
        %v1937 = vadd.f32 %v1776, %v1936
        %v1938 = vpop.f32.mrb[0].mxu0
        %1939 = vmatprep.mubr.bf16.mxu0 0
        %1940 = vmatmul.mubr.bf16.gmra.mrb[0].mxu0 %v1528
        %v1941 = vpop.f32.mrb[0].mxu0
        %v1942 = vadd.f32 %v1781, %v1941
        %v1943 = vpop.f32.mrb[0].mxu0
        %v1944 = vpop.f32.mrb[0].mxu0
        %v1945 = vadd.f32 %v1784, %v1944
        %v1946 = vpop.f32.mrb[0].mxu0
        %1947 = vmatprep.mubr.bf16.mxu0 0
        %1948 = vmatmul.mubr.bf16.gmra.mrb[0].mxu0 %v1531
        %v1949 = vpop.f32.mrb[0].mxu0
        %v1950 = vadd.f32 %v1789, %v1949
        %v1951 = vpop.f32.mrb[0].mxu0
        %v1952 = vpop.f32.mrb[0].mxu0
        %v1953 = vadd.f32 %v1792, %v1952
        %v1954 = vpop.f32.mrb[0].mxu0
        %1955 = vmatprep.mubr.bf16.mxu0 0
        %1956 = vmatmul.mubr.bf16.gmra.mrb[0].mxu0 %v1534
        %v1957 = vpop.f32.mrb[0].mxu0
        %v1958 = vadd.f32 %v1797, %v1957
        %v1959 = vpop.f32.mrb[0].mxu0
        %v1960 = vpop.f32.mrb[0].mxu0
        %v1961 = vadd.f32 %v1800, %v1960
        %v1962 = vpop.f32.mrb[0].mxu0
        %1963 = vmatprep.mubr.bf16.mxu0 0
        %1964 = vmatmul.mubr.bf16.gmra.mrb[0].mxu0 %v1537
        %v1965 = vpop.f32.mrb[0].mxu0
        %v1966 = vadd.f32 %v1805, %v1965
        %v1967 = vpop.f32.mrb[0].mxu0
        %v1968 = vpop.f32.mrb[0].mxu0
        %v1969 = vadd.f32 %v1808, %v1968
        %v1970 = vpop.f32.mrb[0].mxu0
        %1971 = vmatprep.mubr.bf16.mxu0 0
        %1972 = vmatmul.mubr.bf16.gmra.mrb[0].mxu0 %v1540
        %v1973 = vpop.f32.mrb[0].mxu0
        %v1974 = vadd.f32 %v1813, %v1973
        %v1975 = vpop.f32.mrb[0].mxu0
        %v1976 = vpop.f32.mrb[0].mxu0
        %v1977 = vadd.f32 %v1816, %v1976
        %v1978 = vpop.f32.mrb[0].mxu0
        %1979 = vmatprep.mubr.bf16.mxu0 0
        %1980 = vmatmul.mubr.bf16.gmra.mrb[0].mxu0 %v1543
        %v1981 = vpop.f32.mrb[0].mxu0
        %v1982 = vadd.f32 %v1821, %v1981
        %v1983 = vpop.f32.mrb[0].mxu0
        %v1984 = vpop.f32.mrb[0].mxu0
        %v1985 = vadd.f32 %v1824, %v1984
        %v1986 = vpop.f32.mrb[0].mxu0
        %1987 = vmatprep.mubr.bf16.mxu0 0
        %1988 = vmatmul.mubr.bf16.gmra.mrb[0].mxu0 %v1546
        %v1989 = vpop.f32.mrb[0].mxu0
        %v1990 = vadd.f32 %v1829, %v1989
        %v1991 = vpop.f32.mrb[0].mxu0
        %v1992 = vpop.f32.mrb[0].mxu0
        %v1993 = vadd.f32 %v1832, %v1992
        %v1994 = vpop.f32.mrb[0].mxu0
        %1995 = vmatprep.mubr.bf16.mxu0 0
        %1996 = vmatmul.mubr.bf16.gmra.mrb[0].mxu0 %v1549
        %v1997 = vpop.f32.mrb[0].mxu0
        %v1998 = vadd.f32 %v1837, %v1997
        %v1999 = vpop.f32.mrb[0].mxu0
        %v2000 = vpop.f32.mrb[0].mxu0
        %v2001 = vadd.f32 %v1840, %v2000
        %v2002 = vpop.f32.mrb[0].mxu0
        %2003 = vmatprep.mubr.bf16.mxu0 0
        %2004 = vmatmul.mubr.bf16.gmra.mrb[0].mxu0 %v1552
        %v2005 = vpop.f32.mrb[0].mxu0
        %v2006 = vadd.f32 %v1845, %v2005
        %v2007 = vpop.f32.mrb[0].mxu0
        %v2008 = vpop.f32.mrb[0].mxu0
        %v2009 = vadd.f32 %v1848, %v2008
        %v2010 = vpop.f32.mrb[0].mxu0
        %2011 = vmatprep.mubr.bf16.mxu0 0
        %2012 = vmatmul.mubr.bf16.gmra.mrb[0].mxu0 %v1555
        %v2013 = vpop.f32.mrb[0].mxu0
        %v2014 = vadd.f32 %v1853, %v2013
        %v2015 = vpop.f32.mrb[0].mxu0
        %v2016 = vpop.f32.mrb[0].mxu0
        %v2017 = vadd.f32 %v1856, %v2016
        %v2018 = vpop.f32.mrb[0].mxu0
        %2019 = vmatprep.mubr.bf16.mxu0 0
        %2020 = vmatmul.mubr.bf16.gmra.mrb[0].mxu0 %v1558
        %v2021 = vpop.f32.mrb[0].mxu0
        %v2022 = vadd.f32 %v1861, %v2021
        %v2023 = vpop.f32.mrb[0].mxu0
        %v2024 = vpop.f32.mrb[0].mxu0
        %v2025 = vadd.f32 %v1864, %v2024
        %v2026 = vpop.f32.mrb[0].mxu0
        %2027 = vmatprep.mubr.bf16.mxu0 0
        %2028 = vmatmul.mubr.bf16.gmra.mrb[0].mxu0 %v1561
        %v2029 = vpop.f32.mrb[0].mxu0
        %v2030 = vadd.f32 %v1869, %v2029
        %v2031 = vpop.f32.mrb[0].mxu0
        %v2032 = vpop.f32.mrb[0].mxu0
        %v2033 = vadd.f32 %v1872, %v2032
        %v2034 = vpop.f32.mrb[0].mxu0
        %2035 = vmatprep.mubr.bf16.mxu0 0
        %2036 = vmatmul.mubr.bf16.gmra.mrb[0].mxu0 %v1564
        %v2037 = vpop.f32.mrb[0].mxu0
        %v2038 = vadd.f32 %v1877, %v2037
        %v2039 = vpop.f32.mrb[0].mxu0
        %v2040 = vpop.f32.mrb[0].mxu0
        %v2041 = vadd.f32 %v1880, %v2040
        %v2042 = vpop.f32.mrb[0].mxu0
        %2043 = vmatprep.mubr.bf16.mxu0 0
        %2044 = vmatmul.mubr.bf16.gmra.mrb[0].mxu0 %v1567
        %v2045 = vpop.f32.mrb[0].mxu0
        %v2046 = vadd.f32 %v1885, %v2045
        %v2047 = vpop.f32.mrb[0].mxu0
        %v2048 = vpop.f32.mrb[0].mxu0
        %v2049 = vadd.f32 %v1888, %v2048
        %v2050 = vpop.f32.mrb[0].mxu0
        %2051 = vdwg.mxu0
        %v2052 = vmax.f32 %v1926, 0.0
        %v2053 = vmax.f32 %v1929, 0.0
        %v2054 = vmax.f32 %v1934, 0.0
        %v2055 = vmax.f32 %v1937, 0.0
        %v2056 = vmax.f32 %v1942, 0.0
        %v2057 = vmax.f32 %v1945, 0.0
        %v2058 = vmax.f32 %v1950, 0.0
        %v2059 = vmax.f32 %v1953, 0.0
        %v2060 = vmax.f32 %v1958, 0.0
        %v2061 = vmax.f32 %v1961, 0.0
        %v2062 = vmax.f32 %v1966, 0.0
        %v2063 = vmax.f32 %v1969, 0.0
        %v2064 = vmax.f32 %v1974, 0.0
        %v2065 = vmax.f32 %v1977, 0.0
        %v2066 = vmax.f32 %v1982, 0.0
        %v2067 = vmax.f32 %v1985, 0.0
        %v2068 = vmax.f32 %v1990, 0.0
        %v2069 = vmax.f32 %v1993, 0.0
        %v2070 = vmax.f32 %v1998, 0.0
        %v2071 = vmax.f32 %v2001, 0.0
        %v2072 = vmax.f32 %v2006, 0.0
        %v2073 = vmax.f32 %v2009, 0.0
        %v2074 = vmax.f32 %v2014, 0.0
        %v2075 = vmax.f32 %v2017, 0.0
        %v2076 = vmax.f32 %v2022, 0.0
        %v2077 = vmax.f32 %v2025, 0.0
        %v2078 = vmax.f32 %v2030, 0.0
        %v2079 = vmax.f32 %v2033, 0.0
        %v2080 = vmax.f32 %v2038, 0.0
        %v2081 = vmax.f32 %v2041, 0.0
        %v2082 = vmax.f32 %v2046, 0.0
        %v2083 = vmax.f32 %v2049, 0.0
        %v2084 = vld [vmem:[%s222] sm:$0xff]
        %v2085 = vld [vmem:[%s222 + $0x8] sm:$0xff]
        %v2086 = vld [vmem:[%s222 + $0x10] sm:$0xff]
        %v2087 = vld [vmem:[%s222 + $0x18] sm:$0xff]
        %v2088 = vld [vmem:[%s222 + $0x20] sm:$0xff]
        %v2089 = vld [vmem:[%s222 + $0x28] sm:$0xff]
        %v2090 = vld [vmem:[%s222 + $0x30] sm:$0xff]
        %v2091 = vld [vmem:[%s222 + $0x38] sm:$0xff]
        %v2092 = vld [vmem:[%s222 + $0x40] sm:$0xff]
        %v2093 = vld [vmem:[%s222 + $0x48] sm:$0xff]
        %v2094 = vld [vmem:[%s222 + $0x50] sm:$0xff]
        %v2095 = vld [vmem:[%s222 + $0x58] sm:$0xff]
        %v2096 = vld [vmem:[%s222 + $0x60] sm:$0xff]
        %v2097 = vld [vmem:[%s222 + $0x68] sm:$0xff]
        %v2098 = vld [vmem:[%s222 + $0x70] sm:$0xff]
        %v2099 = vld [vmem:[%s222 + $0x78] sm:$0xff]
        %v2100 = vld [vmem:[%s222 + $0x80] sm:$0xff]
        %v2101 = vld [vmem:[%s222 + $0x88] sm:$0xff]
        %v2102 = vld [vmem:[%s222 + $0x90] sm:$0xff]
        %v2103 = vld [vmem:[%s222 + $0x98] sm:$0xff]
        %v2104 = vld [vmem:[%s222 + $0xa0] sm:$0xff]
        %v2105 = vld [vmem:[%s222 + $0xa8] sm:$0xff]
        %v2106 = vld [vmem:[%s222 + $0xb0] sm:$0xff]
        %v2107 = vld [vmem:[%s222 + $0xb8] sm:$0xff]
        %v2108 = vld [vmem:[%s222 + $0xc0] sm:$0xff]
        %v2109 = vld [vmem:[%s222 + $0xc8] sm:$0xff]
        %v2110 = vld [vmem:[%s222 + $0xd0] sm:$0xff]
        %v2111 = vld [vmem:[%s222 + $0xd8] sm:$0xff]
        %v2112 = vld [vmem:[%s222 + $0xe0] sm:$0xff]
        %v2113 = vld [vmem:[%s222 + $0xe8] sm:$0xff]
        %v2114 = vld [vmem:[%s222 + $0xf0] sm:$0xff]
        %v2115 = vld [vmem:[%s222 + $0xf8] sm:$0xff]
        %2116 = vst.msk [vmem:[#allocation3] sm:$0xff] %vm224, 0.0
        %2117 = vst.msk [vmem:[#allocation3 + $0x8] sm:$0xff] %vm224, 0.0
        %2118 = vst.msk [vmem:[#allocation3 + $0x10] sm:$0x3] %vm227, 0.0
        %2119 = vst.msk [vmem:[#allocation3 + $0x18] sm:$0xff] %vm224, 0.0
        %2120 = vst.msk [vmem:[#allocation3 + $0x20] sm:$0xff] %vm224, 0.0
        %2121 = vst.msk [vmem:[#allocation3 + $0x28] sm:$0x3] %vm227, 0.0
        %2122 = vst.msk [vmem:[#allocation3 + $0x30] sm:$0xff] %vm224, 0.0
        %2123 = vst.msk [vmem:[#allocation3 + $0x38] sm:$0xff] %vm224, 0.0
        %2124 = vst.msk [vmem:[#allocation3 + $0x40] sm:$0x3] %vm227, 0.0
        %2125 = vst.msk [vmem:[#allocation3 + $0x48] sm:$0xff] %vm224, 0.0
        %2126 = vst.msk [vmem:[#allocation3 + $0x50] sm:$0xff] %vm224, 0.0
        %2127 = vst.msk [vmem:[#allocation3 + $0x58] sm:$0x3] %vm227, 0.0
        %2128 = vst.msk [vmem:[#allocation3 + $0x60] sm:$0xff] %vm224, 0.0
        %2129 = vst.msk [vmem:[#allocation3 + $0x68] sm:$0xff] %vm224, 0.0
        %2130 = vst.msk [vmem:[#allocation3 + $0x70] sm:$0x3] %vm227, 0.0
        %2131 = vst.msk [vmem:[#allocation3 + $0x78] sm:$0xff] %vm224, 0.0
        %2132 = vst.msk [vmem:[#allocation3 + $0x80] sm:$0xff] %vm224, 0.0
        %2133 = vst.msk [vmem:[#allocation3 + $0x88] sm:$0x3] %vm227, 0.0
        %2134 = vst.msk [vmem:[#allocation3 + $0x90] sm:$0xff] %vm224, 0.0
        %2135 = vst.msk [vmem:[#allocation3 + $0x98] sm:$0xff] %vm224, 0.0
        %2136 = vst.msk [vmem:[#allocation3 + $0xa0] sm:$0x3] %vm227, 0.0
        %2137 = vst.msk [vmem:[#allocation3 + $0xa8] sm:$0xff] %vm224, 0.0
        %2138 = vst.msk [vmem:[#allocation3 + $0xb0] sm:$0xff] %vm224, 0.0
        %2139 = vst.msk [vmem:[#allocation3 + $0xb8] sm:$0x3] %vm227, 0.0
        %2140 = vst.msk [vmem:[#allocation3 + $0xc0] sm:$0xff] %vm224, 0.0
        %2141 = vst.msk [vmem:[#allocation3 + $0xc8] sm:$0xff] %vm224, 0.0
        %2142 = vst.msk [vmem:[#allocation3 + $0xd0] sm:$0x3] %vm227, 0.0
        %2143 = vst.msk [vmem:[#allocation3 + $0xd8] sm:$0xff] %vm224, 0.0
        %2144 = vst.msk [vmem:[#allocation3 + $0xe0] sm:$0xff] %vm224, 0.0
        %2145 = vst.msk [vmem:[#allocation3 + $0xe8] sm:$0x3] %vm227, 0.0
        %2146 = vst.msk [vmem:[#allocation3 + $0xf0] sm:$0xff] %vm224, 0.0
        %2147 = vst.msk [vmem:[#allocation3 + $0xf8] sm:$0xff] %vm224, 0.0
        %2148 = vst.msk [vmem:[#allocation3 + $0x100] sm:$0x3] %vm227, 0.0
        %2149 = vst.msk [vmem:[#allocation3 + $0x108] sm:$0xff] %vm224, 0.0
        %2150 = vst.msk [vmem:[#allocation3 + $0x110] sm:$0xff] %vm224, 0.0
        %2151 = vst.msk [vmem:[#allocation3 + $0x118] sm:$0x3] %vm227, 0.0
        %2152 = vst.msk [vmem:[#allocation3 + $0x120] sm:$0xff] %vm224, 0.0
        %2153 = vst.msk [vmem:[#allocation3 + $0x128] sm:$0xff] %vm224, 0.0
        %2154 = vst.msk [vmem:[#allocation3 + $0x130] sm:$0x3] %vm227, 0.0
        %2155 = vst.msk [vmem:[#allocation3 + $0x138] sm:$0xff] %vm224, 0.0
        %2156 = vst.msk [vmem:[#allocation3 + $0x140] sm:$0xff] %vm224, 0.0
        %2157 = vst.msk [vmem:[#allocation3 + $0x148] sm:$0x3] %vm227, 0.0
        %2158 = vst.msk [vmem:[#allocation3 + $0x150] sm:$0xff] %vm224, 0.0
        %2159 = vst.msk [vmem:[#allocation3 + $0x158] sm:$0xff] %vm224, 0.0
        %2160 = vst.msk [vmem:[#allocation3 + $0x160] sm:$0x3] %vm227, 0.0
        %2161 = vst.msk [vmem:[#allocation3 + $0x168] sm:$0xff] %vm224, 0.0
        %2162 = vst.msk [vmem:[#allocation3 + $0x170] sm:$0xff] %vm224, 0.0
        %2163 = vst.msk [vmem:[#allocation3 + $0x178] sm:$0x3] %vm227, 0.0
        %2164 = vst.msk [vmem:[#allocation3 + $0x180] sm:$0xff] %vm224, 0.0
        %2165 = vst.msk [vmem:[#allocation3 + $0x188] sm:$0xff] %vm224, 0.0
        %2166 = vst.msk [vmem:[#allocation3 + $0x190] sm:$0x3] %vm227, 0.0
        %2167 = vst.msk [vmem:[#allocation3 + $0x198] sm:$0xff] %vm224, 0.0
        %2168 = vst.msk [vmem:[#allocation3 + $0x1a0] sm:$0xff] %vm224, 0.0
        %2169 = vst.msk [vmem:[#allocation3 + $0x1a8] sm:$0x3] %vm227, 0.0
        %s2170 = scalar_lea.vmem [#allocation3], 24
        %2171 = vst.msk [vmem:[%s2170 + $0x1] sm:$0xff] %vm224, %v2052
        %2172 = vst.msk [vmem:[%s2170 + $0x9] sm:$0xff] %vm224, %v2053
        %2173 = vst.msk [vmem:[%s2170 + $0x19] sm:$0xff] %vm224, %v2054
        %2174 = vst.msk [vmem:[%s2170 + $0x21] sm:$0xff] %vm224, %v2055
        %2175 = vst.msk [vmem:[%s2170 + $0x31] sm:$0xff] %vm224, %v2056
        %2176 = vst.msk [vmem:[%s2170 + $0x39] sm:$0xff] %vm224, %v2057
        %2177 = vst.msk [vmem:[%s2170 + $0x49] sm:$0xff] %vm224, %v2058
        %2178 = vst.msk [vmem:[%s2170 + $0x51] sm:$0xff] %vm224, %v2059
        %2179 = vst.msk [vmem:[%s2170 + $0x61] sm:$0xff] %vm224, %v2060
        %2180 = vst.msk [vmem:[%s2170 + $0x69] sm:$0xff] %vm224, %v2061
        %2181 = vst.msk [vmem:[%s2170 + $0x79] sm:$0xff] %vm224, %v2062
        %2182 = vst.msk [vmem:[%s2170 + $0x81] sm:$0xff] %vm224, %v2063
        %2183 = vst.msk [vmem:[%s2170 + $0x91] sm:$0xff] %vm224, %v2064
        %2184 = vst.msk [vmem:[%s2170 + $0x99] sm:$0xff] %vm224, %v2065
        %2185 = vst.msk [vmem:[%s2170 + $0xa9] sm:$0xff] %vm224, %v2066
        %2186 = vst.msk [vmem:[%s2170 + $0xb1] sm:$0xff] %vm224, %v2067
        %2187 = vst.msk [vmem:[%s2170 + $0xc1] sm:$0xff] %vm224, %v2068
        %2188 = vst.msk [vmem:[%s2170 + $0xc9] sm:$0xff] %vm224, %v2069
        %2189 = vst.msk [vmem:[%s2170 + $0xd9] sm:$0xff] %vm224, %v2070
        %2190 = vst.msk [vmem:[%s2170 + $0xe1] sm:$0xff] %vm224, %v2071
        %2191 = vst.msk [vmem:[%s2170 + $0xf1] sm:$0xff] %vm224, %v2072
        %2192 = vst.msk [vmem:[%s2170 + $0xf9] sm:$0xff] %vm224, %v2073
        %2193 = vst.msk [vmem:[%s2170 + $0x109] sm:$0xff] %vm224, %v2074
        %2194 = vst.msk [vmem:[%s2170 + $0x111] sm:$0xff] %vm224, %v2075
        %2195 = vst.msk [vmem:[%s2170 + $0x121] sm:$0xff] %vm224, %v2076
        %2196 = vst.msk [vmem:[%s2170 + $0x129] sm:$0xff] %vm224, %v2077
        %2197 = vst.msk [vmem:[%s2170 + $0x139] sm:$0xff] %vm224, %v2078
        %2198 = vst.msk [vmem:[%s2170 + $0x141] sm:$0xff] %vm224, %v2079
        %2199 = vst.msk [vmem:[%s2170 + $0x151] sm:$0xff] %vm224, %v2080
        %2200 = vst.msk [vmem:[%s2170 + $0x159] sm:$0xff] %vm224, %v2081
        %2201 = vst.msk [vmem:[%s2170 + $0x169] sm:$0xff] %vm224, %v2082
        %2202 = vst.msk [vmem:[%s2170 + $0x171] sm:$0xff] %vm224, %v2083
        %v2203 = vld [vmem:[#allocation3] sm:$0xff]
        %v2204 = vld [vmem:[#allocation3 + $0x8] sm:$0xff]
        %v2205 = vld [vmem:[#allocation3 + $0x18] sm:$0xff]
        %v2206 = vld [vmem:[#allocation3 + $0x20] sm:$0xff]
        %v2207 = vld [vmem:[#allocation3 + $0x30] sm:$0xff]
        %v2208 = vld [vmem:[#allocation3 + $0x38] sm:$0xff]
        %v2209 = vld [vmem:[#allocation3 + $0x48] sm:$0xff]
        %v2210 = vld [vmem:[#allocation3 + $0x50] sm:$0xff]
        %v2211 = vld [vmem:[#allocation3 + $0x60] sm:$0xff]
        %v2212 = vld [vmem:[#allocation3 + $0x68] sm:$0xff]
        %v2213 = vld [vmem:[#allocation3 + $0x78] sm:$0xff]
        %v2214 = vld [vmem:[#allocation3 + $0x80] sm:$0xff]
        %v2215 = vld [vmem:[#allocation3 + $0x90] sm:$0xff]
        %v2216 = vld [vmem:[#allocation3 + $0x98] sm:$0xff]
        %v2217 = vld [vmem:[#allocation3 + $0xa8] sm:$0xff]
        %v2218 = vld [vmem:[#allocation3 + $0xb0] sm:$0xff]
        %v2219 = vld [vmem:[#allocation3 + $0xc0] sm:$0xff]
        %v2220 = vld [vmem:[#allocation3 + $0xc8] sm:$0xff]
        %v2221 = vld [vmem:[#allocation3 + $0xd8] sm:$0xff]
        %v2222 = vld [vmem:[#allocation3 + $0xe0] sm:$0xff]
        %v2223 = vld [vmem:[#allocation3 + $0xf0] sm:$0xff]
        %v2224 = vld [vmem:[#allocation3 + $0xf8] sm:$0xff]
        %v2225 = vld [vmem:[#allocation3 + $0x108] sm:$0xff]
        %v2226 = vld [vmem:[#allocation3 + $0x110] sm:$0xff]
        %v2227 = vld [vmem:[#allocation3 + $0x120] sm:$0xff]
        %v2228 = vld [vmem:[#allocation3 + $0x128] sm:$0xff]
        %v2229 = vld [vmem:[#allocation3 + $0x138] sm:$0xff]
        %v2230 = vld [vmem:[#allocation3 + $0x140] sm:$0xff]
        %v2231 = vld [vmem:[#allocation3 + $0x150] sm:$0xff]
        %v2232 = vld [vmem:[#allocation3 + $0x158] sm:$0xff]
        %v2233 = vld [vmem:[#allocation3 + $0x168] sm:$0xff]
        %v2234 = vld [vmem:[#allocation3 + $0x170] sm:$0xff]
        %v2235 = vpack.c.bf16 %v2204, %v2203
        %v2236 = vpack.c.bf16 %v2206, %v2205
        %v2237 = vpack.c.bf16 %v2208, %v2207
        %v2238 = vpack.c.bf16 %v2210, %v2209
        %v2239 = vpack.c.bf16 %v2212, %v2211
        %v2240 = vpack.c.bf16 %v2214, %v2213
        %v2241 = vpack.c.bf16 %v2216, %v2215
        %v2242 = vpack.c.bf16 %v2218, %v2217
        %v2243 = vpack.c.bf16 %v2220, %v2219
        %v2244 = vpack.c.bf16 %v2222, %v2221
        %v2245 = vpack.c.bf16 %v2224, %v2223
        %v2246 = vpack.c.bf16 %v2226, %v2225
        %v2247 = vpack.c.bf16 %v2228, %v2227
        %v2248 = vpack.c.bf16 %v2230, %v2229
        %v2249 = vpack.c.bf16 %v2232, %v2231
        %v2250 = vpack.c.bf16 %v2234, %v2233
        %v2251 = vld [vmem:[#allocation3 + $0x1] sm:$0xff]
        %v2252 = vld [vmem:[#allocation3 + $0x9] sm:$0xff]
        %v2253 = vld [vmem:[#allocation3 + $0x19] sm:$0xff]
        %v2254 = vld [vmem:[#allocation3 + $0x21] sm:$0xff]
        %v2255 = vld [vmem:[#allocation3 + $0x31] sm:$0xff]
        %v2256 = vld [vmem:[#allocation3 + $0x39] sm:$0xff]
        %v2257 = vld [vmem:[#allocation3 + $0x49] sm:$0xff]
        %v2258 = vld [vmem:[#allocation3 + $0x51] sm:$0xff]
        %v2259 = vld [vmem:[#allocation3 + $0x61] sm:$0xff]
        %v2260 = vld [vmem:[#allocation3 + $0x69] sm:$0xff]
        %v2261 = vld [vmem:[#allocation3 + $0x79] sm:$0xff]
        %v2262 = vld [vmem:[#allocation3 + $0x81] sm:$0xff]
        %v2263 = vld [vmem:[#allocation3 + $0x91] sm:$0xff]
        %v2264 = vld [vmem:[#allocation3 + $0x99] sm:$0xff]
        %v2265 = vld [vmem:[#allocation3 + $0xa9] sm:$0xff]
        %v2266 = vld [vmem:[#allocation3 + $0xb1] sm:$0xff]
        %v2267 = vld [vmem:[#allocation3 + $0xc1] sm:$0xff]
        %v2268 = vld [vmem:[#allocation3 + $0xc9] sm:$0xff]
        %v2269 = vld [vmem:[#allocation3 + $0xd9] sm:$0xff]
        %v2270 = vld [vmem:[#allocation3 + $0xe1] sm:$0xff]
        %v2271 = vld [vmem:[#allocation3 + $0xf1] sm:$0xff]
        %v2272 = vld [vmem:[#allocation3 + $0xf9] sm:$0xff]
        %v2273 = vld [vmem:[#allocation3 + $0x109] sm:$0xff]
        %v2274 = vld [vmem:[#allocation3 + $0x111] sm:$0xff]
        %v2275 = vld [vmem:[#allocation3 + $0x121] sm:$0xff]
        %v2276 = vld [vmem:[#allocation3 + $0x129] sm:$0xff]
        %v2277 = vld [vmem:[#allocation3 + $0x139] sm:$0xff]
        %v2278 = vld [vmem:[#allocation3 + $0x141] sm:$0xff]
        %v2279 = vld [vmem:[#allocation3 + $0x151] sm:$0xff]
        %v2280 = vld [vmem:[#allocation3 + $0x159] sm:$0xff]
        %v2281 = vld [vmem:[#allocation3 + $0x169] sm:$0xff]
        %v2282 = vld [vmem:[#allocation3 + $0x171] sm:$0xff]
        %v2283 = vpack.c.bf16 %v2252, %v2251
        %v2284 = vpack.c.bf16 %v2254, %v2253
        %v2285 = vpack.c.bf16 %v2256, %v2255
        %v2286 = vpack.c.bf16 %v2258, %v2257
        %v2287 = vpack.c.bf16 %v2260, %v2259
        %v2288 = vpack.c.bf16 %v2262, %v2261
        %v2289 = vpack.c.bf16 %v2264, %v2263
        %v2290 = vpack.c.bf16 %v2266, %v2265
        %v2291 = vpack.c.bf16 %v2268, %v2267
        %v2292 = vpack.c.bf16 %v2270, %v2269
        %v2293 = vpack.c.bf16 %v2272, %v2271
        %v2294 = vpack.c.bf16 %v2274, %v2273
        %v2295 = vpack.c.bf16 %v2276, %v2275
        %v2296 = vpack.c.bf16 %v2278, %v2277
        %v2297 = vpack.c.bf16 %v2280, %v2279
        %v2298 = vpack.c.bf16 %v2282, %v2281
        %v2299 = vld [vmem:[#allocation3 + $0x2] sm:$0xff]
        %v2300 = vld [vmem:[#allocation3 + $0xa] sm:$0xff]
        %v2301 = vld [vmem:[#allocation3 + $0x1a] sm:$0xff]
        %v2302 = vld [vmem:[#allocation3 + $0x22] sm:$0xff]
        %v2303 = vld [vmem:[#allocation3 + $0x32] sm:$0xff]
        %v2304 = vld [vmem:[#allocation3 + $0x3a] sm:$0xff]
        %v2305 = vld [vmem:[#allocation3 + $0x4a] sm:$0xff]
        %v2306 = vld [vmem:[#allocation3 + $0x52] sm:$0xff]
        %v2307 = vld [vmem:[#allocation3 + $0x62] sm:$0xff]
        %v2308 = vld [vmem:[#allocation3 + $0x6a] sm:$0xff]
        %v2309 = vld [vmem:[#allocation3 + $0x7a] sm:$0xff]
        %v2310 = vld [vmem:[#allocation3 + $0x82] sm:$0xff]
        %v2311 = vld [vmem:[#allocation3 + $0x92] sm:$0xff]
        %v2312 = vld [vmem:[#allocation3 + $0x9a] sm:$0xff]
        %v2313 = vld [vmem:[#allocation3 + $0xaa] sm:$0xff]
        %v2314 = vld [vmem:[#allocation3 + $0xb2] sm:$0xff]
        %v2315 = vld [vmem:[#allocation3 + $0xc2] sm:$0xff]
        %v2316 = vld [vmem:[#allocation3 + $0xca] sm:$0xff]
        %v2317 = vld [vmem:[#allocation3 + $0xda] sm:$0xff]
        %v2318 = vld [vmem:[#allocation3 + $0xe2] sm:$0xff]
        %v2319 = vld [vmem:[#allocation3 + $0xf2] sm:$0xff]
        %v2320 = vld [vmem:[#allocation3 + $0xfa] sm:$0xff]
        %v2321 = vld [vmem:[#allocation3 + $0x10a] sm:$0xff]
        %v2322 = vld [vmem:[#allocation3 + $0x112] sm:$0xff]
        %v2323 = vld [vmem:[#allocation3 + $0x122] sm:$0xff]
        %v2324 = vld [vmem:[#allocation3 + $0x12a] sm:$0xff]
        %v2325 = vld [vmem:[#allocation3 + $0x13a] sm:$0xff]
        %v2326 = vld [vmem:[#allocation3 + $0x142] sm:$0xff]
        %v2327 = vld [vmem:[#allocation3 + $0x152] sm:$0xff]
        %v2328 = vld [vmem:[#allocation3 + $0x15a] sm:$0xff]
        %v2329 = vld [vmem:[#allocation3 + $0x16a] sm:$0xff]
        %v2330 = vld [vmem:[#allocation3 + $0x172] sm:$0xff]
        %v2331 = vpack.c.bf16 %v2300, %v2299
        %v2332 = vpack.c.bf16 %v2302, %v2301
        %v2333 = vpack.c.bf16 %v2304, %v2303
        %v2334 = vpack.c.bf16 %v2306, %v2305
        %v2335 = vpack.c.bf16 %v2308, %v2307
        %v2336 = vpack.c.bf16 %v2310, %v2309
        %v2337 = vpack.c.bf16 %v2312, %v2311
        %v2338 = vpack.c.bf16 %v2314, %v2313
        %v2339 = vpack.c.bf16 %v2316, %v2315
        %v2340 = vpack.c.bf16 %v2318, %v2317
        %v2341 = vpack.c.bf16 %v2320, %v2319
        %v2342 = vpack.c.bf16 %v2322, %v2321
        %v2343 = vpack.c.bf16 %v2324, %v2323
        %v2344 = vpack.c.bf16 %v2326, %v2325
        %v2345 = vpack.c.bf16 %v2328, %v2327
        %v2346 = vpack.c.bf16 %v2330, %v2329
        %v2347 = vld [vmem:[%s2170] sm:$0xff]
        %v2348 = vld [vmem:[%s2170 + $0x8] sm:$0xff]
        %v2349 = vld [vmem:[%s2170 + $0x18] sm:$0xff]
        %v2350 = vld [vmem:[%s2170 + $0x20] sm:$0xff]
        %v2351 = vld [vmem:[%s2170 + $0x30] sm:$0xff]
        %v2352 = vld [vmem:[%s2170 + $0x38] sm:$0xff]
        %v2353 = vld [vmem:[%s2170 + $0x48] sm:$0xff]
        %v2354 = vld [vmem:[%s2170 + $0x50] sm:$0xff]
        %v2355 = vld [vmem:[%s2170 + $0x60] sm:$0xff]
        %v2356 = vld [vmem:[%s2170 + $0x68] sm:$0xff]
        %v2357 = vld [vmem:[%s2170 + $0x78] sm:$0xff]
        %v2358 = vld [vmem:[%s2170 + $0x80] sm:$0xff]
        %v2359 = vld [vmem:[%s2170 + $0x90] sm:$0xff]
        %v2360 = vld [vmem:[%s2170 + $0x98] sm:$0xff]
        %v2361 = vld [vmem:[%s2170 + $0xa8] sm:$0xff]
        %v2362 = vld [vmem:[%s2170 + $0xb0] sm:$0xff]
        %v2363 = vld [vmem:[%s2170 + $0xc0] sm:$0xff]
        %v2364 = vld [vmem:[%s2170 + $0xc8] sm:$0xff]
        %v2365 = vld [vmem:[%s2170 + $0xd8] sm:$0xff]
        %v2366 = vld [vmem:[%s2170 + $0xe0] sm:$0xff]
        %v2367 = vld [vmem:[%s2170 + $0xf0] sm:$0xff]
        %v2368 = vld [vmem:[%s2170 + $0xf8] sm:$0xff]
        %v2369 = vld [vmem:[%s2170 + $0x108] sm:$0xff]
        %v2370 = vld [vmem:[%s2170 + $0x110] sm:$0xff]
        %v2371 = vld [vmem:[%s2170 + $0x120] sm:$0xff]
        %v2372 = vld [vmem:[%s2170 + $0x128] sm:$0xff]
        %v2373 = vld [vmem:[%s2170 + $0x138] sm:$0xff]
        %v2374 = vld [vmem:[%s2170 + $0x140] sm:$0xff]
        %v2375 = vld [vmem:[%s2170 + $0x150] sm:$0xff]
        %v2376 = vld [vmem:[%s2170 + $0x158] sm:$0xff]
        %v2377 = vld [vmem:[%s2170 + $0x168] sm:$0xff]
        %v2378 = vld [vmem:[%s2170 + $0x170] sm:$0xff]
        %v2379 = vpack.c.bf16 %v2348, %v2347
        %v2380 = vpack.c.bf16 %v2350, %v2349
        %v2381 = vpack.c.bf16 %v2352, %v2351
        %v2382 = vpack.c.bf16 %v2354, %v2353
        %v2383 = vpack.c.bf16 %v2356, %v2355
        %v2384 = vpack.c.bf16 %v2358, %v2357
        %v2385 = vpack.c.bf16 %v2360, %v2359
        %v2386 = vpack.c.bf16 %v2362, %v2361
        %v2387 = vpack.c.bf16 %v2364, %v2363
        %v2388 = vpack.c.bf16 %v2366, %v2365
        %v2389 = vpack.c.bf16 %v2368, %v2367
        %v2390 = vpack.c.bf16 %v2370, %v2369
        %v2391 = vpack.c.bf16 %v2372, %v2371
        %v2392 = vpack.c.bf16 %v2374, %v2373
        %v2393 = vpack.c.bf16 %v2376, %v2375
        %v2394 = vpack.c.bf16 %v2378, %v2377
        %v2395 = vld [vmem:[%s2170 + $0x1] sm:$0xff]
        %v2396 = vld [vmem:[%s2170 + $0x9] sm:$0xff]
        %v2397 = vld [vmem:[%s2170 + $0x19] sm:$0xff]
        %v2398 = vld [vmem:[%s2170 + $0x21] sm:$0xff]
        %v2399 = vld [vmem:[%s2170 + $0x31] sm:$0xff]
        %v2400 = vld [vmem:[%s2170 + $0x39] sm:$0xff]
        %v2401 = vld [vmem:[%s2170 + $0x49] sm:$0xff]
        %v2402 = vld [vmem:[%s2170 + $0x51] sm:$0xff]
        %v2403 = vld [vmem:[%s2170 + $0x61] sm:$0xff]
        %v2404 = vld [vmem:[%s2170 + $0x69] sm:$0xff]
        %v2405 = vld [vmem:[%s2170 + $0x79] sm:$0xff]
        %v2406 = vld [vmem:[%s2170 + $0x81] sm:$0xff]
        %v2407 = vld [vmem:[%s2170 + $0x91] sm:$0xff]
        %v2408 = vld [vmem:[%s2170 + $0x99] sm:$0xff]
        %v2409 = vld [vmem:[%s2170 + $0xa9] sm:$0xff]
        %v2410 = vld [vmem:[%s2170 + $0xb1] sm:$0xff]
        %v2411 = vld [vmem:[%s2170 + $0xc1] sm:$0xff]
        %v2412 = vld [vmem:[%s2170 + $0xc9] sm:$0xff]
        %v2413 = vld [vmem:[%s2170 + $0xd9] sm:$0xff]
        %v2414 = vld [vmem:[%s2170 + $0xe1] sm:$0xff]
        %v2415 = vld [vmem:[%s2170 + $0xf1] sm:$0xff]
        %v2416 = vld [vmem:[%s2170 + $0xf9] sm:$0xff]
        %v2417 = vld [vmem:[%s2170 + $0x109] sm:$0xff]
        %v2418 = vld [vmem:[%s2170 + $0x111] sm:$0xff]
        %v2419 = vld [vmem:[%s2170 + $0x121] sm:$0xff]
        %v2420 = vld [vmem:[%s2170 + $0x129] sm:$0xff]
        %v2421 = vld [vmem:[%s2170 + $0x139] sm:$0xff]
        %v2422 = vld [vmem:[%s2170 + $0x141] sm:$0xff]
        %v2423 = vld [vmem:[%s2170 + $0x151] sm:$0xff]
        %v2424 = vld [vmem:[%s2170 + $0x159] sm:$0xff]
        %v2425 = vld [vmem:[%s2170 + $0x169] sm:$0xff]
        %v2426 = vld [vmem:[%s2170 + $0x171] sm:$0xff]
        %v2427 = vpack.c.bf16 %v2396, %v2395
        %v2428 = vpack.c.bf16 %v2398, %v2397
        %v2429 = vpack.c.bf16 %v2400, %v2399
        %v2430 = vpack.c.bf16 %v2402, %v2401
        %v2431 = vpack.c.bf16 %v2404, %v2403
        %v2432 = vpack.c.bf16 %v2406, %v2405
        %v2433 = vpack.c.bf16 %v2408, %v2407
        %v2434 = vpack.c.bf16 %v2410, %v2409
        %v2435 = vpack.c.bf16 %v2412, %v2411
        %v2436 = vpack.c.bf16 %v2414, %v2413
        %v2437 = vpack.c.bf16 %v2416, %v2415
        %v2438 = vpack.c.bf16 %v2418, %v2417
        %v2439 = vpack.c.bf16 %v2420, %v2419
        %v2440 = vpack.c.bf16 %v2422, %v2421
        %v2441 = vpack.c.bf16 %v2424, %v2423
        %v2442 = vpack.c.bf16 %v2426, %v2425
        %v2443 = vld [vmem:[%s2170 + $0x2] sm:$0xff]
        %v2444 = vld [vmem:[%s2170 + $0xa] sm:$0xff]
        %v2445 = vld [vmem:[%s2170 + $0x1a] sm:$0xff]
        %v2446 = vld [vmem:[%s2170 + $0x22] sm:$0xff]
        %v2447 = vld [vmem:[%s2170 + $0x32] sm:$0xff]
        %v2448 = vld [vmem:[%s2170 + $0x3a] sm:$0xff]
        %v2449 = vld [vmem:[%s2170 + $0x4a] sm:$0xff]
        %v2450 = vld [vmem:[%s2170 + $0x52] sm:$0xff]
        %v2451 = vld [vmem:[%s2170 + $0x62] sm:$0xff]
        %v2452 = vld [vmem:[%s2170 + $0x6a] sm:$0xff]
        %v2453 = vld [vmem:[%s2170 + $0x7a] sm:$0xff]
        %v2454 = vld [vmem:[%s2170 + $0x82] sm:$0xff]
        %v2455 = vld [vmem:[%s2170 + $0x92] sm:$0xff]
        %v2456 = vld [vmem:[%s2170 + $0x9a] sm:$0xff]
        %v2457 = vld [vmem:[%s2170 + $0xaa] sm:$0xff]
        %v2458 = vld [vmem:[%s2170 + $0xb2] sm:$0xff]
        %v2459 = vld [vmem:[%s2170 + $0xc2] sm:$0xff]
        %v2460 = vld [vmem:[%s2170 + $0xca] sm:$0xff]
        %v2461 = vld [vmem:[%s2170 + $0xda] sm:$0xff]
        %v2462 = vld [vmem:[%s2170 + $0xe2] sm:$0xff]
        %v2463 = vld [vmem:[%s2170 + $0xf2] sm:$0xff]
        %v2464 = vld [vmem:[%s2170 + $0xfa] sm:$0xff]
        %v2465 = vld [vmem:[%s2170 + $0x10a] sm:$0xff]
        %v2466 = vld [vmem:[%s2170 + $0x112] sm:$0xff]
        %v2467 = vld [vmem:[%s2170 + $0x122] sm:$0xff]
        %v2468 = vld [vmem:[%s2170 + $0x12a] sm:$0xff]
        %v2469 = vld [vmem:[%s2170 + $0x13a] sm:$0xff]
        %v2470 = vld [vmem:[%s2170 + $0x142] sm:$0xff]
        %v2471 = vld [vmem:[%s2170 + $0x152] sm:$0xff]
        %v2472 = vld [vmem:[%s2170 + $0x15a] sm:$0xff]
        %v2473 = vld [vmem:[%s2170 + $0x16a] sm:$0xff]
        %v2474 = vld [vmem:[%s2170 + $0x172] sm:$0xff]
        %v2475 = vpack.c.bf16 %v2444, %v2443
        %v2476 = vpack.c.bf16 %v2446, %v2445
        %v2477 = vpack.c.bf16 %v2448, %v2447
        %v2478 = vpack.c.bf16 %v2450, %v2449
        %v2479 = vpack.c.bf16 %v2452, %v2451
        %v2480 = vpack.c.bf16 %v2454, %v2453
        %v2481 = vpack.c.bf16 %v2456, %v2455
        %v2482 = vpack.c.bf16 %v2458, %v2457
        %v2483 = vpack.c.bf16 %v2460, %v2459
        %v2484 = vpack.c.bf16 %v2462, %v2461
        %v2485 = vpack.c.bf16 %v2464, %v2463
        %v2486 = vpack.c.bf16 %v2466, %v2465
        %v2487 = vpack.c.bf16 %v2468, %v2467
        %v2488 = vpack.c.bf16 %v2470, %v2469
        %v2489 = vpack.c.bf16 %v2472, %v2471
        %v2490 = vpack.c.bf16 %v2474, %v2473
        %s2491 = scalar_lea.vmem [#allocation3], 48
        %v2492 = vld [vmem:[%s2491] sm:$0xff]
        %v2493 = vld [vmem:[%s2491 + $0x8] sm:$0xff]
        %v2494 = vld [vmem:[%s2491 + $0x18] sm:$0xff]
        %v2495 = vld [vmem:[%s2491 + $0x20] sm:$0xff]
        %v2496 = vld [vmem:[%s2491 + $0x30] sm:$0xff]
        %v2497 = vld [vmem:[%s2491 + $0x38] sm:$0xff]
        %v2498 = vld [vmem:[%s2491 + $0x48] sm:$0xff]
        %v2499 = vld [vmem:[%s2491 + $0x50] sm:$0xff]
        %v2500 = vld [vmem:[%s2491 + $0x60] sm:$0xff]
        %v2501 = vld [vmem:[%s2491 + $0x68] sm:$0xff]
        %v2502 = vld [vmem:[%s2491 + $0x78] sm:$0xff]
        %v2503 = vld [vmem:[%s2491 + $0x80] sm:$0xff]
        %v2504 = vld [vmem:[%s2491 + $0x90] sm:$0xff]
        %v2505 = vld [vmem:[%s2491 + $0x98] sm:$0xff]
        %v2506 = vld [vmem:[%s2491 + $0xa8] sm:$0xff]
        %v2507 = vld [vmem:[%s2491 + $0xb0] sm:$0xff]
        %v2508 = vld [vmem:[%s2491 + $0xc0] sm:$0xff]
        %v2509 = vld [vmem:[%s2491 + $0xc8] sm:$0xff]
        %v2510 = vld [vmem:[%s2491 + $0xd8] sm:$0xff]
        %v2511 = vld [vmem:[%s2491 + $0xe0] sm:$0xff]
        %v2512 = vld [vmem:[%s2491 + $0xf0] sm:$0xff]
        %v2513 = vld [vmem:[%s2491 + $0xf8] sm:$0xff]
        %v2514 = vld [vmem:[%s2491 + $0x108] sm:$0xff]
        %v2515 = vld [vmem:[%s2491 + $0x110] sm:$0xff]
        %v2516 = vld [vmem:[%s2491 + $0x120] sm:$0xff]
        %v2517 = vld [vmem:[%s2491 + $0x128] sm:$0xff]
        %v2518 = vld [vmem:[%s2491 + $0x138] sm:$0xff]
        %v2519 = vld [vmem:[%s2491 + $0x140] sm:$0xff]
        %v2520 = vld [vmem:[%s2491 + $0x150] sm:$0xff]
        %v2521 = vld [vmem:[%s2491 + $0x158] sm:$0xff]
        %v2522 = vld [vmem:[%s2491 + $0x168] sm:$0xff]
        %v2523 = vld [vmem:[%s2491 + $0x170] sm:$0xff]
        %v2524 = vpack.c.bf16 %v2493, %v2492
        %v2525 = vpack.c.bf16 %v2495, %v2494
        %v2526 = vpack.c.bf16 %v2497, %v2496
        %v2527 = vpack.c.bf16 %v2499, %v2498
        %v2528 = vpack.c.bf16 %v2501, %v2500
        %v2529 = vpack.c.bf16 %v2503, %v2502
        %v2530 = vpack.c.bf16 %v2505, %v2504
        %v2531 = vpack.c.bf16 %v2507, %v2506
        %v2532 = vpack.c.bf16 %v2509, %v2508
        %v2533 = vpack.c.bf16 %v2511, %v2510
        %v2534 = vpack.c.bf16 %v2513, %v2512
        %v2535 = vpack.c.bf16 %v2515, %v2514
        %v2536 = vpack.c.bf16 %v2517, %v2516
        %v2537 = vpack.c.bf16 %v2519, %v2518
        %v2538 = vpack.c.bf16 %v2521, %v2520
        %v2539 = vpack.c.bf16 %v2523, %v2522
        %v2540 = vld [vmem:[%s2491 + $0x1] sm:$0xff]
        %v2541 = vld [vmem:[%s2491 + $0x9] sm:$0xff]
        %v2542 = vld [vmem:[%s2491 + $0x19] sm:$0xff]
        %v2543 = vld [vmem:[%s2491 + $0x21] sm:$0xff]
        %v2544 = vld [vmem:[%s2491 + $0x31] sm:$0xff]
        %v2545 = vld [vmem:[%s2491 + $0x39] sm:$0xff]
        %v2546 = vld [vmem:[%s2491 + $0x49] sm:$0xff]
        %v2547 = vld [vmem:[%s2491 + $0x51] sm:$0xff]
        %v2548 = vld [vmem:[%s2491 + $0x61] sm:$0xff]
        %v2549 = vld [vmem:[%s2491 + $0x69] sm:$0xff]
        %v2550 = vld [vmem:[%s2491 + $0x79] sm:$0xff]
        %v2551 = vld [vmem:[%s2491 + $0x81] sm:$0xff]
        %v2552 = vld [vmem:[%s2491 + $0x91] sm:$0xff]
        %v2553 = vld [vmem:[%s2491 + $0x99] sm:$0xff]
        %v2554 = vld [vmem:[%s2491 + $0xa9] sm:$0xff]
        %v2555 = vld [vmem:[%s2491 + $0xb1] sm:$0xff]
        %v2556 = vld [vmem:[%s2491 + $0xc1] sm:$0xff]
        %v2557 = vld [vmem:[%s2491 + $0xc9] sm:$0xff]
        %v2558 = vld [vmem:[%s2491 + $0xd9] sm:$0xff]
        %v2559 = vld [vmem:[%s2491 + $0xe1] sm:$0xff]
        %v2560 = vld [vmem:[%s2491 + $0xf1] sm:$0xff]
        %v2561 = vld [vmem:[%s2491 + $0xf9] sm:$0xff]
        %v2562 = vld [vmem:[%s2491 + $0x109] sm:$0xff]
        %v2563 = vld [vmem:[%s2491 + $0x111] sm:$0xff]
        %v2564 = vld [vmem:[%s2491 + $0x121] sm:$0xff]
        %v2565 = vld [vmem:[%s2491 + $0x129] sm:$0xff]
        %v2566 = vld [vmem:[%s2491 + $0x139] sm:$0xff]
        %v2567 = vld [vmem:[%s2491 + $0x141] sm:$0xff]
        %v2568 = vld [vmem:[%s2491 + $0x151] sm:$0xff]
        %v2569 = vld [vmem:[%s2491 + $0x159] sm:$0xff]
        %v2570 = vld [vmem:[%s2491 + $0x169] sm:$0xff]
        %v2571 = vld [vmem:[%s2491 + $0x171] sm:$0xff]
        %v2572 = vpack.c.bf16 %v2541, %v2540
        %v2573 = vpack.c.bf16 %v2543, %v2542
        %v2574 = vpack.c.bf16 %v2545, %v2544
        %v2575 = vpack.c.bf16 %v2547, %v2546
        %v2576 = vpack.c.bf16 %v2549, %v2548
        %v2577 = vpack.c.bf16 %v2551, %v2550
        %v2578 = vpack.c.bf16 %v2553, %v2552
        %v2579 = vpack.c.bf16 %v2555, %v2554
        %v2580 = vpack.c.bf16 %v2557, %v2556
        %v2581 = vpack.c.bf16 %v2559, %v2558
        %v2582 = vpack.c.bf16 %v2561, %v2560
        %v2583 = vpack.c.bf16 %v2563, %v2562
        %v2584 = vpack.c.bf16 %v2565, %v2564
        %v2585 = vpack.c.bf16 %v2567, %v2566
        %v2586 = vpack.c.bf16 %v2569, %v2568
        %v2587 = vpack.c.bf16 %v2571, %v2570
        %v2588 = vld [vmem:[%s2491 + $0x2] sm:$0xff]
        %v2589 = vld [vmem:[%s2491 + $0xa] sm:$0xff]
        %v2590 = vld [vmem:[%s2491 + $0x1a] sm:$0xff]
        %v2591 = vld [vmem:[%s2491 + $0x22] sm:$0xff]
        %v2592 = vld [vmem:[%s2491 + $0x32] sm:$0xff]
        %v2593 = vld [vmem:[%s2491 + $0x3a] sm:$0xff]
        %v2594 = vld [vmem:[%s2491 + $0x4a] sm:$0xff]
        %v2595 = vld [vmem:[%s2491 + $0x52] sm:$0xff]
        %v2596 = vld [vmem:[%s2491 + $0x62] sm:$0xff]
        %v2597 = vld [vmem:[%s2491 + $0x6a] sm:$0xff]
        %v2598 = vld [vmem:[%s2491 + $0x7a] sm:$0xff]
        %v2599 = vld [vmem:[%s2491 + $0x82] sm:$0xff]
        %v2600 = vld [vmem:[%s2491 + $0x92] sm:$0xff]
        %v2601 = vld [vmem:[%s2491 + $0x9a] sm:$0xff]
        %v2602 = vld [vmem:[%s2491 + $0xaa] sm:$0xff]
        %v2603 = vld [vmem:[%s2491 + $0xb2] sm:$0xff]
        %v2604 = vld [vmem:[%s2491 + $0xc2] sm:$0xff]
        %v2605 = vld [vmem:[%s2491 + $0xca] sm:$0xff]
        %v2606 = vld [vmem:[%s2491 + $0xda] sm:$0xff]
        %v2607 = vld [vmem:[%s2491 + $0xe2] sm:$0xff]
        %v2608 = vld [vmem:[%s2491 + $0xf2] sm:$0xff]
        %v2609 = vld [vmem:[%s2491 + $0xfa] sm:$0xff]
        %v2610 = vld [vmem:[%s2491 + $0x10a] sm:$0xff]
        %v2611 = vld [vmem:[%s2491 + $0x112] sm:$0xff]
        %v2612 = vld [vmem:[%s2491 + $0x122] sm:$0xff]
        %v2613 = vld [vmem:[%s2491 + $0x12a] sm:$0xff]
        %v2614 = vld [vmem:[%s2491 + $0x13a] sm:$0xff]
        %v2615 = vld [vmem:[%s2491 + $0x142] sm:$0xff]
        %v2616 = vld [vmem:[%s2491 + $0x152] sm:$0xff]
        %v2617 = vld [vmem:[%s2491 + $0x15a] sm:$0xff]
        %v2618 = vld [vmem:[%s2491 + $0x16a] sm:$0xff]
        %v2619 = vld [vmem:[%s2491 + $0x172] sm:$0xff]
        %v2620 = vpack.c.bf16 %v2589, %v2588
        %v2621 = vpack.c.bf16 %v2591, %v2590
        %v2622 = vpack.c.bf16 %v2593, %v2592
        %v2623 = vpack.c.bf16 %v2595, %v2594
        %v2624 = vpack.c.bf16 %v2597, %v2596
        %v2625 = vpack.c.bf16 %v2599, %v2598
        %v2626 = vpack.c.bf16 %v2601, %v2600
        %v2627 = vpack.c.bf16 %v2603, %v2602
        %v2628 = vpack.c.bf16 %v2605, %v2604
        %v2629 = vpack.c.bf16 %v2607, %v2606
        %v2630 = vpack.c.bf16 %v2609, %v2608
        %v2631 = vpack.c.bf16 %v2611, %v2610
        %v2632 = vpack.c.bf16 %v2613, %v2612
        %v2633 = vpack.c.bf16 %v2615, %v2614
        %v2634 = vpack.c.bf16 %v2617, %v2616
        %v2635 = vpack.c.bf16 %v2619, %v2618
        %2652 = vrot.lane.b32.xlu0 %v2283, 64
        %v2653 = vpop.permute.xlu0 %2652
        %2654 = vrot.lane.b32.xlu0 %v2284, 64
        %v2655 = vpop.permute.xlu0 %2654
        %2656 = vrot.lane.b32.xlu0 %v2285, 64
        %v2657 = vpop.permute.xlu0 %2656
        %2658 = vrot.lane.b32.xlu0 %v2286, 64
        %v2659 = vpop.permute.xlu0 %2658
        %2660 = vrot.lane.b32.xlu0 %v2287, 64
        %v2661 = vpop.permute.xlu0 %2660
        %2662 = vrot.lane.b32.xlu0 %v2288, 64
        %v2663 = vpop.permute.xlu0 %2662
        %2664 = vrot.lane.b32.xlu0 %v2289, 64
        %v2665 = vpop.permute.xlu0 %2664
        %2666 = vrot.lane.b32.xlu0 %v2290, 64
        %v2667 = vpop.permute.xlu0 %2666
        %2668 = vrot.lane.b32.xlu0 %v2291, 64
        %v2669 = vpop.permute.xlu0 %2668
        %2670 = vrot.lane.b32.xlu0 %v2292, 64
        %v2671 = vpop.permute.xlu0 %2670
        %2672 = vrot.lane.b32.xlu0 %v2293, 64
        %v2673 = vpop.permute.xlu0 %2672
        %2674 = vrot.lane.b32.xlu0 %v2294, 64
        %v2675 = vpop.permute.xlu0 %2674
        %2676 = vrot.lane.b32.xlu0 %v2295, 64
        %v2677 = vpop.permute.xlu0 %2676
        %2678 = vrot.lane.b32.xlu0 %v2296, 64
        %v2679 = vpop.permute.xlu0 %2678
        %2680 = vrot.lane.b32.xlu0 %v2297, 64
        %v2681 = vpop.permute.xlu0 %2680
        %2682 = vrot.lane.b32.xlu0 %v2298, 64
        %v2683 = vpop.permute.xlu0 %2682
        %2700 = vrot.lane.b32.xlu0 %v2379, 64
        %v2701 = vpop.permute.xlu0 %2700
        %2702 = vrot.lane.b32.xlu0 %v2380, 64
        %v2703 = vpop.permute.xlu0 %2702
        %2704 = vrot.lane.b32.xlu0 %v2381, 64
        %v2705 = vpop.permute.xlu0 %2704
        %2706 = vrot.lane.b32.xlu0 %v2382, 64
        %v2707 = vpop.permute.xlu0 %2706
        %2708 = vrot.lane.b32.xlu0 %v2383, 64
        %v2709 = vpop.permute.xlu0 %2708
        %2710 = vrot.lane.b32.xlu0 %v2384, 64
        %v2711 = vpop.permute.xlu0 %2710
        %2712 = vrot.lane.b32.xlu0 %v2385, 64
        %v2713 = vpop.permute.xlu0 %2712
        %2714 = vrot.lane.b32.xlu0 %v2386, 64
        %v2715 = vpop.permute.xlu0 %2714
        %2716 = vrot.lane.b32.xlu0 %v2387, 64
        %v2717 = vpop.permute.xlu0 %2716
        %2718 = vrot.lane.b32.xlu0 %v2388, 64
        %v2719 = vpop.permute.xlu0 %2718
        %2720 = vrot.lane.b32.xlu0 %v2389, 64
        %v2721 = vpop.permute.xlu0 %2720
        %2722 = vrot.lane.b32.xlu0 %v2390, 64
        %v2723 = vpop.permute.xlu0 %2722
        %2724 = vrot.lane.b32.xlu0 %v2391, 64
        %v2725 = vpop.permute.xlu0 %2724
        %2726 = vrot.lane.b32.xlu0 %v2392, 64
        %v2727 = vpop.permute.xlu0 %2726
        %2728 = vrot.lane.b32.xlu0 %v2393, 64
        %v2729 = vpop.permute.xlu0 %2728
        %2730 = vrot.lane.b32.xlu0 %v2394, 64
        %v2731 = vpop.permute.xlu0 %2730
        %2748 = vrot.lane.b32.xlu0 %v2475, 64
        %v2749 = vpop.permute.xlu0 %2748
        %2750 = vrot.lane.b32.xlu0 %v2476, 64
        %v2751 = vpop.permute.xlu0 %2750
        %2752 = vrot.lane.b32.xlu0 %v2477, 64
        %v2753 = vpop.permute.xlu0 %2752
        %2754 = vrot.lane.b32.xlu0 %v2478, 64
        %v2755 = vpop.permute.xlu0 %2754
        %2756 = vrot.lane.b32.xlu0 %v2479, 64
        %v2757 = vpop.permute.xlu0 %2756
        %2758 = vrot.lane.b32.xlu0 %v2480, 64
        %v2759 = vpop.permute.xlu0 %2758
        %2760 = vrot.lane.b32.xlu0 %v2481, 64
        %v2761 = vpop.permute.xlu0 %2760
        %2762 = vrot.lane.b32.xlu0 %v2482, 64
        %v2763 = vpop.permute.xlu0 %2762
        %2764 = vrot.lane.b32.xlu0 %v2483, 64
        %v2765 = vpop.permute.xlu0 %2764
        %2766 = vrot.lane.b32.xlu0 %v2484, 64
        %v2767 = vpop.permute.xlu0 %2766
        %2768 = vrot.lane.b32.xlu0 %v2485, 64
        %v2769 = vpop.permute.xlu0 %2768
        %2770 = vrot.lane.b32.xlu0 %v2486, 64
        %v2771 = vpop.permute.xlu0 %2770
        %2772 = vrot.lane.b32.xlu0 %v2487, 64
        %v2773 = vpop.permute.xlu0 %2772
        %2774 = vrot.lane.b32.xlu0 %v2488, 64
        %v2775 = vpop.permute.xlu0 %2774
        %2776 = vrot.lane.b32.xlu0 %v2489, 64
        %v2777 = vpop.permute.xlu0 %2776
        %2778 = vrot.lane.b32.xlu0 %v2490, 64
        %v2779 = vpop.permute.xlu0 %2778
        %2796 = vrot.lane.b32.xlu0 %v2572, 64
        %v2797 = vpop.permute.xlu0 %2796
        %2798 = vrot.lane.b32.xlu0 %v2573, 64
        %v2799 = vpop.permute.xlu0 %2798
        %2800 = vrot.lane.b32.xlu0 %v2574, 64
        %v2801 = vpop.permute.xlu0 %2800
        %2802 = vrot.lane.b32.xlu0 %v2575, 64
        %v2803 = vpop.permute.xlu0 %2802
        %2804 = vrot.lane.b32.xlu0 %v2576, 64
        %v2805 = vpop.permute.xlu0 %2804
        %2806 = vrot.lane.b32.xlu0 %v2577, 64
        %v2807 = vpop.permute.xlu0 %2806
        %2808 = vrot.lane.b32.xlu0 %v2578, 64
        %v2809 = vpop.permute.xlu0 %2808
        %2810 = vrot.lane.b32.xlu0 %v2579, 64
        %v2811 = vpop.permute.xlu0 %2810
        %2812 = vrot.lane.b32.xlu0 %v2580, 64
        %v2813 = vpop.permute.xlu0 %2812
        %2814 = vrot.lane.b32.xlu0 %v2581, 64
        %v2815 = vpop.permute.xlu0 %2814
        %2816 = vrot.lane.b32.xlu0 %v2582, 64
        %v2817 = vpop.permute.xlu0 %2816
        %2818 = vrot.lane.b32.xlu0 %v2583, 64
        %v2819 = vpop.permute.xlu0 %2818
        %2820 = vrot.lane.b32.xlu0 %v2584, 64
        %v2821 = vpop.permute.xlu0 %2820
        %2822 = vrot.lane.b32.xlu0 %v2585, 64
        %v2823 = vpop.permute.xlu0 %2822
        %2824 = vrot.lane.b32.xlu0 %v2586, 64
        %v2825 = vpop.permute.xlu0 %2824
        %2826 = vrot.lane.b32.xlu0 %v2587, 64
        %v2827 = vpop.permute.xlu0 %2826
        %v2830 = vsel %vm224, %v2235, %v2653
        %v2834 = vsel %vm224, %v2236, %v2655
        %v2838 = vsel %vm224, %v2237, %v2657
        %v2842 = vsel %vm224, %v2238, %v2659
        %v2846 = vsel %vm224, %v2239, %v2661
        %v2850 = vsel %vm224, %v2240, %v2663
        %v2854 = vsel %vm224, %v2241, %v2665
        %v2858 = vsel %vm224, %v2242, %v2667
        %v2862 = vsel %vm224, %v2243, %v2669
        %v2866 = vsel %vm224, %v2244, %v2671
        %v2870 = vsel %vm224, %v2245, %v2673
        %v2874 = vsel %vm224, %v2246, %v2675
        %v2878 = vsel %vm224, %v2247, %v2677
        %v2882 = vsel %vm224, %v2248, %v2679
        %v2886 = vsel %vm224, %v2249, %v2681
        %v2890 = vsel %vm224, %v2250, %v2683
        %v2894 = vsel %vm224, %v2331, %v2701
        %v2898 = vsel %vm224, %v2332, %v2703
        %v2902 = vsel %vm224, %v2333, %v2705
        %v2906 = vsel %vm224, %v2334, %v2707
        %v2910 = vsel %vm224, %v2335, %v2709
        %v2914 = vsel %vm224, %v2336, %v2711
        %v2918 = vsel %vm224, %v2337, %v2713
        %v2922 = vsel %vm224, %v2338, %v2715
        %v2926 = vsel %vm224, %v2339, %v2717
        %v2930 = vsel %vm224, %v2340, %v2719
        %v2934 = vsel %vm224, %v2341, %v2721
        %v2938 = vsel %vm224, %v2342, %v2723
        %v2942 = vsel %vm224, %v2343, %v2725
        %v2946 = vsel %vm224, %v2344, %v2727
        %v2950 = vsel %vm224, %v2345, %v2729
        %v2954 = vsel %vm224, %v2346, %v2731
        %v2958 = vsel %vm224, %v2427, %v2749
        %v2962 = vsel %vm224, %v2428, %v2751
        %v2966 = vsel %vm224, %v2429, %v2753
        %v2970 = vsel %vm224, %v2430, %v2755
        %v2974 = vsel %vm224, %v2431, %v2757
        %v2978 = vsel %vm224, %v2432, %v2759
        %v2982 = vsel %vm224, %v2433, %v2761
        %v2986 = vsel %vm224, %v2434, %v2763
        %v2990 = vsel %vm224, %v2435, %v2765
        %v2994 = vsel %vm224, %v2436, %v2767
        %v2998 = vsel %vm224, %v2437, %v2769
        %v3002 = vsel %vm224, %v2438, %v2771
        %v3006 = vsel %vm224, %v2439, %v2773
        %v3010 = vsel %vm224, %v2440, %v2775
        %v3014 = vsel %vm224, %v2441, %v2777
        %v3018 = vsel %vm224, %v2442, %v2779
        %v3022 = vsel %vm224, %v2524, %v2797
        %v3026 = vsel %vm224, %v2525, %v2799
        %v3030 = vsel %vm224, %v2526, %v2801
        %v3034 = vsel %vm224, %v2527, %v2803
        %v3038 = vsel %vm224, %v2528, %v2805
        %v3042 = vsel %vm224, %v2529, %v2807
        %v3046 = vsel %vm224, %v2530, %v2809
        %v3050 = vsel %vm224, %v2531, %v2811
        %v3054 = vsel %vm224, %v2532, %v2813
        %v3058 = vsel %vm224, %v2533, %v2815
        %v3062 = vsel %vm224, %v2534, %v2817
        %v3066 = vsel %vm224, %v2535, %v2819
        %v3070 = vsel %vm224, %v2536, %v2821
        %v3074 = vsel %vm224, %v2537, %v2823
        %v3078 = vsel %vm224, %v2538, %v2825
        %v3082 = vsel %vm224, %v2539, %v2827
        %v3084 = vld [vmem:[%s3] sm:$0xf]
        %v3085 = vld [vmem:[%s3 + $0x4] sm:$0xf]
        %v3086 = vld [vmem:[%s3 + $0x8] sm:$0xf]
        %v3087 = vld [vmem:[%s3 + $0xc] sm:$0xf]
        %v3088 = vld [vmem:[%s3 + $0x10] sm:$0xf]
        %v3089 = vld [vmem:[%s3 + $0x14] sm:$0xf]
        %v3090 = vld [vmem:[%s3 + $0x18] sm:$0xf]
        %v3091 = vld [vmem:[%s3 + $0x1c] sm:$0xf]
        %v3092 = vld [vmem:[%s3 + $0x20] sm:$0xf]
        %v3093 = vld [vmem:[%s3 + $0x24] sm:$0xf]
        %v3094 = vld [vmem:[%s3 + $0x28] sm:$0xf]
        %v3095 = vld [vmem:[%s3 + $0x2c] sm:$0xf]
        %v3096 = vld [vmem:[%s3 + $0x30] sm:$0xf]
        %v3097 = vld [vmem:[%s3 + $0x34] sm:$0xf]
        %v3098 = vld [vmem:[%s3 + $0x38] sm:$0xf]
        %v3099 = vld [vmem:[%s3 + $0x3c] sm:$0xf]
        %v3100 = vld [vmem:[%s3 + $0x40] sm:$0xf]
        %v3101 = vld [vmem:[%s3 + $0x44] sm:$0xf]
        %v3102 = vld [vmem:[%s3 + $0x48] sm:$0xf]
        %v3103 = vld [vmem:[%s3 + $0x4c] sm:$0xf]
        %v3104 = vld [vmem:[%s3 + $0x50] sm:$0xf]
        %v3105 = vld [vmem:[%s3 + $0x54] sm:$0xf]
        %v3106 = vld [vmem:[%s3 + $0x58] sm:$0xf]
        %v3107 = vld [vmem:[%s3 + $0x5c] sm:$0xf]
        %v3108 = vld [vmem:[%s3 + $0x60] sm:$0xf]
        %v3109 = vld [vmem:[%s3 + $0x64] sm:$0xf]
        %v3110 = vld [vmem:[%s3 + $0x68] sm:$0xf]
        %v3111 = vld [vmem:[%s3 + $0x6c] sm:$0xf]
        %v3112 = vld [vmem:[%s3 + $0x70] sm:$0xf]
        %v3113 = vld [vmem:[%s3 + $0x74] sm:$0xf]
        %v3114 = vld [vmem:[%s3 + $0x78] sm:$0xf]
        %v3115 = vld [vmem:[%s3 + $0x7c] sm:$0xf]
        %v3116 = vld [vmem:[%s3 + $0x80] sm:$0xf]
        %v3117 = vld [vmem:[%s3 + $0x84] sm:$0xf]
        %v3118 = vld [vmem:[%s3 + $0x88] sm:$0xf]
        %v3119 = vld [vmem:[%s3 + $0x8c] sm:$0xf]
        %v3120 = vld [vmem:[%s3 + $0x90] sm:$0xf]
        %v3121 = vld [vmem:[%s3 + $0x94] sm:$0xf]
        %v3122 = vld [vmem:[%s3 + $0x98] sm:$0xf]
        %v3123 = vld [vmem:[%s3 + $0x9c] sm:$0xf]
        %v3124 = vld [vmem:[%s3 + $0xa0] sm:$0xf]
        %v3125 = vld [vmem:[%s3 + $0xa4] sm:$0xf]
        %v3126 = vld [vmem:[%s3 + $0xa8] sm:$0xf]
        %v3127 = vld [vmem:[%s3 + $0xac] sm:$0xf]
        %v3128 = vld [vmem:[%s3 + $0xb0] sm:$0xf]
        %v3129 = vld [vmem:[%s3 + $0xb4] sm:$0xf]
        %v3130 = vld [vmem:[%s3 + $0xb8] sm:$0xf]
        %v3131 = vld [vmem:[%s3 + $0xbc] sm:$0xf]
        %v3132 = vld [vmem:[%s3 + $0xc0] sm:$0xf]
        %v3133 = vld [vmem:[%s3 + $0xc4] sm:$0xf]
        %v3134 = vld [vmem:[%s3 + $0xc8] sm:$0xf]
        %v3135 = vld [vmem:[%s3 + $0xcc] sm:$0xf]
        %v3136 = vld [vmem:[%s3 + $0xd0] sm:$0xf]
        %v3137 = vld [vmem:[%s3 + $0xd4] sm:$0xf]
        %v3138 = vld [vmem:[%s3 + $0xd8] sm:$0xf]
        %v3139 = vld [vmem:[%s3 + $0xdc] sm:$0xf]
        %v3140 = vld [vmem:[%s3 + $0xe0] sm:$0xf]
        %v3141 = vld [vmem:[%s3 + $0xe4] sm:$0xf]
        %v3142 = vld [vmem:[%s3 + $0xe8] sm:$0xf]
        %v3143 = vld [vmem:[%s3 + $0xec] sm:$0xf]
        %v3144 = vld [vmem:[%s3 + $0xf0] sm:$0xf]
        %v3145 = vld [vmem:[%s3 + $0xf4] sm:$0xf]
        %v3146 = vld [vmem:[%s3 + $0xf8] sm:$0xf]
        %v3147 = vld [vmem:[%s3 + $0xfc] sm:$0xf]
        %v3148 = vld [vmem:[%s3 + $0x100] sm:$0xf]
        %v3149 = vld [vmem:[%s3 + $0x104] sm:$0xf]
        %v3150 = vld [vmem:[%s3 + $0x108] sm:$0xf]
        %v3151 = vld [vmem:[%s3 + $0x10c] sm:$0xf]
        %v3152 = vld [vmem:[%s3 + $0x110] sm:$0xf]
        %v3153 = vld [vmem:[%s3 + $0x114] sm:$0xf]
        %v3154 = vld [vmem:[%s3 + $0x118] sm:$0xf]
        %v3155 = vld [vmem:[%s3 + $0x11c] sm:$0xf]
        %v3156 = vld [vmem:[%s4] sm:$0x1]
        %v3158 = vlaneseq
        %v3159 = vshrl.u32 %v3158, 7
        %v3160 = vsub.s32 0, %v3159
        %v3161 = vrot.slane %v3156, %v3160
        %v3235 = vunpack.c.l.b16 %v3084
        %v3236 = vunpack.c.l.b16 %v3085
        %v3237 = vunpack.c.l.b16 %v3086
        %v3238 = vunpack.c.l.b16 %v3087
        %v3239 = vunpack.c.l.b16 %v3088
        %v3240 = vunpack.c.l.b16 %v3089
        %v3241 = vunpack.c.l.b16 %v3090
        %v3242 = vunpack.c.l.b16 %v3091
        %v3243 = vunpack.c.l.b16 %v3092
        %v3244 = vunpack.c.l.b16 %v3093
        %v3245 = vunpack.c.l.b16 %v3094
        %v3246 = vunpack.c.l.b16 %v3095
        %v3247 = vunpack.c.l.b16 %v3096
        %v3248 = vunpack.c.l.b16 %v3097
        %v3249 = vunpack.c.l.b16 %v3098
        %v3250 = vunpack.c.l.b16 %v3099
        %v3251 = vunpack.c.l.b16 %v3100
        %v3252 = vunpack.c.l.b16 %v3101
        %v3253 = vunpack.c.l.b16 %v3102
        %v3254 = vunpack.c.l.b16 %v3103
        %v3255 = vunpack.c.l.b16 %v3104
        %v3256 = vunpack.c.l.b16 %v3105
        %v3257 = vunpack.c.l.b16 %v3106
        %v3258 = vunpack.c.l.b16 %v3107
        %v3259 = vunpack.c.l.b16 %v3108
        %v3260 = vunpack.c.l.b16 %v3109
        %v3261 = vunpack.c.l.b16 %v3110
        %v3262 = vunpack.c.l.b16 %v3111
        %v3263 = vunpack.c.l.b16 %v3112
        %v3264 = vunpack.c.l.b16 %v3113
        %v3265 = vunpack.c.l.b16 %v3114
        %v3266 = vunpack.c.l.b16 %v3115
        %v3267 = vunpack.c.l.b16 %v3116
        %v3268 = vunpack.c.l.b16 %v3117
        %v3269 = vunpack.c.l.b16 %v3118
        %v3270 = vunpack.c.l.b16 %v3119
        %v3271 = vunpack.c.l.b16 %v3120
        %v3272 = vunpack.c.l.b16 %v3121
        %v3273 = vunpack.c.l.b16 %v3122
        %v3274 = vunpack.c.l.b16 %v3123
        %v3275 = vunpack.c.l.b16 %v3124
        %v3276 = vunpack.c.l.b16 %v3125
        %v3277 = vunpack.c.l.b16 %v3126
        %v3278 = vunpack.c.l.b16 %v3127
        %v3279 = vunpack.c.l.b16 %v3128
        %v3280 = vunpack.c.l.b16 %v3129
        %v3281 = vunpack.c.l.b16 %v3130
        %v3282 = vunpack.c.l.b16 %v3131
        %v3283 = vunpack.c.l.b16 %v3132
        %v3284 = vunpack.c.l.b16 %v3133
        %v3285 = vunpack.c.l.b16 %v3134
        %v3286 = vunpack.c.l.b16 %v3135
        %v3287 = vunpack.c.l.b16 %v3136
        %v3288 = vunpack.c.l.b16 %v3137
        %v3289 = vunpack.c.l.b16 %v3138
        %v3290 = vunpack.c.l.b16 %v3139
        %v3291 = vunpack.c.l.b16 %v3140
        %v3292 = vunpack.c.l.b16 %v3141
        %v3293 = vunpack.c.l.b16 %v3142
        %v3294 = vunpack.c.l.b16 %v3143
        %v3295 = vunpack.c.l.b16 %v3144
        %v3296 = vunpack.c.l.b16 %v3145
        %v3297 = vunpack.c.l.b16 %v3146
        %v3298 = vunpack.c.l.b16 %v3147
        %v3299 = vunpack.c.l.b16 %v3148
        %v3300 = vunpack.c.l.b16 %v3149
        %v3301 = vunpack.c.l.b16 %v3150
        %v3302 = vunpack.c.l.b16 %v3151
        %v3303 = vunpack.c.l.b16 %v3152
        %v3304 = vunpack.c.l.b16 %v3153
        %v3305 = vunpack.c.l.b16 %v3154
        %v3306 = vunpack.c.l.b16 %v3155
        %v3307 = vpack.c.b16 %v3236, %v3235
        %v3308 = vpack.c.b16 %v3238, %v3237
        %v3309 = vpack.c.b16 %v3240, %v3239
        %v3310 = vpack.c.b16 %v3242, %v3241
        %v3311 = vpack.c.b16 %v3244, %v3243
        %v3312 = vpack.c.b16 %v3246, %v3245
        %v3313 = vpack.c.b16 %v3248, %v3247
        %v3314 = vpack.c.b16 %v3250, %v3249
        %v3315 = vpack.c.b16 %v3252, %v3251
        %v3316 = vpack.c.b16 %v3254, %v3253
        %v3317 = vpack.c.b16 %v3256, %v3255
        %v3318 = vpack.c.b16 %v3258, %v3257
        %v3319 = vpack.c.b16 %v3260, %v3259
        %v3320 = vpack.c.b16 %v3262, %v3261
        %v3321 = vpack.c.b16 %v3264, %v3263
        %v3322 = vpack.c.b16 %v3266, %v3265
        %v3323 = vpack.c.b16 %v3268, %v3267
        %v3324 = vpack.c.b16 %v3270, %v3269
        %v3325 = vpack.c.b16 %v3272, %v3271
        %v3326 = vpack.c.b16 %v3274, %v3273
        %v3327 = vpack.c.b16 %v3276, %v3275
        %v3328 = vpack.c.b16 %v3278, %v3277
        %v3329 = vpack.c.b16 %v3280, %v3279
        %v3330 = vpack.c.b16 %v3282, %v3281
        %v3331 = vpack.c.b16 %v3284, %v3283
        %v3332 = vpack.c.b16 %v3286, %v3285
        %v3333 = vpack.c.b16 %v3288, %v3287
        %v3334 = vpack.c.b16 %v3290, %v3289
        %v3335 = vpack.c.b16 %v3292, %v3291
        %v3336 = vpack.c.b16 %v3294, %v3293
        %v3337 = vpack.c.b16 %v3296, %v3295
        %v3338 = vpack.c.b16 %v3298, %v3297
        %v3339 = vpack.c.b16 %v3300, %v3299
        %v3340 = vpack.c.b16 %v3302, %v3301
        %v3341 = vpack.c.b16 %v3304, %v3303
        %v3342 = vpack.c.b16 %v3306, %v3305
        %v3380 = vsel %vm224, %v2620, 0
        %v3383 = vsel %vm224, %v2621, 0
        %v3386 = vsel %vm224, %v2622, 0
        %v3389 = vsel %vm224, %v2623, 0
        %v3392 = vsel %vm224, %v2624, 0
        %v3395 = vsel %vm224, %v2625, 0
        %v3398 = vsel %vm224, %v2626, 0
        %v3401 = vsel %vm224, %v2627, 0
        %v3404 = vsel %vm224, %v2628, 0
        %v3407 = vsel %vm224, %v2629, 0
        %v3410 = vsel %vm224, %v2630, 0
        %v3413 = vsel %vm224, %v2631, 0
        %v3416 = vsel %vm224, %v2632, 0
        %v3419 = vsel %vm224, %v2633, 0
        %v3422 = vsel %vm224, %v2634, 0
        %v3425 = vsel %vm224, %v2635, 0
        %3427 = vmatprep.subr.bf16.mxu0 0
        %3428 = vmatpush1.bf16.msra.mxu0 %v3307
        %3429 = vmatprep.subr.bf16.mxu0 0
        %3430 = vmatpush1.bf16.msra.mxu0 %v3308
        %3431 = vmatprep.subr.bf16.mxu0 0
        %3432 = vmatpush1.bf16.msra.mxu0 %v3309
        %3433 = vmatprep.subr.bf16.mxu0 0
        %3434 = vmatpush1.bf16.msra.mxu0 %v3310
        %3435 = vmatprep.subr.bf16.mxu0 0
        %3436 = vmatpush1.bf16.msra.mxu0 %v3311
        %3437 = vmatprep.subr.bf16.mxu0 0
        %3438 = vmatpush1.bf16.msra.mxu0 %v3312
        %3439 = vmatprep.subr.bf16.mxu0 0
        %3440 = vmatpush1.bf16.msra.mxu0 %v3313
        %3441 = vmatprep.subr.bf16.mxu0 0
        %3442 = vmatpush1.bf16.msra.mxu0 %v3314
        %3443 = vmatprep.subr.bf16.mxu0 0
        %3444 = vmatpush1.bf16.msra.mxu0 %v3315
        %3445 = vmatprep.subr.bf16.mxu0 0
        %3446 = vmatpush1.bf16.msra.mxu0 %v3316
        %3447 = vmatprep.subr.bf16.mxu0 0
        %3448 = vmatpush1.bf16.msra.mxu0 %v3317
        %3449 = vmatprep.subr.bf16.mxu0 0
        %3450 = vmatpush1.bf16.msra.mxu0 %v3318
        %3451 = vmatprep.subr.bf16.mxu0 0
        %3452 = vmatpush1.bf16.msra.mxu0 %v3319
        %3453 = vmatprep.subr.bf16.mxu0 0
        %3454 = vmatpush1.bf16.msra.mxu0 %v3320
        %3455 = vmatprep.subr.bf16.mxu0 0
        %3456 = vmatpush1.bf16.msra.mxu0 %v3321
        %3457 = vmatprep.subr.bf16.mxu0 0
        %3458 = vmatpush1.bf16.msra.mxu0 %v3322
        %3459 = vmatprep.mubr.bf16.mxu0 %v2894
        %3460 = vmatmul.mubr.bf16.gmra.mrb[0].mxu0 %v2830
        %v3461 = vpop.f32.mrb[0].mxu0
        %v3462 = vadd.f32 %v3161, %v3461
        %v3463 = vpop.f32.mrb[0].mxu0
        %v3464 = vpop.f32.mrb[0].mxu0
        %v3465 = vadd.f32 %v3161, %v3464
        %v3466 = vpop.f32.mrb[0].mxu0
        %3467 = vmatprep.mubr.bf16.mxu0 %v2898
        %3468 = vmatmul.mubr.bf16.gmra.mrb[0].mxu0 %v2834
        %v3469 = vpop.f32.mrb[0].mxu0
        %v3470 = vadd.f32 %v3161, %v3469
        %v3471 = vpop.f32.mrb[0].mxu0
        %v3472 = vpop.f32.mrb[0].mxu0
        %v3473 = vadd.f32 %v3161, %v3472
        %v3474 = vpop.f32.mrb[0].mxu0
        %3475 = vmatprep.mubr.bf16.mxu0 %v2902
        %3476 = vmatmul.mubr.bf16.gmra.mrb[0].mxu0 %v2838
        %v3477 = vpop.f32.mrb[0].mxu0
        %v3478 = vadd.f32 %v3161, %v3477
        %v3479 = vpop.f32.mrb[0].mxu0
        %v3480 = vpop.f32.mrb[0].mxu0
        %v3481 = vadd.f32 %v3161, %v3480
        %v3482 = vpop.f32.mrb[0].mxu0
        %3483 = vmatprep.mubr.bf16.mxu0 %v2906
        %3484 = vmatmul.mubr.bf16.gmra.mrb[0].mxu0 %v2842
        %v3485 = vpop.f32.mrb[0].mxu0
        %v3486 = vadd.f32 %v3161, %v3485
        %v3487 = vpop.f32.mrb[0].mxu0
        %v3488 = vpop.f32.mrb[0].mxu0
        %v3489 = vadd.f32 %v3161, %v3488
        %v3490 = vpop.f32.mrb[0].mxu0
        %3491 = vmatprep.mubr.bf16.mxu0 %v2910
        %3492 = vmatmul.mubr.bf16.gmra.mrb[0].mxu0 %v2846
        %v3493 = vpop.f32.mrb[0].mxu0
        %v3494 = vadd.f32 %v3161, %v3493
        %v3495 = vpop.f32.mrb[0].mxu0
        %v3496 = vpop.f32.mrb[0].mxu0
        %v3497 = vadd.f32 %v3161, %v3496
        %v3498 = vpop.f32.mrb[0].mxu0
        %3499 = vmatprep.mubr.bf16.mxu0 %v2914
        %3500 = vmatmul.mubr.bf16.gmra.mrb[0].mxu0 %v2850
        %v3501 = vpop.f32.mrb[0].mxu0
        %v3502 = vadd.f32 %v3161, %v3501
        %v3503 = vpop.f32.mrb[0].mxu0
        %v3504 = vpop.f32.mrb[0].mxu0
        %v3505 = vadd.f32 %v3161, %v3504
        %v3506 = vpop.f32.mrb[0].mxu0
        %3507 = vmatprep.mubr.bf16.mxu0 %v2918
        %3508 = vmatmul.mubr.bf16.gmra.mrb[0].mxu0 %v2854
        %v3509 = vpop.f32.mrb[0].mxu0
        %v3510 = vadd.f32 %v3161, %v3509
        %v3511 = vpop.f32.mrb[0].mxu0
        %v3512 = vpop.f32.mrb[0].mxu0
        %v3513 = vadd.f32 %v3161, %v3512
        %v3514 = vpop.f32.mrb[0].mxu0
        %3515 = vmatprep.mubr.bf16.mxu0 %v2922
        %3516 = vmatmul.mubr.bf16.gmra.mrb[0].mxu0 %v2858
        %v3517 = vpop.f32.mrb[0].mxu0
        %v3518 = vadd.f32 %v3161, %v3517
        %v3519 = vpop.f32.mrb[0].mxu0
        %v3520 = vpop.f32.mrb[0].mxu0
        %v3521 = vadd.f32 %v3161, %v3520
        %v3522 = vpop.f32.mrb[0].mxu0
        %3523 = vmatprep.mubr.bf16.mxu0 %v2926
        %3524 = vmatmul.mubr.bf16.gmra.mrb[0].mxu0 %v2862
        %v3525 = vpop.f32.mrb[0].mxu0
        %v3526 = vadd.f32 %v3161, %v3525
        %v3527 = vpop.f32.mrb[0].mxu0
        %v3528 = vpop.f32.mrb[0].mxu0
        %v3529 = vadd.f32 %v3161, %v3528
        %v3530 = vpop.f32.mrb[0].mxu0
        %3531 = vmatprep.mubr.bf16.mxu0 %v2930
        %3532 = vmatmul.mubr.bf16.gmra.mrb[0].mxu0 %v2866
        %v3533 = vpop.f32.mrb[0].mxu0
        %v3534 = vadd.f32 %v3161, %v3533
        %v3535 = vpop.f32.mrb[0].mxu0
        %v3536 = vpop.f32.mrb[0].mxu0
        %v3537 = vadd.f32 %v3161, %v3536
        %v3538 = vpop.f32.mrb[0].mxu0
        %3539 = vmatprep.mubr.bf16.mxu0 %v2934
        %3540 = vmatmul.mubr.bf16.gmra.mrb[0].mxu0 %v2870
        %v3541 = vpop.f32.mrb[0].mxu0
        %v3542 = vadd.f32 %v3161, %v3541
        %v3543 = vpop.f32.mrb[0].mxu0
        %v3544 = vpop.f32.mrb[0].mxu0
        %v3545 = vadd.f32 %v3161, %v3544
        %v3546 = vpop.f32.mrb[0].mxu0
        %3547 = vmatprep.mubr.bf16.mxu0 %v2938
        %3548 = vmatmul.mubr.bf16.gmra.mrb[0].mxu0 %v2874
        %v3549 = vpop.f32.mrb[0].mxu0
        %v3550 = vadd.f32 %v3161, %v3549
        %v3551 = vpop.f32.mrb[0].mxu0
        %v3552 = vpop.f32.mrb[0].mxu0
        %v3553 = vadd.f32 %v3161, %v3552
        %v3554 = vpop.f32.mrb[0].mxu0
        %3555 = vmatprep.mubr.bf16.mxu0 %v2942
        %3556 = vmatmul.mubr.bf16.gmra.mrb[0].mxu0 %v2878
        %v3557 = vpop.f32.mrb[0].mxu0
        %v3558 = vadd.f32 %v3161, %v3557
        %v3559 = vpop.f32.mrb[0].mxu0
        %v3560 = vpop.f32.mrb[0].mxu0
        %v3561 = vadd.f32 %v3161, %v3560
        %v3562 = vpop.f32.mrb[0].mxu0
        %3563 = vmatprep.mubr.bf16.mxu0 %v2946
        %3564 = vmatmul.mubr.bf16.gmra.mrb[0].mxu0 %v2882
        %v3565 = vpop.f32.mrb[0].mxu0
        %v3566 = vadd.f32 %v3161, %v3565
        %v3567 = vpop.f32.mrb[0].mxu0
        %v3568 = vpop.f32.mrb[0].mxu0
        %v3569 = vadd.f32 %v3161, %v3568
        %v3570 = vpop.f32.mrb[0].mxu0
        %3571 = vmatprep.mubr.bf16.mxu0 %v2950
        %3572 = vmatmul.mubr.bf16.gmra.mrb[0].mxu0 %v2886
        %v3573 = vpop.f32.mrb[0].mxu0
        %v3574 = vadd.f32 %v3161, %v3573
        %v3575 = vpop.f32.mrb[0].mxu0
        %v3576 = vpop.f32.mrb[0].mxu0
        %v3577 = vadd.f32 %v3161, %v3576
        %v3578 = vpop.f32.mrb[0].mxu0
        %3579 = vmatprep.mubr.bf16.mxu0 %v2954
        %3580 = vmatmul.mubr.bf16.gmra.mrb[0].mxu0 %v2890
        %v3581 = vpop.f32.mrb[0].mxu0
        %v3582 = vadd.f32 %v3161, %v3581
        %v3583 = vpop.f32.mrb[0].mxu0
        %v3584 = vpop.f32.mrb[0].mxu0
        %v3585 = vadd.f32 %v3161, %v3584
        %v3586 = vpop.f32.mrb[0].mxu0
        %3587 = vdwg.mxu0
        %3588 = vmatprep.subr.bf16.mxu0 0
        %3589 = vmatpush1.bf16.msra.mxu0 %v3323
        %3590 = vmatprep.subr.bf16.mxu0 0
        %3591 = vmatpush1.bf16.msra.mxu0 %v3324
        %3592 = vmatprep.subr.bf16.mxu0 0
        %3593 = vmatpush1.bf16.msra.mxu0 %v3325
        %3594 = vmatprep.subr.bf16.mxu0 0
        %3595 = vmatpush1.bf16.msra.mxu0 %v3326
        %3596 = vmatprep.subr.bf16.mxu0 0
        %3597 = vmatpush1.bf16.msra.mxu0 %v3327
        %3598 = vmatprep.subr.bf16.mxu0 0
        %3599 = vmatpush1.bf16.msra.mxu0 %v3328
        %3600 = vmatprep.subr.bf16.mxu0 0
        %3601 = vmatpush1.bf16.msra.mxu0 %v3329
        %3602 = vmatprep.subr.bf16.mxu0 0
        %3603 = vmatpush1.bf16.msra.mxu0 %v3330
        %3604 = vmatprep.subr.bf16.mxu0 0
        %3605 = vmatpush1.bf16.msra.mxu0 %v3331
        %3606 = vmatprep.subr.bf16.mxu0 0
        %3607 = vmatpush1.bf16.msra.mxu0 %v3332
        %3608 = vmatprep.subr.bf16.mxu0 0
        %3609 = vmatpush1.bf16.msra.mxu0 %v3333
        %3610 = vmatprep.subr.bf16.mxu0 0
        %3611 = vmatpush1.bf16.msra.mxu0 %v3334
        %3612 = vmatprep.subr.bf16.mxu0 0
        %3613 = vmatpush1.bf16.msra.mxu0 %v3335
        %3614 = vmatprep.subr.bf16.mxu0 0
        %3615 = vmatpush1.bf16.msra.mxu0 %v3336
        %3616 = vmatprep.subr.bf16.mxu0 0
        %3617 = vmatpush1.bf16.msra.mxu0 %v3337
        %3618 = vmatprep.subr.bf16.mxu0 0
        %3619 = vmatpush1.bf16.msra.mxu0 %v3338
        %3620 = vmatprep.mubr.bf16.mxu0 %v3022
        %3621 = vmatmul.mubr.bf16.gmra.mrb[0].mxu0 %v2958
        %v3622 = vpop.f32.mrb[0].mxu0
        %v3623 = vadd.f32 %v3462, %v3622
        %v3624 = vpop.f32.mrb[0].mxu0
        %v3625 = vpop.f32.mrb[0].mxu0
        %v3626 = vadd.f32 %v3465, %v3625
        %v3627 = vpop.f32.mrb[0].mxu0
        %3628 = vmatprep.mubr.bf16.mxu0 %v3026
        %3629 = vmatmul.mubr.bf16.gmra.mrb[0].mxu0 %v2962
        %v3630 = vpop.f32.mrb[0].mxu0
        %v3631 = vadd.f32 %v3470, %v3630
        %v3632 = vpop.f32.mrb[0].mxu0
        %v3633 = vpop.f32.mrb[0].mxu0
        %v3634 = vadd.f32 %v3473, %v3633
        %v3635 = vpop.f32.mrb[0].mxu0
        %3636 = vmatprep.mubr.bf16.mxu0 %v3030
        %3637 = vmatmul.mubr.bf16.gmra.mrb[0].mxu0 %v2966
        %v3638 = vpop.f32.mrb[0].mxu0
        %v3639 = vadd.f32 %v3478, %v3638
        %v3640 = vpop.f32.mrb[0].mxu0
        %v3641 = vpop.f32.mrb[0].mxu0
        %v3642 = vadd.f32 %v3481, %v3641
        %v3643 = vpop.f32.mrb[0].mxu0
        %3644 = vmatprep.mubr.bf16.mxu0 %v3034
        %3645 = vmatmul.mubr.bf16.gmra.mrb[0].mxu0 %v2970
        %v3646 = vpop.f32.mrb[0].mxu0
        %v3647 = vadd.f32 %v3486, %v3646
        %v3648 = vpop.f32.mrb[0].mxu0
        %v3649 = vpop.f32.mrb[0].mxu0
        %v3650 = vadd.f32 %v3489, %v3649
        %v3651 = vpop.f32.mrb[0].mxu0
        %3652 = vmatprep.mubr.bf16.mxu0 %v3038
        %3653 = vmatmul.mubr.bf16.gmra.mrb[0].mxu0 %v2974
        %v3654 = vpop.f32.mrb[0].mxu0
        %v3655 = vadd.f32 %v3494, %v3654
        %v3656 = vpop.f32.mrb[0].mxu0
        %v3657 = vpop.f32.mrb[0].mxu0
        %v3658 = vadd.f32 %v3497, %v3657
        %v3659 = vpop.f32.mrb[0].mxu0
        %3660 = vmatprep.mubr.bf16.mxu0 %v3042
        %3661 = vmatmul.mubr.bf16.gmra.mrb[0].mxu0 %v2978
        %v3662 = vpop.f32.mrb[0].mxu0
        %v3663 = vadd.f32 %v3502, %v3662
        %v3664 = vpop.f32.mrb[0].mxu0
        %v3665 = vpop.f32.mrb[0].mxu0
        %v3666 = vadd.f32 %v3505, %v3665
        %v3667 = vpop.f32.mrb[0].mxu0
        %3668 = vmatprep.mubr.bf16.mxu0 %v3046
        %3669 = vmatmul.mubr.bf16.gmra.mrb[0].mxu0 %v2982
        %v3670 = vpop.f32.mrb[0].mxu0
        %v3671 = vadd.f32 %v3510, %v3670
        %v3672 = vpop.f32.mrb[0].mxu0
        %v3673 = vpop.f32.mrb[0].mxu0
        %v3674 = vadd.f32 %v3513, %v3673
        %v3675 = vpop.f32.mrb[0].mxu0
        %3676 = vmatprep.mubr.bf16.mxu0 %v3050
        %3677 = vmatmul.mubr.bf16.gmra.mrb[0].mxu0 %v2986
        %v3678 = vpop.f32.mrb[0].mxu0
        %v3679 = vadd.f32 %v3518, %v3678
        %v3680 = vpop.f32.mrb[0].mxu0
        %v3681 = vpop.f32.mrb[0].mxu0
        %v3682 = vadd.f32 %v3521, %v3681
        %v3683 = vpop.f32.mrb[0].mxu0
        %3684 = vmatprep.mubr.bf16.mxu0 %v3054
        %3685 = vmatmul.mubr.bf16.gmra.mrb[0].mxu0 %v2990
        %v3686 = vpop.f32.mrb[0].mxu0
        %v3687 = vadd.f32 %v3526, %v3686
        %v3688 = vpop.f32.mrb[0].mxu0
        %v3689 = vpop.f32.mrb[0].mxu0
        %v3690 = vadd.f32 %v3529, %v3689
        %v3691 = vpop.f32.mrb[0].mxu0
        %3692 = vmatprep.mubr.bf16.mxu0 %v3058
        %3693 = vmatmul.mubr.bf16.gmra.mrb[0].mxu0 %v2994
        %v3694 = vpop.f32.mrb[0].mxu0
        %v3695 = vadd.f32 %v3534, %v3694
        %v3696 = vpop.f32.mrb[0].mxu0
        %v3697 = vpop.f32.mrb[0].mxu0
        %v3698 = vadd.f32 %v3537, %v3697
        %v3699 = vpop.f32.mrb[0].mxu0
        %3700 = vmatprep.mubr.bf16.mxu0 %v3062
        %3701 = vmatmul.mubr.bf16.gmra.mrb[0].mxu0 %v2998
        %v3702 = vpop.f32.mrb[0].mxu0
        %v3703 = vadd.f32 %v3542, %v3702
        %v3704 = vpop.f32.mrb[0].mxu0
        %v3705 = vpop.f32.mrb[0].mxu0
        %v3706 = vadd.f32 %v3545, %v3705
        %v3707 = vpop.f32.mrb[0].mxu0
        %3708 = vmatprep.mubr.bf16.mxu0 %v3066
        %3709 = vmatmul.mubr.bf16.gmra.mrb[0].mxu0 %v3002
        %v3710 = vpop.f32.mrb[0].mxu0
        %v3711 = vadd.f32 %v3550, %v3710
        %v3712 = vpop.f32.mrb[0].mxu0
        %v3713 = vpop.f32.mrb[0].mxu0
        %v3714 = vadd.f32 %v3553, %v3713
        %v3715 = vpop.f32.mrb[0].mxu0
        %3716 = vmatprep.mubr.bf16.mxu0 %v3070
        %3717 = vmatmul.mubr.bf16.gmra.mrb[0].mxu0 %v3006
        %v3718 = vpop.f32.mrb[0].mxu0
        %v3719 = vadd.f32 %v3558, %v3718
        %v3720 = vpop.f32.mrb[0].mxu0
        %v3721 = vpop.f32.mrb[0].mxu0
        %v3722 = vadd.f32 %v3561, %v3721
        %v3723 = vpop.f32.mrb[0].mxu0
        %3724 = vmatprep.mubr.bf16.mxu0 %v3074
        %3725 = vmatmul.mubr.bf16.gmra.mrb[0].mxu0 %v3010
        %v3726 = vpop.f32.mrb[0].mxu0
        %v3727 = vadd.f32 %v3566, %v3726
        %v3728 = vpop.f32.mrb[0].mxu0
        %v3729 = vpop.f32.mrb[0].mxu0
        %v3730 = vadd.f32 %v3569, %v3729
        %v3731 = vpop.f32.mrb[0].mxu0
        %3732 = vmatprep.mubr.bf16.mxu0 %v3078
        %3733 = vmatmul.mubr.bf16.gmra.mrb[0].mxu0 %v3014
        %v3734 = vpop.f32.mrb[0].mxu0
        %v3735 = vadd.f32 %v3574, %v3734
        %v3736 = vpop.f32.mrb[0].mxu0
        %v3737 = vpop.f32.mrb[0].mxu0
        %v3738 = vadd.f32 %v3577, %v3737
        %v3739 = vpop.f32.mrb[0].mxu0
        %3740 = vmatprep.mubr.bf16.mxu0 %v3082
        %3741 = vmatmul.mubr.bf16.gmra.mrb[0].mxu0 %v3018
        %v3742 = vpop.f32.mrb[0].mxu0
        %v3743 = vadd.f32 %v3582, %v3742
        %v3744 = vpop.f32.mrb[0].mxu0
        %v3745 = vpop.f32.mrb[0].mxu0
        %v3746 = vadd.f32 %v3585, %v3745
        %v3747 = vpop.f32.mrb[0].mxu0
        %3748 = vdwg.mxu0
        %3749 = vmatprep.subr.bf16.mxu0 0
        %3750 = vmatpush1.bf16.msra.mxu0 %v3339
        %3751 = vmatprep.subr.bf16.mxu0 0
        %3752 = vmatpush1.bf16.msra.mxu0 %v3340
        %3753 = vmatprep.subr.bf16.mxu0 0
        %3754 = vmatpush1.bf16.msra.mxu0 %v3341
        %3755 = vmatprep.subr.bf16.mxu0 0
        %3756 = vmatpush1.bf16.msra.mxu0 %v3342
        %3757 = vmatprep.subr.bf16.mxu0 0
        %3758 = vmatpush1.bf16.msra.mxu0 0
        %3759 = vmatprep.subr.bf16.mxu0 0
        %3760 = vmatpush1.bf16.msra.mxu0 0
        %3761 = vmatprep.subr.bf16.mxu0 0
        %3762 = vmatpush1.bf16.msra.mxu0 0
        %3763 = vmatprep.subr.bf16.mxu0 0
        %3764 = vmatpush1.bf16.msra.mxu0 0
        %3765 = vmatprep.subr.bf16.mxu0 0
        %3766 = vmatpush1.bf16.msra.mxu0 0
        %3767 = vmatprep.subr.bf16.mxu0 0
        %3768 = vmatpush1.bf16.msra.mxu0 0
        %3769 = vmatprep.subr.bf16.mxu0 0
        %3770 = vmatpush1.bf16.msra.mxu0 0
        %3771 = vmatprep.subr.bf16.mxu0 0
        %3772 = vmatpush1.bf16.msra.mxu0 0
        %3773 = vmatprep.subr.bf16.mxu0 0
        %3774 = vmatpush1.bf16.msra.mxu0 0
        %3775 = vmatprep.subr.bf16.mxu0 0
        %3776 = vmatpush1.bf16.msra.mxu0 0
        %3777 = vmatprep.subr.bf16.mxu0 0
        %3778 = vmatpush1.bf16.msra.mxu0 0
        %3779 = vmatprep.subr.bf16.mxu0 0
        %3780 = vmatpush1.bf16.msra.mxu0 0
        %3781 = vmatprep.mubr.bf16.mxu0 0
        %3782 = vmatmul.mubr.bf16.gmra.mrb[0].mxu0 %v3380
        %v3783 = vpop.f32.mrb[0].mxu0
        %v3784 = vadd.f32 %v3623, %v3783
        %v3785 = vpop.f32.mrb[0].mxu0
        %v3786 = vpop.f32.mrb[0].mxu0
        %v3787 = vadd.f32 %v3626, %v3786
        %v3788 = vpop.f32.mrb[0].mxu0
        %3789 = vmatprep.mubr.bf16.mxu0 0
        %3790 = vmatmul.mubr.bf16.gmra.mrb[0].mxu0 %v3383
        %v3791 = vpop.f32.mrb[0].mxu0
        %v3792 = vadd.f32 %v3631, %v3791
        %v3793 = vpop.f32.mrb[0].mxu0
        %v3794 = vpop.f32.mrb[0].mxu0
        %v3795 = vadd.f32 %v3634, %v3794
        %v3796 = vpop.f32.mrb[0].mxu0
        %3797 = vmatprep.mubr.bf16.mxu0 0
        %3798 = vmatmul.mubr.bf16.gmra.mrb[0].mxu0 %v3386
        %v3799 = vpop.f32.mrb[0].mxu0
        %v3800 = vadd.f32 %v3639, %v3799
        %v3801 = vpop.f32.mrb[0].mxu0
        %v3802 = vpop.f32.mrb[0].mxu0
        %v3803 = vadd.f32 %v3642, %v3802
        %v3804 = vpop.f32.mrb[0].mxu0
        %3805 = vmatprep.mubr.bf16.mxu0 0
        %3806 = vmatmul.mubr.bf16.gmra.mrb[0].mxu0 %v3389
        %v3807 = vpop.f32.mrb[0].mxu0
        %v3808 = vadd.f32 %v3647, %v3807
        %v3809 = vpop.f32.mrb[0].mxu0
        %v3810 = vpop.f32.mrb[0].mxu0
        %v3811 = vadd.f32 %v3650, %v3810
        %v3812 = vpop.f32.mrb[0].mxu0
        %3813 = vmatprep.mubr.bf16.mxu0 0
        %3814 = vmatmul.mubr.bf16.gmra.mrb[0].mxu0 %v3392
        %v3815 = vpop.f32.mrb[0].mxu0
        %v3816 = vadd.f32 %v3655, %v3815
        %v3817 = vpop.f32.mrb[0].mxu0
        %v3818 = vpop.f32.mrb[0].mxu0
        %v3819 = vadd.f32 %v3658, %v3818
        %v3820 = vpop.f32.mrb[0].mxu0
        %3821 = vmatprep.mubr.bf16.mxu0 0
        %3822 = vmatmul.mubr.bf16.gmra.mrb[0].mxu0 %v3395
        %v3823 = vpop.f32.mrb[0].mxu0
        %v3824 = vadd.f32 %v3663, %v3823
        %v3825 = vpop.f32.mrb[0].mxu0
        %v3826 = vpop.f32.mrb[0].mxu0
        %v3827 = vadd.f32 %v3666, %v3826
        %v3828 = vpop.f32.mrb[0].mxu0
        %3829 = vmatprep.mubr.bf16.mxu0 0
        %3830 = vmatmul.mubr.bf16.gmra.mrb[0].mxu0 %v3398
        %v3831 = vpop.f32.mrb[0].mxu0
        %v3832 = vadd.f32 %v3671, %v3831
        %v3833 = vpop.f32.mrb[0].mxu0
        %v3834 = vpop.f32.mrb[0].mxu0
        %v3835 = vadd.f32 %v3674, %v3834
        %v3836 = vpop.f32.mrb[0].mxu0
        %3837 = vmatprep.mubr.bf16.mxu0 0
        %3838 = vmatmul.mubr.bf16.gmra.mrb[0].mxu0 %v3401
        %v3839 = vpop.f32.mrb[0].mxu0
        %v3840 = vadd.f32 %v3679, %v3839
        %v3841 = vpop.f32.mrb[0].mxu0
        %v3842 = vpop.f32.mrb[0].mxu0
        %v3843 = vadd.f32 %v3682, %v3842
        %v3844 = vpop.f32.mrb[0].mxu0
        %3845 = vmatprep.mubr.bf16.mxu0 0
        %3846 = vmatmul.mubr.bf16.gmra.mrb[0].mxu0 %v3404
        %v3847 = vpop.f32.mrb[0].mxu0
        %v3848 = vadd.f32 %v3687, %v3847
        %v3849 = vpop.f32.mrb[0].mxu0
        %v3850 = vpop.f32.mrb[0].mxu0
        %v3851 = vadd.f32 %v3690, %v3850
        %v3852 = vpop.f32.mrb[0].mxu0
        %3853 = vmatprep.mubr.bf16.mxu0 0
        %3854 = vmatmul.mubr.bf16.gmra.mrb[0].mxu0 %v3407
        %v3855 = vpop.f32.mrb[0].mxu0
        %v3856 = vadd.f32 %v3695, %v3855
        %v3857 = vpop.f32.mrb[0].mxu0
        %v3858 = vpop.f32.mrb[0].mxu0
        %v3859 = vadd.f32 %v3698, %v3858
        %v3860 = vpop.f32.mrb[0].mxu0
        %3861 = vmatprep.mubr.bf16.mxu0 0
        %3862 = vmatmul.mubr.bf16.gmra.mrb[0].mxu0 %v3410
        %v3863 = vpop.f32.mrb[0].mxu0
        %v3864 = vadd.f32 %v3703, %v3863
        %v3865 = vpop.f32.mrb[0].mxu0
        %v3866 = vpop.f32.mrb[0].mxu0
        %v3867 = vadd.f32 %v3706, %v3866
        %v3868 = vpop.f32.mrb[0].mxu0
        %3869 = vmatprep.mubr.bf16.mxu0 0
        %3870 = vmatmul.mubr.bf16.gmra.mrb[0].mxu0 %v3413
        %v3871 = vpop.f32.mrb[0].mxu0
        %v3872 = vadd.f32 %v3711, %v3871
        %v3873 = vpop.f32.mrb[0].mxu0
        %v3874 = vpop.f32.mrb[0].mxu0
        %v3875 = vadd.f32 %v3714, %v3874
        %v3876 = vpop.f32.mrb[0].mxu0
        %3877 = vmatprep.mubr.bf16.mxu0 0
        %3878 = vmatmul.mubr.bf16.gmra.mrb[0].mxu0 %v3416
        %v3879 = vpop.f32.mrb[0].mxu0
        %v3880 = vadd.f32 %v3719, %v3879
        %v3881 = vpop.f32.mrb[0].mxu0
        %v3882 = vpop.f32.mrb[0].mxu0
        %v3883 = vadd.f32 %v3722, %v3882
        %v3884 = vpop.f32.mrb[0].mxu0
        %3885 = vmatprep.mubr.bf16.mxu0 0
        %3886 = vmatmul.mubr.bf16.gmra.mrb[0].mxu0 %v3419
        %v3887 = vpop.f32.mrb[0].mxu0
        %v3888 = vadd.f32 %v3727, %v3887
        %v3889 = vpop.f32.mrb[0].mxu0
        %v3890 = vpop.f32.mrb[0].mxu0
        %v3891 = vadd.f32 %v3730, %v3890
        %v3892 = vpop.f32.mrb[0].mxu0
        %3893 = vmatprep.mubr.bf16.mxu0 0
        %3894 = vmatmul.mubr.bf16.gmra.mrb[0].mxu0 %v3422
        %v3895 = vpop.f32.mrb[0].mxu0
        %v3896 = vadd.f32 %v3735, %v3895
        %v3897 = vpop.f32.mrb[0].mxu0
        %v3898 = vpop.f32.mrb[0].mxu0
        %v3899 = vadd.f32 %v3738, %v3898
        %v3900 = vpop.f32.mrb[0].mxu0
        %3901 = vmatprep.mubr.bf16.mxu0 0
        %3902 = vmatmul.mubr.bf16.gmra.mrb[0].mxu0 %v3425
        %v3903 = vpop.f32.mrb[0].mxu0
        %v3904 = vadd.f32 %v3743, %v3903
        %v3905 = vpop.f32.mrb[0].mxu0
        %v3906 = vpop.f32.mrb[0].mxu0
        %v3907 = vadd.f32 %v3746, %v3906
        %v3908 = vpop.f32.mrb[0].mxu0
        %3909 = vdwg.mxu0
        %v3910 = vadd.f32 %v3784, %v2084
        %v3911 = vadd.f32 %v3787, %v2085
        %v3912 = vadd.f32 %v3792, %v2086
        %v3913 = vadd.f32 %v3795, %v2087
        %v3914 = vadd.f32 %v3800, %v2088
        %v3915 = vadd.f32 %v3803, %v2089
        %v3916 = vadd.f32 %v3808, %v2090
        %v3917 = vadd.f32 %v3811, %v2091
        %v3918 = vadd.f32 %v3816, %v2092
        %v3919 = vadd.f32 %v3819, %v2093
        %v3920 = vadd.f32 %v3824, %v2094
        %v3921 = vadd.f32 %v3827, %v2095
        %v3922 = vadd.f32 %v3832, %v2096
        %v3923 = vadd.f32 %v3835, %v2097
        %v3924 = vadd.f32 %v3840, %v2098
        %v3925 = vadd.f32 %v3843, %v2099
        %v3926 = vadd.f32 %v3848, %v2100
        %v3927 = vadd.f32 %v3851, %v2101
        %v3928 = vadd.f32 %v3856, %v2102
        %v3929 = vadd.f32 %v3859, %v2103
        %v3930 = vadd.f32 %v3864, %v2104
        %v3931 = vadd.f32 %v3867, %v2105
        %v3932 = vadd.f32 %v3872, %v2106
        %v3933 = vadd.f32 %v3875, %v2107
        %v3934 = vadd.f32 %v3880, %v2108
        %v3935 = vadd.f32 %v3883, %v2109
        %v3936 = vadd.f32 %v3888, %v2110
        %v3937 = vadd.f32 %v3891, %v2111
        %v3938 = vadd.f32 %v3896, %v2112
        %v3939 = vadd.f32 %v3899, %v2113
        %v3940 = vadd.f32 %v3904, %v2114
        %v3941 = vadd.f32 %v3907, %v2115
        %v3942 = vmax.f32 %v3910, 0.0
        %v3943 = vmax.f32 %v3911, 0.0
        %v3944 = vmax.f32 %v3912, 0.0
        %v3945 = vmax.f32 %v3913, 0.0
        %v3946 = vmax.f32 %v3914, 0.0
        %v3947 = vmax.f32 %v3915, 0.0
        %v3948 = vmax.f32 %v3916, 0.0
        %v3949 = vmax.f32 %v3917, 0.0
        %v3950 = vmax.f32 %v3918, 0.0
        %v3951 = vmax.f32 %v3919, 0.0
        %v3952 = vmax.f32 %v3920, 0.0
        %v3953 = vmax.f32 %v3921, 0.0
        %v3954 = vmax.f32 %v3922, 0.0
        %v3955 = vmax.f32 %v3923, 0.0
        %v3956 = vmax.f32 %v3924, 0.0
        %v3957 = vmax.f32 %v3925, 0.0
        %v3958 = vmax.f32 %v3926, 0.0
        %v3959 = vmax.f32 %v3927, 0.0
        %v3960 = vmax.f32 %v3928, 0.0
        %v3961 = vmax.f32 %v3929, 0.0
        %v3962 = vmax.f32 %v3930, 0.0
        %v3963 = vmax.f32 %v3931, 0.0
        %v3964 = vmax.f32 %v3932, 0.0
        %v3965 = vmax.f32 %v3933, 0.0
        %v3966 = vmax.f32 %v3934, 0.0
        %v3967 = vmax.f32 %v3935, 0.0
        %v3968 = vmax.f32 %v3936, 0.0
        %v3969 = vmax.f32 %v3937, 0.0
        %v3970 = vmax.f32 %v3938, 0.0
        %v3971 = vmax.f32 %v3939, 0.0
        %v3972 = vmax.f32 %v3940, 0.0
        %v3973 = vmax.f32 %v3941, 0.0
        %3974 = vst.msk [vmem:[%s217] sm:$0xff] %vm224, %v3942
        %3975 = vst.msk [vmem:[%s217 + $0x8] sm:$0xff] %vm224, %v3943
        %3976 = vst.msk [vmem:[%s217 + $0x10] sm:$0xff] %vm224, %v3944
        %3977 = vst.msk [vmem:[%s217 + $0x18] sm:$0xff] %vm224, %v3945
        %3978 = vst.msk [vmem:[%s217 + $0x20] sm:$0xff] %vm224, %v3946
        %3979 = vst.msk [vmem:[%s217 + $0x28] sm:$0xff] %vm224, %v3947
        %3980 = vst.msk [vmem:[%s217 + $0x30] sm:$0xff] %vm224, %v3948
        %3981 = vst.msk [vmem:[%s217 + $0x38] sm:$0xff] %vm224, %v3949
        %3982 = vst.msk [vmem:[%s217 + $0x40] sm:$0xff] %vm224, %v3950
        %3983 = vst.msk [vmem:[%s217 + $0x48] sm:$0xff] %vm224, %v3951
        %3984 = vst.msk [vmem:[%s217 + $0x50] sm:$0xff] %vm224, %v3952
        %3985 = vst.msk [vmem:[%s217 + $0x58] sm:$0xff] %vm224, %v3953
        %3986 = vst.msk [vmem:[%s217 + $0x60] sm:$0xff] %vm224, %v3954
        %3987 = vst.msk [vmem:[%s217 + $0x68] sm:$0xff] %vm224, %v3955
        %3988 = vst.msk [vmem:[%s217 + $0x70] sm:$0xff] %vm224, %v3956
        %3989 = vst.msk [vmem:[%s217 + $0x78] sm:$0xff] %vm224, %v3957
        %3990 = vst.msk [vmem:[%s217 + $0x80] sm:$0xff] %vm224, %v3958
        %3991 = vst.msk [vmem:[%s217 + $0x88] sm:$0xff] %vm224, %v3959
        %3992 = vst.msk [vmem:[%s217 + $0x90] sm:$0xff] %vm224, %v3960
        %3993 = vst.msk [vmem:[%s217 + $0x98] sm:$0xff] %vm224, %v3961
        %3994 = vst.msk [vmem:[%s217 + $0xa0] sm:$0xff] %vm224, %v3962
        %3995 = vst.msk [vmem:[%s217 + $0xa8] sm:$0xff] %vm224, %v3963
        %3996 = vst.msk [vmem:[%s217 + $0xb0] sm:$0xff] %vm224, %v3964
        %3997 = vst.msk [vmem:[%s217 + $0xb8] sm:$0xff] %vm224, %v3965
        %3998 = vst.msk [vmem:[%s217 + $0xc0] sm:$0xff] %vm224, %v3966
        %3999 = vst.msk [vmem:[%s217 + $0xc8] sm:$0xff] %vm224, %v3967
        %4000 = vst.msk [vmem:[%s217 + $0xd0] sm:$0xff] %vm224, %v3968
        %4001 = vst.msk [vmem:[%s217 + $0xd8] sm:$0xff] %vm224, %v3969
        %4002 = vst.msk [vmem:[%s217 + $0xe0] sm:$0xff] %vm224, %v3970
        %4003 = vst.msk [vmem:[%s217 + $0xe8] sm:$0xff] %vm224, %v3971
        %4004 = vst.msk [vmem:[%s217 + $0xf0] sm:$0xff] %vm224, %v3972
        %4005 = vst.msk [vmem:[%s217 + $0xf8] sm:$0xff] %vm224, %v3973
        %s4006 = sand.u32 %s137, 1
        %s4007 = scalar_lea.sflag [#allocation5], %s4006
        %s4008 = sand.u32 %s137, 1
        %s4009 = smul.addr %s4008, 256
        %s4010 = scalar_lea.vmem [#allocation4], %s4009
        // Predicated region
        $region41: #{_lambda_.2} parent=39 // pred_check
          %p4011 = pneg %p147
        $region42: #{_lambda_.2} parent=39 // pred_check_branch
          %4013 = sbr.rel (%p4011) target = $region44
        $region43: #{_lambda_.2} parent=39 // pred_region
          %s4015 = ssub.s32 4096, 4096
          %4016 = vsyncadd %s4007, %s4015
          %s4017 = smul.addr %s19, 32
          %s4018 = smul.addr %s4017, 128
          %s4019 = scalar_lea.hbm %s5, %s4018
          %s4020 = sshll.u32 %s4010, 4
          %s4021 = int_to_ptr.vmem [resolvable:$true] %s4020
          %4026 = dma.vmem_to_hbm [thread:$0]  %s4021, 4096, %s4019, %s4007, 128, 128, 8
        $region44: #{_lambda_.2} parent=39 // pred_fallthru
          _
      $region40: #{_lambda_.2} parent=5 // pred_fallthru
        _
      %p4027 = scmp.le.s32.totalorder 2, %s14
      // Predicated region
      $region45: #{_lambda_.2} parent=5 // pred_check
        %p4028 = pneg %p4027
      $region46: #{_lambda_.2} parent=5 // pred_check_branch
        %4030 = sbr.rel (%p4028) target = $region48
      $region47: #{_lambda_.2} parent=5 // pred_region
        %s4031 = ssub.s32 %s14, 2
        // Predicated region
        $region49: #{_lambda_.2} parent=47 // pred_check
          %p4032 = pneg %p153
        $region50: #{_lambda_.2} parent=47 // pred_check_branch
          %4034 = sbr.rel (%p4032) target = $region52
        $region51: #{_lambda_.2} parent=47 // pred_region
          %s4035 = sand.u32 %s138, 1
          %s4036 = scalar_lea.sflag [#allocation5], %s4035
          %s4037 = sand.u32 %s138, 1
          %s4038 = smul.addr %s4037, 256
          %s4039 = scalar_lea.vmem [#allocation4], %s4038
          %4040 = dma.done %s4036, 4096
        $region52: #{_lambda_.2} parent=47 // pred_fallthru
          _
      $region48: #{_lambda_.2} parent=5 // pred_fallthru
        _
    $region6: #{_lambda_.2} parent=1 // loop_footer
      %s18 = sadd.s32 1, %s14
    $region7: #{_lambda_.2} parent=1 // loop_footer_branch
      %13 = sbr.rel target = $region3
    $region8: #{_lambda_.2} parent=1 // loop_exit
      _
    %4041 = vsyncpa [#allocation5], 1
    %s4042 = scalar_lea.sflag [#allocation5], 1
    %4043 = vsyncpa %s4042, 1

</llo_original>
